<compile_context>
chip_gen: v7x
topology: tpu7x:2x2x1
jax: 0.10.0
libtpu: 0.0.40
codegen_flags: <defaults>
</compile_context>

<pallas_src>
import jax
import jax.numpy as jnp
from jax.experimental import pallas as pl
from jax.experimental.pallas import tpu as pltpu


def _sigmoid(v):
    # exp goes to the EUP; applied only to the small pre-expansion gate tensors
    # (rank x 128 per gate), so the exact f32 divide is negligible.
    return 1.0 / (1.0 + jnp.exp(-v))


def _const_spec(arr):
    nd = arr.ndim
    return pl.BlockSpec(arr.shape, lambda b: (0,) * nd)


def _pick_batch_block(B, HW):
    # A few images per step amortizes fixed per-step cost and widens N for the MXU.
    # Keep the lane-tiling rule (block last dim % 128 == 0 unless it spans the whole
    # array) and cap the slab so feat/z stay a small fraction of scoped VMEM.
    for bb in (4, 2, 1):
        if B % bb != 0:
            continue
        if bb * HW > 16384 and bb != 1:
            continue
        if bb == B or (bb * HW) % 128 == 0:
            return bb
    return B   # whole batch in one step (block == full array, always legal)


def reconet_head_forward(x, params, *, batch_block=None):
    B, Cin, H, W = x.shape
    HW = H * W
    eps = 1e-5
    rank = params['w1'].shape[0]
    h = params['w2'].shape[1]
    # The Tucker gates map the width-pooled vector onto the height axis (and vice
    # versa); this only matches the PyTorch module when H == W == h.
    assert H == W == h, "reconetHead decomp requires square spatial dims equal to dim // 8"
    assert h <= 128, "gate axis padding assumes h <= 128"

    inter = params['w6b'].shape[1]
    Cout = params['w6b'].shape[0]

    # ---- fold eval-mode BatchNorm into the preceding bias-free 1x1 convs ----
    scale1 = params['bn1_gamma'] / jnp.sqrt(params['bn1_var'] + eps)
    bias1 = params['bn1_beta'] - params['bn1_mean'] * scale1
    wfeat_s = params['w_feat'] * scale1[:, None]
    b1c = bias1[:, None]

    scale6 = params['bn6_gamma'] / jnp.sqrt(params['bn6_var'] + eps)
    bias6 = params['bn6_beta'] - params['bn6_mean'] * scale6
    w6a_s = params['w6a'] * scale6[:, None]
    w6a_feat = w6a_s[:, :128]           # acts on feat
    w6a_z = w6a_s[:, 128:]              # acts on relu(feat * T)   (no concat copy)
    b6c = bias6[:, None]
    b6bc = params['b6b'][:, None]

    # softmax(lam) as a (rank,1) column, folded into the channel gates in-kernel.
    lam_col = jax.nn.softmax(params['lam']).reshape(rank, 1).astype(jnp.float32)

    # Channel-gate weights, 1/HW (Cpool mean) folded in:
    #   w1t_cat[k, i*128 + c] = w1[i, c, k] / HW
    w1t_cat = (jnp.transpose(params['w1'], (2, 0, 1)).reshape(128, rank * 128)
               * (1.0 / HW))

    # Spatial gate weights, UN-expanded, gate axis zero-padded to 128 so the
    # in-kernel reshape is the proven (1, rank*128) -> (rank, 128) pattern:
    #   w2cat[w, i*128 + j] = w2[i, j, w]   (gate over height j from the width pool)
    #   w3cat[y, i*128 + k] = w3[i, k, y]   (gate over width  k from the height pool)
    w2p = jnp.pad(params['w2'], ((0, 0), (0, 128 - h), (0, 0)))
    w3p = jnp.pad(params['w3'], ((0, 0), (0, 128 - h), (0, 0)))
    w2cat = jnp.transpose(w2p, (2, 0, 1)).reshape(h, rank * 128)
    w3cat = jnp.transpose(w3p, (2, 0, 1)).reshape(h, rank * 128)

    # Fused pooling selector: one (1,HW)@(HW, W+H) matmul gives [Hpool | Wpool]
    # (mean scales folded in).  No per-pool selectors, no HW-sized gate weights.
    p_idx = jnp.arange(HW)
    a_w = (p_idx[:, None] % W == jnp.arange(W)[None, :]).astype(jnp.float32)    # (HW, W)
    a_y = (p_idx[:, None] // W == jnp.arange(H)[None, :]).astype(jnp.float32)   # (HW, H)
    poolsel = jnp.concatenate([a_w * (1.0 / (128.0 * H)),
                               a_y * (1.0 / (128.0 * W))], axis=1)              # (HW, W+H)

    # Gate -> HW expansion selectors (rank-independent, zero rows beyond h so the
    # sigmoid(0)=0.5 padding contributes nothing):
    selh = jnp.zeros((128, HW), jnp.float32).at[:H, :].set(a_y.T)   # [j, p] = (p//W == j)
    selw = jnp.zeros((128, HW), jnp.float32).at[:W, :].set(a_w.T)   # [k, p] = (p% W == k)

    bb = batch_block if batch_block is not None else _pick_batch_block(B, HW)
    assert B % bb == 0 and (bb == B or (bb * HW) % 128 == 0)

    # Channel-major layout with batch folded into the lane axis.
    x_cm = x.reshape(B, Cin, HW).transpose(1, 0, 2).reshape(Cin, B * HW)

    def kernel(x_ref, wfeat_ref, b1_ref, lam_ref, w1_ref, w2_ref, w3_ref,
               poolsel_ref, selh_ref, selw_ref,
               w6f_ref, w6z_ref, b6_ref, w6b_ref, b6b_ref,
               out_ref, z_ref):
        # feat = ReLU(BN(1x1 conv(x))) for the whole bb-image slab: (128, bb*HW)
        feat = jnp.dot(wfeat_ref[...], x_ref[...], preferred_element_type=jnp.float32)
        feat = jnp.maximum(feat + b1_ref[...], 0.0)

        lam = lam_ref[...]                                                    # (rank, 1)
        for j in range(bb):                                                   # static, short
            fj = feat[:, j * HW:(j + 1) * HW]                                 # (128, HW)

            # ---- the three AdaptiveAvgPool2d(1) pools ----
            cpool = jnp.sum(fj, axis=1, keepdims=True).reshape(1, 128)        # (1, 128) (1/HW in w1)
            colsum = jnp.sum(fj, axis=0, keepdims=True)                       # (1, HW)
            pools = jnp.dot(colsum, poolsel_ref[...],
                            preferred_element_type=jnp.float32)               # (1, W+H), means
            hpool = pools[:, :W]                                              # (1, W) idx by width
            wpool = pools[:, W:]                                              # (1, H) idx by height

            # ---- all rank gates at once, sigmoid on the SMALL un-expanded tensors ----
            sc = _sigmoid(jnp.dot(cpool, w1_ref[...],
                                  preferred_element_type=jnp.float32)
                          .reshape(rank, 128)) * lam                          # (rank, 128)
            gh = _sigmoid(jnp.dot(hpool, w2_ref[...],
                                  preferred_element_type=jnp.float32)
                          .reshape(rank, 128))                                # gates over height (padded)
            gw = _sigmoid(jnp.dot(wpool, w3_ref[...],
                                  preferred_element_type=jnp.float32)
                          .reshape(rank, 128))                                # gates over width  (padded)

            # ---- expand gates over flattened HW, then ONE MXU matmul for the rank sum ----
            row = (jnp.dot(gh, selh_ref[...], preferred_element_type=jnp.float32)
                   * jnp.dot(gw, selw_ref[...], preferred_element_type=jnp.float32))   # (rank, HW)
            t_j = jnp.dot(sc.T, row, preferred_element_type=jnp.float32)      # (128, HW)

            # relu(feat * T) for this image, written into the z scratch slab
            z_ref[:, j * HW:(j + 1) * HW] = jnp.maximum(fj * t_j, 0.0)

        # ---- conv6 over the whole slab (concat folded into split conv6a weights) ----
        z = z_ref[...]
        y1 = jnp.maximum(
            jnp.dot(w6f_ref[...], feat, preferred_element_type=jnp.float32)
            + jnp.dot(w6z_ref[...], z, preferred_element_type=jnp.float32)
            + b6_ref[...], 0.0)                                               # (inter, bb*HW)
        out_ref[...] = (jnp.dot(w6b_ref[...], y1, preferred_element_type=jnp.float32)
                        + b6b_ref[...])                                       # (Cout, bb*HW)

    # Advisory cost so XLA can overlap this small custom call with surrounding work.
    conv_flops = 2 * B * HW * (128 * Cin + 256 * inter + Cout * inter)
    gate_flops = 2 * B * (rank * 128 * 128 + 2 * h * rank * 128
                          + HW * (W + H) + 3 * rank * 128 * HW)
    flops = int(conv_flops + gate_flops)
    transcendentals = int(B * 3 * rank * 128)
    weight_elems = (wfeat_s.size + w1t_cat.size + w2cat.size + w3cat.size
                    + poolsel.size + selh.size + selw.size
                    + w6a_feat.size + w6a_z.size + params['w6b'].size
                    + 128 + inter + Cout + rank)
    bytes_accessed = int(4 * (x.size + B * Cout * HW + weight_elems))

    out_flat = pl.pallas_call(
        kernel,
        out_shape=jax.ShapeDtypeStruct((Cout, B * HW), jnp.float32),
        grid=(B // bb,),
        in_specs=[
            pl.BlockSpec((Cin, bb * HW), lambda b: (0, b)),   # x slab: bb images per step
            _const_spec(wfeat_s),
            _const_spec(b1c),
            _const_spec(lam_col),
            _const_spec(w1t_cat),
            _const_spec(w2cat),
            _const_spec(w3cat),
            _const_spec(poolsel),
            _const_spec(selh),
            _const_spec(selw),
            _const_spec(w6a_feat),
            _const_spec(w6a_z),
            _const_spec(b6c),
            _const_spec(params['w6b']),
            _const_spec(b6bc),
        ],
        out_specs=pl.BlockSpec((Cout, bb * HW), lambda b: (0, b)),
        scratch_shapes=[pltpu.VMEM((128, bb * HW), jnp.float32)],   # relu(feat*T) slab
        compiler_params=pltpu.CompilerParams(
            dimension_semantics=("parallel",),
            vmem_limit_bytes=32 * 1024 * 1024),
        cost_estimate=pl.CostEstimate(flops=flops,
                                      transcendentals=transcendentals,
                                      bytes_accessed=bytes_accessed),
    )(x_cm, wfeat_s, b1c, lam_col, w1t_cat, w2cat, w3cat,
      poolsel, selh, selw, w6a_feat, w6a_z, b6c, params['w6b'], b6bc)

    return (out_flat.reshape(Cout, B, HW).transpose(1, 0, 2)
            .reshape(B, Cout, H, W))


def init_params(key, in_channels, out_channels, dim, rank=16):
    h = dim // 8
    inter = in_channels // 4
    ks = jax.random.split(key, 12)
    p = {}
    p['w_feat'] = jax.random.normal(ks[0], (128, in_channels), jnp.float32) * (2.0 / in_channels) ** 0.5
    p['bn1_gamma'] = 1.0 + 0.1 * jax.random.normal(ks[1], (128,), jnp.float32)
    p['bn1_beta'] = 0.1 * jax.random.normal(ks[2], (128,), jnp.float32)
    p['bn1_mean'] = 0.1 * jax.random.normal(ks[3], (128,), jnp.float32)
    p['bn1_var'] = jnp.abs(1.0 + 0.1 * jax.random.normal(ks[4], (128,), jnp.float32))
    # TGMandTRM weights (kaiming_normal in the original; deterministic normal here)
    p['w1'] = jax.random.normal(ks[5], (rank, 128, 128), jnp.float32) * (2.0 / 128) ** 0.5
    p['w2'] = jax.random.normal(ks[6], (rank, h, h), jnp.float32) * (2.0 / h) ** 0.5
    p['w3'] = jax.random.normal(ks[7], (rank, h, h), jnp.float32) * (2.0 / h) ** 0.5
    p['lam'] = jnp.ones((rank,), jnp.float32)        # matches nn.Parameter(torch.ones(rank))
    # conv6
    p['w6a'] = jax.random.normal(ks[8], (inter, 256), jnp.float32) * (2.0 / 256) ** 0.5
    p['bn6_gamma'] = 1.0 + 0.1 * jax.random.normal(ks[9], (inter,), jnp.float32)
    p['bn6_beta'] = 0.1 * jax.random.normal(ks[10], (inter,), jnp.float32)
    p['bn6_mean'] = jnp.zeros((inter,), jnp.float32)
    p['bn6_var'] = jnp.ones((inter,), jnp.float32)
    p['w6b'] = jax.random.normal(ks[11], (out_channels, inter), jnp.float32) * (2.0 / inter) ** 0.5
    p['b6b'] = 0.05 * jnp.arange(out_channels, dtype=jnp.float32)
    return p


def reference_forward(x, params):
    """Pure-JAX NCHW reference mirroring the PyTorch forward (eval-mode BN)."""
    eps = 1e-5

    def bn(y, g, b, m, v):
        return (g[None, :, None, None] * (y - m[None, :, None, None])
                / jnp.sqrt(v[None, :, None, None] + eps) + b[None, :, None, None])

    def conv1x1(y, w):
        return jnp.einsum('oc,bchw->bohw', w, y)

    feat = jax.nn.relu(bn(conv1x1(x, params['w_feat']),
                          params['bn1_gamma'], params['bn1_beta'],
                          params['bn1_mean'], params['bn1_var']))
    B, C, H, W = feat.shape
    cp = feat.mean(axis=(2, 3))      # (B, 128)
    hp = feat.mean(axis=(1, 2))      # (B, W)   pool over (c, height)
    wp = feat.mean(axis=(1, 3))      # (B, H)   pool over (c, width)
    lam = jax.nn.softmax(params['lam'])
    rank = params['w1'].shape[0]
    t = jnp.zeros_like(feat)
    for i in range(rank):
        sc = jax.nn.sigmoid(cp @ params['w1'][i].T)
        sh = jax.nn.sigmoid(hp @ params['w2'][i].T)
        sw = jax.nn.sigmoid(wp @ params['w3'][i].T)
        t = t + lam[i] * sc[:, :, None, None] * sh[:, None, :, None] * sw[:, None, None, :]
    cat = jnp.concatenate([feat, jax.nn.relu(feat * t)], axis=1)
    y1 = jax.nn.relu(bn(conv1x1(cat, params['w6a']),
                        params['bn6_gamma'], params['bn6_beta'],
                        params['bn6_mean'], params['bn6_var']))
    return conv1x1(y1, params['w6b']) + params['b6b'][None, :, None, None]


if __name__ == "__main__":
    B, in_channels, out_channels, dim = 2, 64, 8, 128
    h = dim // 8                                  # 16 ; decomp requires spatial == h x h
    key = jax.random.PRNGKey(0)
    kx, kp = jax.random.split(key)
    x = jax.random.normal(kx, (B, in_channels, h, h), jnp.float32)
    params = init_params(kp, in_channels, out_channels, dim)

    out = reconet_head_forward(x, params)
    out = jax.block_until_ready(out)

    ref = reference_forward(x, params)
    assert out.shape == ref.shape == (B, out_channels, h, h)
    err = float(jnp.max(jnp.abs(out - ref)))
    if err < 1e-3:
        print("KERNEL_OK")
    else:
        print(f"MISMATCH max_abs_err={err}")
</pallas_src>

<mosaic_0001>
module attributes {stable_mosaic.version = 11 : i64} {
  func.func @kernel(%arg0: i32, %arg1: memref<64x512xf32, #tpu.memory_space<vmem>>, %arg2: memref<128x64xf32, #tpu.memory_space<vmem>>, %arg3: memref<128x1xf32, #tpu.memory_space<vmem>>, %arg4: memref<16x1xf32, #tpu.memory_space<vmem>>, %arg5: memref<128x2048xf32, #tpu.memory_space<vmem>>, %arg6: memref<16x2048xf32, #tpu.memory_space<vmem>>, %arg7: memref<16x2048xf32, #tpu.memory_space<vmem>>, %arg8: memref<256x32xf32, #tpu.memory_space<vmem>>, %arg9: memref<128x256xf32, #tpu.memory_space<vmem>>, %arg10: memref<128x256xf32, #tpu.memory_space<vmem>>, %arg11: memref<16x128xf32, #tpu.memory_space<vmem>>, %arg12: memref<16x128xf32, #tpu.memory_space<vmem>>, %arg13: memref<16x1xf32, #tpu.memory_space<vmem>>, %arg14: memref<8x16xf32, #tpu.memory_space<vmem>>, %arg15: memref<8x1xf32, #tpu.memory_space<vmem>>, %arg16: memref<8x512xf32, #tpu.memory_space<vmem>>, %arg17: memref<128x512xf32, #tpu.memory_space<vmem>>) attributes {dimension_semantics = [#tpu.dimension_semantics<parallel>], iteration_bounds = array<i64: 1>, scalar_prefetch = 0 : i64, scratch_operands = 1 : i64, tpu.core_type = #tpu.core_type<tc>, window_params = [{transform_indices = @transform_0, window_bounds = array<i64: 64, 512>}, {pipeline_mode = #tpu.pipeline_mode<synchronous>, transform_indices = @transform_1, window_bounds = array<i64: 128, 64>}, {pipeline_mode = #tpu.pipeline_mode<synchronous>, transform_indices = @transform_2, window_bounds = array<i64: 128, 1>}, {pipeline_mode = #tpu.pipeline_mode<synchronous>, transform_indices = @transform_3, window_bounds = array<i64: 16, 1>}, {pipeline_mode = #tpu.pipeline_mode<synchronous>, transform_indices = @transform_4, window_bounds = array<i64: 128, 2048>}, {pipeline_mode = #tpu.pipeline_mode<synchronous>, transform_indices = @transform_5, window_bounds = array<i64: 16, 2048>}, {pipeline_mode = #tpu.pipeline_mode<synchronous>, transform_indices = @transform_6, window_bounds = array<i64: 16, 2048>}, {pipeline_mode = #tpu.pipeline_mode<synchronous>, transform_indices = @transform_7, window_bounds = array<i64: 256, 32>}, {pipeline_mode = #tpu.pipeline_mode<synchronous>, transform_indices = @transform_8, window_bounds = array<i64: 128, 256>}, {pipeline_mode = #tpu.pipeline_mode<synchronous>, transform_indices = @transform_9, window_bounds = array<i64: 128, 256>}, {pipeline_mode = #tpu.pipeline_mode<synchronous>, transform_indices = @transform_10, window_bounds = array<i64: 16, 128>}, {pipeline_mode = #tpu.pipeline_mode<synchronous>, transform_indices = @transform_11, window_bounds = array<i64: 16, 128>}, {pipeline_mode = #tpu.pipeline_mode<synchronous>, transform_indices = @transform_12, window_bounds = array<i64: 16, 1>}, {pipeline_mode = #tpu.pipeline_mode<synchronous>, transform_indices = @transform_13, window_bounds = array<i64: 8, 16>}, {pipeline_mode = #tpu.pipeline_mode<synchronous>, transform_indices = @transform_14, window_bounds = array<i64: 8, 1>}, {transform_indices = @transform_15, window_bounds = array<i64: 8, 512>}]} {
    %c0 = arith.constant 0 : index
    %c0_0 = arith.constant 0 : index
    %0 = vector.load %arg2[%c0, %c0_0] : memref<128x64xf32, #tpu.memory_space<vmem>>, vector<128x64xf32>
    %c0_1 = arith.constant 0 : index
    %c0_2 = arith.constant 0 : index
    %1 = vector.load %arg1[%c0_1, %c0_2] : memref<64x512xf32, #tpu.memory_space<vmem>>, vector<64x512xf32>
    %cst = arith.constant dense<0.000000e+00> : vector<128x512xf32>
    %2 = tpu.matmul %0, %1, %cst {dimension_numbers = #tpu.dot_dimension_numbers<[1], [0], [0], [1], [0, 0, 1, 1], [], []>} : vector<128x64xf32>, vector<64x512xf32>, vector<128x512xf32> -> vector<128x512xf32>
    %c0_3 = arith.constant 0 : index
    %c0_4 = arith.constant 0 : index
    %3 = vector.load %arg3[%c0_3, %c0_4] : memref<128x1xf32, #tpu.memory_space<vmem>>, vector<128x1xf32>
    %4 = vector.broadcast %3 : vector<128x1xf32> to vector<128x512xf32>
    %5 = arith.addf %2, %4 : vector<128x512xf32>
    %cst_5 = arith.constant 0.000000e+00 : f32
    %6 = vector.broadcast %cst_5 : f32 to vector<128x512xf32>
    %7 = arith.maximumf %5, %6 : vector<128x512xf32>
    %c0_6 = arith.constant 0 : index
    %c0_7 = arith.constant 0 : index
    %8 = vector.load %arg4[%c0_6, %c0_7] : memref<16x1xf32, #tpu.memory_space<vmem>>, vector<16x1xf32>
    %9 = vector.extract_strided_slice %7 {offsets = [0, 0], sizes = [128, 256], strides = [1, 1]} : vector<128x512xf32> to vector<128x256xf32>
    %cst_8 = arith.constant dense<0.000000e+00> : vector<128xf32>
    %10 = vector.multi_reduction <add>, %9, %cst_8 [1] : vector<128x256xf32> to vector<128xf32>
    %11 = vector.shape_cast %10 : vector<128xf32> to vector<128x1xf32>
    %12 = vector.shape_cast %11 : vector<128x1xf32> to vector<1x128xf32>
    %cst_9 = arith.constant dense<0.000000e+00> : vector<256xf32>
    %13 = vector.multi_reduction <add>, %9, %cst_9 [0] : vector<128x256xf32> to vector<256xf32>
    %14 = vector.shape_cast %13 : vector<256xf32> to vector<1x256xf32>
    %c0_10 = arith.constant 0 : index
    %c0_11 = arith.constant 0 : index
    %15 = vector.load %arg8[%c0_10, %c0_11] : memref<256x32xf32, #tpu.memory_space<vmem>>, vector<256x32xf32>
    %cst_12 = arith.constant dense<0.000000e+00> : vector<1x32xf32>
    %16 = tpu.matmul %14, %15, %cst_12 {dimension_numbers = #tpu.dot_dimension_numbers<[1], [0], [0], [1], [0, 0, 1, 1], [], []>} : vector<1x256xf32>, vector<256x32xf32>, vector<1x32xf32> -> vector<1x32xf32>
    %17 = vector.extract_strided_slice %16 {offsets = [0, 0], sizes = [1, 16], strides = [1, 1]} : vector<1x32xf32> to vector<1x16xf32>
    %18 = vector.extract_strided_slice %16 {offsets = [0, 16], sizes = [1, 16], strides = [1, 1]} : vector<1x32xf32> to vector<1x16xf32>
    %c0_13 = arith.constant 0 : index
    %c0_14 = arith.constant 0 : index
    %19 = vector.load %arg5[%c0_13, %c0_14] : memref<128x2048xf32, #tpu.memory_space<vmem>>, vector<128x2048xf32>
    %cst_15 = arith.constant dense<0.000000e+00> : vector<1x2048xf32>
    %20 = tpu.matmul %12, %19, %cst_15 {dimension_numbers = #tpu.dot_dimension_numbers<[1], [0], [0], [1], [0, 0, 1, 1], [], []>} : vector<1x128xf32>, vector<128x2048xf32>, vector<1x2048xf32> -> vector<1x2048xf32>
    %21 = vector.shape_cast %20 : vector<1x2048xf32> to vector<16x128xf32>
    %cst_16 = arith.constant 0.000000e+00 : f32
    %22 = vector.broadcast %cst_16 : f32 to vector<16x128xf32>
    %23 = arith.subf %22, %21 : vector<16x128xf32>
    %24 = math.exp %23 : vector<16x128xf32>
    %cst_17 = arith.constant 1.000000e+00 : f32
    %25 = vector.broadcast %cst_17 : f32 to vector<16x128xf32>
    %26 = arith.addf %25, %24 : vector<16x128xf32>
    %cst_18 = arith.constant 1.000000e+00 : f32
    %27 = vector.broadcast %cst_18 : f32 to vector<16x128xf32>
    %28 = arith.divf %27, %26 : vector<16x128xf32>
    %29 = vector.broadcast %8 : vector<16x1xf32> to vector<16x128xf32>
    %30 = arith.mulf %28, %29 : vector<16x128xf32>
    %c0_19 = arith.constant 0 : index
    %c0_20 = arith.constant 0 : index
    %31 = vector.load %arg6[%c0_19, %c0_20] : memref<16x2048xf32, #tpu.memory_space<vmem>>, vector<16x2048xf32>
    %cst_21 = arith.constant dense<0.000000e+00> : vector<1x2048xf32>
    %32 = tpu.matmul %17, %31, %cst_21 {dimension_numbers = #tpu.dot_dimension_numbers<[1], [0], [0], [1], [0, 0, 1, 1], [], []>} : vector<1x16xf32>, vector<16x2048xf32>, vector<1x2048xf32> -> vector<1x2048xf32>
    %33 = vector.shape_cast %32 : vector<1x2048xf32> to vector<16x128xf32>
    %cst_22 = arith.constant 0.000000e+00 : f32
    %34 = vector.broadcast %cst_22 : f32 to vector<16x128xf32>
    %35 = arith.subf %34, %33 : vector<16x128xf32>
    %36 = math.exp %35 : vector<16x128xf32>
    %cst_23 = arith.constant 1.000000e+00 : f32
    %37 = vector.broadcast %cst_23 : f32 to vector<16x128xf32>
    %38 = arith.addf %37, %36 : vector<16x128xf32>
    %cst_24 = arith.constant 1.000000e+00 : f32
    %39 = vector.broadcast %cst_24 : f32 to vector<16x128xf32>
    %40 = arith.divf %39, %38 : vector<16x128xf32>
    %c0_25 = arith.constant 0 : index
    %c0_26 = arith.constant 0 : index
    %41 = vector.load %arg7[%c0_25, %c0_26] : memref<16x2048xf32, #tpu.memory_space<vmem>>, vector<16x2048xf32>
    %cst_27 = arith.constant dense<0.000000e+00> : vector<1x2048xf32>
    %42 = tpu.matmul %18, %41, %cst_27 {dimension_numbers = #tpu.dot_dimension_numbers<[1], [0], [0], [1], [0, 0, 1, 1], [], []>} : vector<1x16xf32>, vector<16x2048xf32>, vector<1x2048xf32> -> vector<1x2048xf32>
    %43 = vector.shape_cast %42 : vector<1x2048xf32> to vector<16x128xf32>
    %cst_28 = arith.constant 0.000000e+00 : f32
    %44 = vector.broadcast %cst_28 : f32 to vector<16x128xf32>
    %45 = arith.subf %44, %43 : vector<16x128xf32>
    %46 = math.exp %45 : vector<16x128xf32>
    %cst_29 = arith.constant 1.000000e+00 : f32
    %47 = vector.broadcast %cst_29 : f32 to vector<16x128xf32>
    %48 = arith.addf %47, %46 : vector<16x128xf32>
    %cst_30 = arith.constant 1.000000e+00 : f32
    %49 = vector.broadcast %cst_30 : f32 to vector<16x128xf32>
    %50 = arith.divf %49, %48 : vector<16x128xf32>
    %c0_31 = arith.constant 0 : index
    %c0_32 = arith.constant 0 : index
    %51 = vector.load %arg9[%c0_31, %c0_32] : memref<128x256xf32, #tpu.memory_space<vmem>>, vector<128x256xf32>
    %cst_33 = arith.constant dense<0.000000e+00> : vector<16x256xf32>
    %52 = tpu.matmul %40, %51, %cst_33 {dimension_numbers = #tpu.dot_dimension_numbers<[1], [0], [0], [1], [0, 0, 1, 1], [], []>} : vector<16x128xf32>, vector<128x256xf32>, vector<16x256xf32> -> vector<16x256xf32>
    %c0_34 = arith.constant 0 : index
    %c0_35 = arith.constant 0 : index
    %53 = vector.load %arg10[%c0_34, %c0_35] : memref<128x256xf32, #tpu.memory_space<vmem>>, vector<128x256xf32>
    %cst_36 = arith.constant dense<0.000000e+00> : vector<16x256xf32>
    %54 = tpu.matmul %50, %53, %cst_36 {dimension_numbers = #tpu.dot_dimension_numbers<[1], [0], [0], [1], [0, 0, 1, 1], [], []>} : vector<16x128xf32>, vector<128x256xf32>, vector<16x256xf32> -> vector<16x256xf32>
    %55 = arith.mulf %52, %54 : vector<16x256xf32>
    %56 = tpu.transpose %30, [1, 0] : vector<16x128xf32> -> vector<128x16xf32>
    %cst_37 = arith.constant dense<0.000000e+00> : vector<128x256xf32>
    %57 = tpu.matmul %56, %55, %cst_37 {dimension_numbers = #tpu.dot_dimension_numbers<[1], [0], [0], [1], [0, 0, 1, 1], [], []>} : vector<128x16xf32>, vector<16x256xf32>, vector<128x256xf32> -> vector<128x256xf32>
    %58 = arith.mulf %9, %57 : vector<128x256xf32>
    %cst_38 = arith.constant 0.000000e+00 : f32
    %59 = vector.broadcast %cst_38 : f32 to vector<128x256xf32>
    %60 = arith.maximumf %58, %59 : vector<128x256xf32>
    %c0_39 = arith.constant 0 : index
    %c0_40 = arith.constant 0 : index
    %61 = vector.load %arg17[%c0_39, %c0_40] : memref<128x512xf32, #tpu.memory_space<vmem>>, vector<128x256xf32>
    tpu.vector_store %arg17[%c0_39, %c0_40], %60 {strides = array<i32>} : memref<128x512xf32, #tpu.memory_space<vmem>>, vector<128x256xf32>,
    %62 = vector.extract_strided_slice %7 {offsets = [0, 256], sizes = [128, 256], strides = [1, 1]} : vector<128x512xf32> to vector<128x256xf32>
    %cst_41 = arith.constant dense<0.000000e+00> : vector<128xf32>
    %63 = vector.multi_reduction <add>, %62, %cst_41 [1] : vector<128x256xf32> to vector<128xf32>
    %64 = vector.shape_cast %63 : vector<128xf32> to vector<128x1xf32>
    %65 = vector.shape_cast %64 : vector<128x1xf32> to vector<1x128xf32>
    %cst_42 = arith.constant dense<0.000000e+00> : vector<256xf32>
    %66 = vector.multi_reduction <add>, %62, %cst_42 [0] : vector<128x256xf32> to vector<256xf32>
    %67 = vector.shape_cast %66 : vector<256xf32> to vector<1x256xf32>
    %c0_43 = arith.constant 0 : index
    %c0_44 = arith.constant 0 : index
    %68 = vector.load %arg8[%c0_43, %c0_44] : memref<256x32xf32, #tpu.memory_space<vmem>>, vector<256x32xf32>
    %cst_45 = arith.constant dense<0.000000e+00> : vector<1x32xf32>
    %69 = tpu.matmul %67, %68, %cst_45 {dimension_numbers = #tpu.dot_dimension_numbers<[1], [0], [0], [1], [0, 0, 1, 1], [], []>} : vector<1x256xf32>, vector<256x32xf32>, vector<1x32xf32> -> vector<1x32xf32>
    %70 = vector.extract_strided_slice %69 {offsets = [0, 0], sizes = [1, 16], strides = [1, 1]} : vector<1x32xf32> to vector<1x16xf32>
    %71 = vector.extract_strided_slice %69 {offsets = [0, 16], sizes = [1, 16], strides = [1, 1]} : vector<1x32xf32> to vector<1x16xf32>
    %c0_46 = arith.constant 0 : index
    %c0_47 = arith.constant 0 : index
    %72 = vector.load %arg5[%c0_46, %c0_47] : memref<128x2048xf32, #tpu.memory_space<vmem>>, vector<128x2048xf32>
    %cst_48 = arith.constant dense<0.000000e+00> : vector<1x2048xf32>
    %73 = tpu.matmul %65, %72, %cst_48 {dimension_numbers = #tpu.dot_dimension_numbers<[1], [0], [0], [1], [0, 0, 1, 1], [], []>} : vector<1x128xf32>, vector<128x2048xf32>, vector<1x2048xf32> -> vector<1x2048xf32>
    %74 = vector.shape_cast %73 : vector<1x2048xf32> to vector<16x128xf32>
    %cst_49 = arith.constant 0.000000e+00 : f32
    %75 = vector.broadcast %cst_49 : f32 to vector<16x128xf32>
    %76 = arith.subf %75, %74 : vector<16x128xf32>
    %77 = math.exp %76 : vector<16x128xf32>
    %cst_50 = arith.constant 1.000000e+00 : f32
    %78 = vector.broadcast %cst_50 : f32 to vector<16x128xf32>
    %79 = arith.addf %78, %77 : vector<16x128xf32>
    %cst_51 = arith.constant 1.000000e+00 : f32
    %80 = vector.broadcast %cst_51 : f32 to vector<16x128xf32>
    %81 = arith.divf %80, %79 : vector<16x128xf32>
    %82 = vector.broadcast %8 : vector<16x1xf32> to vector<16x128xf32>
    %83 = arith.mulf %81, %82 : vector<16x128xf32>
    %c0_52 = arith.constant 0 : index
    %c0_53 = arith.constant 0 : index
    %84 = vector.load %arg6[%c0_52, %c0_53] : memref<16x2048xf32, #tpu.memory_space<vmem>>, vector<16x2048xf32>
    %cst_54 = arith.constant dense<0.000000e+00> : vector<1x2048xf32>
    %85 = tpu.matmul %70, %84, %cst_54 {dimension_numbers = #tpu.dot_dimension_numbers<[1], [0], [0], [1], [0, 0, 1, 1], [], []>} : vector<1x16xf32>, vector<16x2048xf32>, vector<1x2048xf32> -> vector<1x2048xf32>
    %86 = vector.shape_cast %85 : vector<1x2048xf32> to vector<16x128xf32>
    %cst_55 = arith.constant 0.000000e+00 : f32
    %87 = vector.broadcast %cst_55 : f32 to vector<16x128xf32>
    %88 = arith.subf %87, %86 : vector<16x128xf32>
    %89 = math.exp %88 : vector<16x128xf32>
    %cst_56 = arith.constant 1.000000e+00 : f32
    %90 = vector.broadcast %cst_56 : f32 to vector<16x128xf32>
    %91 = arith.addf %90, %89 : vector<16x128xf32>
    %cst_57 = arith.constant 1.000000e+00 : f32
    %92 = vector.broadcast %cst_57 : f32 to vector<16x128xf32>
    %93 = arith.divf %92, %91 : vector<16x128xf32>
    %c0_58 = arith.constant 0 : index
    %c0_59 = arith.constant 0 : index
    %94 = vector.load %arg7[%c0_58, %c0_59] : memref<16x2048xf32, #tpu.memory_space<vmem>>, vector<16x2048xf32>
    %cst_60 = arith.constant dense<0.000000e+00> : vector<1x2048xf32>
    %95 = tpu.matmul %71, %94, %cst_60 {dimension_numbers = #tpu.dot_dimension_numbers<[1], [0], [0], [1], [0, 0, 1, 1], [], []>} : vector<1x16xf32>, vector<16x2048xf32>, vector<1x2048xf32> -> vector<1x2048xf32>
    %96 = vector.shape_cast %95 : vector<1x2048xf32> to vector<16x128xf32>
    %cst_61 = arith.constant 0.000000e+00 : f32
    %97 = vector.broadcast %cst_61 : f32 to vector<16x128xf32>
    %98 = arith.subf %97, %96 : vector<16x128xf32>
    %99 = math.exp %98 : vector<16x128xf32>
    %cst_62 = arith.constant 1.000000e+00 : f32
    %100 = vector.broadcast %cst_62 : f32 to vector<16x128xf32>
    %101 = arith.addf %100, %99 : vector<16x128xf32>
    %cst_63 = arith.constant 1.000000e+00 : f32
    %102 = vector.broadcast %cst_63 : f32 to vector<16x128xf32>
    %103 = arith.divf %102, %101 : vector<16x128xf32>
    %c0_64 = arith.constant 0 : index
    %c0_65 = arith.constant 0 : index
    %104 = vector.load %arg9[%c0_64, %c0_65] : memref<128x256xf32, #tpu.memory_space<vmem>>, vector<128x256xf32>
    %cst_66 = arith.constant dense<0.000000e+00> : vector<16x256xf32>
    %105 = tpu.matmul %93, %104, %cst_66 {dimension_numbers = #tpu.dot_dimension_numbers<[1], [0], [0], [1], [0, 0, 1, 1], [], []>} : vector<16x128xf32>, vector<128x256xf32>, vector<16x256xf32> -> vector<16x256xf32>
    %c0_67 = arith.constant 0 : index
    %c0_68 = arith.constant 0 : index
    %106 = vector.load %arg10[%c0_67, %c0_68] : memref<128x256xf32, #tpu.memory_space<vmem>>, vector<128x256xf32>
    %cst_69 = arith.constant dense<0.000000e+00> : vector<16x256xf32>
    %107 = tpu.matmul %103, %106, %cst_69 {dimension_numbers = #tpu.dot_dimension_numbers<[1], [0], [0], [1], [0, 0, 1, 1], [], []>} : vector<16x128xf32>, vector<128x256xf32>, vector<16x256xf32> -> vector<16x256xf32>
    %108 = arith.mulf %105, %107 : vector<16x256xf32>
    %109 = tpu.transpose %83, [1, 0] : vector<16x128xf32> -> vector<128x16xf32>
    %cst_70 = arith.constant dense<0.000000e+00> : vector<128x256xf32>
    %110 = tpu.matmul %109, %108, %cst_70 {dimension_numbers = #tpu.dot_dimension_numbers<[1], [0], [0], [1], [0, 0, 1, 1], [], []>} : vector<128x16xf32>, vector<16x256xf32>, vector<128x256xf32> -> vector<128x256xf32>
    %111 = arith.mulf %62, %110 : vector<128x256xf32>
    %cst_71 = arith.constant 0.000000e+00 : f32
    %112 = vector.broadcast %cst_71 : f32 to vector<128x256xf32>
    %113 = arith.maximumf %111, %112 : vector<128x256xf32>
    %c0_72 = arith.constant 0 : index
    %c256 = arith.constant 256 : index
    %114 = vector.load %arg17[%c0_72, %c256] : memref<128x512xf32, #tpu.memory_space<vmem>>, vector<128x256xf32>
    tpu.vector_store %arg17[%c0_72, %c256], %113 {strides = array<i32>} : memref<128x512xf32, #tpu.memory_space<vmem>>, vector<128x256xf32>,
    %c0_73 = arith.constant 0 : index
    %c0_74 = arith.constant 0 : index
    %115 = vector.load %arg17[%c0_73, %c0_74] : memref<128x512xf32, #tpu.memory_space<vmem>>, vector<128x512xf32>
    %c0_75 = arith.constant 0 : index
    %c0_76 = arith.constant 0 : index
    %116 = vector.load %arg11[%c0_75, %c0_76] : memref<16x128xf32, #tpu.memory_space<vmem>>, vector<16x128xf32>
    %cst_77 = arith.constant dense<0.000000e+00> : vector<16x512xf32>
    %117 = tpu.matmul %116, %7, %cst_77 {dimension_numbers = #tpu.dot_dimension_numbers<[1], [0], [0], [1], [0, 0, 1, 1], [], []>} : vector<16x128xf32>, vector<128x512xf32>, vector<16x512xf32> -> vector<16x512xf32>
    %c0_78 = arith.constant 0 : index
    %c0_79 = arith.constant 0 : index
    %118 = vector.load %arg12[%c0_78, %c0_79] : memref<16x128xf32, #tpu.memory_space<vmem>>, vector<16x128xf32>
    %cst_80 = arith.constant dense<0.000000e+00> : vector<16x512xf32>
    %119 = tpu.matmul %118, %115, %cst_80 {dimension_numbers = #tpu.dot_dimension_numbers<[1], [0], [0], [1], [0, 0, 1, 1], [], []>} : vector<16x128xf32>, vector<128x512xf32>, vector<16x512xf32> -> vector<16x512xf32>
    %120 = arith.addf %117, %119 : vector<16x512xf32>
    %c0_81 = arith.constant 0 : index
    %c0_82 = arith.constant 0 : index
    %121 = vector.load %arg13[%c0_81, %c0_82] : memref<16x1xf32, #tpu.memory_space<vmem>>, vector<16x1xf32>
    %122 = vector.broadcast %121 : vector<16x1xf32> to vector<16x512xf32>
    %123 = arith.addf %120, %122 : vector<16x512xf32>
    %cst_83 = arith.constant 0.000000e+00 : f32
    %124 = vector.broadcast %cst_83 : f32 to vector<16x512xf32>
    %125 = arith.maximumf %123, %124 : vector<16x512xf32>
    %c0_84 = arith.constant 0 : index
    %c0_85 = arith.constant 0 : index
    %126 = vector.load %arg14[%c0_84, %c0_85] : memref<8x16xf32, #tpu.memory_space<vmem>>, vector<8x16xf32>
    %cst_86 = arith.constant dense<0.000000e+00> : vector<8x512xf32>
    %127 = tpu.matmul %126, %125, %cst_86 {dimension_numbers = #tpu.dot_dimension_numbers<[1], [0], [0], [1], [0, 0, 1, 1], [], []>} : vector<8x16xf32>, vector<16x512xf32>, vector<8x512xf32> -> vector<8x512xf32>
    %c0_87 = arith.constant 0 : index
    %c0_88 = arith.constant 0 : index
    %128 = vector.load %arg15[%c0_87, %c0_88] : memref<8x1xf32, #tpu.memory_space<vmem>>, vector<8x1xf32>
    %129 = vector.broadcast %128 : vector<8x1xf32> to vector<8x512xf32>
    %130 = arith.addf %127, %129 : vector<8x512xf32>
    %c0_89 = arith.constant 0 : index
    %c0_90 = arith.constant 0 : index
    %131 = vector.load %arg16[%c0_89, %c0_90] : memref<8x512xf32, #tpu.memory_space<vmem>>, vector<8x512xf32>
    tpu.vector_store %arg16[%c0_89, %c0_90], %130 {strides = array<i32>} : memref<8x512xf32, #tpu.memory_space<vmem>>, vector<8x512xf32>,
    return
  }
  func.func @transform_0(%arg0: i32) -> (i32, i32) {
    %c0_i32 = arith.constant 0 : i32
    %c0_i32_0 = arith.constant 0 : i32
    return %c0_i32, %arg0 : i32, i32
  }
  func.func @transform_1(%arg0: i32) -> (i32, i32) {
    %c0_i32 = arith.constant 0 : i32
    %c0_i32_0 = arith.constant 0 : i32
    %c0_i32_1 = arith.constant 0 : i32
    return %c0_i32, %c0_i32_0 : i32, i32
  }
  func.func @transform_2(%arg0: i32) -> (i32, i32) {
    %c0_i32 = arith.constant 0 : i32
    %c0_i32_0 = arith.constant 0 : i32
    %c0_i32_1 = arith.constant 0 : i32
    return %c0_i32, %c0_i32_0 : i32, i32
  }
  func.func @transform_3(%arg0: i32) -> (i32, i32) {
    %c0_i32 = arith.constant 0 : i32
    %c0_i32_0 = arith.constant 0 : i32
    %c0_i32_1 = arith.constant 0 : i32
    return %c0_i32, %c0_i32_0 : i32, i32
  }
  func.func @transform_4(%arg0: i32) -> (i32, i32) {
    %c0_i32 = arith.constant 0 : i32
    %c0_i32_0 = arith.constant 0 : i32
    %c0_i32_1 = arith.constant 0 : i32
    return %c0_i32, %c0_i32_0 : i32, i32
  }
  func.func @transform_5(%arg0: i32) -> (i32, i32) {
    %c0_i32 = arith.constant 0 : i32
    %c0_i32_0 = arith.constant 0 : i32
    %c0_i32_1 = arith.constant 0 : i32
    return %c0_i32, %c0_i32_0 : i32, i32
  }
  func.func @transform_6(%arg0: i32) -> (i32, i32) {
    %c0_i32 = arith.constant 0 : i32
    %c0_i32_0 = arith.constant 0 : i32
    %c0_i32_1 = arith.constant 0 : i32
    return %c0_i32, %c0_i32_0 : i32, i32
  }
  func.func @transform_7(%arg0: i32) -> (i32, i32) {
    %c0_i32 = arith.constant 0 : i32
    %c0_i32_0 = arith.constant 0 : i32
    %c0_i32_1 = arith.constant 0 : i32
    return %c0_i32, %c0_i32_0 : i32, i32
  }
  func.func @transform_8(%arg0: i32) -> (i32, i32) {
    %c0_i32 = arith.constant 0 : i32
    %c0_i32_0 = arith.constant 0 : i32
    %c0_i32_1 = arith.constant 0 : i32
    return %c0_i32, %c0_i32_0 : i32, i32
  }
  func.func @transform_9(%arg0: i32) -> (i32, i32) {
    %c0_i32 = arith.constant 0 : i32
    %c0_i32_0 = arith.constant 0 : i32
    %c0_i32_1 = arith.constant 0 : i32
    return %c0_i32, %c0_i32_0 : i32, i32
  }
  func.func @transform_10(%arg0: i32) -> (i32, i32) {
    %c0_i32 = arith.constant 0 : i32
    %c0_i32_0 = arith.constant 0 : i32
    %c0_i32_1 = arith.constant 0 : i32
    return %c0_i32, %c0_i32_0 : i32, i32
  }
  func.func @transform_11(%arg0: i32) -> (i32, i32) {
    %c0_i32 = arith.constant 0 : i32
    %c0_i32_0 = arith.constant 0 : i32
    %c0_i32_1 = arith.constant 0 : i32
    return %c0_i32, %c0_i32_0 : i32, i32
  }
  func.func @transform_12(%arg0: i32) -> (i32, i32) {
    %c0_i32 = arith.constant 0 : i32
    %c0_i32_0 = arith.constant 0 : i32
    %c0_i32_1 = arith.constant 0 : i32
    return %c0_i32, %c0_i32_0 : i32, i32
  }
  func.func @transform_13(%arg0: i32) -> (i32, i32) {
    %c0_i32 = arith.constant 0 : i32
    %c0_i32_0 = arith.constant 0 : i32
    %c0_i32_1 = arith.constant 0 : i32
    return %c0_i32, %c0_i32_0 : i32, i32
  }
  func.func @transform_14(%arg0: i32) -> (i32, i32) {
    %c0_i32 = arith.constant 0 : i32
    %c0_i32_0 = arith.constant 0 : i32
    %c0_i32_1 = arith.constant 0 : i32
    return %c0_i32, %c0_i32_0 : i32, i32
  }
  func.func @transform_15(%arg0: i32) -> (i32, i32) {
    %c0_i32 = arith.constant 0 : i32
    %c0_i32_0 = arith.constant 0 : i32
    return %c0_i32, %arg0 : i32, i32
  }
}

</mosaic_0001>

<llo_original>
// kernel: tpu_custom_call.1
$region0: #{tpu_custom_call.1}
  #allocation0 [shape = 'u32[]', space=smem, size = 0x4, offset = 0x4, fixed_abs, tag = 'smem constant byte address 0x4 - core index']
  #allocation1 [shape = 'u32[144,128]{1,0:T(1,128)}', space=vmem, size = 0x12000, scoped, tag = 'internal scratch']
  #allocation2 [shape = 'f32[128,512]{1,0:T(8,128)}', space=vmem, size = 0x40000, scoped, tag = 'scratch operand']
  %s0 = inlined_call_operand.vmem [shape: f32[64,512], index: 0, kind: input, shape index: {}]
  %s1 = inlined_call_operand.vmem [shape: f32[128,64], index: 1, kind: input, shape index: {}]
  %s2 = inlined_call_operand.vmem [shape: f32[128,1], index: 2, kind: input, shape index: {}]
  %s3 = inlined_call_operand.vmem [shape: f32[16,1], index: 3, kind: input, shape index: {}]
  %s4 = inlined_call_operand.hbm [shape: f32[128,2048], index: 4, kind: input, shape index: {}]
  %s5 = inlined_call_operand.vmem [shape: f32[16,2048], index: 5, kind: input, shape index: {}]
  %s6 = inlined_call_operand.hbm [shape: f32[16,2048], index: 6, kind: input, shape index: {}]
  %s7 = inlined_call_operand.vmem [shape: f32[256,32], index: 7, kind: input, shape index: {}]
  %s8 = inlined_call_operand.hbm [shape: f32[128,256], index: 8, kind: input, shape index: {}]
  %s9 = inlined_call_operand.hbm [shape: f32[128,256], index: 9, kind: input, shape index: {}]
  %s10 = inlined_call_operand.vmem [shape: f32[16,128], index: 10, kind: input, shape index: {}]
  %s11 = inlined_call_operand.vmem [shape: f32[16,128], index: 11, kind: input, shape index: {}]
  %s12 = inlined_call_operand.vmem [shape: f32[16,1], index: 12, kind: input, shape index: {}]
  %s13 = inlined_call_operand.vmem [shape: f32[8,16], index: 13, kind: input, shape index: {}]
  %s14 = inlined_call_operand.vmem [shape: f32[8,1], index: 14, kind: input, shape index: {}]
  %s15 = inlined_call_operand.hbm [shape: f32[8,512], index: 15, kind: output, shape index: {}]
  %s16 = sld [smem:[#allocation0]]
  $region86: #{tpu_custom_call.1} parent=0
    _
  %s18 = ssub.s32 1, %s16
  %s19 = scalar_select 0, %s18, %s16
  $region1: #{tpu_custom_call.1} parent=0
    #allocation3 [shape = 'u8[1048576]{0}', space=vmem, size = 0x100000, scoped, tag = 'input window, operand 4, single buffered']
    #allocation4 [shape = 's32[1]{0}', space=sflag, size = 0x4, scoped, tag = 'scoped memory for tpu_custom_call.1']
    #allocation5 [shape = 's32[1]{0}', space=sflag, size = 0x4, scoped, tag = 'scoped memory for tpu_custom_call.1']
    #allocation6 [shape = 'u8[131072]{0}', space=vmem, size = 0x20000, scoped, tag = 'input window, operand 6, single buffered']
    #allocation7 [shape = 's32[1]{0}', space=sflag, size = 0x4, scoped, tag = 'scoped memory for tpu_custom_call.1']
    #allocation8 [shape = 'u8[131072]{0}', space=vmem, size = 0x20000, scoped, tag = 'input window, operand 8, single buffered']
    #allocation9 [shape = 'u8[131072]{0}', space=vmem, size = 0x20000, scoped, tag = 'input window, operand 9, single buffered']
    #allocation10 [shape = 's32[1]{0}', space=sflag, size = 0x4, scoped, tag = 'scoped memory for tpu_custom_call.1']
    #allocation11 [shape = 'u8[16384]{0}', space=vmem, size = 0x4000, scoped, tag = 'output window, operand 0, single buffered']
    %20 = vsyncpa [#allocation4], 0
    %21 = vsyncpa [#allocation7], 0
    %22 = vsyncpa [#allocation10], 0
    %23 = vsyncpa [#allocation5], 0
    // Predicated region
    $region2: #{tpu_custom_call.1} parent=1 // pred_check
      _
    $region3: #{tpu_custom_call.1} parent=1 // pred_check_branch
      %25 = sbr.rel (0) target = $region5
    $region4: #{tpu_custom_call.1} parent=1 // pred_region
      _
    $region5: #{tpu_custom_call.1} parent=1 // pred_fallthru
      _
    // Predicated region
    $region6: #{tpu_custom_call.1} parent=1 // pred_check
      _
    $region7: #{tpu_custom_call.1} parent=1 // pred_check_branch
      %27 = sbr.rel (0) target = $region9
    $region8: #{tpu_custom_call.1} parent=1 // pred_region
      _
    $region9: #{tpu_custom_call.1} parent=1 // pred_fallthru
      _
    // Predicated region
    $region10: #{tpu_custom_call.1} parent=1 // pred_check
      _
    $region11: #{tpu_custom_call.1} parent=1 // pred_check_branch
      %29 = sbr.rel (0) target = $region13
    $region12: #{tpu_custom_call.1} parent=1 // pred_region
      _
    $region13: #{tpu_custom_call.1} parent=1 // pred_fallthru
      _
    // Predicated region
    $region14: #{tpu_custom_call.1} parent=1 // pred_check
      _
    $region15: #{tpu_custom_call.1} parent=1 // pred_check_branch
      %31 = sbr.rel (0) target = $region17
    $region16: #{tpu_custom_call.1} parent=1 // pred_region
      _
    $region17: #{tpu_custom_call.1} parent=1 // pred_fallthru
      _
    // Predicated region
    $region18: #{tpu_custom_call.1} parent=1 // pred_check
      _
    $region19: #{tpu_custom_call.1} parent=1 // pred_check_branch
      %33 = sbr.rel (0) target = $region21
    $region20: #{tpu_custom_call.1} parent=1 // pred_region
      %s35 = ssub.s32 32768, 32768
      %36 = vsyncadd [#allocation4], %s35
      %s37 = sshll.u32 [#allocation3], 4
      %s38 = int_to_ptr.vmem [resolvable:$true] %s37
      %43 = dma.hbm_to_vmem [thread:$0]  %s4, 32768, %s38, [#allocation4], 2048, 2048, 128
    $region21: #{tpu_custom_call.1} parent=1 // pred_fallthru
      _
    // Predicated region
    $region22: #{tpu_custom_call.1} parent=1 // pred_check
      _
    $region23: #{tpu_custom_call.1} parent=1 // pred_check_branch
      %45 = sbr.rel (0) target = $region25
    $region24: #{tpu_custom_call.1} parent=1 // pred_region
      _
    $region25: #{tpu_custom_call.1} parent=1 // pred_fallthru
      _
    // Predicated region
    $region26: #{tpu_custom_call.1} parent=1 // pred_check
      _
    $region27: #{tpu_custom_call.1} parent=1 // pred_check_branch
      %47 = sbr.rel (0) target = $region29
    $region28: #{tpu_custom_call.1} parent=1 // pred_region
      %s49 = ssub.s32 4096, 4096
      %50 = vsyncadd [#allocation7], %s49
      %s51 = sshll.u32 [#allocation6], 4
      %s52 = int_to_ptr.vmem [resolvable:$true] %s51
      %57 = dma.hbm_to_vmem [thread:$0]  %s6, 4096, %s52, [#allocation7], 2048, 2048, 128
    $region29: #{tpu_custom_call.1} parent=1 // pred_fallthru
      _
    // Predicated region
    $region30: #{tpu_custom_call.1} parent=1 // pred_check
      _
    $region31: #{tpu_custom_call.1} parent=1 // pred_check_branch
      %59 = sbr.rel (0) target = $region33
    $region32: #{tpu_custom_call.1} parent=1 // pred_region
      _
    $region33: #{tpu_custom_call.1} parent=1 // pred_fallthru
      _
    // Predicated region
    $region34: #{tpu_custom_call.1} parent=1 // pred_check
      _
    $region35: #{tpu_custom_call.1} parent=1 // pred_check_branch
      %61 = sbr.rel (0) target = $region37
    $region36: #{tpu_custom_call.1} parent=1 // pred_region
      %s63 = ssub.s32 4096, 4096
      %64 = vsyncadd [#allocation7], %s63
      %s65 = sshll.u32 [#allocation8], 4
      %s66 = int_to_ptr.vmem [resolvable:$true] %s65
      %71 = dma.hbm_to_vmem [thread:$0]  %s8, 4096, %s66, [#allocation7], 256, 256, 16
    $region37: #{tpu_custom_call.1} parent=1 // pred_fallthru
      _
    // Predicated region
    $region38: #{tpu_custom_call.1} parent=1 // pred_check
      _
    $region39: #{tpu_custom_call.1} parent=1 // pred_check_branch
      %73 = sbr.rel (0) target = $region41
    $region40: #{tpu_custom_call.1} parent=1 // pred_region
      %s75 = ssub.s32 4096, 4096
      %76 = vsyncadd [#allocation10], %s75
      %s77 = sshll.u32 [#allocation9], 4
      %s78 = int_to_ptr.vmem [resolvable:$true] %s77
      %83 = dma.hbm_to_vmem [thread:$0]  %s9, 4096, %s78, [#allocation10], 256, 256, 16
    $region41: #{tpu_custom_call.1} parent=1 // pred_fallthru
      _
    // Predicated region
    $region42: #{tpu_custom_call.1} parent=1 // pred_check
      _
    $region43: #{tpu_custom_call.1} parent=1 // pred_check_branch
      %85 = sbr.rel (0) target = $region45
    $region44: #{tpu_custom_call.1} parent=1 // pred_region
      _
    $region45: #{tpu_custom_call.1} parent=1 // pred_fallthru
      _
    // Predicated region
    $region46: #{tpu_custom_call.1} parent=1 // pred_check
      _
    $region47: #{tpu_custom_call.1} parent=1 // pred_check_branch
      %87 = sbr.rel (0) target = $region49
    $region48: #{tpu_custom_call.1} parent=1 // pred_region
      _
    $region49: #{tpu_custom_call.1} parent=1 // pred_fallthru
      _
    // Predicated region
    $region50: #{tpu_custom_call.1} parent=1 // pred_check
      _
    $region51: #{tpu_custom_call.1} parent=1 // pred_check_branch
      %89 = sbr.rel (0) target = $region53
    $region52: #{tpu_custom_call.1} parent=1 // pred_region
      _
    $region53: #{tpu_custom_call.1} parent=1 // pred_fallthru
      _
    // Predicated region
    $region54: #{tpu_custom_call.1} parent=1 // pred_check
      _
    $region55: #{tpu_custom_call.1} parent=1 // pred_check_branch
      %91 = sbr.rel (0) target = $region57
    $region56: #{tpu_custom_call.1} parent=1 // pred_region
      _
    $region57: #{tpu_custom_call.1} parent=1 // pred_fallthru
      _
    // Predicated region
    $region58: #{tpu_custom_call.1} parent=1 // pred_check
      _
    $region59: #{tpu_custom_call.1} parent=1 // pred_check_branch
      %93 = sbr.rel (0) target = $region61
    $region60: #{tpu_custom_call.1} parent=1 // pred_region
      _
    $region61: #{tpu_custom_call.1} parent=1 // pred_fallthru
      _
    // Predicated region
    $region62: #{tpu_custom_call.1} parent=1 // pred_check
      _
    $region63: #{tpu_custom_call.1} parent=1 // pred_check_branch
      %95 = sbr.rel (0) target = $region65
    $region64: #{tpu_custom_call.1} parent=1 // pred_region
      %96 = dma.done [#allocation4], 32768
    $region65: #{tpu_custom_call.1} parent=1 // pred_fallthru
      _
    // Predicated region
    $region66: #{tpu_custom_call.1} parent=1 // pred_check
      _
    $region67: #{tpu_custom_call.1} parent=1 // pred_check_branch
      %98 = sbr.rel (0) target = $region69
    $region68: #{tpu_custom_call.1} parent=1 // pred_region
      %99 = dma.done [#allocation7], 4096
    $region69: #{tpu_custom_call.1} parent=1 // pred_fallthru
      _
    // Predicated region
    $region70: #{tpu_custom_call.1} parent=1 // pred_check
      _
    $region71: #{tpu_custom_call.1} parent=1 // pred_check_branch
      %101 = sbr.rel (0) target = $region73
    $region72: #{tpu_custom_call.1} parent=1 // pred_region
      %102 = dma.done [#allocation7], 4096
    $region73: #{tpu_custom_call.1} parent=1 // pred_fallthru
      _
    // Predicated region
    $region74: #{tpu_custom_call.1} parent=1 // pred_check
      _
    $region75: #{tpu_custom_call.1} parent=1 // pred_check_branch
      %104 = sbr.rel (0) target = $region77
    $region76: #{tpu_custom_call.1} parent=1 // pred_region
      %105 = dma.done [#allocation10], 4096
    $region77: #{tpu_custom_call.1} parent=1 // pred_fallthru
      _
    %v106 = vld [vmem:[%s1] sm:$0xff]
    %v107 = vld [vmem:[%s1 + $0x8] sm:$0xff]
    %v108 = vld [vmem:[%s1 + $0x10] sm:$0xff]
    %v109 = vld [vmem:[%s1 + $0x18] sm:$0xff]
    %v110 = vld [vmem:[%s1 + $0x20] sm:$0xff]
    %v111 = vld [vmem:[%s1 + $0x28] sm:$0xff]
    %v112 = vld [vmem:[%s1 + $0x30] sm:$0xff]
    %v113 = vld [vmem:[%s1 + $0x38] sm:$0xff]
    %v114 = vld [vmem:[%s1 + $0x40] sm:$0xff]
    %v115 = vld [vmem:[%s1 + $0x48] sm:$0xff]
    %v116 = vld [vmem:[%s1 + $0x50] sm:$0xff]
    %v117 = vld [vmem:[%s1 + $0x58] sm:$0xff]
    %v118 = vld [vmem:[%s1 + $0x60] sm:$0xff]
    %v119 = vld [vmem:[%s1 + $0x68] sm:$0xff]
    %v120 = vld [vmem:[%s1 + $0x70] sm:$0xff]
    %v121 = vld [vmem:[%s1 + $0x78] sm:$0xff]
    %v122 = vld [vmem:[%s0] sm:$0xff]
    %v123 = vld [vmem:[%s0 + $0x8] sm:$0xff]
    %v124 = vld [vmem:[%s0 + $0x10] sm:$0xff]
    %v125 = vld [vmem:[%s0 + $0x18] sm:$0xff]
    %v126 = vld [vmem:[%s0 + $0x20] sm:$0xff]
    %v127 = vld [vmem:[%s0 + $0x28] sm:$0xff]
    %v128 = vld [vmem:[%s0 + $0x30] sm:$0xff]
    %v129 = vld [vmem:[%s0 + $0x38] sm:$0xff]
    %v130 = vld [vmem:[%s0 + $0x40] sm:$0xff]
    %v131 = vld [vmem:[%s0 + $0x48] sm:$0xff]
    %v132 = vld [vmem:[%s0 + $0x50] sm:$0xff]
    %v133 = vld [vmem:[%s0 + $0x58] sm:$0xff]
    %v134 = vld [vmem:[%s0 + $0x60] sm:$0xff]
    %v135 = vld [vmem:[%s0 + $0x68] sm:$0xff]
    %v136 = vld [vmem:[%s0 + $0x70] sm:$0xff]
    %v137 = vld [vmem:[%s0 + $0x78] sm:$0xff]
    %v138 = vld [vmem:[%s0 + $0x80] sm:$0xff]
    %v139 = vld [vmem:[%s0 + $0x88] sm:$0xff]
    %v140 = vld [vmem:[%s0 + $0x90] sm:$0xff]
    %v141 = vld [vmem:[%s0 + $0x98] sm:$0xff]
    %v142 = vld [vmem:[%s0 + $0xa0] sm:$0xff]
    %v143 = vld [vmem:[%s0 + $0xa8] sm:$0xff]
    %v144 = vld [vmem:[%s0 + $0xb0] sm:$0xff]
    %v145 = vld [vmem:[%s0 + $0xb8] sm:$0xff]
    %v146 = vld [vmem:[%s0 + $0xc0] sm:$0xff]
    %v147 = vld [vmem:[%s0 + $0xc8] sm:$0xff]
    %v148 = vld [vmem:[%s0 + $0xd0] sm:$0xff]
    %v149 = vld [vmem:[%s0 + $0xd8] sm:$0xff]
    %v150 = vld [vmem:[%s0 + $0xe0] sm:$0xff]
    %v151 = vld [vmem:[%s0 + $0xe8] sm:$0xff]
    %v152 = vld [vmem:[%s0 + $0xf0] sm:$0xff]
    %v153 = vld [vmem:[%s0 + $0xf8] sm:$0xff]
    %v154 = vld [vmem:[%s2] sm:$0xff]
    %v155 = vld [vmem:[%s2 + $0x8] sm:$0xff]
    %v156 = vld [vmem:[%s2 + $0x10] sm:$0xff]
    %v157 = vld [vmem:[%s2 + $0x18] sm:$0xff]
    %v158 = vld [vmem:[%s2 + $0x20] sm:$0xff]
    %v159 = vld [vmem:[%s2 + $0x28] sm:$0xff]
    %v160 = vld [vmem:[%s2 + $0x30] sm:$0xff]
    %v161 = vld [vmem:[%s2 + $0x38] sm:$0xff]
    %v162 = vld [vmem:[%s2 + $0x40] sm:$0xff]
    %v163 = vld [vmem:[%s2 + $0x48] sm:$0xff]
    %v164 = vld [vmem:[%s2 + $0x50] sm:$0xff]
    %v165 = vld [vmem:[%s2 + $0x58] sm:$0xff]
    %v166 = vld [vmem:[%s2 + $0x60] sm:$0xff]
    %v167 = vld [vmem:[%s2 + $0x68] sm:$0xff]
    %v168 = vld [vmem:[%s2 + $0x70] sm:$0xff]
    %v169 = vld [vmem:[%s2 + $0x78] sm:$0xff]
    %171 = vset.pattern.permute.xlu0 0
    %172 = vperm.xlu0 %171, %v154
    %v173 = vpop.permute.xlu0 %172
    %176 = vset.pattern.permute.xlu0 0
    %177 = vperm.xlu0 %176, %v155
    %v178 = vpop.permute.xlu0 %177
    %181 = vset.pattern.permute.xlu0 0
    %182 = vperm.xlu0 %181, %v156
    %v183 = vpop.permute.xlu0 %182
    %186 = vset.pattern.permute.xlu0 0
    %187 = vperm.xlu0 %186, %v157
    %v188 = vpop.permute.xlu0 %187
    %191 = vset.pattern.permute.xlu0 0
    %192 = vperm.xlu0 %191, %v158
    %v193 = vpop.permute.xlu0 %192
    %196 = vset.pattern.permute.xlu0 0
    %197 = vperm.xlu0 %196, %v159
    %v198 = vpop.permute.xlu0 %197
    %201 = vset.pattern.permute.xlu0 0
    %202 = vperm.xlu0 %201, %v160
    %v203 = vpop.permute.xlu0 %202
    %206 = vset.pattern.permute.xlu0 0
    %207 = vperm.xlu0 %206, %v161
    %v208 = vpop.permute.xlu0 %207
    %211 = vset.pattern.permute.xlu0 0
    %212 = vperm.xlu0 %211, %v162
    %v213 = vpop.permute.xlu0 %212
    %216 = vset.pattern.permute.xlu0 0
    %217 = vperm.xlu0 %216, %v163
    %v218 = vpop.permute.xlu0 %217
    %221 = vset.pattern.permute.xlu0 0
    %222 = vperm.xlu0 %221, %v164
    %v223 = vpop.permute.xlu0 %222
    %226 = vset.pattern.permute.xlu0 0
    %227 = vperm.xlu0 %226, %v165
    %v228 = vpop.permute.xlu0 %227
    %231 = vset.pattern.permute.xlu0 0
    %232 = vperm.xlu0 %231, %v166
    %v233 = vpop.permute.xlu0 %232
    %236 = vset.pattern.permute.xlu0 0
    %237 = vperm.xlu0 %236, %v167
    %v238 = vpop.permute.xlu0 %237
    %241 = vset.pattern.permute.xlu0 0
    %242 = vperm.xlu0 %241, %v168
    %v243 = vpop.permute.xlu0 %242
    %246 = vset.pattern.permute.xlu0 0
    %247 = vperm.xlu0 %246, %v169
    %v248 = vpop.permute.xlu0 %247
    %vm250 = vcmask 523264
    %v252 = vsel %vm250, %v106, 0
    %v255 = vsel %vm250, %v107, 0
    %v258 = vsel %vm250, %v108, 0
    %v261 = vsel %vm250, %v109, 0
    %v264 = vsel %vm250, %v110, 0
    %v267 = vsel %vm250, %v111, 0
    %v270 = vsel %vm250, %v112, 0
    %v273 = vsel %vm250, %v113, 0
    %v276 = vsel %vm250, %v114, 0
    %v279 = vsel %vm250, %v115, 0
    %v282 = vsel %vm250, %v116, 0
    %v285 = vsel %vm250, %v117, 0
    %v288 = vsel %vm250, %v118, 0
    %v291 = vsel %vm250, %v119, 0
    %v294 = vsel %vm250, %v120, 0
    %v297 = vsel %vm250, %v121, 0
    %299 = vmatprep.subr.mxu0 %v123
    %300 = vmatpush1.msra.mxu0 %v122
    %301 = vmatprep.subr.mxu0 %v127
    %302 = vmatpush1.msra.mxu0 %v126
    %303 = vmatprep.subr.mxu0 %v131
    %304 = vmatpush1.msra.mxu0 %v130
    %305 = vmatprep.subr.mxu0 %v135
    %306 = vmatpush1.msra.mxu0 %v134
    %307 = vmatprep.subr.mxu0 %v139
    %308 = vmatpush1.msra.mxu0 %v138
    %309 = vmatprep.subr.mxu0 %v143
    %310 = vmatpush1.msra.mxu0 %v142
    %311 = vmatprep.subr.mxu0 %v147
    %312 = vmatpush1.msra.mxu0 %v146
    %313 = vmatprep.subr.mxu0 %v151
    %314 = vmatpush1.msra.mxu0 %v150
    %315 = vmatprep.subr.mxu0 0.0
    %316 = vmatpush1.msra.mxu0 0.0
    %317 = vmatprep.subr.mxu0 0.0
    %318 = vmatpush1.msra.mxu0 0.0
    %319 = vmatprep.subr.mxu0 0.0
    %320 = vmatpush1.msra.mxu0 0.0
    %321 = vmatprep.subr.mxu0 0.0
    %322 = vmatpush1.msra.mxu0 0.0
    %323 = vmatprep.subr.mxu0 0.0
    %324 = vmatpush1.msra.mxu0 0.0
    %325 = vmatprep.subr.mxu0 0.0
    %326 = vmatpush1.msra.mxu0 0.0
    %327 = vmatprep.subr.mxu0 0.0
    %328 = vmatpush1.msra.mxu0 0.0
    %329 = vmatprep.subr.mxu0 0.0
    %330 = vmatpush1.msra.mxu0 0.0
    %331 = vmatprep.subr.mxu0 0.0
    %332 = vmatpush1.msra.mxu0 0.0
    %333 = vmatprep.subr.mxu0 0.0
    %334 = vmatpush1.msra.mxu0 0.0
    %335 = vmatprep.subr.mxu0 0.0
    %336 = vmatpush1.msra.mxu0 0.0
    %337 = vmatprep.subr.mxu0 0.0
    %338 = vmatpush1.msra.mxu0 0.0
    %339 = vmatprep.subr.mxu0 0.0
    %340 = vmatpush1.msra.mxu0 0.0
    %341 = vmatprep.subr.mxu0 0.0
    %342 = vmatpush1.msra.mxu0 0.0
    %343 = vmatprep.subr.mxu0 0.0
    %344 = vmatpush1.msra.mxu0 0.0
    %345 = vmatprep.subr.mxu0 0.0
    %346 = vmatpush1.msra.mxu0 0.0
    %347 = vmatprep.subr.mxu0 0.0
    %348 = vmatpush1.msra.mxu0 0.0
    %349 = vmatprep.subr.mxu0 0.0
    %350 = vmatpush1.msra.mxu0 0.0
    %351 = vmatprep.subr.mxu0 0.0
    %352 = vmatpush1.msra.mxu0 0.0
    %353 = vmatprep.subr.mxu0 0.0
    %354 = vmatpush1.msra.mxu0 0.0
    %355 = vmatprep.subr.mxu0 0.0
    %356 = vmatpush1.msra.mxu0 0.0
    %357 = vmatprep.subr.mxu0 0.0
    %358 = vmatpush1.msra.mxu0 0.0
    %359 = vmatprep.subr.mxu0 0.0
    %360 = vmatpush1.msra.mxu0 0.0
    %361 = vmatprep.subr.mxu0 0.0
    %362 = vmatpush1.msra.mxu0 0.0
    %363 = vmatprep.mubr.f32.mxu0 0.0
    %364 = vmatmul.mubr.f32.gmra.mrb[0].mxu0 %v252
    %v365 = vpop.f32.mrb[0].mxu0
    %v366 = vadd.f32 %v173, %v365
    %v367 = vpop.f32.mrb[0].mxu0
    %v368 = vadd.f32 %v173, %v367
    %369 = vmatprep.mubr.f32.mxu0 0.0
    %370 = vmatmul.mubr.f32.gmra.mrb[0].mxu0 %v255
    %v371 = vpop.f32.mrb[0].mxu0
    %v372 = vadd.f32 %v178, %v371
    %v373 = vpop.f32.mrb[0].mxu0
    %v374 = vadd.f32 %v178, %v373
    %375 = vmatprep.mubr.f32.mxu0 0.0
    %376 = vmatmul.mubr.f32.gmra.mrb[0].mxu0 %v258
    %v377 = vpop.f32.mrb[0].mxu0
    %v378 = vadd.f32 %v183, %v377
    %v379 = vpop.f32.mrb[0].mxu0
    %v380 = vadd.f32 %v183, %v379
    %381 = vmatprep.mubr.f32.mxu0 0.0
    %382 = vmatmul.mubr.f32.gmra.mrb[0].mxu0 %v261
    %v383 = vpop.f32.mrb[0].mxu0
    %v384 = vadd.f32 %v188, %v383
    %v385 = vpop.f32.mrb[0].mxu0
    %v386 = vadd.f32 %v188, %v385
    %387 = vmatprep.mubr.f32.mxu0 0.0
    %388 = vmatmul.mubr.f32.gmra.mrb[0].mxu0 %v264
    %v389 = vpop.f32.mrb[0].mxu0
    %v390 = vadd.f32 %v193, %v389
    %v391 = vpop.f32.mrb[0].mxu0
    %v392 = vadd.f32 %v193, %v391
    %393 = vmatprep.mubr.f32.mxu0 0.0
    %394 = vmatmul.mubr.f32.gmra.mrb[0].mxu0 %v267
    %v395 = vpop.f32.mrb[0].mxu0
    %v396 = vadd.f32 %v198, %v395
    %v397 = vpop.f32.mrb[0].mxu0
    %v398 = vadd.f32 %v198, %v397
    %399 = vmatprep.mubr.f32.mxu0 0.0
    %400 = vmatmul.mubr.f32.gmra.mrb[0].mxu0 %v270
    %v401 = vpop.f32.mrb[0].mxu0
    %v402 = vadd.f32 %v203, %v401
    %v403 = vpop.f32.mrb[0].mxu0
    %v404 = vadd.f32 %v203, %v403
    %405 = vmatprep.mubr.f32.mxu0 0.0
    %406 = vmatmul.mubr.f32.gmra.mrb[0].mxu0 %v273
    %v407 = vpop.f32.mrb[0].mxu0
    %v408 = vadd.f32 %v208, %v407
    %v409 = vpop.f32.mrb[0].mxu0
    %v410 = vadd.f32 %v208, %v409
    %411 = vmatprep.mubr.f32.mxu0 0.0
    %412 = vmatmul.mubr.f32.gmra.mrb[0].mxu0 %v276
    %v413 = vpop.f32.mrb[0].mxu0
    %v414 = vadd.f32 %v213, %v413
    %v415 = vpop.f32.mrb[0].mxu0
    %v416 = vadd.f32 %v213, %v415
    %417 = vmatprep.mubr.f32.mxu0 0.0
    %418 = vmatmul.mubr.f32.gmra.mrb[0].mxu0 %v279
    %v419 = vpop.f32.mrb[0].mxu0
    %v420 = vadd.f32 %v218, %v419
    %v421 = vpop.f32.mrb[0].mxu0
    %v422 = vadd.f32 %v218, %v421
    %423 = vmatprep.mubr.f32.mxu0 0.0
    %424 = vmatmul.mubr.f32.gmra.mrb[0].mxu0 %v282
    %v425 = vpop.f32.mrb[0].mxu0
    %v426 = vadd.f32 %v223, %v425
    %v427 = vpop.f32.mrb[0].mxu0
    %v428 = vadd.f32 %v223, %v427
    %429 = vmatprep.mubr.f32.mxu0 0.0
    %430 = vmatmul.mubr.f32.gmra.mrb[0].mxu0 %v285
    %v431 = vpop.f32.mrb[0].mxu0
    %v432 = vadd.f32 %v228, %v431
    %v433 = vpop.f32.mrb[0].mxu0
    %v434 = vadd.f32 %v228, %v433
    %435 = vmatprep.mubr.f32.mxu0 0.0
    %436 = vmatmul.mubr.f32.gmra.mrb[0].mxu0 %v288
    %v437 = vpop.f32.mrb[0].mxu0
    %v438 = vadd.f32 %v233, %v437
    %v439 = vpop.f32.mrb[0].mxu0
    %v440 = vadd.f32 %v233, %v439
    %441 = vmatprep.mubr.f32.mxu0 0.0
    %442 = vmatmul.mubr.f32.gmra.mrb[0].mxu0 %v291
    %v443 = vpop.f32.mrb[0].mxu0
    %v444 = vadd.f32 %v238, %v443
    %v445 = vpop.f32.mrb[0].mxu0
    %v446 = vadd.f32 %v238, %v445
    %447 = vmatprep.mubr.f32.mxu0 0.0
    %448 = vmatmul.mubr.f32.gmra.mrb[0].mxu0 %v294
    %v449 = vpop.f32.mrb[0].mxu0
    %v450 = vadd.f32 %v243, %v449
    %v451 = vpop.f32.mrb[0].mxu0
    %v452 = vadd.f32 %v243, %v451
    %453 = vmatprep.mubr.f32.mxu0 0.0
    %454 = vmatmul.mubr.f32.gmra.mrb[0].mxu0 %v297
    %v455 = vpop.f32.mrb[0].mxu0
    %v456 = vadd.f32 %v248, %v455
    %v457 = vpop.f32.mrb[0].mxu0
    %v458 = vadd.f32 %v248, %v457
    %459 = vdwg.mxu0
    %460 = vmatprep.subr.mxu0 %v125
    %461 = vmatpush1.msra.mxu0 %v124
    %462 = vmatprep.subr.mxu0 %v129
    %463 = vmatpush1.msra.mxu0 %v128
    %464 = vmatprep.subr.mxu0 %v133
    %465 = vmatpush1.msra.mxu0 %v132
    %466 = vmatprep.subr.mxu0 %v137
    %467 = vmatpush1.msra.mxu0 %v136
    %468 = vmatprep.subr.mxu0 %v141
    %469 = vmatpush1.msra.mxu0 %v140
    %470 = vmatprep.subr.mxu0 %v145
    %471 = vmatpush1.msra.mxu0 %v144
    %472 = vmatprep.subr.mxu0 %v149
    %473 = vmatpush1.msra.mxu0 %v148
    %474 = vmatprep.subr.mxu0 %v153
    %475 = vmatpush1.msra.mxu0 %v152
    %476 = vmatprep.subr.mxu0 0.0
    %477 = vmatpush1.msra.mxu0 0.0
    %478 = vmatprep.subr.mxu0 0.0
    %479 = vmatpush1.msra.mxu0 0.0
    %480 = vmatprep.subr.mxu0 0.0
    %481 = vmatpush1.msra.mxu0 0.0
    %482 = vmatprep.subr.mxu0 0.0
    %483 = vmatpush1.msra.mxu0 0.0
    %484 = vmatprep.subr.mxu0 0.0
    %485 = vmatpush1.msra.mxu0 0.0
    %486 = vmatprep.subr.mxu0 0.0
    %487 = vmatpush1.msra.mxu0 0.0
    %488 = vmatprep.subr.mxu0 0.0
    %489 = vmatpush1.msra.mxu0 0.0
    %490 = vmatprep.subr.mxu0 0.0
    %491 = vmatpush1.msra.mxu0 0.0
    %492 = vmatprep.subr.mxu0 0.0
    %493 = vmatpush1.msra.mxu0 0.0
    %494 = vmatprep.subr.mxu0 0.0
    %495 = vmatpush1.msra.mxu0 0.0
    %496 = vmatprep.subr.mxu0 0.0
    %497 = vmatpush1.msra.mxu0 0.0
    %498 = vmatprep.subr.mxu0 0.0
    %499 = vmatpush1.msra.mxu0 0.0
    %500 = vmatprep.subr.mxu0 0.0
    %501 = vmatpush1.msra.mxu0 0.0
    %502 = vmatprep.subr.mxu0 0.0
    %503 = vmatpush1.msra.mxu0 0.0
    %504 = vmatprep.subr.mxu0 0.0
    %505 = vmatpush1.msra.mxu0 0.0
    %506 = vmatprep.subr.mxu0 0.0
    %507 = vmatpush1.msra.mxu0 0.0
    %508 = vmatprep.subr.mxu0 0.0
    %509 = vmatpush1.msra.mxu0 0.0
    %510 = vmatprep.subr.mxu0 0.0
    %511 = vmatpush1.msra.mxu0 0.0
    %512 = vmatprep.subr.mxu0 0.0
    %513 = vmatpush1.msra.mxu0 0.0
    %514 = vmatprep.subr.mxu0 0.0
    %515 = vmatpush1.msra.mxu0 0.0
    %516 = vmatprep.subr.mxu0 0.0
    %517 = vmatpush1.msra.mxu0 0.0
    %518 = vmatprep.subr.mxu0 0.0
    %519 = vmatpush1.msra.mxu0 0.0
    %520 = vmatprep.subr.mxu0 0.0
    %521 = vmatpush1.msra.mxu0 0.0
    %522 = vmatprep.subr.mxu0 0.0
    %523 = vmatpush1.msra.mxu0 0.0
    %524 = vmatprep.mubr.f32.mxu0 0.0
    %525 = vmatmul.mubr.f32.gmra.mrb[0].mxu0 %v252
    %v526 = vpop.f32.mrb[0].mxu0
    %v527 = vadd.f32 %v173, %v526
    %v528 = vpop.f32.mrb[0].mxu0
    %v529 = vadd.f32 %v173, %v528
    %530 = vmatprep.mubr.f32.mxu0 0.0
    %531 = vmatmul.mubr.f32.gmra.mrb[0].mxu0 %v255
    %v532 = vpop.f32.mrb[0].mxu0
    %v533 = vadd.f32 %v178, %v532
    %v534 = vpop.f32.mrb[0].mxu0
    %v535 = vadd.f32 %v178, %v534
    %536 = vmatprep.mubr.f32.mxu0 0.0
    %537 = vmatmul.mubr.f32.gmra.mrb[0].mxu0 %v258
    %v538 = vpop.f32.mrb[0].mxu0
    %v539 = vadd.f32 %v183, %v538
    %v540 = vpop.f32.mrb[0].mxu0
    %v541 = vadd.f32 %v183, %v540
    %542 = vmatprep.mubr.f32.mxu0 0.0
    %543 = vmatmul.mubr.f32.gmra.mrb[0].mxu0 %v261
    %v544 = vpop.f32.mrb[0].mxu0
    %v545 = vadd.f32 %v188, %v544
    %v546 = vpop.f32.mrb[0].mxu0
    %v547 = vadd.f32 %v188, %v546
    %548 = vmatprep.mubr.f32.mxu0 0.0
    %549 = vmatmul.mubr.f32.gmra.mrb[0].mxu0 %v264
    %v550 = vpop.f32.mrb[0].mxu0
    %v551 = vadd.f32 %v193, %v550
    %v552 = vpop.f32.mrb[0].mxu0
    %v553 = vadd.f32 %v193, %v552
    %554 = vmatprep.mubr.f32.mxu0 0.0
    %555 = vmatmul.mubr.f32.gmra.mrb[0].mxu0 %v267
    %v556 = vpop.f32.mrb[0].mxu0
    %v557 = vadd.f32 %v198, %v556
    %v558 = vpop.f32.mrb[0].mxu0
    %v559 = vadd.f32 %v198, %v558
    %560 = vmatprep.mubr.f32.mxu0 0.0
    %561 = vmatmul.mubr.f32.gmra.mrb[0].mxu0 %v270
    %v562 = vpop.f32.mrb[0].mxu0
    %v563 = vadd.f32 %v203, %v562
    %v564 = vpop.f32.mrb[0].mxu0
    %v565 = vadd.f32 %v203, %v564
    %566 = vmatprep.mubr.f32.mxu0 0.0
    %567 = vmatmul.mubr.f32.gmra.mrb[0].mxu0 %v273
    %v568 = vpop.f32.mrb[0].mxu0
    %v569 = vadd.f32 %v208, %v568
    %v570 = vpop.f32.mrb[0].mxu0
    %v571 = vadd.f32 %v208, %v570
    %572 = vmatprep.mubr.f32.mxu0 0.0
    %573 = vmatmul.mubr.f32.gmra.mrb[0].mxu0 %v276
    %v574 = vpop.f32.mrb[0].mxu0
    %v575 = vadd.f32 %v213, %v574
    %v576 = vpop.f32.mrb[0].mxu0
    %v577 = vadd.f32 %v213, %v576
    %578 = vmatprep.mubr.f32.mxu0 0.0
    %579 = vmatmul.mubr.f32.gmra.mrb[0].mxu0 %v279
    %v580 = vpop.f32.mrb[0].mxu0
    %v581 = vadd.f32 %v218, %v580
    %v582 = vpop.f32.mrb[0].mxu0
    %v583 = vadd.f32 %v218, %v582
    %584 = vmatprep.mubr.f32.mxu0 0.0
    %585 = vmatmul.mubr.f32.gmra.mrb[0].mxu0 %v282
    %v586 = vpop.f32.mrb[0].mxu0
    %v587 = vadd.f32 %v223, %v586
    %v588 = vpop.f32.mrb[0].mxu0
    %v589 = vadd.f32 %v223, %v588
    %590 = vmatprep.mubr.f32.mxu0 0.0
    %591 = vmatmul.mubr.f32.gmra.mrb[0].mxu0 %v285
    %v592 = vpop.f32.mrb[0].mxu0
    %v593 = vadd.f32 %v228, %v592
    %v594 = vpop.f32.mrb[0].mxu0
    %v595 = vadd.f32 %v228, %v594
    %596 = vmatprep.mubr.f32.mxu0 0.0
    %597 = vmatmul.mubr.f32.gmra.mrb[0].mxu0 %v288
    %v598 = vpop.f32.mrb[0].mxu0
    %v599 = vadd.f32 %v233, %v598
    %v600 = vpop.f32.mrb[0].mxu0
    %v601 = vadd.f32 %v233, %v600
    %602 = vmatprep.mubr.f32.mxu0 0.0
    %603 = vmatmul.mubr.f32.gmra.mrb[0].mxu0 %v291
    %v604 = vpop.f32.mrb[0].mxu0
    %v605 = vadd.f32 %v238, %v604
    %v606 = vpop.f32.mrb[0].mxu0
    %v607 = vadd.f32 %v238, %v606
    %608 = vmatprep.mubr.f32.mxu0 0.0
    %609 = vmatmul.mubr.f32.gmra.mrb[0].mxu0 %v294
    %v610 = vpop.f32.mrb[0].mxu0
    %v611 = vadd.f32 %v243, %v610
    %v612 = vpop.f32.mrb[0].mxu0
    %v613 = vadd.f32 %v243, %v612
    %614 = vmatprep.mubr.f32.mxu0 0.0
    %615 = vmatmul.mubr.f32.gmra.mrb[0].mxu0 %v297
    %v616 = vpop.f32.mrb[0].mxu0
    %v617 = vadd.f32 %v248, %v616
    %v618 = vpop.f32.mrb[0].mxu0
    %v619 = vadd.f32 %v248, %v618
    %620 = vdwg.mxu0
    %v621 = vmax.f32 %v366, 0.0
    %v622 = vmax.f32 %v368, 0.0
    %v623 = vmax.f32 %v527, 0.0
    %v624 = vmax.f32 %v529, 0.0
    %v625 = vmax.f32 %v372, 0.0
    %v626 = vmax.f32 %v374, 0.0
    %v627 = vmax.f32 %v533, 0.0
    %v628 = vmax.f32 %v535, 0.0
    %v629 = vmax.f32 %v378, 0.0
    %v630 = vmax.f32 %v380, 0.0
    %v631 = vmax.f32 %v539, 0.0
    %v632 = vmax.f32 %v541, 0.0
    %v633 = vmax.f32 %v384, 0.0
    %v634 = vmax.f32 %v386, 0.0
    %v635 = vmax.f32 %v545, 0.0
    %v636 = vmax.f32 %v547, 0.0
    %v637 = vmax.f32 %v390, 0.0
    %v638 = vmax.f32 %v392, 0.0
    %v639 = vmax.f32 %v551, 0.0
    %v640 = vmax.f32 %v553, 0.0
    %v641 = vmax.f32 %v396, 0.0
    %v642 = vmax.f32 %v398, 0.0
    %v643 = vmax.f32 %v557, 0.0
    %v644 = vmax.f32 %v559, 0.0
    %v645 = vmax.f32 %v402, 0.0
    %v646 = vmax.f32 %v404, 0.0
    %v647 = vmax.f32 %v563, 0.0
    %v648 = vmax.f32 %v565, 0.0
    %v649 = vmax.f32 %v408, 0.0
    %v650 = vmax.f32 %v410, 0.0
    %v651 = vmax.f32 %v569, 0.0
    %v652 = vmax.f32 %v571, 0.0
    %v653 = vmax.f32 %v414, 0.0
    %v654 = vmax.f32 %v416, 0.0
    %v655 = vmax.f32 %v575, 0.0
    %v656 = vmax.f32 %v577, 0.0
    %v657 = vmax.f32 %v420, 0.0
    %v658 = vmax.f32 %v422, 0.0
    %v659 = vmax.f32 %v581, 0.0
    %v660 = vmax.f32 %v583, 0.0
    %v661 = vmax.f32 %v426, 0.0
    %v662 = vmax.f32 %v428, 0.0
    %v663 = vmax.f32 %v587, 0.0
    %v664 = vmax.f32 %v589, 0.0
    %v665 = vmax.f32 %v432, 0.0
    %v666 = vmax.f32 %v434, 0.0
    %v667 = vmax.f32 %v593, 0.0
    %v668 = vmax.f32 %v595, 0.0
    %v669 = vmax.f32 %v438, 0.0
    %v670 = vmax.f32 %v440, 0.0
    %v671 = vmax.f32 %v599, 0.0
    %v672 = vmax.f32 %v601, 0.0
    %v673 = vmax.f32 %v444, 0.0
    %v674 = vmax.f32 %v446, 0.0
    %v675 = vmax.f32 %v605, 0.0
    %v676 = vmax.f32 %v607, 0.0
    %v677 = vmax.f32 %v450, 0.0
    %v678 = vmax.f32 %v452, 0.0
    %v679 = vmax.f32 %v611, 0.0
    %v680 = vmax.f32 %v613, 0.0
    %v681 = vmax.f32 %v456, 0.0
    %v682 = vmax.f32 %v458, 0.0
    %v683 = vmax.f32 %v617, 0.0
    %v684 = vmax.f32 %v619, 0.0
    %v685 = vld [vmem:[%s3] sm:$0xff]
    %v686 = vld [vmem:[%s3 + $0x8] sm:$0xff]
    %v687 = vadd.f32 %v621, %v622
    %688 = vadd.xlane.f32.xlu0 %v687
    %v689 = vpop.xlane.xlu0 %688
    %v690 = vadd.f32 %v625, %v626
    %691 = vadd.xlane.f32.xlu0 %v690
    %v692 = vpop.xlane.xlu0 %691
    %v693 = vadd.f32 %v629, %v630
    %694 = vadd.xlane.f32.xlu0 %v693
    %v695 = vpop.xlane.xlu0 %694
    %v696 = vadd.f32 %v633, %v634
    %697 = vadd.xlane.f32.xlu0 %v696
    %v698 = vpop.xlane.xlu0 %697
    %v699 = vadd.f32 %v637, %v638
    %700 = vadd.xlane.f32.xlu0 %v699
    %v701 = vpop.xlane.xlu0 %700
    %v702 = vadd.f32 %v641, %v642
    %703 = vadd.xlane.f32.xlu0 %v702
    %v704 = vpop.xlane.xlu0 %703
    %v705 = vadd.f32 %v645, %v646
    %706 = vadd.xlane.f32.xlu0 %v705
    %v707 = vpop.xlane.xlu0 %706
    %v708 = vadd.f32 %v649, %v650
    %709 = vadd.xlane.f32.xlu0 %v708
    %v710 = vpop.xlane.xlu0 %709
    %v711 = vadd.f32 %v653, %v654
    %712 = vadd.xlane.f32.xlu0 %v711
    %v713 = vpop.xlane.xlu0 %712
    %v714 = vadd.f32 %v657, %v658
    %715 = vadd.xlane.f32.xlu0 %v714
    %v716 = vpop.xlane.xlu0 %715
    %v717 = vadd.f32 %v661, %v662
    %718 = vadd.xlane.f32.xlu0 %v717
    %v719 = vpop.xlane.xlu0 %718
    %v720 = vadd.f32 %v665, %v666
    %721 = vadd.xlane.f32.xlu0 %v720
    %v722 = vpop.xlane.xlu0 %721
    %v723 = vadd.f32 %v669, %v670
    %724 = vadd.xlane.f32.xlu0 %v723
    %v725 = vpop.xlane.xlu0 %724
    %v726 = vadd.f32 %v673, %v674
    %727 = vadd.xlane.f32.xlu0 %v726
    %v728 = vpop.xlane.xlu0 %727
    %v729 = vadd.f32 %v677, %v678
    %730 = vadd.xlane.f32.xlu0 %v729
    %v731 = vpop.xlane.xlu0 %730
    %v732 = vadd.f32 %v681, %v682
    %733 = vadd.xlane.f32.xlu0 %v732
    %v734 = vpop.xlane.xlu0 %733
    %v735 = vadd.f32 %v621, %v625
    %v736 = vadd.f32 %v735, %v629
    %v737 = vadd.f32 %v736, %v633
    %v738 = vadd.f32 %v737, %v637
    %v739 = vadd.f32 %v738, %v641
    %v740 = vadd.f32 %v739, %v645
    %v741 = vadd.f32 %v740, %v649
    %v742 = vadd.f32 %v741, %v653
    %v743 = vadd.f32 %v742, %v657
    %v744 = vadd.f32 %v743, %v661
    %v745 = vadd.f32 %v744, %v665
    %v746 = vadd.f32 %v745, %v669
    %v747 = vadd.f32 %v746, %v673
    %v748 = vadd.f32 %v747, %v677
    %v749 = vadd.f32 %v748, %v681
    %v750 = vrot.slane %v749, 4
    %v751 = vadd.f32 %v749, %v750
    %v752 = vrot.slane %v751, 2
    %v753 = vadd.f32 %v751, %v752
    %v754 = vrot.slane %v753, 1
    %v755 = vadd.f32 %v753, %v754
    %v756 = vadd.f32 %v622, %v626
    %v757 = vadd.f32 %v756, %v630
    %v758 = vadd.f32 %v757, %v634
    %v759 = vadd.f32 %v758, %v638
    %v760 = vadd.f32 %v759, %v642
    %v761 = vadd.f32 %v760, %v646
    %v762 = vadd.f32 %v761, %v650
    %v763 = vadd.f32 %v762, %v654
    %v764 = vadd.f32 %v763, %v658
    %v765 = vadd.f32 %v764, %v662
    %v766 = vadd.f32 %v765, %v666
    %v767 = vadd.f32 %v766, %v670
    %v768 = vadd.f32 %v767, %v674
    %v769 = vadd.f32 %v768, %v678
    %v770 = vadd.f32 %v769, %v682
    %v771 = vrot.slane %v770, 4
    %v772 = vadd.f32 %v770, %v771
    %v773 = vrot.slane %v772, 2
    %v774 = vadd.f32 %v772, %v773
    %v775 = vrot.slane %v774, 1
    %v776 = vadd.f32 %v774, %v775
    %v777 = vld [vmem:[%s7] sm:$0xff]
    %v778 = vld [vmem:[%s7 + $0x8] sm:$0xff]
    %v779 = vld [vmem:[%s7 + $0x10] sm:$0xff]
    %v780 = vld [vmem:[%s7 + $0x18] sm:$0xff]
    %v781 = vld [vmem:[%s7 + $0x20] sm:$0xff]
    %v782 = vld [vmem:[%s7 + $0x28] sm:$0xff]
    %v783 = vld [vmem:[%s7 + $0x30] sm:$0xff]
    %v784 = vld [vmem:[%s7 + $0x38] sm:$0xff]
    %v785 = vld [vmem:[%s7 + $0x40] sm:$0xff]
    %v786 = vld [vmem:[%s7 + $0x48] sm:$0xff]
    %v787 = vld [vmem:[%s7 + $0x50] sm:$0xff]
    %v788 = vld [vmem:[%s7 + $0x58] sm:$0xff]
    %v789 = vld [vmem:[%s7 + $0x60] sm:$0xff]
    %v790 = vld [vmem:[%s7 + $0x68] sm:$0xff]
    %v791 = vld [vmem:[%s7 + $0x70] sm:$0xff]
    %v792 = vld [vmem:[%s7 + $0x78] sm:$0xff]
    %v793 = vld [vmem:[%s7 + $0x80] sm:$0xff]
    %v794 = vld [vmem:[%s7 + $0x88] sm:$0xff]
    %v795 = vld [vmem:[%s7 + $0x90] sm:$0xff]
    %v796 = vld [vmem:[%s7 + $0x98] sm:$0xff]
    %v797 = vld [vmem:[%s7 + $0xa0] sm:$0xff]
    %v798 = vld [vmem:[%s7 + $0xa8] sm:$0xff]
    %v799 = vld [vmem:[%s7 + $0xb0] sm:$0xff]
    %v800 = vld [vmem:[%s7 + $0xb8] sm:$0xff]
    %v801 = vld [vmem:[%s7 + $0xc0] sm:$0xff]
    %v802 = vld [vmem:[%s7 + $0xc8] sm:$0xff]
    %v803 = vld [vmem:[%s7 + $0xd0] sm:$0xff]
    %v804 = vld [vmem:[%s7 + $0xd8] sm:$0xff]
    %v805 = vld [vmem:[%s7 + $0xe0] sm:$0xff]
    %v806 = vld [vmem:[%s7 + $0xe8] sm:$0xff]
    %v807 = vld [vmem:[%s7 + $0xf0] sm:$0xff]
    %v808 = vld [vmem:[%s7 + $0xf8] sm:$0xff]
    %809 = vmatprep.subr.mxu0 0.0
    %810 = vmatpush1.msra.mxu0 %v777
    %811 = vmatprep.subr.mxu0 0.0
    %812 = vmatpush1.msra.mxu0 %v778
    %813 = vmatprep.subr.mxu0 0.0
    %814 = vmatpush1.msra.mxu0 %v779
    %815 = vmatprep.subr.mxu0 0.0
    %816 = vmatpush1.msra.mxu0 %v780
    %817 = vmatprep.subr.mxu0 0.0
    %818 = vmatpush1.msra.mxu0 %v781
    %819 = vmatprep.subr.mxu0 0.0
    %820 = vmatpush1.msra.mxu0 %v782
    %821 = vmatprep.subr.mxu0 0.0
    %822 = vmatpush1.msra.mxu0 %v783
    %823 = vmatprep.subr.mxu0 0.0
    %824 = vmatpush1.msra.mxu0 %v784
    %825 = vmatprep.subr.mxu0 0.0
    %826 = vmatpush1.msra.mxu0 %v785
    %827 = vmatprep.subr.mxu0 0.0
    %828 = vmatpush1.msra.mxu0 %v786
    %829 = vmatprep.subr.mxu0 0.0
    %830 = vmatpush1.msra.mxu0 %v787
    %831 = vmatprep.subr.mxu0 0.0
    %832 = vmatpush1.msra.mxu0 %v788
    %833 = vmatprep.subr.mxu0 0.0
    %834 = vmatpush1.msra.mxu0 %v789
    %835 = vmatprep.subr.mxu0 0.0
    %836 = vmatpush1.msra.mxu0 %v790
    %837 = vmatprep.subr.mxu0 0.0
    %838 = vmatpush1.msra.mxu0 %v791
    %839 = vmatprep.subr.mxu0 0.0
    %840 = vmatpush1.msra.mxu0 %v792
    %841 = vmatprep.subr.mxu0 0.0
    %842 = vmatpush1.msra.mxu0 %v793
    %843 = vmatprep.subr.mxu0 0.0
    %844 = vmatpush1.msra.mxu0 %v794
    %845 = vmatprep.subr.mxu0 0.0
    %846 = vmatpush1.msra.mxu0 %v795
    %847 = vmatprep.subr.mxu0 0.0
    %848 = vmatpush1.msra.mxu0 %v796
    %849 = vmatprep.subr.mxu0 0.0
    %850 = vmatpush1.msra.mxu0 %v797
    %851 = vmatprep.subr.mxu0 0.0
    %852 = vmatpush1.msra.mxu0 %v798
    %853 = vmatprep.subr.mxu0 0.0
    %854 = vmatpush1.msra.mxu0 %v799
    %855 = vmatprep.subr.mxu0 0.0
    %856 = vmatpush1.msra.mxu0 %v800
    %857 = vmatprep.subr.mxu0 0.0
    %858 = vmatpush1.msra.mxu0 %v801
    %859 = vmatprep.subr.mxu0 0.0
    %860 = vmatpush1.msra.mxu0 %v802
    %861 = vmatprep.subr.mxu0 0.0
    %862 = vmatpush1.msra.mxu0 %v803
    %863 = vmatprep.subr.mxu0 0.0
    %864 = vmatpush1.msra.mxu0 %v804
    %865 = vmatprep.subr.mxu0 0.0
    %866 = vmatpush1.msra.mxu0 %v805
    %867 = vmatprep.subr.mxu0 0.0
    %868 = vmatpush1.msra.mxu0 %v806
    %869 = vmatprep.subr.mxu0 0.0
    %870 = vmatpush1.msra.mxu0 %v807
    %871 = vmatprep.subr.mxu0 0.0
    %872 = vmatpush1.msra.mxu0 %v808
    %873 = vmatprep.mubr.f32.mxu0 %v776
    %874 = vmatmul.mubr.f32.gmra.mrb[0].mxu0 %v755
    %v875 = vpop.f32.mrb[0].mxu0
    %v876 = vadd.f32 0.0, %v875
    %v877 = vpop.f32.mrb[0].mxu0
    %878 = vdwg.mxu0
    %v879 = vld [vmem:[#allocation3] sm:$0xff]
    %v880 = vld [vmem:[#allocation3 + $0x8] sm:$0xff]
    %v881 = vld [vmem:[#allocation3 + $0x10] sm:$0xff]
    %v882 = vld [vmem:[#allocation3 + $0x18] sm:$0xff]
    %v883 = vld [vmem:[#allocation3 + $0x20] sm:$0xff]
    %v884 = vld [vmem:[#allocation3 + $0x28] sm:$0xff]
    %v885 = vld [vmem:[#allocation3 + $0x30] sm:$0xff]
    %v886 = vld [vmem:[#allocation3 + $0x38] sm:$0xff]
    %v887 = vld [vmem:[#allocation3 + $0x40] sm:$0xff]
    %v888 = vld [vmem:[#allocation3 + $0x48] sm:$0xff]
    %v889 = vld [vmem:[#allocation3 + $0x50] sm:$0xff]
    %v890 = vld [vmem:[#allocation3 + $0x58] sm:$0xff]
    %v891 = vld [vmem:[#allocation3 + $0x60] sm:$0xff]
    %v892 = vld [vmem:[#allocation3 + $0x68] sm:$0xff]
    %v893 = vld [vmem:[#allocation3 + $0x70] sm:$0xff]
    %v894 = vld [vmem:[#allocation3 + $0x78] sm:$0xff]
    %v895 = vld [vmem:[#allocation3 + $0x80] sm:$0xff]
    %v896 = vld [vmem:[#allocation3 + $0x88] sm:$0xff]
    %v897 = vld [vmem:[#allocation3 + $0x90] sm:$0xff]
    %v898 = vld [vmem:[#allocation3 + $0x98] sm:$0xff]
    %v899 = vld [vmem:[#allocation3 + $0xa0] sm:$0xff]
    %v900 = vld [vmem:[#allocation3 + $0xa8] sm:$0xff]
    %v901 = vld [vmem:[#allocation3 + $0xb0] sm:$0xff]
    %v902 = vld [vmem:[#allocation3 + $0xb8] sm:$0xff]
    %v903 = vld [vmem:[#allocation3 + $0xc0] sm:$0xff]
    %v904 = vld [vmem:[#allocation3 + $0xc8] sm:$0xff]
    %v905 = vld [vmem:[#allocation3 + $0xd0] sm:$0xff]
    %v906 = vld [vmem:[#allocation3 + $0xd8] sm:$0xff]
    %v907 = vld [vmem:[#allocation3 + $0xe0] sm:$0xff]
    %v908 = vld [vmem:[#allocation3 + $0xe8] sm:$0xff]
    %v909 = vld [vmem:[#allocation3 + $0xf0] sm:$0xff]
    %v910 = vld [vmem:[#allocation3 + $0xf8] sm:$0xff]
    %v911 = vld [vmem:[#allocation3 + $0x100] sm:$0xff]
    %v912 = vld [vmem:[#allocation3 + $0x108] sm:$0xff]
    %v913 = vld [vmem:[#allocation3 + $0x110] sm:$0xff]
    %v914 = vld [vmem:[#allocation3 + $0x118] sm:$0xff]
    %v915 = vld [vmem:[#allocation3 + $0x120] sm:$0xff]
    %v916 = vld [vmem:[#allocation3 + $0x128] sm:$0xff]
    %v917 = vld [vmem:[#allocation3 + $0x130] sm:$0xff]
    %v918 = vld [vmem:[#allocation3 + $0x138] sm:$0xff]
    %v919 = vld [vmem:[#allocation3 + $0x140] sm:$0xff]
    %v920 = vld [vmem:[#allocation3 + $0x148] sm:$0xff]
    %v921 = vld [vmem:[#allocation3 + $0x150] sm:$0xff]
    %v922 = vld [vmem:[#allocation3 + $0x158] sm:$0xff]
    %v923 = vld [vmem:[#allocation3 + $0x160] sm:$0xff]
    %v924 = vld [vmem:[#allocation3 + $0x168] sm:$0xff]
    %v925 = vld [vmem:[#allocation3 + $0x170] sm:$0xff]
    %v926 = vld [vmem:[#allocation3 + $0x178] sm:$0xff]
    %v927 = vld [vmem:[#allocation3 + $0x180] sm:$0xff]
    %v928 = vld [vmem:[#allocation3 + $0x188] sm:$0xff]
    %v929 = vld [vmem:[#allocation3 + $0x190] sm:$0xff]
    %v930 = vld [vmem:[#allocation3 + $0x198] sm:$0xff]
    %v931 = vld [vmem:[#allocation3 + $0x1a0] sm:$0xff]
    %v932 = vld [vmem:[#allocation3 + $0x1a8] sm:$0xff]
    %v933 = vld [vmem:[#allocation3 + $0x1b0] sm:$0xff]
    %v934 = vld [vmem:[#allocation3 + $0x1b8] sm:$0xff]
    %v935 = vld [vmem:[#allocation3 + $0x1c0] sm:$0xff]
    %v936 = vld [vmem:[#allocation3 + $0x1c8] sm:$0xff]
    %v937 = vld [vmem:[#allocation3 + $0x1d0] sm:$0xff]
    %v938 = vld [vmem:[#allocation3 + $0x1d8] sm:$0xff]
    %v939 = vld [vmem:[#allocation3 + $0x1e0] sm:$0xff]
    %v940 = vld [vmem:[#allocation3 + $0x1e8] sm:$0xff]
    %v941 = vld [vmem:[#allocation3 + $0x1f0] sm:$0xff]
    %v942 = vld [vmem:[#allocation3 + $0x1f8] sm:$0xff]
    %v943 = vld [vmem:[#allocation3 + $0x200] sm:$0xff]
    %v944 = vld [vmem:[#allocation3 + $0x208] sm:$0xff]
    %v945 = vld [vmem:[#allocation3 + $0x210] sm:$0xff]
    %v946 = vld [vmem:[#allocation3 + $0x218] sm:$0xff]
    %v947 = vld [vmem:[#allocation3 + $0x220] sm:$0xff]
    %v948 = vld [vmem:[#allocation3 + $0x228] sm:$0xff]
    %v949 = vld [vmem:[#allocation3 + $0x230] sm:$0xff]
    %v950 = vld [vmem:[#allocation3 + $0x238] sm:$0xff]
    %v951 = vld [vmem:[#allocation3 + $0x240] sm:$0xff]
    %v952 = vld [vmem:[#allocation3 + $0x248] sm:$0xff]
    %v953 = vld [vmem:[#allocation3 + $0x250] sm:$0xff]
    %v954 = vld [vmem:[#allocation3 + $0x258] sm:$0xff]
    %v955 = vld [vmem:[#allocation3 + $0x260] sm:$0xff]
    %v956 = vld [vmem:[#allocation3 + $0x268] sm:$0xff]
    %v957 = vld [vmem:[#allocation3 + $0x270] sm:$0xff]
    %v958 = vld [vmem:[#allocation3 + $0x278] sm:$0xff]
    %v959 = vld [vmem:[#allocation3 + $0x280] sm:$0xff]
    %v960 = vld [vmem:[#allocation3 + $0x288] sm:$0xff]
    %v961 = vld [vmem:[#allocation3 + $0x290] sm:$0xff]
    %v962 = vld [vmem:[#allocation3 + $0x298] sm:$0xff]
    %v963 = vld [vmem:[#allocation3 + $0x2a0] sm:$0xff]
    %v964 = vld [vmem:[#allocation3 + $0x2a8] sm:$0xff]
    %v965 = vld [vmem:[#allocation3 + $0x2b0] sm:$0xff]
    %v966 = vld [vmem:[#allocation3 + $0x2b8] sm:$0xff]
    %v967 = vld [vmem:[#allocation3 + $0x2c0] sm:$0xff]
    %v968 = vld [vmem:[#allocation3 + $0x2c8] sm:$0xff]
    %v969 = vld [vmem:[#allocation3 + $0x2d0] sm:$0xff]
    %v970 = vld [vmem:[#allocation3 + $0x2d8] sm:$0xff]
    %v971 = vld [vmem:[#allocation3 + $0x2e0] sm:$0xff]
    %v972 = vld [vmem:[#allocation3 + $0x2e8] sm:$0xff]
    %v973 = vld [vmem:[#allocation3 + $0x2f0] sm:$0xff]
    %v974 = vld [vmem:[#allocation3 + $0x2f8] sm:$0xff]
    %v975 = vld [vmem:[#allocation3 + $0x300] sm:$0xff]
    %v976 = vld [vmem:[#allocation3 + $0x308] sm:$0xff]
    %v977 = vld [vmem:[#allocation3 + $0x310] sm:$0xff]
    %v978 = vld [vmem:[#allocation3 + $0x318] sm:$0xff]
    %v979 = vld [vmem:[#allocation3 + $0x320] sm:$0xff]
    %v980 = vld [vmem:[#allocation3 + $0x328] sm:$0xff]
    %v981 = vld [vmem:[#allocation3 + $0x330] sm:$0xff]
    %v982 = vld [vmem:[#allocation3 + $0x338] sm:$0xff]
    %v983 = vld [vmem:[#allocation3 + $0x340] sm:$0xff]
    %v984 = vld [vmem:[#allocation3 + $0x348] sm:$0xff]
    %v985 = vld [vmem:[#allocation3 + $0x350] sm:$0xff]
    %v986 = vld [vmem:[#allocation3 + $0x358] sm:$0xff]
    %v987 = vld [vmem:[#allocation3 + $0x360] sm:$0xff]
    %v988 = vld [vmem:[#allocation3 + $0x368] sm:$0xff]
    %v989 = vld [vmem:[#allocation3 + $0x370] sm:$0xff]
    %v990 = vld [vmem:[#allocation3 + $0x378] sm:$0xff]
    %v991 = vld [vmem:[#allocation3 + $0x380] sm:$0xff]
    %v992 = vld [vmem:[#allocation3 + $0x388] sm:$0xff]
    %v993 = vld [vmem:[#allocation3 + $0x390] sm:$0xff]
    %v994 = vld [vmem:[#allocation3 + $0x398] sm:$0xff]
    %v995 = vld [vmem:[#allocation3 + $0x3a0] sm:$0xff]
    %v996 = vld [vmem:[#allocation3 + $0x3a8] sm:$0xff]
    %v997 = vld [vmem:[#allocation3 + $0x3b0] sm:$0xff]
    %v998 = vld [vmem:[#allocation3 + $0x3b8] sm:$0xff]
    %v999 = vld [vmem:[#allocation3 + $0x3c0] sm:$0xff]
    %v1000 = vld [vmem:[#allocation3 + $0x3c8] sm:$0xff]
    %v1001 = vld [vmem:[#allocation3 + $0x3d0] sm:$0xff]
    %v1002 = vld [vmem:[#allocation3 + $0x3d8] sm:$0xff]
    %v1003 = vld [vmem:[#allocation3 + $0x3e0] sm:$0xff]
    %v1004 = vld [vmem:[#allocation3 + $0x3e8] sm:$0xff]
    %v1005 = vld [vmem:[#allocation3 + $0x3f0] sm:$0xff]
    %v1006 = vld [vmem:[#allocation3 + $0x3f8] sm:$0xff]
    %v1007 = vld [vmem:[#allocation3 + $0x400] sm:$0xff]
    %v1008 = vld [vmem:[#allocation3 + $0x408] sm:$0xff]
    %v1009 = vld [vmem:[#allocation3 + $0x410] sm:$0xff]
    %v1010 = vld [vmem:[#allocation3 + $0x418] sm:$0xff]
    %v1011 = vld [vmem:[#allocation3 + $0x420] sm:$0xff]
    %v1012 = vld [vmem:[#allocation3 + $0x428] sm:$0xff]
    %v1013 = vld [vmem:[#allocation3 + $0x430] sm:$0xff]
    %v1014 = vld [vmem:[#allocation3 + $0x438] sm:$0xff]
    %v1015 = vld [vmem:[#allocation3 + $0x440] sm:$0xff]
    %v1016 = vld [vmem:[#allocation3 + $0x448] sm:$0xff]
    %v1017 = vld [vmem:[#allocation3 + $0x450] sm:$0xff]
    %v1018 = vld [vmem:[#allocation3 + $0x458] sm:$0xff]
    %v1019 = vld [vmem:[#allocation3 + $0x460] sm:$0xff]
    %v1020 = vld [vmem:[#allocation3 + $0x468] sm:$0xff]
    %v1021 = vld [vmem:[#allocation3 + $0x470] sm:$0xff]
    %v1022 = vld [vmem:[#allocation3 + $0x478] sm:$0xff]
    %v1023 = vld [vmem:[#allocation3 + $0x480] sm:$0xff]
    %v1024 = vld [vmem:[#allocation3 + $0x488] sm:$0xff]
    %v1025 = vld [vmem:[#allocation3 + $0x490] sm:$0xff]
    %v1026 = vld [vmem:[#allocation3 + $0x498] sm:$0xff]
    %v1027 = vld [vmem:[#allocation3 + $0x4a0] sm:$0xff]
    %v1028 = vld [vmem:[#allocation3 + $0x4a8] sm:$0xff]
    %v1029 = vld [vmem:[#allocation3 + $0x4b0] sm:$0xff]
    %v1030 = vld [vmem:[#allocation3 + $0x4b8] sm:$0xff]
    %v1031 = vld [vmem:[#allocation3 + $0x4c0] sm:$0xff]
    %v1032 = vld [vmem:[#allocation3 + $0x4c8] sm:$0xff]
    %v1033 = vld [vmem:[#allocation3 + $0x4d0] sm:$0xff]
    %v1034 = vld [vmem:[#allocation3 + $0x4d8] sm:$0xff]
    %v1035 = vld [vmem:[#allocation3 + $0x4e0] sm:$0xff]
    %v1036 = vld [vmem:[#allocation3 + $0x4e8] sm:$0xff]
    %v1037 = vld [vmem:[#allocation3 + $0x4f0] sm:$0xff]
    %v1038 = vld [vmem:[#allocation3 + $0x4f8] sm:$0xff]
    %v1039 = vld [vmem:[#allocation3 + $0x500] sm:$0xff]
    %v1040 = vld [vmem:[#allocation3 + $0x508] sm:$0xff]
    %v1041 = vld [vmem:[#allocation3 + $0x510] sm:$0xff]
    %v1042 = vld [vmem:[#allocation3 + $0x518] sm:$0xff]
    %v1043 = vld [vmem:[#allocation3 + $0x520] sm:$0xff]
    %v1044 = vld [vmem:[#allocation3 + $0x528] sm:$0xff]
    %v1045 = vld [vmem:[#allocation3 + $0x530] sm:$0xff]
    %v1046 = vld [vmem:[#allocation3 + $0x538] sm:$0xff]
    %v1047 = vld [vmem:[#allocation3 + $0x540] sm:$0xff]
    %v1048 = vld [vmem:[#allocation3 + $0x548] sm:$0xff]
    %v1049 = vld [vmem:[#allocation3 + $0x550] sm:$0xff]
    %v1050 = vld [vmem:[#allocation3 + $0x558] sm:$0xff]
    %v1051 = vld [vmem:[#allocation3 + $0x560] sm:$0xff]
    %v1052 = vld [vmem:[#allocation3 + $0x568] sm:$0xff]
    %v1053 = vld [vmem:[#allocation3 + $0x570] sm:$0xff]
    %v1054 = vld [vmem:[#allocation3 + $0x578] sm:$0xff]
    %v1055 = vld [vmem:[#allocation3 + $0x580] sm:$0xff]
    %v1056 = vld [vmem:[#allocation3 + $0x588] sm:$0xff]
    %v1057 = vld [vmem:[#allocation3 + $0x590] sm:$0xff]
    %v1058 = vld [vmem:[#allocation3 + $0x598] sm:$0xff]
    %v1059 = vld [vmem:[#allocation3 + $0x5a0] sm:$0xff]
    %v1060 = vld [vmem:[#allocation3 + $0x5a8] sm:$0xff]
    %v1061 = vld [vmem:[#allocation3 + $0x5b0] sm:$0xff]
    %v1062 = vld [vmem:[#allocation3 + $0x5b8] sm:$0xff]
    %v1063 = vld [vmem:[#allocation3 + $0x5c0] sm:$0xff]
    %v1064 = vld [vmem:[#allocation3 + $0x5c8] sm:$0xff]
    %v1065 = vld [vmem:[#allocation3 + $0x5d0] sm:$0xff]
    %v1066 = vld [vmem:[#allocation3 + $0x5d8] sm:$0xff]
    %v1067 = vld [vmem:[#allocation3 + $0x5e0] sm:$0xff]
    %v1068 = vld [vmem:[#allocation3 + $0x5e8] sm:$0xff]
    %v1069 = vld [vmem:[#allocation3 + $0x5f0] sm:$0xff]
    %v1070 = vld [vmem:[#allocation3 + $0x5f8] sm:$0xff]
    %v1071 = vld [vmem:[#allocation3 + $0x600] sm:$0xff]
    %v1072 = vld [vmem:[#allocation3 + $0x608] sm:$0xff]
    %v1073 = vld [vmem:[#allocation3 + $0x610] sm:$0xff]
    %v1074 = vld [vmem:[#allocation3 + $0x618] sm:$0xff]
    %v1075 = vld [vmem:[#allocation3 + $0x620] sm:$0xff]
    %v1076 = vld [vmem:[#allocation3 + $0x628] sm:$0xff]
    %v1077 = vld [vmem:[#allocation3 + $0x630] sm:$0xff]
    %v1078 = vld [vmem:[#allocation3 + $0x638] sm:$0xff]
    %v1079 = vld [vmem:[#allocation3 + $0x640] sm:$0xff]
    %v1080 = vld [vmem:[#allocation3 + $0x648] sm:$0xff]
    %v1081 = vld [vmem:[#allocation3 + $0x650] sm:$0xff]
    %v1082 = vld [vmem:[#allocation3 + $0x658] sm:$0xff]
    %v1083 = vld [vmem:[#allocation3 + $0x660] sm:$0xff]
    %v1084 = vld [vmem:[#allocation3 + $0x668] sm:$0xff]
    %v1085 = vld [vmem:[#allocation3 + $0x670] sm:$0xff]
    %v1086 = vld [vmem:[#allocation3 + $0x678] sm:$0xff]
    %v1087 = vld [vmem:[#allocation3 + $0x680] sm:$0xff]
    %v1088 = vld [vmem:[#allocation3 + $0x688] sm:$0xff]
    %v1089 = vld [vmem:[#allocation3 + $0x690] sm:$0xff]
    %v1090 = vld [vmem:[#allocation3 + $0x698] sm:$0xff]
    %v1091 = vld [vmem:[#allocation3 + $0x6a0] sm:$0xff]
    %v1092 = vld [vmem:[#allocation3 + $0x6a8] sm:$0xff]
    %v1093 = vld [vmem:[#allocation3 + $0x6b0] sm:$0xff]
    %v1094 = vld [vmem:[#allocation3 + $0x6b8] sm:$0xff]
    %v1095 = vld [vmem:[#allocation3 + $0x6c0] sm:$0xff]
    %v1096 = vld [vmem:[#allocation3 + $0x6c8] sm:$0xff]
    %v1097 = vld [vmem:[#allocation3 + $0x6d0] sm:$0xff]
    %v1098 = vld [vmem:[#allocation3 + $0x6d8] sm:$0xff]
    %v1099 = vld [vmem:[#allocation3 + $0x6e0] sm:$0xff]
    %v1100 = vld [vmem:[#allocation3 + $0x6e8] sm:$0xff]
    %v1101 = vld [vmem:[#allocation3 + $0x6f0] sm:$0xff]
    %v1102 = vld [vmem:[#allocation3 + $0x6f8] sm:$0xff]
    %v1103 = vld [vmem:[#allocation3 + $0x700] sm:$0xff]
    %v1104 = vld [vmem:[#allocation3 + $0x708] sm:$0xff]
    %v1105 = vld [vmem:[#allocation3 + $0x710] sm:$0xff]
    %v1106 = vld [vmem:[#allocation3 + $0x718] sm:$0xff]
    %v1107 = vld [vmem:[#allocation3 + $0x720] sm:$0xff]
    %v1108 = vld [vmem:[#allocation3 + $0x728] sm:$0xff]
    %v1109 = vld [vmem:[#allocation3 + $0x730] sm:$0xff]
    %v1110 = vld [vmem:[#allocation3 + $0x738] sm:$0xff]
    %v1111 = vld [vmem:[#allocation3 + $0x740] sm:$0xff]
    %v1112 = vld [vmem:[#allocation3 + $0x748] sm:$0xff]
    %v1113 = vld [vmem:[#allocation3 + $0x750] sm:$0xff]
    %v1114 = vld [vmem:[#allocation3 + $0x758] sm:$0xff]
    %v1115 = vld [vmem:[#allocation3 + $0x760] sm:$0xff]
    %v1116 = vld [vmem:[#allocation3 + $0x768] sm:$0xff]
    %v1117 = vld [vmem:[#allocation3 + $0x770] sm:$0xff]
    %v1118 = vld [vmem:[#allocation3 + $0x778] sm:$0xff]
    %v1119 = vld [vmem:[#allocation3 + $0x780] sm:$0xff]
    %v1120 = vld [vmem:[#allocation3 + $0x788] sm:$0xff]
    %v1121 = vld [vmem:[#allocation3 + $0x790] sm:$0xff]
    %v1122 = vld [vmem:[#allocation3 + $0x798] sm:$0xff]
    %v1123 = vld [vmem:[#allocation3 + $0x7a0] sm:$0xff]
    %v1124 = vld [vmem:[#allocation3 + $0x7a8] sm:$0xff]
    %v1125 = vld [vmem:[#allocation3 + $0x7b0] sm:$0xff]
    %v1126 = vld [vmem:[#allocation3 + $0x7b8] sm:$0xff]
    %v1127 = vld [vmem:[#allocation3 + $0x7c0] sm:$0xff]
    %v1128 = vld [vmem:[#allocation3 + $0x7c8] sm:$0xff]
    %v1129 = vld [vmem:[#allocation3 + $0x7d0] sm:$0xff]
    %v1130 = vld [vmem:[#allocation3 + $0x7d8] sm:$0xff]
    %v1131 = vld [vmem:[#allocation3 + $0x7e0] sm:$0xff]
    %v1132 = vld [vmem:[#allocation3 + $0x7e8] sm:$0xff]
    %v1133 = vld [vmem:[#allocation3 + $0x7f0] sm:$0xff]
    %v1134 = vld [vmem:[#allocation3 + $0x7f8] sm:$0xff]
    %v1151 = vlaneseq
    %v1152 = vand.u32 %v1151, 127
    %v1153 = vlaneseq
    %v1154 = vshrl.u32 %v1153, 7
    %v1155 = vsub.s32 %v1152, %v1154
    %v1156 = vrot.slane %v689, %v1155
    %v1157 = vadd.s32 %v1152, 4294967288
    %v1158 = vlaneseq
    %v1159 = vshrl.u32 %v1158, 7
    %v1160 = vsub.s32 %v1157, %v1159
    %v1161 = vrot.slane %v692, %v1160
    %vm1162 = vcmask 130112
    %v1163 = vsel %vm1162, %v1161, %v1156
    %v1164 = vadd.s32 %v1152, 4294967280
    %v1165 = vlaneseq
    %v1166 = vshrl.u32 %v1165, 7
    %v1167 = vsub.s32 %v1164, %v1166
    %v1168 = vrot.slane %v695, %v1167
    %vm1169 = vcmask 195712
    %v1170 = vsel %vm1169, %v1168, %v1163
    %v1171 = vadd.s32 %v1152, 4294967272
    %v1172 = vlaneseq
    %v1173 = vshrl.u32 %v1172, 7
    %v1174 = vsub.s32 %v1171, %v1173
    %v1175 = vrot.slane %v698, %v1174
    %vm1176 = vcmask 261312
    %v1177 = vsel %vm1176, %v1175, %v1170
    %v1178 = vadd.s32 %v1152, 4294967264
    %v1179 = vlaneseq
    %v1180 = vshrl.u32 %v1179, 7
    %v1181 = vsub.s32 %v1178, %v1180
    %v1182 = vrot.slane %v701, %v1181
    %vm1183 = vcmask 326912
    %v1184 = vsel %vm1183, %v1182, %v1177
    %v1185 = vadd.s32 %v1152, 4294967256
    %v1186 = vlaneseq
    %v1187 = vshrl.u32 %v1186, 7
    %v1188 = vsub.s32 %v1185, %v1187
    %v1189 = vrot.slane %v704, %v1188
    %vm1190 = vcmask 392512
    %v1191 = vsel %vm1190, %v1189, %v1184
    %v1192 = vadd.s32 %v1152, 4294967248
    %v1193 = vlaneseq
    %v1194 = vshrl.u32 %v1193, 7
    %v1195 = vsub.s32 %v1192, %v1194
    %v1196 = vrot.slane %v707, %v1195
    %vm1197 = vcmask 458112
    %v1198 = vsel %vm1197, %v1196, %v1191
    %v1199 = vadd.s32 %v1152, 4294967240
    %v1200 = vlaneseq
    %v1201 = vshrl.u32 %v1200, 7
    %v1202 = vsub.s32 %v1199, %v1201
    %v1203 = vrot.slane %v710, %v1202
    %vm1204 = vcmask 523712
    %v1205 = vsel %vm1204, %v1203, %v1198
    %v1206 = vadd.s32 %v1152, 4294967232
    %v1207 = vlaneseq
    %v1208 = vshrl.u32 %v1207, 7
    %v1209 = vsub.s32 %v1206, %v1208
    %v1210 = vrot.slane %v713, %v1209
    %vm1211 = vcmask 589312
    %v1212 = vsel %vm1211, %v1210, %v1205
    %v1213 = vadd.s32 %v1152, 4294967224
    %v1214 = vlaneseq
    %v1215 = vshrl.u32 %v1214, 7
    %v1216 = vsub.s32 %v1213, %v1215
    %v1217 = vrot.slane %v716, %v1216
    %vm1218 = vcmask 654912
    %v1219 = vsel %vm1218, %v1217, %v1212
    %v1220 = vadd.s32 %v1152, 4294967216
    %v1221 = vlaneseq
    %v1222 = vshrl.u32 %v1221, 7
    %v1223 = vsub.s32 %v1220, %v1222
    %v1224 = vrot.slane %v719, %v1223
    %vm1225 = vcmask 720512
    %v1226 = vsel %vm1225, %v1224, %v1219
    %v1227 = vadd.s32 %v1152, 4294967208
    %v1228 = vlaneseq
    %v1229 = vshrl.u32 %v1228, 7
    %v1230 = vsub.s32 %v1227, %v1229
    %v1231 = vrot.slane %v722, %v1230
    %vm1232 = vcmask 786112
    %v1233 = vsel %vm1232, %v1231, %v1226
    %v1234 = vadd.s32 %v1152, 4294967200
    %v1235 = vlaneseq
    %v1236 = vshrl.u32 %v1235, 7
    %v1237 = vsub.s32 %v1234, %v1236
    %v1238 = vrot.slane %v725, %v1237
    %vm1239 = vcmask 851712
    %v1240 = vsel %vm1239, %v1238, %v1233
    %v1241 = vadd.s32 %v1152, 4294967192
    %v1242 = vlaneseq
    %v1243 = vshrl.u32 %v1242, 7
    %v1244 = vsub.s32 %v1241, %v1243
    %v1245 = vrot.slane %v728, %v1244
    %vm1246 = vcmask 917312
    %v1247 = vsel %vm1246, %v1245, %v1240
    %v1248 = vadd.s32 %v1152, 4294967184
    %v1249 = vlaneseq
    %v1250 = vshrl.u32 %v1249, 7
    %v1251 = vsub.s32 %v1248, %v1250
    %v1252 = vrot.slane %v731, %v1251
    %vm1253 = vcmask 982912
    %v1254 = vsel %vm1253, %v1252, %v1247
    %v1255 = vadd.s32 %v1152, 4294967176
    %v1256 = vlaneseq
    %v1257 = vshrl.u32 %v1256, 7
    %v1258 = vsub.s32 %v1255, %v1257
    %v1259 = vrot.slane %v734, %v1258
    %vm1260 = vcmask 1048512
    %v1261 = vsel %vm1260, %v1259, %v1254
    %1263 = vmatprep.subr.mxu0 %v880
    %1264 = vmatpush1.msra.mxu0 %v879
    %1265 = vmatprep.subr.mxu0 %v896
    %1266 = vmatpush1.msra.mxu0 %v895
    %1267 = vmatprep.subr.mxu0 %v912
    %1268 = vmatpush1.msra.mxu0 %v911
    %1269 = vmatprep.subr.mxu0 %v928
    %1270 = vmatpush1.msra.mxu0 %v927
    %1271 = vmatprep.subr.mxu0 %v944
    %1272 = vmatpush1.msra.mxu0 %v943
    %1273 = vmatprep.subr.mxu0 %v960
    %1274 = vmatpush1.msra.mxu0 %v959
    %1275 = vmatprep.subr.mxu0 %v976
    %1276 = vmatpush1.msra.mxu0 %v975
    %1277 = vmatprep.subr.mxu0 %v992
    %1278 = vmatpush1.msra.mxu0 %v991
    %1279 = vmatprep.subr.mxu0 %v1008
    %1280 = vmatpush1.msra.mxu0 %v1007
    %1281 = vmatprep.subr.mxu0 %v1024
    %1282 = vmatpush1.msra.mxu0 %v1023
    %1283 = vmatprep.subr.mxu0 %v1040
    %1284 = vmatpush1.msra.mxu0 %v1039
    %1285 = vmatprep.subr.mxu0 %v1056
    %1286 = vmatpush1.msra.mxu0 %v1055
    %1287 = vmatprep.subr.mxu0 %v1072
    %1288 = vmatpush1.msra.mxu0 %v1071
    %1289 = vmatprep.subr.mxu0 %v1088
    %1290 = vmatpush1.msra.mxu0 %v1087
    %1291 = vmatprep.subr.mxu0 %v1104
    %1292 = vmatpush1.msra.mxu0 %v1103
    %1293 = vmatprep.subr.mxu0 %v1120
    %1294 = vmatpush1.msra.mxu0 %v1119
    %1295 = vmatprep.subr.mxu0 0.0
    %1296 = vmatpush1.msra.mxu0 0.0
    %1297 = vmatprep.subr.mxu0 0.0
    %1298 = vmatpush1.msra.mxu0 0.0
    %1299 = vmatprep.subr.mxu0 0.0
    %1300 = vmatpush1.msra.mxu0 0.0
    %1301 = vmatprep.subr.mxu0 0.0
    %1302 = vmatpush1.msra.mxu0 0.0
    %1303 = vmatprep.subr.mxu0 0.0
    %1304 = vmatpush1.msra.mxu0 0.0
    %1305 = vmatprep.subr.mxu0 0.0
    %1306 = vmatpush1.msra.mxu0 0.0
    %1307 = vmatprep.subr.mxu0 0.0
    %1308 = vmatpush1.msra.mxu0 0.0
    %1309 = vmatprep.subr.mxu0 0.0
    %1310 = vmatpush1.msra.mxu0 0.0
    %1311 = vmatprep.subr.mxu0 0.0
    %1312 = vmatpush1.msra.mxu0 0.0
    %1313 = vmatprep.subr.mxu0 0.0
    %1314 = vmatpush1.msra.mxu0 0.0
    %1315 = vmatprep.subr.mxu0 0.0
    %1316 = vmatpush1.msra.mxu0 0.0
    %1317 = vmatprep.subr.mxu0 0.0
    %1318 = vmatpush1.msra.mxu0 0.0
    %1319 = vmatprep.subr.mxu0 0.0
    %1320 = vmatpush1.msra.mxu0 0.0
    %1321 = vmatprep.subr.mxu0 0.0
    %1322 = vmatpush1.msra.mxu0 0.0
    %1323 = vmatprep.subr.mxu0 0.0
    %1324 = vmatpush1.msra.mxu0 0.0
    %1325 = vmatprep.subr.mxu0 0.0
    %1326 = vmatpush1.msra.mxu0 0.0
    %1327 = vmatprep.mubr.f32.mxu0 0.0
    %1328 = vmatmul.mubr.f32.gmra.mrb[0].mxu0 %v1261
    %v1329 = vpop.f32.mrb[0].mxu0
    %v1330 = vadd.f32 0.0, %v1329
    %v1331 = vpop.f32.mrb[0].mxu0
    %v1332 = vadd.f32 0.0, %v1331
    %1333 = vdwg.mxu0
    %1334 = vmatprep.subr.mxu0 %v882
    %1335 = vmatpush1.msra.mxu0 %v881
    %1336 = vmatprep.subr.mxu0 %v898
    %1337 = vmatpush1.msra.mxu0 %v897
    %1338 = vmatprep.subr.mxu0 %v914
    %1339 = vmatpush1.msra.mxu0 %v913
    %1340 = vmatprep.subr.mxu0 %v930
    %1341 = vmatpush1.msra.mxu0 %v929
    %1342 = vmatprep.subr.mxu0 %v946
    %1343 = vmatpush1.msra.mxu0 %v945
    %1344 = vmatprep.subr.mxu0 %v962
    %1345 = vmatpush1.msra.mxu0 %v961
    %1346 = vmatprep.subr.mxu0 %v978
    %1347 = vmatpush1.msra.mxu0 %v977
    %1348 = vmatprep.subr.mxu0 %v994
    %1349 = vmatpush1.msra.mxu0 %v993
    %1350 = vmatprep.subr.mxu0 %v1010
    %1351 = vmatpush1.msra.mxu0 %v1009
    %1352 = vmatprep.subr.mxu0 %v1026
    %1353 = vmatpush1.msra.mxu0 %v1025
    %1354 = vmatprep.subr.mxu0 %v1042
    %1355 = vmatpush1.msra.mxu0 %v1041
    %1356 = vmatprep.subr.mxu0 %v1058
    %1357 = vmatpush1.msra.mxu0 %v1057
    %1358 = vmatprep.subr.mxu0 %v1074
    %1359 = vmatpush1.msra.mxu0 %v1073
    %1360 = vmatprep.subr.mxu0 %v1090
    %1361 = vmatpush1.msra.mxu0 %v1089
    %1362 = vmatprep.subr.mxu0 %v1106
    %1363 = vmatpush1.msra.mxu0 %v1105
    %1364 = vmatprep.subr.mxu0 %v1122
    %1365 = vmatpush1.msra.mxu0 %v1121
    %1366 = vmatprep.subr.mxu0 0.0
    %1367 = vmatpush1.msra.mxu0 0.0
    %1368 = vmatprep.subr.mxu0 0.0
    %1369 = vmatpush1.msra.mxu0 0.0
    %1370 = vmatprep.subr.mxu0 0.0
    %1371 = vmatpush1.msra.mxu0 0.0
    %1372 = vmatprep.subr.mxu0 0.0
    %1373 = vmatpush1.msra.mxu0 0.0
    %1374 = vmatprep.subr.mxu0 0.0
    %1375 = vmatpush1.msra.mxu0 0.0
    %1376 = vmatprep.subr.mxu0 0.0
    %1377 = vmatpush1.msra.mxu0 0.0
    %1378 = vmatprep.subr.mxu0 0.0
    %1379 = vmatpush1.msra.mxu0 0.0
    %1380 = vmatprep.subr.mxu0 0.0
    %1381 = vmatpush1.msra.mxu0 0.0
    %1382 = vmatprep.subr.mxu0 0.0
    %1383 = vmatpush1.msra.mxu0 0.0
    %1384 = vmatprep.subr.mxu0 0.0
    %1385 = vmatpush1.msra.mxu0 0.0
    %1386 = vmatprep.subr.mxu0 0.0
    %1387 = vmatpush1.msra.mxu0 0.0
    %1388 = vmatprep.subr.mxu0 0.0
    %1389 = vmatpush1.msra.mxu0 0.0
    %1390 = vmatprep.subr.mxu0 0.0
    %1391 = vmatpush1.msra.mxu0 0.0
    %1392 = vmatprep.subr.mxu0 0.0
    %1393 = vmatpush1.msra.mxu0 0.0
    %1394 = vmatprep.subr.mxu0 0.0
    %1395 = vmatpush1.msra.mxu0 0.0
    %1396 = vmatprep.subr.mxu0 0.0
    %1397 = vmatpush1.msra.mxu0 0.0
    %1398 = vmatprep.mubr.f32.mxu0 0.0
    %1399 = vmatmul.mubr.f32.gmra.mrb[0].mxu0 %v1261
    %v1400 = vpop.f32.mrb[0].mxu0
    %v1401 = vadd.f32 0.0, %v1400
    %v1402 = vpop.f32.mrb[0].mxu0
    %v1403 = vadd.f32 0.0, %v1402
    %1404 = vdwg.mxu0
    %1405 = vmatprep.subr.mxu0 %v884
    %1406 = vmatpush1.msra.mxu0 %v883
    %1407 = vmatprep.subr.mxu0 %v900
    %1408 = vmatpush1.msra.mxu0 %v899
    %1409 = vmatprep.subr.mxu0 %v916
    %1410 = vmatpush1.msra.mxu0 %v915
    %1411 = vmatprep.subr.mxu0 %v932
    %1412 = vmatpush1.msra.mxu0 %v931
    %1413 = vmatprep.subr.mxu0 %v948
    %1414 = vmatpush1.msra.mxu0 %v947
    %1415 = vmatprep.subr.mxu0 %v964
    %1416 = vmatpush1.msra.mxu0 %v963
    %1417 = vmatprep.subr.mxu0 %v980
    %1418 = vmatpush1.msra.mxu0 %v979
    %1419 = vmatprep.subr.mxu0 %v996
    %1420 = vmatpush1.msra.mxu0 %v995
    %1421 = vmatprep.subr.mxu0 %v1012
    %1422 = vmatpush1.msra.mxu0 %v1011
    %1423 = vmatprep.subr.mxu0 %v1028
    %1424 = vmatpush1.msra.mxu0 %v1027
    %1425 = vmatprep.subr.mxu0 %v1044
    %1426 = vmatpush1.msra.mxu0 %v1043
    %1427 = vmatprep.subr.mxu0 %v1060
    %1428 = vmatpush1.msra.mxu0 %v1059
    %1429 = vmatprep.subr.mxu0 %v1076
    %1430 = vmatpush1.msra.mxu0 %v1075
    %1431 = vmatprep.subr.mxu0 %v1092
    %1432 = vmatpush1.msra.mxu0 %v1091
    %1433 = vmatprep.subr.mxu0 %v1108
    %1434 = vmatpush1.msra.mxu0 %v1107
    %1435 = vmatprep.subr.mxu0 %v1124
    %1436 = vmatpush1.msra.mxu0 %v1123
    %1437 = vmatprep.subr.mxu0 0.0
    %1438 = vmatpush1.msra.mxu0 0.0
    %1439 = vmatprep.subr.mxu0 0.0
    %1440 = vmatpush1.msra.mxu0 0.0
    %1441 = vmatprep.subr.mxu0 0.0
    %1442 = vmatpush1.msra.mxu0 0.0
    %1443 = vmatprep.subr.mxu0 0.0
    %1444 = vmatpush1.msra.mxu0 0.0
    %1445 = vmatprep.subr.mxu0 0.0
    %1446 = vmatpush1.msra.mxu0 0.0
    %1447 = vmatprep.subr.mxu0 0.0
    %1448 = vmatpush1.msra.mxu0 0.0
    %1449 = vmatprep.subr.mxu0 0.0
    %1450 = vmatpush1.msra.mxu0 0.0
    %1451 = vmatprep.subr.mxu0 0.0
    %1452 = vmatpush1.msra.mxu0 0.0
    %1453 = vmatprep.subr.mxu0 0.0
    %1454 = vmatpush1.msra.mxu0 0.0
    %1455 = vmatprep.subr.mxu0 0.0
    %1456 = vmatpush1.msra.mxu0 0.0
    %1457 = vmatprep.subr.mxu0 0.0
    %1458 = vmatpush1.msra.mxu0 0.0
    %1459 = vmatprep.subr.mxu0 0.0
    %1460 = vmatpush1.msra.mxu0 0.0
    %1461 = vmatprep.subr.mxu0 0.0
    %1462 = vmatpush1.msra.mxu0 0.0
    %1463 = vmatprep.subr.mxu0 0.0
    %1464 = vmatpush1.msra.mxu0 0.0
    %1465 = vmatprep.subr.mxu0 0.0
    %1466 = vmatpush1.msra.mxu0 0.0
    %1467 = vmatprep.subr.mxu0 0.0
    %1468 = vmatpush1.msra.mxu0 0.0
    %1469 = vmatprep.mubr.f32.mxu0 0.0
    %1470 = vmatmul.mubr.f32.gmra.mrb[0].mxu0 %v1261
    %v1471 = vpop.f32.mrb[0].mxu0
    %v1472 = vadd.f32 0.0, %v1471
    %v1473 = vpop.f32.mrb[0].mxu0
    %v1474 = vadd.f32 0.0, %v1473
    %1475 = vdwg.mxu0
    %1476 = vmatprep.subr.mxu0 %v886
    %1477 = vmatpush1.msra.mxu0 %v885
    %1478 = vmatprep.subr.mxu0 %v902
    %1479 = vmatpush1.msra.mxu0 %v901
    %1480 = vmatprep.subr.mxu0 %v918
    %1481 = vmatpush1.msra.mxu0 %v917
    %1482 = vmatprep.subr.mxu0 %v934
    %1483 = vmatpush1.msra.mxu0 %v933
    %1484 = vmatprep.subr.mxu0 %v950
    %1485 = vmatpush1.msra.mxu0 %v949
    %1486 = vmatprep.subr.mxu0 %v966
    %1487 = vmatpush1.msra.mxu0 %v965
    %1488 = vmatprep.subr.mxu0 %v982
    %1489 = vmatpush1.msra.mxu0 %v981
    %1490 = vmatprep.subr.mxu0 %v998
    %1491 = vmatpush1.msra.mxu0 %v997
    %1492 = vmatprep.subr.mxu0 %v1014
    %1493 = vmatpush1.msra.mxu0 %v1013
    %1494 = vmatprep.subr.mxu0 %v1030
    %1495 = vmatpush1.msra.mxu0 %v1029
    %1496 = vmatprep.subr.mxu0 %v1046
    %1497 = vmatpush1.msra.mxu0 %v1045
    %1498 = vmatprep.subr.mxu0 %v1062
    %1499 = vmatpush1.msra.mxu0 %v1061
    %1500 = vmatprep.subr.mxu0 %v1078
    %1501 = vmatpush1.msra.mxu0 %v1077
    %1502 = vmatprep.subr.mxu0 %v1094
    %1503 = vmatpush1.msra.mxu0 %v1093
    %1504 = vmatprep.subr.mxu0 %v1110
    %1505 = vmatpush1.msra.mxu0 %v1109
    %1506 = vmatprep.subr.mxu0 %v1126
    %1507 = vmatpush1.msra.mxu0 %v1125
    %1508 = vmatprep.subr.mxu0 0.0
    %1509 = vmatpush1.msra.mxu0 0.0
    %1510 = vmatprep.subr.mxu0 0.0
    %1511 = vmatpush1.msra.mxu0 0.0
    %1512 = vmatprep.subr.mxu0 0.0
    %1513 = vmatpush1.msra.mxu0 0.0
    %1514 = vmatprep.subr.mxu0 0.0
    %1515 = vmatpush1.msra.mxu0 0.0
    %1516 = vmatprep.subr.mxu0 0.0
    %1517 = vmatpush1.msra.mxu0 0.0
    %1518 = vmatprep.subr.mxu0 0.0
    %1519 = vmatpush1.msra.mxu0 0.0
    %1520 = vmatprep.subr.mxu0 0.0
    %1521 = vmatpush1.msra.mxu0 0.0
    %1522 = vmatprep.subr.mxu0 0.0
    %1523 = vmatpush1.msra.mxu0 0.0
    %1524 = vmatprep.subr.mxu0 0.0
    %1525 = vmatpush1.msra.mxu0 0.0
    %1526 = vmatprep.subr.mxu0 0.0
    %1527 = vmatpush1.msra.mxu0 0.0
    %1528 = vmatprep.subr.mxu0 0.0
    %1529 = vmatpush1.msra.mxu0 0.0
    %1530 = vmatprep.subr.mxu0 0.0
    %1531 = vmatpush1.msra.mxu0 0.0
    %1532 = vmatprep.subr.mxu0 0.0
    %1533 = vmatpush1.msra.mxu0 0.0
    %1534 = vmatprep.subr.mxu0 0.0
    %1535 = vmatpush1.msra.mxu0 0.0
    %1536 = vmatprep.subr.mxu0 0.0
    %1537 = vmatpush1.msra.mxu0 0.0
    %1538 = vmatprep.subr.mxu0 0.0
    %1539 = vmatpush1.msra.mxu0 0.0
    %1540 = vmatprep.mubr.f32.mxu0 0.0
    %1541 = vmatmul.mubr.f32.gmra.mrb[0].mxu0 %v1261
    %v1542 = vpop.f32.mrb[0].mxu0
    %v1543 = vadd.f32 0.0, %v1542
    %v1544 = vpop.f32.mrb[0].mxu0
    %v1545 = vadd.f32 0.0, %v1544
    %1546 = vdwg.mxu0
    %1547 = vmatprep.subr.mxu0 %v888
    %1548 = vmatpush1.msra.mxu0 %v887
    %1549 = vmatprep.subr.mxu0 %v904
    %1550 = vmatpush1.msra.mxu0 %v903
    %1551 = vmatprep.subr.mxu0 %v920
    %1552 = vmatpush1.msra.mxu0 %v919
    %1553 = vmatprep.subr.mxu0 %v936
    %1554 = vmatpush1.msra.mxu0 %v935
    %1555 = vmatprep.subr.mxu0 %v952
    %1556 = vmatpush1.msra.mxu0 %v951
    %1557 = vmatprep.subr.mxu0 %v968
    %1558 = vmatpush1.msra.mxu0 %v967
    %1559 = vmatprep.subr.mxu0 %v984
    %1560 = vmatpush1.msra.mxu0 %v983
    %1561 = vmatprep.subr.mxu0 %v1000
    %1562 = vmatpush1.msra.mxu0 %v999
    %1563 = vmatprep.subr.mxu0 %v1016
    %1564 = vmatpush1.msra.mxu0 %v1015
    %1565 = vmatprep.subr.mxu0 %v1032
    %1566 = vmatpush1.msra.mxu0 %v1031
    %1567 = vmatprep.subr.mxu0 %v1048
    %1568 = vmatpush1.msra.mxu0 %v1047
    %1569 = vmatprep.subr.mxu0 %v1064
    %1570 = vmatpush1.msra.mxu0 %v1063
    %1571 = vmatprep.subr.mxu0 %v1080
    %1572 = vmatpush1.msra.mxu0 %v1079
    %1573 = vmatprep.subr.mxu0 %v1096
    %1574 = vmatpush1.msra.mxu0 %v1095
    %1575 = vmatprep.subr.mxu0 %v1112
    %1576 = vmatpush1.msra.mxu0 %v1111
    %1577 = vmatprep.subr.mxu0 %v1128
    %1578 = vmatpush1.msra.mxu0 %v1127
    %1579 = vmatprep.subr.mxu0 0.0
    %1580 = vmatpush1.msra.mxu0 0.0
    %1581 = vmatprep.subr.mxu0 0.0
    %1582 = vmatpush1.msra.mxu0 0.0
    %1583 = vmatprep.subr.mxu0 0.0
    %1584 = vmatpush1.msra.mxu0 0.0
    %1585 = vmatprep.subr.mxu0 0.0
    %1586 = vmatpush1.msra.mxu0 0.0
    %1587 = vmatprep.subr.mxu0 0.0
    %1588 = vmatpush1.msra.mxu0 0.0
    %1589 = vmatprep.subr.mxu0 0.0
    %1590 = vmatpush1.msra.mxu0 0.0
    %1591 = vmatprep.subr.mxu0 0.0
    %1592 = vmatpush1.msra.mxu0 0.0
    %1593 = vmatprep.subr.mxu0 0.0
    %1594 = vmatpush1.msra.mxu0 0.0
    %1595 = vmatprep.subr.mxu0 0.0
    %1596 = vmatpush1.msra.mxu0 0.0
    %1597 = vmatprep.subr.mxu0 0.0
    %1598 = vmatpush1.msra.mxu0 0.0
    %1599 = vmatprep.subr.mxu0 0.0
    %1600 = vmatpush1.msra.mxu0 0.0
    %1601 = vmatprep.subr.mxu0 0.0
    %1602 = vmatpush1.msra.mxu0 0.0
    %1603 = vmatprep.subr.mxu0 0.0
    %1604 = vmatpush1.msra.mxu0 0.0
    %1605 = vmatprep.subr.mxu0 0.0
    %1606 = vmatpush1.msra.mxu0 0.0
    %1607 = vmatprep.subr.mxu0 0.0
    %1608 = vmatpush1.msra.mxu0 0.0
    %1609 = vmatprep.subr.mxu0 0.0
    %1610 = vmatpush1.msra.mxu0 0.0
    %1611 = vmatprep.mubr.f32.mxu0 0.0
    %1612 = vmatmul.mubr.f32.gmra.mrb[0].mxu0 %v1261
    %v1613 = vpop.f32.mrb[0].mxu0
    %v1614 = vadd.f32 0.0, %v1613
    %v1615 = vpop.f32.mrb[0].mxu0
    %v1616 = vadd.f32 0.0, %v1615
    %1617 = vdwg.mxu0
    %1618 = vmatprep.subr.mxu0 %v890
    %1619 = vmatpush1.msra.mxu0 %v889
    %1620 = vmatprep.subr.mxu0 %v906
    %1621 = vmatpush1.msra.mxu0 %v905
    %1622 = vmatprep.subr.mxu0 %v922
    %1623 = vmatpush1.msra.mxu0 %v921
    %1624 = vmatprep.subr.mxu0 %v938
    %1625 = vmatpush1.msra.mxu0 %v937
    %1626 = vmatprep.subr.mxu0 %v954
    %1627 = vmatpush1.msra.mxu0 %v953
    %1628 = vmatprep.subr.mxu0 %v970
    %1629 = vmatpush1.msra.mxu0 %v969
    %1630 = vmatprep.subr.mxu0 %v986
    %1631 = vmatpush1.msra.mxu0 %v985
    %1632 = vmatprep.subr.mxu0 %v1002
    %1633 = vmatpush1.msra.mxu0 %v1001
    %1634 = vmatprep.subr.mxu0 %v1018
    %1635 = vmatpush1.msra.mxu0 %v1017
    %1636 = vmatprep.subr.mxu0 %v1034
    %1637 = vmatpush1.msra.mxu0 %v1033
    %1638 = vmatprep.subr.mxu0 %v1050
    %1639 = vmatpush1.msra.mxu0 %v1049
    %1640 = vmatprep.subr.mxu0 %v1066
    %1641 = vmatpush1.msra.mxu0 %v1065
    %1642 = vmatprep.subr.mxu0 %v1082
    %1643 = vmatpush1.msra.mxu0 %v1081
    %1644 = vmatprep.subr.mxu0 %v1098
    %1645 = vmatpush1.msra.mxu0 %v1097
    %1646 = vmatprep.subr.mxu0 %v1114
    %1647 = vmatpush1.msra.mxu0 %v1113
    %1648 = vmatprep.subr.mxu0 %v1130
    %1649 = vmatpush1.msra.mxu0 %v1129
    %1650 = vmatprep.subr.mxu0 0.0
    %1651 = vmatpush1.msra.mxu0 0.0
    %1652 = vmatprep.subr.mxu0 0.0
    %1653 = vmatpush1.msra.mxu0 0.0
    %1654 = vmatprep.subr.mxu0 0.0
    %1655 = vmatpush1.msra.mxu0 0.0
    %1656 = vmatprep.subr.mxu0 0.0
    %1657 = vmatpush1.msra.mxu0 0.0
    %1658 = vmatprep.subr.mxu0 0.0
    %1659 = vmatpush1.msra.mxu0 0.0
    %1660 = vmatprep.subr.mxu0 0.0
    %1661 = vmatpush1.msra.mxu0 0.0
    %1662 = vmatprep.subr.mxu0 0.0
    %1663 = vmatpush1.msra.mxu0 0.0
    %1664 = vmatprep.subr.mxu0 0.0
    %1665 = vmatpush1.msra.mxu0 0.0
    %1666 = vmatprep.subr.mxu0 0.0
    %1667 = vmatpush1.msra.mxu0 0.0
    %1668 = vmatprep.subr.mxu0 0.0
    %1669 = vmatpush1.msra.mxu0 0.0
    %1670 = vmatprep.subr.mxu0 0.0
    %1671 = vmatpush1.msra.mxu0 0.0
    %1672 = vmatprep.subr.mxu0 0.0
    %1673 = vmatpush1.msra.mxu0 0.0
    %1674 = vmatprep.subr.mxu0 0.0
    %1675 = vmatpush1.msra.mxu0 0.0
    %1676 = vmatprep.subr.mxu0 0.0
    %1677 = vmatpush1.msra.mxu0 0.0
    %1678 = vmatprep.subr.mxu0 0.0
    %1679 = vmatpush1.msra.mxu0 0.0
    %1680 = vmatprep.subr.mxu0 0.0
    %1681 = vmatpush1.msra.mxu0 0.0
    %1682 = vmatprep.mubr.f32.mxu0 0.0
    %1683 = vmatmul.mubr.f32.gmra.mrb[0].mxu0 %v1261
    %v1684 = vpop.f32.mrb[0].mxu0
    %v1685 = vadd.f32 0.0, %v1684
    %v1686 = vpop.f32.mrb[0].mxu0
    %v1687 = vadd.f32 0.0, %v1686
    %1688 = vdwg.mxu0
    %1689 = vmatprep.subr.mxu0 %v892
    %1690 = vmatpush1.msra.mxu0 %v891
    %1691 = vmatprep.subr.mxu0 %v908
    %1692 = vmatpush1.msra.mxu0 %v907
    %1693 = vmatprep.subr.mxu0 %v924
    %1694 = vmatpush1.msra.mxu0 %v923
    %1695 = vmatprep.subr.mxu0 %v940
    %1696 = vmatpush1.msra.mxu0 %v939
    %1697 = vmatprep.subr.mxu0 %v956
    %1698 = vmatpush1.msra.mxu0 %v955
    %1699 = vmatprep.subr.mxu0 %v972
    %1700 = vmatpush1.msra.mxu0 %v971
    %1701 = vmatprep.subr.mxu0 %v988
    %1702 = vmatpush1.msra.mxu0 %v987
    %1703 = vmatprep.subr.mxu0 %v1004
    %1704 = vmatpush1.msra.mxu0 %v1003
    %1705 = vmatprep.subr.mxu0 %v1020
    %1706 = vmatpush1.msra.mxu0 %v1019
    %1707 = vmatprep.subr.mxu0 %v1036
    %1708 = vmatpush1.msra.mxu0 %v1035
    %1709 = vmatprep.subr.mxu0 %v1052
    %1710 = vmatpush1.msra.mxu0 %v1051
    %1711 = vmatprep.subr.mxu0 %v1068
    %1712 = vmatpush1.msra.mxu0 %v1067
    %1713 = vmatprep.subr.mxu0 %v1084
    %1714 = vmatpush1.msra.mxu0 %v1083
    %1715 = vmatprep.subr.mxu0 %v1100
    %1716 = vmatpush1.msra.mxu0 %v1099
    %1717 = vmatprep.subr.mxu0 %v1116
    %1718 = vmatpush1.msra.mxu0 %v1115
    %1719 = vmatprep.subr.mxu0 %v1132
    %1720 = vmatpush1.msra.mxu0 %v1131
    %1721 = vmatprep.subr.mxu0 0.0
    %1722 = vmatpush1.msra.mxu0 0.0
    %1723 = vmatprep.subr.mxu0 0.0
    %1724 = vmatpush1.msra.mxu0 0.0
    %1725 = vmatprep.subr.mxu0 0.0
    %1726 = vmatpush1.msra.mxu0 0.0
    %1727 = vmatprep.subr.mxu0 0.0
    %1728 = vmatpush1.msra.mxu0 0.0
    %1729 = vmatprep.subr.mxu0 0.0
    %1730 = vmatpush1.msra.mxu0 0.0
    %1731 = vmatprep.subr.mxu0 0.0
    %1732 = vmatpush1.msra.mxu0 0.0
    %1733 = vmatprep.subr.mxu0 0.0
    %1734 = vmatpush1.msra.mxu0 0.0
    %1735 = vmatprep.subr.mxu0 0.0
    %1736 = vmatpush1.msra.mxu0 0.0
    %1737 = vmatprep.subr.mxu0 0.0
    %1738 = vmatpush1.msra.mxu0 0.0
    %1739 = vmatprep.subr.mxu0 0.0
    %1740 = vmatpush1.msra.mxu0 0.0
    %1741 = vmatprep.subr.mxu0 0.0
    %1742 = vmatpush1.msra.mxu0 0.0
    %1743 = vmatprep.subr.mxu0 0.0
    %1744 = vmatpush1.msra.mxu0 0.0
    %1745 = vmatprep.subr.mxu0 0.0
    %1746 = vmatpush1.msra.mxu0 0.0
    %1747 = vmatprep.subr.mxu0 0.0
    %1748 = vmatpush1.msra.mxu0 0.0
    %1749 = vmatprep.subr.mxu0 0.0
    %1750 = vmatpush1.msra.mxu0 0.0
    %1751 = vmatprep.subr.mxu0 0.0
    %1752 = vmatpush1.msra.mxu0 0.0
    %1753 = vmatprep.mubr.f32.mxu0 0.0
    %1754 = vmatmul.mubr.f32.gmra.mrb[0].mxu0 %v1261
    %v1755 = vpop.f32.mrb[0].mxu0
    %v1756 = vadd.f32 0.0, %v1755
    %v1757 = vpop.f32.mrb[0].mxu0
    %v1758 = vadd.f32 0.0, %v1757
    %1759 = vdwg.mxu0
    %1760 = vmatprep.subr.mxu0 %v894
    %1761 = vmatpush1.msra.mxu0 %v893
    %1762 = vmatprep.subr.mxu0 %v910
    %1763 = vmatpush1.msra.mxu0 %v909
    %1764 = vmatprep.subr.mxu0 %v926
    %1765 = vmatpush1.msra.mxu0 %v925
    %1766 = vmatprep.subr.mxu0 %v942
    %1767 = vmatpush1.msra.mxu0 %v941
    %1768 = vmatprep.subr.mxu0 %v958
    %1769 = vmatpush1.msra.mxu0 %v957
    %1770 = vmatprep.subr.mxu0 %v974
    %1771 = vmatpush1.msra.mxu0 %v973
    %1772 = vmatprep.subr.mxu0 %v990
    %1773 = vmatpush1.msra.mxu0 %v989
    %1774 = vmatprep.subr.mxu0 %v1006
    %1775 = vmatpush1.msra.mxu0 %v1005
    %1776 = vmatprep.subr.mxu0 %v1022
    %1777 = vmatpush1.msra.mxu0 %v1021
    %1778 = vmatprep.subr.mxu0 %v1038
    %1779 = vmatpush1.msra.mxu0 %v1037
    %1780 = vmatprep.subr.mxu0 %v1054
    %1781 = vmatpush1.msra.mxu0 %v1053
    %1782 = vmatprep.subr.mxu0 %v1070
    %1783 = vmatpush1.msra.mxu0 %v1069
    %1784 = vmatprep.subr.mxu0 %v1086
    %1785 = vmatpush1.msra.mxu0 %v1085
    %1786 = vmatprep.subr.mxu0 %v1102
    %1787 = vmatpush1.msra.mxu0 %v1101
    %1788 = vmatprep.subr.mxu0 %v1118
    %1789 = vmatpush1.msra.mxu0 %v1117
    %1790 = vmatprep.subr.mxu0 %v1134
    %1791 = vmatpush1.msra.mxu0 %v1133
    %1792 = vmatprep.subr.mxu0 0.0
    %1793 = vmatpush1.msra.mxu0 0.0
    %1794 = vmatprep.subr.mxu0 0.0
    %1795 = vmatpush1.msra.mxu0 0.0
    %1796 = vmatprep.subr.mxu0 0.0
    %1797 = vmatpush1.msra.mxu0 0.0
    %1798 = vmatprep.subr.mxu0 0.0
    %1799 = vmatpush1.msra.mxu0 0.0
    %1800 = vmatprep.subr.mxu0 0.0
    %1801 = vmatpush1.msra.mxu0 0.0
    %1802 = vmatprep.subr.mxu0 0.0
    %1803 = vmatpush1.msra.mxu0 0.0
    %1804 = vmatprep.subr.mxu0 0.0
    %1805 = vmatpush1.msra.mxu0 0.0
    %1806 = vmatprep.subr.mxu0 0.0
    %1807 = vmatpush1.msra.mxu0 0.0
    %1808 = vmatprep.subr.mxu0 0.0
    %1809 = vmatpush1.msra.mxu0 0.0
    %1810 = vmatprep.subr.mxu0 0.0
    %1811 = vmatpush1.msra.mxu0 0.0
    %1812 = vmatprep.subr.mxu0 0.0
    %1813 = vmatpush1.msra.mxu0 0.0
    %1814 = vmatprep.subr.mxu0 0.0
    %1815 = vmatpush1.msra.mxu0 0.0
    %1816 = vmatprep.subr.mxu0 0.0
    %1817 = vmatpush1.msra.mxu0 0.0
    %1818 = vmatprep.subr.mxu0 0.0
    %1819 = vmatpush1.msra.mxu0 0.0
    %1820 = vmatprep.subr.mxu0 0.0
    %1821 = vmatpush1.msra.mxu0 0.0
    %1822 = vmatprep.subr.mxu0 0.0
    %1823 = vmatpush1.msra.mxu0 0.0
    %1824 = vmatprep.mubr.f32.mxu0 0.0
    %1825 = vmatmul.mubr.f32.gmra.mrb[0].mxu0 %v1261
    %v1826 = vpop.f32.mrb[0].mxu0
    %v1827 = vadd.f32 0.0, %v1826
    %v1828 = vpop.f32.mrb[0].mxu0
    %v1829 = vadd.f32 0.0, %v1828
    %1830 = vdwg.mxu0
    %v1847 = vcombine.low %v1330, %v1332
    %v1848 = vcombine.low %v1401, %v1403
    %v1849 = vcombine.low %v1472, %v1474
    %v1850 = vcombine.low %v1543, %v1545
    %v1852 = vunpack.c.l.s4 1966171168
    %v1853 = vunpack.c.0.s8 %v1852
    %v1854 = vlaneseq
    %v1855 = vshrl.u32 %v1854, 7
    %v1856 = vsub.s32 %v1853, %v1855
    %v1857 = vrot.slane %v1847, %v1856
    %v1859 = vunpack.c.l.s4 1966171168
    %v1860 = vunpack.c.0.s8 %v1859
    %v1861 = vlaneseq
    %v1862 = vshrl.u32 %v1861, 7
    %v1863 = vsub.s32 %v1860, %v1862
    %v1864 = vrot.slane %v1848, %v1863
    %v1866 = vunpack.c.l.s4 1966171168
    %v1867 = vunpack.c.0.s8 %v1866
    %v1868 = vlaneseq
    %v1869 = vshrl.u32 %v1868, 7
    %v1870 = vsub.s32 %v1867, %v1869
    %v1871 = vrot.slane %v1849, %v1870
    %v1873 = vunpack.c.l.s4 1966171168
    %v1874 = vunpack.c.0.s8 %v1873
    %v1875 = vlaneseq
    %v1876 = vshrl.u32 %v1875, 7
    %v1877 = vsub.s32 %v1874, %v1876
    %v1878 = vrot.slane %v1850, %v1877
    %v1879 = vcombine.low %v1857, %v1864
    %v1880 = vcombine.low %v1871, %v1878
    %v1882 = vunpack.c.l.s4 1966171168
    %v1883 = vunpack.c.0.s8 %v1882
    %v1884 = vlaneseq
    %v1885 = vshrl.u32 %v1884, 7
    %v1886 = vsub.s32 %v1883, %v1885
    %v1887 = vrot.slane %v1879, %v1886
    %v1889 = vunpack.c.l.s4 1966171168
    %v1890 = vunpack.c.0.s8 %v1889
    %v1891 = vlaneseq
    %v1892 = vshrl.u32 %v1891, 7
    %v1893 = vsub.s32 %v1890, %v1892
    %v1894 = vrot.slane %v1880, %v1893
    %v1895 = vcombine.low %v1887, %v1894
    %v1896 = vcombine.low %v1614, %v1616
    %v1897 = vcombine.low %v1685, %v1687
    %v1898 = vcombine.low %v1756, %v1758
    %v1899 = vcombine.low %v1827, %v1829
    %v1901 = vunpack.c.l.s4 1966171168
    %v1902 = vunpack.c.0.s8 %v1901
    %v1903 = vlaneseq
    %v1904 = vshrl.u32 %v1903, 7
    %v1905 = vsub.s32 %v1902, %v1904
    %v1906 = vrot.slane %v1896, %v1905
    %v1908 = vunpack.c.l.s4 1966171168
    %v1909 = vunpack.c.0.s8 %v1908
    %v1910 = vlaneseq
    %v1911 = vshrl.u32 %v1910, 7
    %v1912 = vsub.s32 %v1909, %v1911
    %v1913 = vrot.slane %v1897, %v1912
    %v1915 = vunpack.c.l.s4 1966171168
    %v1916 = vunpack.c.0.s8 %v1915
    %v1917 = vlaneseq
    %v1918 = vshrl.u32 %v1917, 7
    %v1919 = vsub.s32 %v1916, %v1918
    %v1920 = vrot.slane %v1898, %v1919
    %v1922 = vunpack.c.l.s4 1966171168
    %v1923 = vunpack.c.0.s8 %v1922
    %v1924 = vlaneseq
    %v1925 = vshrl.u32 %v1924, 7
    %v1926 = vsub.s32 %v1923, %v1925
    %v1927 = vrot.slane %v1899, %v1926
    %v1928 = vcombine.low %v1906, %v1913
    %v1929 = vcombine.low %v1920, %v1927
    %v1931 = vunpack.c.l.s4 1966171168
    %v1932 = vunpack.c.0.s8 %v1931
    %v1933 = vlaneseq
    %v1934 = vshrl.u32 %v1933, 7
    %v1935 = vsub.s32 %v1932, %v1934
    %v1936 = vrot.slane %v1928, %v1935
    %v1938 = vunpack.c.l.s4 1966171168
    %v1939 = vunpack.c.0.s8 %v1938
    %v1940 = vlaneseq
    %v1941 = vshrl.u32 %v1940, 7
    %v1942 = vsub.s32 %v1939, %v1941
    %v1943 = vrot.slane %v1929, %v1942
    %v1944 = vcombine.low %v1936, %v1943
    %v1947 = vsub.f32 0.0, %v1895
    %v1948 = vsub.f32 0.0, %v1944
    %v1949 = vmul.f32 %v1947, 1.442695
    %v1950 = vpow.pop %v1949
    %v1951 = vmul.f32 %v1948, 1.442695
    %v1952 = vpow.pop %v1951
    %v1953 = vadd.f32 %v1950, 1.0
    %v1954 = vadd.f32 %v1952, 1.0
    %v1955 = vrcp.pop %v1953
    %v1956 = vmul.f32 1.0, %v1955
    %v1957 = vrcp.pop %v1954
    %v1958 = vmul.f32 1.0, %v1957
    %1960 = vset.pattern.permute.xlu0 0
    %1961 = vperm.xlu0 %1960, %v685
    %v1962 = vpop.permute.xlu0 %1961
    %1965 = vset.pattern.permute.xlu0 0
    %1966 = vperm.xlu0 %1965, %v686
    %v1967 = vpop.permute.xlu0 %1966
    %v1969 = vmul.f32 %v1956, %v1962
    %v1970 = vmul.f32 %v1958, %v1967
    %v1971 = vld [vmem:[%s5] sm:$0xff]
    %v1972 = vld [vmem:[%s5 + $0x8] sm:$0xff]
    %v1973 = vld [vmem:[%s5 + $0x10] sm:$0xff]
    %v1974 = vld [vmem:[%s5 + $0x18] sm:$0xff]
    %v1975 = vld [vmem:[%s5 + $0x20] sm:$0xff]
    %v1976 = vld [vmem:[%s5 + $0x28] sm:$0xff]
    %v1977 = vld [vmem:[%s5 + $0x30] sm:$0xff]
    %v1978 = vld [vmem:[%s5 + $0x38] sm:$0xff]
    %v1979 = vld [vmem:[%s5 + $0x40] sm:$0xff]
    %v1980 = vld [vmem:[%s5 + $0x48] sm:$0xff]
    %v1981 = vld [vmem:[%s5 + $0x50] sm:$0xff]
    %v1982 = vld [vmem:[%s5 + $0x58] sm:$0xff]
    %v1983 = vld [vmem:[%s5 + $0x60] sm:$0xff]
    %v1984 = vld [vmem:[%s5 + $0x68] sm:$0xff]
    %v1985 = vld [vmem:[%s5 + $0x70] sm:$0xff]
    %v1986 = vld [vmem:[%s5 + $0x78] sm:$0xff]
    %v1987 = vld [vmem:[%s5 + $0x80] sm:$0xff]
    %v1988 = vld [vmem:[%s5 + $0x88] sm:$0xff]
    %v1989 = vld [vmem:[%s5 + $0x90] sm:$0xff]
    %v1990 = vld [vmem:[%s5 + $0x98] sm:$0xff]
    %v1991 = vld [vmem:[%s5 + $0xa0] sm:$0xff]
    %v1992 = vld [vmem:[%s5 + $0xa8] sm:$0xff]
    %v1993 = vld [vmem:[%s5 + $0xb0] sm:$0xff]
    %v1994 = vld [vmem:[%s5 + $0xb8] sm:$0xff]
    %v1995 = vld [vmem:[%s5 + $0xc0] sm:$0xff]
    %v1996 = vld [vmem:[%s5 + $0xc8] sm:$0xff]
    %v1997 = vld [vmem:[%s5 + $0xd0] sm:$0xff]
    %v1998 = vld [vmem:[%s5 + $0xd8] sm:$0xff]
    %v1999 = vld [vmem:[%s5 + $0xe0] sm:$0xff]
    %v2000 = vld [vmem:[%s5 + $0xe8] sm:$0xff]
    %v2001 = vld [vmem:[%s5 + $0xf0] sm:$0xff]
    %v2002 = vld [vmem:[%s5 + $0xf8] sm:$0xff]
    %vm2003 = vcmask 130048
    %v2005 = vsel %vm2003, %v876, 0
    %2007 = vmatprep.subr.mxu0 %v1972
    %2008 = vmatpush1.msra.mxu0 %v1971
    %2009 = vmatprep.subr.mxu0 %v1988
    %2010 = vmatpush1.msra.mxu0 %v1987
    %2011 = vmatprep.subr.mxu0 0.0
    %2012 = vmatpush1.msra.mxu0 0.0
    %2013 = vmatprep.subr.mxu0 0.0
    %2014 = vmatpush1.msra.mxu0 0.0
    %2015 = vmatprep.subr.mxu0 0.0
    %2016 = vmatpush1.msra.mxu0 0.0
    %2017 = vmatprep.subr.mxu0 0.0
    %2018 = vmatpush1.msra.mxu0 0.0
    %2019 = vmatprep.subr.mxu0 0.0
    %2020 = vmatpush1.msra.mxu0 0.0
    %2021 = vmatprep.subr.mxu0 0.0
    %2022 = vmatpush1.msra.mxu0 0.0
    %2023 = vmatprep.subr.mxu0 0.0
    %2024 = vmatpush1.msra.mxu0 0.0
    %2025 = vmatprep.subr.mxu0 0.0
    %2026 = vmatpush1.msra.mxu0 0.0
    %2027 = vmatprep.subr.mxu0 0.0
    %2028 = vmatpush1.msra.mxu0 0.0
    %2029 = vmatprep.subr.mxu0 0.0
    %2030 = vmatpush1.msra.mxu0 0.0
    %2031 = vmatprep.subr.mxu0 0.0
    %2032 = vmatpush1.msra.mxu0 0.0
    %2033 = vmatprep.subr.mxu0 0.0
    %2034 = vmatpush1.msra.mxu0 0.0
    %2035 = vmatprep.subr.mxu0 0.0
    %2036 = vmatpush1.msra.mxu0 0.0
    %2037 = vmatprep.subr.mxu0 0.0
    %2038 = vmatpush1.msra.mxu0 0.0
    %2039 = vmatprep.subr.mxu0 0.0
    %2040 = vmatpush1.msra.mxu0 0.0
    %2041 = vmatprep.subr.mxu0 0.0
    %2042 = vmatpush1.msra.mxu0 0.0
    %2043 = vmatprep.subr.mxu0 0.0
    %2044 = vmatpush1.msra.mxu0 0.0
    %2045 = vmatprep.subr.mxu0 0.0
    %2046 = vmatpush1.msra.mxu0 0.0
    %2047 = vmatprep.subr.mxu0 0.0
    %2048 = vmatpush1.msra.mxu0 0.0
    %2049 = vmatprep.subr.mxu0 0.0
    %2050 = vmatpush1.msra.mxu0 0.0
    %2051 = vmatprep.subr.mxu0 0.0
    %2052 = vmatpush1.msra.mxu0 0.0
    %2053 = vmatprep.subr.mxu0 0.0
    %2054 = vmatpush1.msra.mxu0 0.0
    %2055 = vmatprep.subr.mxu0 0.0
    %2056 = vmatpush1.msra.mxu0 0.0
    %2057 = vmatprep.subr.mxu0 0.0
    %2058 = vmatpush1.msra.mxu0 0.0
    %2059 = vmatprep.subr.mxu0 0.0
    %2060 = vmatpush1.msra.mxu0 0.0
    %2061 = vmatprep.subr.mxu0 0.0
    %2062 = vmatpush1.msra.mxu0 0.0
    %2063 = vmatprep.subr.mxu0 0.0
    %2064 = vmatpush1.msra.mxu0 0.0
    %2065 = vmatprep.subr.mxu0 0.0
    %2066 = vmatpush1.msra.mxu0 0.0
    %2067 = vmatprep.subr.mxu0 0.0
    %2068 = vmatpush1.msra.mxu0 0.0
    %2069 = vmatprep.subr.mxu0 0.0
    %2070 = vmatpush1.msra.mxu0 0.0
    %2071 = vmatprep.mubr.f32.mxu0 0.0
    %2072 = vmatmul.mubr.f32.gmra.mrb[0].mxu0 %v2005
    %v2073 = vpop.f32.mrb[0].mxu0
    %v2074 = vadd.f32 0.0, %v2073
    %v2075 = vpop.f32.mrb[0].mxu0
    %v2076 = vadd.f32 0.0, %v2075
    %2077 = vdwg.mxu0
    %2078 = vmatprep.subr.mxu0 %v1974
    %2079 = vmatpush1.msra.mxu0 %v1973
    %2080 = vmatprep.subr.mxu0 %v1990
    %2081 = vmatpush1.msra.mxu0 %v1989
    %2082 = vmatprep.subr.mxu0 0.0
    %2083 = vmatpush1.msra.mxu0 0.0
    %2084 = vmatprep.subr.mxu0 0.0
    %2085 = vmatpush1.msra.mxu0 0.0
    %2086 = vmatprep.subr.mxu0 0.0
    %2087 = vmatpush1.msra.mxu0 0.0
    %2088 = vmatprep.subr.mxu0 0.0
    %2089 = vmatpush1.msra.mxu0 0.0
    %2090 = vmatprep.subr.mxu0 0.0
    %2091 = vmatpush1.msra.mxu0 0.0
    %2092 = vmatprep.subr.mxu0 0.0
    %2093 = vmatpush1.msra.mxu0 0.0
    %2094 = vmatprep.subr.mxu0 0.0
    %2095 = vmatpush1.msra.mxu0 0.0
    %2096 = vmatprep.subr.mxu0 0.0
    %2097 = vmatpush1.msra.mxu0 0.0
    %2098 = vmatprep.subr.mxu0 0.0
    %2099 = vmatpush1.msra.mxu0 0.0
    %2100 = vmatprep.subr.mxu0 0.0
    %2101 = vmatpush1.msra.mxu0 0.0
    %2102 = vmatprep.subr.mxu0 0.0
    %2103 = vmatpush1.msra.mxu0 0.0
    %2104 = vmatprep.subr.mxu0 0.0
    %2105 = vmatpush1.msra.mxu0 0.0
    %2106 = vmatprep.subr.mxu0 0.0
    %2107 = vmatpush1.msra.mxu0 0.0
    %2108 = vmatprep.subr.mxu0 0.0
    %2109 = vmatpush1.msra.mxu0 0.0
    %2110 = vmatprep.subr.mxu0 0.0
    %2111 = vmatpush1.msra.mxu0 0.0
    %2112 = vmatprep.subr.mxu0 0.0
    %2113 = vmatpush1.msra.mxu0 0.0
    %2114 = vmatprep.subr.mxu0 0.0
    %2115 = vmatpush1.msra.mxu0 0.0
    %2116 = vmatprep.subr.mxu0 0.0
    %2117 = vmatpush1.msra.mxu0 0.0
    %2118 = vmatprep.subr.mxu0 0.0
    %2119 = vmatpush1.msra.mxu0 0.0
    %2120 = vmatprep.subr.mxu0 0.0
    %2121 = vmatpush1.msra.mxu0 0.0
    %2122 = vmatprep.subr.mxu0 0.0
    %2123 = vmatpush1.msra.mxu0 0.0
    %2124 = vmatprep.subr.mxu0 0.0
    %2125 = vmatpush1.msra.mxu0 0.0
    %2126 = vmatprep.subr.mxu0 0.0
    %2127 = vmatpush1.msra.mxu0 0.0
    %2128 = vmatprep.subr.mxu0 0.0
    %2129 = vmatpush1.msra.mxu0 0.0
    %2130 = vmatprep.subr.mxu0 0.0
    %2131 = vmatpush1.msra.mxu0 0.0
    %2132 = vmatprep.subr.mxu0 0.0
    %2133 = vmatpush1.msra.mxu0 0.0
    %2134 = vmatprep.subr.mxu0 0.0
    %2135 = vmatpush1.msra.mxu0 0.0
    %2136 = vmatprep.subr.mxu0 0.0
    %2137 = vmatpush1.msra.mxu0 0.0
    %2138 = vmatprep.subr.mxu0 0.0
    %2139 = vmatpush1.msra.mxu0 0.0
    %2140 = vmatprep.subr.mxu0 0.0
    %2141 = vmatpush1.msra.mxu0 0.0
    %2142 = vmatprep.mubr.f32.mxu0 0.0
    %2143 = vmatmul.mubr.f32.gmra.mrb[0].mxu0 %v2005
    %v2144 = vpop.f32.mrb[0].mxu0
    %v2145 = vadd.f32 0.0, %v2144
    %v2146 = vpop.f32.mrb[0].mxu0
    %v2147 = vadd.f32 0.0, %v2146
    %2148 = vdwg.mxu0
    %2149 = vmatprep.subr.mxu0 %v1976
    %2150 = vmatpush1.msra.mxu0 %v1975
    %2151 = vmatprep.subr.mxu0 %v1992
    %2152 = vmatpush1.msra.mxu0 %v1991
    %2153 = vmatprep.subr.mxu0 0.0
    %2154 = vmatpush1.msra.mxu0 0.0
    %2155 = vmatprep.subr.mxu0 0.0
    %2156 = vmatpush1.msra.mxu0 0.0
    %2157 = vmatprep.subr.mxu0 0.0
    %2158 = vmatpush1.msra.mxu0 0.0
    %2159 = vmatprep.subr.mxu0 0.0
    %2160 = vmatpush1.msra.mxu0 0.0
    %2161 = vmatprep.subr.mxu0 0.0
    %2162 = vmatpush1.msra.mxu0 0.0
    %2163 = vmatprep.subr.mxu0 0.0
    %2164 = vmatpush1.msra.mxu0 0.0
    %2165 = vmatprep.subr.mxu0 0.0
    %2166 = vmatpush1.msra.mxu0 0.0
    %2167 = vmatprep.subr.mxu0 0.0
    %2168 = vmatpush1.msra.mxu0 0.0
    %2169 = vmatprep.subr.mxu0 0.0
    %2170 = vmatpush1.msra.mxu0 0.0
    %2171 = vmatprep.subr.mxu0 0.0
    %2172 = vmatpush1.msra.mxu0 0.0
    %2173 = vmatprep.subr.mxu0 0.0
    %2174 = vmatpush1.msra.mxu0 0.0
    %2175 = vmatprep.subr.mxu0 0.0
    %2176 = vmatpush1.msra.mxu0 0.0
    %2177 = vmatprep.subr.mxu0 0.0
    %2178 = vmatpush1.msra.mxu0 0.0
    %2179 = vmatprep.subr.mxu0 0.0
    %2180 = vmatpush1.msra.mxu0 0.0
    %2181 = vmatprep.subr.mxu0 0.0
    %2182 = vmatpush1.msra.mxu0 0.0
    %2183 = vmatprep.subr.mxu0 0.0
    %2184 = vmatpush1.msra.mxu0 0.0
    %2185 = vmatprep.subr.mxu0 0.0
    %2186 = vmatpush1.msra.mxu0 0.0
    %2187 = vmatprep.subr.mxu0 0.0
    %2188 = vmatpush1.msra.mxu0 0.0
    %2189 = vmatprep.subr.mxu0 0.0
    %2190 = vmatpush1.msra.mxu0 0.0
    %2191 = vmatprep.subr.mxu0 0.0
    %2192 = vmatpush1.msra.mxu0 0.0
    %2193 = vmatprep.subr.mxu0 0.0
    %2194 = vmatpush1.msra.mxu0 0.0
    %2195 = vmatprep.subr.mxu0 0.0
    %2196 = vmatpush1.msra.mxu0 0.0
    %2197 = vmatprep.subr.mxu0 0.0
    %2198 = vmatpush1.msra.mxu0 0.0
    %2199 = vmatprep.subr.mxu0 0.0
    %2200 = vmatpush1.msra.mxu0 0.0
    %2201 = vmatprep.subr.mxu0 0.0
    %2202 = vmatpush1.msra.mxu0 0.0
    %2203 = vmatprep.subr.mxu0 0.0
    %2204 = vmatpush1.msra.mxu0 0.0
    %2205 = vmatprep.subr.mxu0 0.0
    %2206 = vmatpush1.msra.mxu0 0.0
    %2207 = vmatprep.subr.mxu0 0.0
    %2208 = vmatpush1.msra.mxu0 0.0
    %2209 = vmatprep.subr.mxu0 0.0
    %2210 = vmatpush1.msra.mxu0 0.0
    %2211 = vmatprep.subr.mxu0 0.0
    %2212 = vmatpush1.msra.mxu0 0.0
    %2213 = vmatprep.mubr.f32.mxu0 0.0
    %2214 = vmatmul.mubr.f32.gmra.mrb[0].mxu0 %v2005
    %v2215 = vpop.f32.mrb[0].mxu0
    %v2216 = vadd.f32 0.0, %v2215
    %v2217 = vpop.f32.mrb[0].mxu0
    %v2218 = vadd.f32 0.0, %v2217
    %2219 = vdwg.mxu0
    %2220 = vmatprep.subr.mxu0 %v1978
    %2221 = vmatpush1.msra.mxu0 %v1977
    %2222 = vmatprep.subr.mxu0 %v1994
    %2223 = vmatpush1.msra.mxu0 %v1993
    %2224 = vmatprep.subr.mxu0 0.0
    %2225 = vmatpush1.msra.mxu0 0.0
    %2226 = vmatprep.subr.mxu0 0.0
    %2227 = vmatpush1.msra.mxu0 0.0
    %2228 = vmatprep.subr.mxu0 0.0
    %2229 = vmatpush1.msra.mxu0 0.0
    %2230 = vmatprep.subr.mxu0 0.0
    %2231 = vmatpush1.msra.mxu0 0.0
    %2232 = vmatprep.subr.mxu0 0.0
    %2233 = vmatpush1.msra.mxu0 0.0
    %2234 = vmatprep.subr.mxu0 0.0
    %2235 = vmatpush1.msra.mxu0 0.0
    %2236 = vmatprep.subr.mxu0 0.0
    %2237 = vmatpush1.msra.mxu0 0.0
    %2238 = vmatprep.subr.mxu0 0.0
    %2239 = vmatpush1.msra.mxu0 0.0
    %2240 = vmatprep.subr.mxu0 0.0
    %2241 = vmatpush1.msra.mxu0 0.0
    %2242 = vmatprep.subr.mxu0 0.0
    %2243 = vmatpush1.msra.mxu0 0.0
    %2244 = vmatprep.subr.mxu0 0.0
    %2245 = vmatpush1.msra.mxu0 0.0
    %2246 = vmatprep.subr.mxu0 0.0
    %2247 = vmatpush1.msra.mxu0 0.0
    %2248 = vmatprep.subr.mxu0 0.0
    %2249 = vmatpush1.msra.mxu0 0.0
    %2250 = vmatprep.subr.mxu0 0.0
    %2251 = vmatpush1.msra.mxu0 0.0
    %2252 = vmatprep.subr.mxu0 0.0
    %2253 = vmatpush1.msra.mxu0 0.0
    %2254 = vmatprep.subr.mxu0 0.0
    %2255 = vmatpush1.msra.mxu0 0.0
    %2256 = vmatprep.subr.mxu0 0.0
    %2257 = vmatpush1.msra.mxu0 0.0
    %2258 = vmatprep.subr.mxu0 0.0
    %2259 = vmatpush1.msra.mxu0 0.0
    %2260 = vmatprep.subr.mxu0 0.0
    %2261 = vmatpush1.msra.mxu0 0.0
    %2262 = vmatprep.subr.mxu0 0.0
    %2263 = vmatpush1.msra.mxu0 0.0
    %2264 = vmatprep.subr.mxu0 0.0
    %2265 = vmatpush1.msra.mxu0 0.0
    %2266 = vmatprep.subr.mxu0 0.0
    %2267 = vmatpush1.msra.mxu0 0.0
    %2268 = vmatprep.subr.mxu0 0.0
    %2269 = vmatpush1.msra.mxu0 0.0
    %2270 = vmatprep.subr.mxu0 0.0
    %2271 = vmatpush1.msra.mxu0 0.0
    %2272 = vmatprep.subr.mxu0 0.0
    %2273 = vmatpush1.msra.mxu0 0.0
    %2274 = vmatprep.subr.mxu0 0.0
    %2275 = vmatpush1.msra.mxu0 0.0
    %2276 = vmatprep.subr.mxu0 0.0
    %2277 = vmatpush1.msra.mxu0 0.0
    %2278 = vmatprep.subr.mxu0 0.0
    %2279 = vmatpush1.msra.mxu0 0.0
    %2280 = vmatprep.subr.mxu0 0.0
    %2281 = vmatpush1.msra.mxu0 0.0
    %2282 = vmatprep.subr.mxu0 0.0
    %2283 = vmatpush1.msra.mxu0 0.0
    %2284 = vmatprep.mubr.f32.mxu0 0.0
    %2285 = vmatmul.mubr.f32.gmra.mrb[0].mxu0 %v2005
    %v2286 = vpop.f32.mrb[0].mxu0
    %v2287 = vadd.f32 0.0, %v2286
    %v2288 = vpop.f32.mrb[0].mxu0
    %v2289 = vadd.f32 0.0, %v2288
    %2290 = vdwg.mxu0
    %2291 = vmatprep.subr.mxu0 %v1980
    %2292 = vmatpush1.msra.mxu0 %v1979
    %2293 = vmatprep.subr.mxu0 %v1996
    %2294 = vmatpush1.msra.mxu0 %v1995
    %2295 = vmatprep.subr.mxu0 0.0
    %2296 = vmatpush1.msra.mxu0 0.0
    %2297 = vmatprep.subr.mxu0 0.0
    %2298 = vmatpush1.msra.mxu0 0.0
    %2299 = vmatprep.subr.mxu0 0.0
    %2300 = vmatpush1.msra.mxu0 0.0
    %2301 = vmatprep.subr.mxu0 0.0
    %2302 = vmatpush1.msra.mxu0 0.0
    %2303 = vmatprep.subr.mxu0 0.0
    %2304 = vmatpush1.msra.mxu0 0.0
    %2305 = vmatprep.subr.mxu0 0.0
    %2306 = vmatpush1.msra.mxu0 0.0
    %2307 = vmatprep.subr.mxu0 0.0
    %2308 = vmatpush1.msra.mxu0 0.0
    %2309 = vmatprep.subr.mxu0 0.0
    %2310 = vmatpush1.msra.mxu0 0.0
    %2311 = vmatprep.subr.mxu0 0.0
    %2312 = vmatpush1.msra.mxu0 0.0
    %2313 = vmatprep.subr.mxu0 0.0
    %2314 = vmatpush1.msra.mxu0 0.0
    %2315 = vmatprep.subr.mxu0 0.0
    %2316 = vmatpush1.msra.mxu0 0.0
    %2317 = vmatprep.subr.mxu0 0.0
    %2318 = vmatpush1.msra.mxu0 0.0
    %2319 = vmatprep.subr.mxu0 0.0
    %2320 = vmatpush1.msra.mxu0 0.0
    %2321 = vmatprep.subr.mxu0 0.0
    %2322 = vmatpush1.msra.mxu0 0.0
    %2323 = vmatprep.subr.mxu0 0.0
    %2324 = vmatpush1.msra.mxu0 0.0
    %2325 = vmatprep.subr.mxu0 0.0
    %2326 = vmatpush1.msra.mxu0 0.0
    %2327 = vmatprep.subr.mxu0 0.0
    %2328 = vmatpush1.msra.mxu0 0.0
    %2329 = vmatprep.subr.mxu0 0.0
    %2330 = vmatpush1.msra.mxu0 0.0
    %2331 = vmatprep.subr.mxu0 0.0
    %2332 = vmatpush1.msra.mxu0 0.0
    %2333 = vmatprep.subr.mxu0 0.0
    %2334 = vmatpush1.msra.mxu0 0.0
    %2335 = vmatprep.subr.mxu0 0.0
    %2336 = vmatpush1.msra.mxu0 0.0
    %2337 = vmatprep.subr.mxu0 0.0
    %2338 = vmatpush1.msra.mxu0 0.0
    %2339 = vmatprep.subr.mxu0 0.0
    %2340 = vmatpush1.msra.mxu0 0.0
    %2341 = vmatprep.subr.mxu0 0.0
    %2342 = vmatpush1.msra.mxu0 0.0
    %2343 = vmatprep.subr.mxu0 0.0
    %2344 = vmatpush1.msra.mxu0 0.0
    %2345 = vmatprep.subr.mxu0 0.0
    %2346 = vmatpush1.msra.mxu0 0.0
    %2347 = vmatprep.subr.mxu0 0.0
    %2348 = vmatpush1.msra.mxu0 0.0
    %2349 = vmatprep.subr.mxu0 0.0
    %2350 = vmatpush1.msra.mxu0 0.0
    %2351 = vmatprep.subr.mxu0 0.0
    %2352 = vmatpush1.msra.mxu0 0.0
    %2353 = vmatprep.subr.mxu0 0.0
    %2354 = vmatpush1.msra.mxu0 0.0
    %2355 = vmatprep.mubr.f32.mxu0 0.0
    %2356 = vmatmul.mubr.f32.gmra.mrb[0].mxu0 %v2005
    %v2357 = vpop.f32.mrb[0].mxu0
    %v2358 = vadd.f32 0.0, %v2357
    %v2359 = vpop.f32.mrb[0].mxu0
    %v2360 = vadd.f32 0.0, %v2359
    %2361 = vdwg.mxu0
    %2362 = vmatprep.subr.mxu0 %v1982
    %2363 = vmatpush1.msra.mxu0 %v1981
    %2364 = vmatprep.subr.mxu0 %v1998
    %2365 = vmatpush1.msra.mxu0 %v1997
    %2366 = vmatprep.subr.mxu0 0.0
    %2367 = vmatpush1.msra.mxu0 0.0
    %2368 = vmatprep.subr.mxu0 0.0
    %2369 = vmatpush1.msra.mxu0 0.0
    %2370 = vmatprep.subr.mxu0 0.0
    %2371 = vmatpush1.msra.mxu0 0.0
    %2372 = vmatprep.subr.mxu0 0.0
    %2373 = vmatpush1.msra.mxu0 0.0
    %2374 = vmatprep.subr.mxu0 0.0
    %2375 = vmatpush1.msra.mxu0 0.0
    %2376 = vmatprep.subr.mxu0 0.0
    %2377 = vmatpush1.msra.mxu0 0.0
    %2378 = vmatprep.subr.mxu0 0.0
    %2379 = vmatpush1.msra.mxu0 0.0
    %2380 = vmatprep.subr.mxu0 0.0
    %2381 = vmatpush1.msra.mxu0 0.0
    %2382 = vmatprep.subr.mxu0 0.0
    %2383 = vmatpush1.msra.mxu0 0.0
    %2384 = vmatprep.subr.mxu0 0.0
    %2385 = vmatpush1.msra.mxu0 0.0
    %2386 = vmatprep.subr.mxu0 0.0
    %2387 = vmatpush1.msra.mxu0 0.0
    %2388 = vmatprep.subr.mxu0 0.0
    %2389 = vmatpush1.msra.mxu0 0.0
    %2390 = vmatprep.subr.mxu0 0.0
    %2391 = vmatpush1.msra.mxu0 0.0
    %2392 = vmatprep.subr.mxu0 0.0
    %2393 = vmatpush1.msra.mxu0 0.0
    %2394 = vmatprep.subr.mxu0 0.0
    %2395 = vmatpush1.msra.mxu0 0.0
    %2396 = vmatprep.subr.mxu0 0.0
    %2397 = vmatpush1.msra.mxu0 0.0
    %2398 = vmatprep.subr.mxu0 0.0
    %2399 = vmatpush1.msra.mxu0 0.0
    %2400 = vmatprep.subr.mxu0 0.0
    %2401 = vmatpush1.msra.mxu0 0.0
    %2402 = vmatprep.subr.mxu0 0.0
    %2403 = vmatpush1.msra.mxu0 0.0
    %2404 = vmatprep.subr.mxu0 0.0
    %2405 = vmatpush1.msra.mxu0 0.0
    %2406 = vmatprep.subr.mxu0 0.0
    %2407 = vmatpush1.msra.mxu0 0.0
    %2408 = vmatprep.subr.mxu0 0.0
    %2409 = vmatpush1.msra.mxu0 0.0
    %2410 = vmatprep.subr.mxu0 0.0
    %2411 = vmatpush1.msra.mxu0 0.0
    %2412 = vmatprep.subr.mxu0 0.0
    %2413 = vmatpush1.msra.mxu0 0.0
    %2414 = vmatprep.subr.mxu0 0.0
    %2415 = vmatpush1.msra.mxu0 0.0
    %2416 = vmatprep.subr.mxu0 0.0
    %2417 = vmatpush1.msra.mxu0 0.0
    %2418 = vmatprep.subr.mxu0 0.0
    %2419 = vmatpush1.msra.mxu0 0.0
    %2420 = vmatprep.subr.mxu0 0.0
    %2421 = vmatpush1.msra.mxu0 0.0
    %2422 = vmatprep.subr.mxu0 0.0
    %2423 = vmatpush1.msra.mxu0 0.0
    %2424 = vmatprep.subr.mxu0 0.0
    %2425 = vmatpush1.msra.mxu0 0.0
    %2426 = vmatprep.mubr.f32.mxu0 0.0
    %2427 = vmatmul.mubr.f32.gmra.mrb[0].mxu0 %v2005
    %v2428 = vpop.f32.mrb[0].mxu0
    %v2429 = vadd.f32 0.0, %v2428
    %v2430 = vpop.f32.mrb[0].mxu0
    %v2431 = vadd.f32 0.0, %v2430
    %2432 = vdwg.mxu0
    %2433 = vmatprep.subr.mxu0 %v1984
    %2434 = vmatpush1.msra.mxu0 %v1983
    %2435 = vmatprep.subr.mxu0 %v2000
    %2436 = vmatpush1.msra.mxu0 %v1999
    %2437 = vmatprep.subr.mxu0 0.0
    %2438 = vmatpush1.msra.mxu0 0.0
    %2439 = vmatprep.subr.mxu0 0.0
    %2440 = vmatpush1.msra.mxu0 0.0
    %2441 = vmatprep.subr.mxu0 0.0
    %2442 = vmatpush1.msra.mxu0 0.0
    %2443 = vmatprep.subr.mxu0 0.0
    %2444 = vmatpush1.msra.mxu0 0.0
    %2445 = vmatprep.subr.mxu0 0.0
    %2446 = vmatpush1.msra.mxu0 0.0
    %2447 = vmatprep.subr.mxu0 0.0
    %2448 = vmatpush1.msra.mxu0 0.0
    %2449 = vmatprep.subr.mxu0 0.0
    %2450 = vmatpush1.msra.mxu0 0.0
    %2451 = vmatprep.subr.mxu0 0.0
    %2452 = vmatpush1.msra.mxu0 0.0
    %2453 = vmatprep.subr.mxu0 0.0
    %2454 = vmatpush1.msra.mxu0 0.0
    %2455 = vmatprep.subr.mxu0 0.0
    %2456 = vmatpush1.msra.mxu0 0.0
    %2457 = vmatprep.subr.mxu0 0.0
    %2458 = vmatpush1.msra.mxu0 0.0
    %2459 = vmatprep.subr.mxu0 0.0
    %2460 = vmatpush1.msra.mxu0 0.0
    %2461 = vmatprep.subr.mxu0 0.0
    %2462 = vmatpush1.msra.mxu0 0.0
    %2463 = vmatprep.subr.mxu0 0.0
    %2464 = vmatpush1.msra.mxu0 0.0
    %2465 = vmatprep.subr.mxu0 0.0
    %2466 = vmatpush1.msra.mxu0 0.0
    %2467 = vmatprep.subr.mxu0 0.0
    %2468 = vmatpush1.msra.mxu0 0.0
    %2469 = vmatprep.subr.mxu0 0.0
    %2470 = vmatpush1.msra.mxu0 0.0
    %2471 = vmatprep.subr.mxu0 0.0
    %2472 = vmatpush1.msra.mxu0 0.0
    %2473 = vmatprep.subr.mxu0 0.0
    %2474 = vmatpush1.msra.mxu0 0.0
    %2475 = vmatprep.subr.mxu0 0.0
    %2476 = vmatpush1.msra.mxu0 0.0
    %2477 = vmatprep.subr.mxu0 0.0
    %2478 = vmatpush1.msra.mxu0 0.0
    %2479 = vmatprep.subr.mxu0 0.0
    %2480 = vmatpush1.msra.mxu0 0.0
    %2481 = vmatprep.subr.mxu0 0.0
    %2482 = vmatpush1.msra.mxu0 0.0
    %2483 = vmatprep.subr.mxu0 0.0
    %2484 = vmatpush1.msra.mxu0 0.0
    %2485 = vmatprep.subr.mxu0 0.0
    %2486 = vmatpush1.msra.mxu0 0.0
    %2487 = vmatprep.subr.mxu0 0.0
    %2488 = vmatpush1.msra.mxu0 0.0
    %2489 = vmatprep.subr.mxu0 0.0
    %2490 = vmatpush1.msra.mxu0 0.0
    %2491 = vmatprep.subr.mxu0 0.0
    %2492 = vmatpush1.msra.mxu0 0.0
    %2493 = vmatprep.subr.mxu0 0.0
    %2494 = vmatpush1.msra.mxu0 0.0
    %2495 = vmatprep.subr.mxu0 0.0
    %2496 = vmatpush1.msra.mxu0 0.0
    %2497 = vmatprep.mubr.f32.mxu0 0.0
    %2498 = vmatmul.mubr.f32.gmra.mrb[0].mxu0 %v2005
    %v2499 = vpop.f32.mrb[0].mxu0
    %v2500 = vadd.f32 0.0, %v2499
    %v2501 = vpop.f32.mrb[0].mxu0
    %v2502 = vadd.f32 0.0, %v2501
    %2503 = vdwg.mxu0
    %2504 = vmatprep.subr.mxu0 %v1986
    %2505 = vmatpush1.msra.mxu0 %v1985
    %2506 = vmatprep.subr.mxu0 %v2002
    %2507 = vmatpush1.msra.mxu0 %v2001
    %2508 = vmatprep.subr.mxu0 0.0
    %2509 = vmatpush1.msra.mxu0 0.0
    %2510 = vmatprep.subr.mxu0 0.0
    %2511 = vmatpush1.msra.mxu0 0.0
    %2512 = vmatprep.subr.mxu0 0.0
    %2513 = vmatpush1.msra.mxu0 0.0
    %2514 = vmatprep.subr.mxu0 0.0
    %2515 = vmatpush1.msra.mxu0 0.0
    %2516 = vmatprep.subr.mxu0 0.0
    %2517 = vmatpush1.msra.mxu0 0.0
    %2518 = vmatprep.subr.mxu0 0.0
    %2519 = vmatpush1.msra.mxu0 0.0
    %2520 = vmatprep.subr.mxu0 0.0
    %2521 = vmatpush1.msra.mxu0 0.0
    %2522 = vmatprep.subr.mxu0 0.0
    %2523 = vmatpush1.msra.mxu0 0.0
    %2524 = vmatprep.subr.mxu0 0.0
    %2525 = vmatpush1.msra.mxu0 0.0
    %2526 = vmatprep.subr.mxu0 0.0
    %2527 = vmatpush1.msra.mxu0 0.0
    %2528 = vmatprep.subr.mxu0 0.0
    %2529 = vmatpush1.msra.mxu0 0.0
    %2530 = vmatprep.subr.mxu0 0.0
    %2531 = vmatpush1.msra.mxu0 0.0
    %2532 = vmatprep.subr.mxu0 0.0
    %2533 = vmatpush1.msra.mxu0 0.0
    %2534 = vmatprep.subr.mxu0 0.0
    %2535 = vmatpush1.msra.mxu0 0.0
    %2536 = vmatprep.subr.mxu0 0.0
    %2537 = vmatpush1.msra.mxu0 0.0
    %2538 = vmatprep.subr.mxu0 0.0
    %2539 = vmatpush1.msra.mxu0 0.0
    %2540 = vmatprep.subr.mxu0 0.0
    %2541 = vmatpush1.msra.mxu0 0.0
    %2542 = vmatprep.subr.mxu0 0.0
    %2543 = vmatpush1.msra.mxu0 0.0
    %2544 = vmatprep.subr.mxu0 0.0
    %2545 = vmatpush1.msra.mxu0 0.0
    %2546 = vmatprep.subr.mxu0 0.0
    %2547 = vmatpush1.msra.mxu0 0.0
    %2548 = vmatprep.subr.mxu0 0.0
    %2549 = vmatpush1.msra.mxu0 0.0
    %2550 = vmatprep.subr.mxu0 0.0
    %2551 = vmatpush1.msra.mxu0 0.0
    %2552 = vmatprep.subr.mxu0 0.0
    %2553 = vmatpush1.msra.mxu0 0.0
    %2554 = vmatprep.subr.mxu0 0.0
    %2555 = vmatpush1.msra.mxu0 0.0
    %2556 = vmatprep.subr.mxu0 0.0
    %2557 = vmatpush1.msra.mxu0 0.0
    %2558 = vmatprep.subr.mxu0 0.0
    %2559 = vmatpush1.msra.mxu0 0.0
    %2560 = vmatprep.subr.mxu0 0.0
    %2561 = vmatpush1.msra.mxu0 0.0
    %2562 = vmatprep.subr.mxu0 0.0
    %2563 = vmatpush1.msra.mxu0 0.0
    %2564 = vmatprep.subr.mxu0 0.0
    %2565 = vmatpush1.msra.mxu0 0.0
    %2566 = vmatprep.subr.mxu0 0.0
    %2567 = vmatpush1.msra.mxu0 0.0
    %2568 = vmatprep.mubr.f32.mxu0 0.0
    %2569 = vmatmul.mubr.f32.gmra.mrb[0].mxu0 %v2005
    %v2570 = vpop.f32.mrb[0].mxu0
    %v2571 = vadd.f32 0.0, %v2570
    %v2572 = vpop.f32.mrb[0].mxu0
    %v2573 = vadd.f32 0.0, %v2572
    %2574 = vdwg.mxu0
    %v2591 = vcombine.low %v2074, %v2076
    %v2592 = vcombine.low %v2145, %v2147
    %v2593 = vcombine.low %v2216, %v2218
    %v2594 = vcombine.low %v2287, %v2289
    %v2596 = vunpack.c.l.s4 1966171168
    %v2597 = vunpack.c.0.s8 %v2596
    %v2598 = vlaneseq
    %v2599 = vshrl.u32 %v2598, 7
    %v2600 = vsub.s32 %v2597, %v2599
    %v2601 = vrot.slane %v2591, %v2600
    %v2603 = vunpack.c.l.s4 1966171168
    %v2604 = vunpack.c.0.s8 %v2603
    %v2605 = vlaneseq
    %v2606 = vshrl.u32 %v2605, 7
    %v2607 = vsub.s32 %v2604, %v2606
    %v2608 = vrot.slane %v2592, %v2607
    %v2610 = vunpack.c.l.s4 1966171168
    %v2611 = vunpack.c.0.s8 %v2610
    %v2612 = vlaneseq
    %v2613 = vshrl.u32 %v2612, 7
    %v2614 = vsub.s32 %v2611, %v2613
    %v2615 = vrot.slane %v2593, %v2614
    %v2617 = vunpack.c.l.s4 1966171168
    %v2618 = vunpack.c.0.s8 %v2617
    %v2619 = vlaneseq
    %v2620 = vshrl.u32 %v2619, 7
    %v2621 = vsub.s32 %v2618, %v2620
    %v2622 = vrot.slane %v2594, %v2621
    %v2623 = vcombine.low %v2601, %v2608
    %v2624 = vcombine.low %v2615, %v2622
    %v2626 = vunpack.c.l.s4 1966171168
    %v2627 = vunpack.c.0.s8 %v2626
    %v2628 = vlaneseq
    %v2629 = vshrl.u32 %v2628, 7
    %v2630 = vsub.s32 %v2627, %v2629
    %v2631 = vrot.slane %v2623, %v2630
    %v2633 = vunpack.c.l.s4 1966171168
    %v2634 = vunpack.c.0.s8 %v2633
    %v2635 = vlaneseq
    %v2636 = vshrl.u32 %v2635, 7
    %v2637 = vsub.s32 %v2634, %v2636
    %v2638 = vrot.slane %v2624, %v2637
    %v2639 = vcombine.low %v2631, %v2638
    %v2640 = vcombine.low %v2358, %v2360
    %v2641 = vcombine.low %v2429, %v2431
    %v2642 = vcombine.low %v2500, %v2502
    %v2643 = vcombine.low %v2571, %v2573
    %v2645 = vunpack.c.l.s4 1966171168
    %v2646 = vunpack.c.0.s8 %v2645
    %v2647 = vlaneseq
    %v2648 = vshrl.u32 %v2647, 7
    %v2649 = vsub.s32 %v2646, %v2648
    %v2650 = vrot.slane %v2640, %v2649
    %v2652 = vunpack.c.l.s4 1966171168
    %v2653 = vunpack.c.0.s8 %v2652
    %v2654 = vlaneseq
    %v2655 = vshrl.u32 %v2654, 7
    %v2656 = vsub.s32 %v2653, %v2655
    %v2657 = vrot.slane %v2641, %v2656
    %v2659 = vunpack.c.l.s4 1966171168
    %v2660 = vunpack.c.0.s8 %v2659
    %v2661 = vlaneseq
    %v2662 = vshrl.u32 %v2661, 7
    %v2663 = vsub.s32 %v2660, %v2662
    %v2664 = vrot.slane %v2642, %v2663
    %v2666 = vunpack.c.l.s4 1966171168
    %v2667 = vunpack.c.0.s8 %v2666
    %v2668 = vlaneseq
    %v2669 = vshrl.u32 %v2668, 7
    %v2670 = vsub.s32 %v2667, %v2669
    %v2671 = vrot.slane %v2643, %v2670
    %v2672 = vcombine.low %v2650, %v2657
    %v2673 = vcombine.low %v2664, %v2671
    %v2675 = vunpack.c.l.s4 1966171168
    %v2676 = vunpack.c.0.s8 %v2675
    %v2677 = vlaneseq
    %v2678 = vshrl.u32 %v2677, 7
    %v2679 = vsub.s32 %v2676, %v2678
    %v2680 = vrot.slane %v2672, %v2679
    %v2682 = vunpack.c.l.s4 1966171168
    %v2683 = vunpack.c.0.s8 %v2682
    %v2684 = vlaneseq
    %v2685 = vshrl.u32 %v2684, 7
    %v2686 = vsub.s32 %v2683, %v2685
    %v2687 = vrot.slane %v2673, %v2686
    %v2688 = vcombine.low %v2680, %v2687
    %v2691 = vsub.f32 0.0, %v2639
    %v2692 = vsub.f32 0.0, %v2688
    %v2693 = vmul.f32 %v2691, 1.442695
    %v2694 = vpow.pop %v2693
    %v2695 = vmul.f32 %v2692, 1.442695
    %v2696 = vpow.pop %v2695
    %v2697 = vadd.f32 %v2694, 1.0
    %v2698 = vadd.f32 %v2696, 1.0
    %v2699 = vrcp.pop %v2697
    %v2700 = vmul.f32 1.0, %v2699
    %v2701 = vrcp.pop %v2698
    %v2702 = vmul.f32 1.0, %v2701
    %v2703 = vld [vmem:[#allocation6] sm:$0xff]
    %v2704 = vld [vmem:[#allocation6 + $0x8] sm:$0xff]
    %v2705 = vld [vmem:[#allocation6 + $0x10] sm:$0xff]
    %v2706 = vld [vmem:[#allocation6 + $0x18] sm:$0xff]
    %v2707 = vld [vmem:[#allocation6 + $0x20] sm:$0xff]
    %v2708 = vld [vmem:[#allocation6 + $0x28] sm:$0xff]
    %v2709 = vld [vmem:[#allocation6 + $0x30] sm:$0xff]
    %v2710 = vld [vmem:[#allocation6 + $0x38] sm:$0xff]
    %v2711 = vld [vmem:[#allocation6 + $0x40] sm:$0xff]
    %v2712 = vld [vmem:[#allocation6 + $0x48] sm:$0xff]
    %v2713 = vld [vmem:[#allocation6 + $0x50] sm:$0xff]
    %v2714 = vld [vmem:[#allocation6 + $0x58] sm:$0xff]
    %v2715 = vld [vmem:[#allocation6 + $0x60] sm:$0xff]
    %v2716 = vld [vmem:[#allocation6 + $0x68] sm:$0xff]
    %v2717 = vld [vmem:[#allocation6 + $0x70] sm:$0xff]
    %v2718 = vld [vmem:[#allocation6 + $0x78] sm:$0xff]
    %v2719 = vld [vmem:[#allocation6 + $0x80] sm:$0xff]
    %v2720 = vld [vmem:[#allocation6 + $0x88] sm:$0xff]
    %v2721 = vld [vmem:[#allocation6 + $0x90] sm:$0xff]
    %v2722 = vld [vmem:[#allocation6 + $0x98] sm:$0xff]
    %v2723 = vld [vmem:[#allocation6 + $0xa0] sm:$0xff]
    %v2724 = vld [vmem:[#allocation6 + $0xa8] sm:$0xff]
    %v2725 = vld [vmem:[#allocation6 + $0xb0] sm:$0xff]
    %v2726 = vld [vmem:[#allocation6 + $0xb8] sm:$0xff]
    %v2727 = vld [vmem:[#allocation6 + $0xc0] sm:$0xff]
    %v2728 = vld [vmem:[#allocation6 + $0xc8] sm:$0xff]
    %v2729 = vld [vmem:[#allocation6 + $0xd0] sm:$0xff]
    %v2730 = vld [vmem:[#allocation6 + $0xd8] sm:$0xff]
    %v2731 = vld [vmem:[#allocation6 + $0xe0] sm:$0xff]
    %v2732 = vld [vmem:[#allocation6 + $0xe8] sm:$0xff]
    %v2733 = vld [vmem:[#allocation6 + $0xf0] sm:$0xff]
    %v2734 = vld [vmem:[#allocation6 + $0xf8] sm:$0xff]
    %2735 = vrot.lane.b32.xlu0 %v876, 112
    %v2736 = vpop.permute.xlu0 %2735
    %v2737 = vsel %vm2003, %v2736, 0
    %2739 = vmatprep.subr.mxu0 %v2704
    %2740 = vmatpush1.msra.mxu0 %v2703
    %2741 = vmatprep.subr.mxu0 %v2720
    %2742 = vmatpush1.msra.mxu0 %v2719
    %2743 = vmatprep.subr.mxu0 0.0
    %2744 = vmatpush1.msra.mxu0 0.0
    %2745 = vmatprep.subr.mxu0 0.0
    %2746 = vmatpush1.msra.mxu0 0.0
    %2747 = vmatprep.subr.mxu0 0.0
    %2748 = vmatpush1.msra.mxu0 0.0
    %2749 = vmatprep.subr.mxu0 0.0
    %2750 = vmatpush1.msra.mxu0 0.0
    %2751 = vmatprep.subr.mxu0 0.0
    %2752 = vmatpush1.msra.mxu0 0.0
    %2753 = vmatprep.subr.mxu0 0.0
    %2754 = vmatpush1.msra.mxu0 0.0
    %2755 = vmatprep.subr.mxu0 0.0
    %2756 = vmatpush1.msra.mxu0 0.0
    %2757 = vmatprep.subr.mxu0 0.0
    %2758 = vmatpush1.msra.mxu0 0.0
    %2759 = vmatprep.subr.mxu0 0.0
    %2760 = vmatpush1.msra.mxu0 0.0
    %2761 = vmatprep.subr.mxu0 0.0
    %2762 = vmatpush1.msra.mxu0 0.0
    %2763 = vmatprep.subr.mxu0 0.0
    %2764 = vmatpush1.msra.mxu0 0.0
    %2765 = vmatprep.subr.mxu0 0.0
    %2766 = vmatpush1.msra.mxu0 0.0
    %2767 = vmatprep.subr.mxu0 0.0
    %2768 = vmatpush1.msra.mxu0 0.0
    %2769 = vmatprep.subr.mxu0 0.0
    %2770 = vmatpush1.msra.mxu0 0.0
    %2771 = vmatprep.subr.mxu0 0.0
    %2772 = vmatpush1.msra.mxu0 0.0
    %2773 = vmatprep.subr.mxu0 0.0
    %2774 = vmatpush1.msra.mxu0 0.0
    %2775 = vmatprep.subr.mxu0 0.0
    %2776 = vmatpush1.msra.mxu0 0.0
    %2777 = vmatprep.subr.mxu0 0.0
    %2778 = vmatpush1.msra.mxu0 0.0
    %2779 = vmatprep.subr.mxu0 0.0
    %2780 = vmatpush1.msra.mxu0 0.0
    %2781 = vmatprep.subr.mxu0 0.0
    %2782 = vmatpush1.msra.mxu0 0.0
    %2783 = vmatprep.subr.mxu0 0.0
    %2784 = vmatpush1.msra.mxu0 0.0
    %2785 = vmatprep.subr.mxu0 0.0
    %2786 = vmatpush1.msra.mxu0 0.0
    %2787 = vmatprep.subr.mxu0 0.0
    %2788 = vmatpush1.msra.mxu0 0.0
    %2789 = vmatprep.subr.mxu0 0.0
    %2790 = vmatpush1.msra.mxu0 0.0
    %2791 = vmatprep.subr.mxu0 0.0
    %2792 = vmatpush1.msra.mxu0 0.0
    %2793 = vmatprep.subr.mxu0 0.0
    %2794 = vmatpush1.msra.mxu0 0.0
    %2795 = vmatprep.subr.mxu0 0.0
    %2796 = vmatpush1.msra.mxu0 0.0
    %2797 = vmatprep.subr.mxu0 0.0
    %2798 = vmatpush1.msra.mxu0 0.0
    %2799 = vmatprep.subr.mxu0 0.0
    %2800 = vmatpush1.msra.mxu0 0.0
    %2801 = vmatprep.subr.mxu0 0.0
    %2802 = vmatpush1.msra.mxu0 0.0
    %2803 = vmatprep.mubr.f32.mxu0 0.0
    %2804 = vmatmul.mubr.f32.gmra.mrb[0].mxu0 %v2737
    %v2805 = vpop.f32.mrb[0].mxu0
    %v2806 = vadd.f32 0.0, %v2805
    %v2807 = vpop.f32.mrb[0].mxu0
    %v2808 = vadd.f32 0.0, %v2807
    %2809 = vdwg.mxu0
    %2810 = vmatprep.subr.mxu0 %v2706
    %2811 = vmatpush1.msra.mxu0 %v2705
    %2812 = vmatprep.subr.mxu0 %v2722
    %2813 = vmatpush1.msra.mxu0 %v2721
    %2814 = vmatprep.subr.mxu0 0.0
    %2815 = vmatpush1.msra.mxu0 0.0
    %2816 = vmatprep.subr.mxu0 0.0
    %2817 = vmatpush1.msra.mxu0 0.0
    %2818 = vmatprep.subr.mxu0 0.0
    %2819 = vmatpush1.msra.mxu0 0.0
    %2820 = vmatprep.subr.mxu0 0.0
    %2821 = vmatpush1.msra.mxu0 0.0
    %2822 = vmatprep.subr.mxu0 0.0
    %2823 = vmatpush1.msra.mxu0 0.0
    %2824 = vmatprep.subr.mxu0 0.0
    %2825 = vmatpush1.msra.mxu0 0.0
    %2826 = vmatprep.subr.mxu0 0.0
    %2827 = vmatpush1.msra.mxu0 0.0
    %2828 = vmatprep.subr.mxu0 0.0
    %2829 = vmatpush1.msra.mxu0 0.0
    %2830 = vmatprep.subr.mxu0 0.0
    %2831 = vmatpush1.msra.mxu0 0.0
    %2832 = vmatprep.subr.mxu0 0.0
    %2833 = vmatpush1.msra.mxu0 0.0
    %2834 = vmatprep.subr.mxu0 0.0
    %2835 = vmatpush1.msra.mxu0 0.0
    %2836 = vmatprep.subr.mxu0 0.0
    %2837 = vmatpush1.msra.mxu0 0.0
    %2838 = vmatprep.subr.mxu0 0.0
    %2839 = vmatpush1.msra.mxu0 0.0
    %2840 = vmatprep.subr.mxu0 0.0
    %2841 = vmatpush1.msra.mxu0 0.0
    %2842 = vmatprep.subr.mxu0 0.0
    %2843 = vmatpush1.msra.mxu0 0.0
    %2844 = vmatprep.subr.mxu0 0.0
    %2845 = vmatpush1.msra.mxu0 0.0
    %2846 = vmatprep.subr.mxu0 0.0
    %2847 = vmatpush1.msra.mxu0 0.0
    %2848 = vmatprep.subr.mxu0 0.0
    %2849 = vmatpush1.msra.mxu0 0.0
    %2850 = vmatprep.subr.mxu0 0.0
    %2851 = vmatpush1.msra.mxu0 0.0
    %2852 = vmatprep.subr.mxu0 0.0
    %2853 = vmatpush1.msra.mxu0 0.0
    %2854 = vmatprep.subr.mxu0 0.0
    %2855 = vmatpush1.msra.mxu0 0.0
    %2856 = vmatprep.subr.mxu0 0.0
    %2857 = vmatpush1.msra.mxu0 0.0
    %2858 = vmatprep.subr.mxu0 0.0
    %2859 = vmatpush1.msra.mxu0 0.0
    %2860 = vmatprep.subr.mxu0 0.0
    %2861 = vmatpush1.msra.mxu0 0.0
    %2862 = vmatprep.subr.mxu0 0.0
    %2863 = vmatpush1.msra.mxu0 0.0
    %2864 = vmatprep.subr.mxu0 0.0
    %2865 = vmatpush1.msra.mxu0 0.0
    %2866 = vmatprep.subr.mxu0 0.0
    %2867 = vmatpush1.msra.mxu0 0.0
    %2868 = vmatprep.subr.mxu0 0.0
    %2869 = vmatpush1.msra.mxu0 0.0
    %2870 = vmatprep.subr.mxu0 0.0
    %2871 = vmatpush1.msra.mxu0 0.0
    %2872 = vmatprep.subr.mxu0 0.0
    %2873 = vmatpush1.msra.mxu0 0.0
    %2874 = vmatprep.mubr.f32.mxu0 0.0
    %2875 = vmatmul.mubr.f32.gmra.mrb[0].mxu0 %v2737
    %v2876 = vpop.f32.mrb[0].mxu0
    %v2877 = vadd.f32 0.0, %v2876
    %v2878 = vpop.f32.mrb[0].mxu0
    %v2879 = vadd.f32 0.0, %v2878
    %2880 = vdwg.mxu0
    %2881 = vmatprep.subr.mxu0 %v2708
    %2882 = vmatpush1.msra.mxu0 %v2707
    %2883 = vmatprep.subr.mxu0 %v2724
    %2884 = vmatpush1.msra.mxu0 %v2723
    %2885 = vmatprep.subr.mxu0 0.0
    %2886 = vmatpush1.msra.mxu0 0.0
    %2887 = vmatprep.subr.mxu0 0.0
    %2888 = vmatpush1.msra.mxu0 0.0
    %2889 = vmatprep.subr.mxu0 0.0
    %2890 = vmatpush1.msra.mxu0 0.0
    %2891 = vmatprep.subr.mxu0 0.0
    %2892 = vmatpush1.msra.mxu0 0.0
    %2893 = vmatprep.subr.mxu0 0.0
    %2894 = vmatpush1.msra.mxu0 0.0
    %2895 = vmatprep.subr.mxu0 0.0
    %2896 = vmatpush1.msra.mxu0 0.0
    %2897 = vmatprep.subr.mxu0 0.0
    %2898 = vmatpush1.msra.mxu0 0.0
    %2899 = vmatprep.subr.mxu0 0.0
    %2900 = vmatpush1.msra.mxu0 0.0
    %2901 = vmatprep.subr.mxu0 0.0
    %2902 = vmatpush1.msra.mxu0 0.0
    %2903 = vmatprep.subr.mxu0 0.0
    %2904 = vmatpush1.msra.mxu0 0.0
    %2905 = vmatprep.subr.mxu0 0.0
    %2906 = vmatpush1.msra.mxu0 0.0
    %2907 = vmatprep.subr.mxu0 0.0
    %2908 = vmatpush1.msra.mxu0 0.0
    %2909 = vmatprep.subr.mxu0 0.0
    %2910 = vmatpush1.msra.mxu0 0.0
    %2911 = vmatprep.subr.mxu0 0.0
    %2912 = vmatpush1.msra.mxu0 0.0
    %2913 = vmatprep.subr.mxu0 0.0
    %2914 = vmatpush1.msra.mxu0 0.0
    %2915 = vmatprep.subr.mxu0 0.0
    %2916 = vmatpush1.msra.mxu0 0.0
    %2917 = vmatprep.subr.mxu0 0.0
    %2918 = vmatpush1.msra.mxu0 0.0
    %2919 = vmatprep.subr.mxu0 0.0
    %2920 = vmatpush1.msra.mxu0 0.0
    %2921 = vmatprep.subr.mxu0 0.0
    %2922 = vmatpush1.msra.mxu0 0.0
    %2923 = vmatprep.subr.mxu0 0.0
    %2924 = vmatpush1.msra.mxu0 0.0
    %2925 = vmatprep.subr.mxu0 0.0
    %2926 = vmatpush1.msra.mxu0 0.0
    %2927 = vmatprep.subr.mxu0 0.0
    %2928 = vmatpush1.msra.mxu0 0.0
    %2929 = vmatprep.subr.mxu0 0.0
    %2930 = vmatpush1.msra.mxu0 0.0
    %2931 = vmatprep.subr.mxu0 0.0
    %2932 = vmatpush1.msra.mxu0 0.0
    %2933 = vmatprep.subr.mxu0 0.0
    %2934 = vmatpush1.msra.mxu0 0.0
    %2935 = vmatprep.subr.mxu0 0.0
    %2936 = vmatpush1.msra.mxu0 0.0
    %2937 = vmatprep.subr.mxu0 0.0
    %2938 = vmatpush1.msra.mxu0 0.0
    %2939 = vmatprep.subr.mxu0 0.0
    %2940 = vmatpush1.msra.mxu0 0.0
    %2941 = vmatprep.subr.mxu0 0.0
    %2942 = vmatpush1.msra.mxu0 0.0
    %2943 = vmatprep.subr.mxu0 0.0
    %2944 = vmatpush1.msra.mxu0 0.0
    %2945 = vmatprep.mubr.f32.mxu0 0.0
    %2946 = vmatmul.mubr.f32.gmra.mrb[0].mxu0 %v2737
    %v2947 = vpop.f32.mrb[0].mxu0
    %v2948 = vadd.f32 0.0, %v2947
    %v2949 = vpop.f32.mrb[0].mxu0
    %v2950 = vadd.f32 0.0, %v2949
    %2951 = vdwg.mxu0
    %2952 = vmatprep.subr.mxu0 %v2710
    %2953 = vmatpush1.msra.mxu0 %v2709
    %2954 = vmatprep.subr.mxu0 %v2726
    %2955 = vmatpush1.msra.mxu0 %v2725
    %2956 = vmatprep.subr.mxu0 0.0
    %2957 = vmatpush1.msra.mxu0 0.0
    %2958 = vmatprep.subr.mxu0 0.0
    %2959 = vmatpush1.msra.mxu0 0.0
    %2960 = vmatprep.subr.mxu0 0.0
    %2961 = vmatpush1.msra.mxu0 0.0
    %2962 = vmatprep.subr.mxu0 0.0
    %2963 = vmatpush1.msra.mxu0 0.0
    %2964 = vmatprep.subr.mxu0 0.0
    %2965 = vmatpush1.msra.mxu0 0.0
    %2966 = vmatprep.subr.mxu0 0.0
    %2967 = vmatpush1.msra.mxu0 0.0
    %2968 = vmatprep.subr.mxu0 0.0
    %2969 = vmatpush1.msra.mxu0 0.0
    %2970 = vmatprep.subr.mxu0 0.0
    %2971 = vmatpush1.msra.mxu0 0.0
    %2972 = vmatprep.subr.mxu0 0.0
    %2973 = vmatpush1.msra.mxu0 0.0
    %2974 = vmatprep.subr.mxu0 0.0
    %2975 = vmatpush1.msra.mxu0 0.0
    %2976 = vmatprep.subr.mxu0 0.0
    %2977 = vmatpush1.msra.mxu0 0.0
    %2978 = vmatprep.subr.mxu0 0.0
    %2979 = vmatpush1.msra.mxu0 0.0
    %2980 = vmatprep.subr.mxu0 0.0
    %2981 = vmatpush1.msra.mxu0 0.0
    %2982 = vmatprep.subr.mxu0 0.0
    %2983 = vmatpush1.msra.mxu0 0.0
    %2984 = vmatprep.subr.mxu0 0.0
    %2985 = vmatpush1.msra.mxu0 0.0
    %2986 = vmatprep.subr.mxu0 0.0
    %2987 = vmatpush1.msra.mxu0 0.0
    %2988 = vmatprep.subr.mxu0 0.0
    %2989 = vmatpush1.msra.mxu0 0.0
    %2990 = vmatprep.subr.mxu0 0.0
    %2991 = vmatpush1.msra.mxu0 0.0
    %2992 = vmatprep.subr.mxu0 0.0
    %2993 = vmatpush1.msra.mxu0 0.0
    %2994 = vmatprep.subr.mxu0 0.0
    %2995 = vmatpush1.msra.mxu0 0.0
    %2996 = vmatprep.subr.mxu0 0.0
    %2997 = vmatpush1.msra.mxu0 0.0
    %2998 = vmatprep.subr.mxu0 0.0
    %2999 = vmatpush1.msra.mxu0 0.0
    %3000 = vmatprep.subr.mxu0 0.0
    %3001 = vmatpush1.msra.mxu0 0.0
    %3002 = vmatprep.subr.mxu0 0.0
    %3003 = vmatpush1.msra.mxu0 0.0
    %3004 = vmatprep.subr.mxu0 0.0
    %3005 = vmatpush1.msra.mxu0 0.0
    %3006 = vmatprep.subr.mxu0 0.0
    %3007 = vmatpush1.msra.mxu0 0.0
    %3008 = vmatprep.subr.mxu0 0.0
    %3009 = vmatpush1.msra.mxu0 0.0
    %3010 = vmatprep.subr.mxu0 0.0
    %3011 = vmatpush1.msra.mxu0 0.0
    %3012 = vmatprep.subr.mxu0 0.0
    %3013 = vmatpush1.msra.mxu0 0.0
    %3014 = vmatprep.subr.mxu0 0.0
    %3015 = vmatpush1.msra.mxu0 0.0
    %3016 = vmatprep.mubr.f32.mxu0 0.0
    %3017 = vmatmul.mubr.f32.gmra.mrb[0].mxu0 %v2737
    %v3018 = vpop.f32.mrb[0].mxu0
    %v3019 = vadd.f32 0.0, %v3018
    %v3020 = vpop.f32.mrb[0].mxu0
    %v3021 = vadd.f32 0.0, %v3020
    %3022 = vdwg.mxu0
    %3023 = vmatprep.subr.mxu0 %v2712
    %3024 = vmatpush1.msra.mxu0 %v2711
    %3025 = vmatprep.subr.mxu0 %v2728
    %3026 = vmatpush1.msra.mxu0 %v2727
    %3027 = vmatprep.subr.mxu0 0.0
    %3028 = vmatpush1.msra.mxu0 0.0
    %3029 = vmatprep.subr.mxu0 0.0
    %3030 = vmatpush1.msra.mxu0 0.0
    %3031 = vmatprep.subr.mxu0 0.0
    %3032 = vmatpush1.msra.mxu0 0.0
    %3033 = vmatprep.subr.mxu0 0.0
    %3034 = vmatpush1.msra.mxu0 0.0
    %3035 = vmatprep.subr.mxu0 0.0
    %3036 = vmatpush1.msra.mxu0 0.0
    %3037 = vmatprep.subr.mxu0 0.0
    %3038 = vmatpush1.msra.mxu0 0.0
    %3039 = vmatprep.subr.mxu0 0.0
    %3040 = vmatpush1.msra.mxu0 0.0
    %3041 = vmatprep.subr.mxu0 0.0
    %3042 = vmatpush1.msra.mxu0 0.0
    %3043 = vmatprep.subr.mxu0 0.0
    %3044 = vmatpush1.msra.mxu0 0.0
    %3045 = vmatprep.subr.mxu0 0.0
    %3046 = vmatpush1.msra.mxu0 0.0
    %3047 = vmatprep.subr.mxu0 0.0
    %3048 = vmatpush1.msra.mxu0 0.0
    %3049 = vmatprep.subr.mxu0 0.0
    %3050 = vmatpush1.msra.mxu0 0.0
    %3051 = vmatprep.subr.mxu0 0.0
    %3052 = vmatpush1.msra.mxu0 0.0
    %3053 = vmatprep.subr.mxu0 0.0
    %3054 = vmatpush1.msra.mxu0 0.0
    %3055 = vmatprep.subr.mxu0 0.0
    %3056 = vmatpush1.msra.mxu0 0.0
    %3057 = vmatprep.subr.mxu0 0.0
    %3058 = vmatpush1.msra.mxu0 0.0
    %3059 = vmatprep.subr.mxu0 0.0
    %3060 = vmatpush1.msra.mxu0 0.0
    %3061 = vmatprep.subr.mxu0 0.0
    %3062 = vmatpush1.msra.mxu0 0.0
    %3063 = vmatprep.subr.mxu0 0.0
    %3064 = vmatpush1.msra.mxu0 0.0
    %3065 = vmatprep.subr.mxu0 0.0
    %3066 = vmatpush1.msra.mxu0 0.0
    %3067 = vmatprep.subr.mxu0 0.0
    %3068 = vmatpush1.msra.mxu0 0.0
    %3069 = vmatprep.subr.mxu0 0.0
    %3070 = vmatpush1.msra.mxu0 0.0
    %3071 = vmatprep.subr.mxu0 0.0
    %3072 = vmatpush1.msra.mxu0 0.0
    %3073 = vmatprep.subr.mxu0 0.0
    %3074 = vmatpush1.msra.mxu0 0.0
    %3075 = vmatprep.subr.mxu0 0.0
    %3076 = vmatpush1.msra.mxu0 0.0
    %3077 = vmatprep.subr.mxu0 0.0
    %3078 = vmatpush1.msra.mxu0 0.0
    %3079 = vmatprep.subr.mxu0 0.0
    %3080 = vmatpush1.msra.mxu0 0.0
    %3081 = vmatprep.subr.mxu0 0.0
    %3082 = vmatpush1.msra.mxu0 0.0
    %3083 = vmatprep.subr.mxu0 0.0
    %3084 = vmatpush1.msra.mxu0 0.0
    %3085 = vmatprep.subr.mxu0 0.0
    %3086 = vmatpush1.msra.mxu0 0.0
    %3087 = vmatprep.mubr.f32.mxu0 0.0
    %3088 = vmatmul.mubr.f32.gmra.mrb[0].mxu0 %v2737
    %v3089 = vpop.f32.mrb[0].mxu0
    %v3090 = vadd.f32 0.0, %v3089
    %v3091 = vpop.f32.mrb[0].mxu0
    %v3092 = vadd.f32 0.0, %v3091
    %3093 = vdwg.mxu0
    %3094 = vmatprep.subr.mxu0 %v2714
    %3095 = vmatpush1.msra.mxu0 %v2713
    %3096 = vmatprep.subr.mxu0 %v2730
    %3097 = vmatpush1.msra.mxu0 %v2729
    %3098 = vmatprep.subr.mxu0 0.0
    %3099 = vmatpush1.msra.mxu0 0.0
    %3100 = vmatprep.subr.mxu0 0.0
    %3101 = vmatpush1.msra.mxu0 0.0
    %3102 = vmatprep.subr.mxu0 0.0
    %3103 = vmatpush1.msra.mxu0 0.0
    %3104 = vmatprep.subr.mxu0 0.0
    %3105 = vmatpush1.msra.mxu0 0.0
    %3106 = vmatprep.subr.mxu0 0.0
    %3107 = vmatpush1.msra.mxu0 0.0
    %3108 = vmatprep.subr.mxu0 0.0
    %3109 = vmatpush1.msra.mxu0 0.0
    %3110 = vmatprep.subr.mxu0 0.0
    %3111 = vmatpush1.msra.mxu0 0.0
    %3112 = vmatprep.subr.mxu0 0.0
    %3113 = vmatpush1.msra.mxu0 0.0
    %3114 = vmatprep.subr.mxu0 0.0
    %3115 = vmatpush1.msra.mxu0 0.0
    %3116 = vmatprep.subr.mxu0 0.0
    %3117 = vmatpush1.msra.mxu0 0.0
    %3118 = vmatprep.subr.mxu0 0.0
    %3119 = vmatpush1.msra.mxu0 0.0
    %3120 = vmatprep.subr.mxu0 0.0
    %3121 = vmatpush1.msra.mxu0 0.0
    %3122 = vmatprep.subr.mxu0 0.0
    %3123 = vmatpush1.msra.mxu0 0.0
    %3124 = vmatprep.subr.mxu0 0.0
    %3125 = vmatpush1.msra.mxu0 0.0
    %3126 = vmatprep.subr.mxu0 0.0
    %3127 = vmatpush1.msra.mxu0 0.0
    %3128 = vmatprep.subr.mxu0 0.0
    %3129 = vmatpush1.msra.mxu0 0.0
    %3130 = vmatprep.subr.mxu0 0.0
    %3131 = vmatpush1.msra.mxu0 0.0
    %3132 = vmatprep.subr.mxu0 0.0
    %3133 = vmatpush1.msra.mxu0 0.0
    %3134 = vmatprep.subr.mxu0 0.0
    %3135 = vmatpush1.msra.mxu0 0.0
    %3136 = vmatprep.subr.mxu0 0.0
    %3137 = vmatpush1.msra.mxu0 0.0
    %3138 = vmatprep.subr.mxu0 0.0
    %3139 = vmatpush1.msra.mxu0 0.0
    %3140 = vmatprep.subr.mxu0 0.0
    %3141 = vmatpush1.msra.mxu0 0.0
    %3142 = vmatprep.subr.mxu0 0.0
    %3143 = vmatpush1.msra.mxu0 0.0
    %3144 = vmatprep.subr.mxu0 0.0
    %3145 = vmatpush1.msra.mxu0 0.0
    %3146 = vmatprep.subr.mxu0 0.0
    %3147 = vmatpush1.msra.mxu0 0.0
    %3148 = vmatprep.subr.mxu0 0.0
    %3149 = vmatpush1.msra.mxu0 0.0
    %3150 = vmatprep.subr.mxu0 0.0
    %3151 = vmatpush1.msra.mxu0 0.0
    %3152 = vmatprep.subr.mxu0 0.0
    %3153 = vmatpush1.msra.mxu0 0.0
    %3154 = vmatprep.subr.mxu0 0.0
    %3155 = vmatpush1.msra.mxu0 0.0
    %3156 = vmatprep.subr.mxu0 0.0
    %3157 = vmatpush1.msra.mxu0 0.0
    %3158 = vmatprep.mubr.f32.mxu0 0.0
    %3159 = vmatmul.mubr.f32.gmra.mrb[0].mxu0 %v2737
    %v3160 = vpop.f32.mrb[0].mxu0
    %v3161 = vadd.f32 0.0, %v3160
    %v3162 = vpop.f32.mrb[0].mxu0
    %v3163 = vadd.f32 0.0, %v3162
    %3164 = vdwg.mxu0
    %3165 = vmatprep.subr.mxu0 %v2716
    %3166 = vmatpush1.msra.mxu0 %v2715
    %3167 = vmatprep.subr.mxu0 %v2732
    %3168 = vmatpush1.msra.mxu0 %v2731
    %3169 = vmatprep.subr.mxu0 0.0
    %3170 = vmatpush1.msra.mxu0 0.0
    %3171 = vmatprep.subr.mxu0 0.0
    %3172 = vmatpush1.msra.mxu0 0.0
    %3173 = vmatprep.subr.mxu0 0.0
    %3174 = vmatpush1.msra.mxu0 0.0
    %3175 = vmatprep.subr.mxu0 0.0
    %3176 = vmatpush1.msra.mxu0 0.0
    %3177 = vmatprep.subr.mxu0 0.0
    %3178 = vmatpush1.msra.mxu0 0.0
    %3179 = vmatprep.subr.mxu0 0.0
    %3180 = vmatpush1.msra.mxu0 0.0
    %3181 = vmatprep.subr.mxu0 0.0
    %3182 = vmatpush1.msra.mxu0 0.0
    %3183 = vmatprep.subr.mxu0 0.0
    %3184 = vmatpush1.msra.mxu0 0.0
    %3185 = vmatprep.subr.mxu0 0.0
    %3186 = vmatpush1.msra.mxu0 0.0
    %3187 = vmatprep.subr.mxu0 0.0
    %3188 = vmatpush1.msra.mxu0 0.0
    %3189 = vmatprep.subr.mxu0 0.0
    %3190 = vmatpush1.msra.mxu0 0.0
    %3191 = vmatprep.subr.mxu0 0.0
    %3192 = vmatpush1.msra.mxu0 0.0
    %3193 = vmatprep.subr.mxu0 0.0
    %3194 = vmatpush1.msra.mxu0 0.0
    %3195 = vmatprep.subr.mxu0 0.0
    %3196 = vmatpush1.msra.mxu0 0.0
    %3197 = vmatprep.subr.mxu0 0.0
    %3198 = vmatpush1.msra.mxu0 0.0
    %3199 = vmatprep.subr.mxu0 0.0
    %3200 = vmatpush1.msra.mxu0 0.0
    %3201 = vmatprep.subr.mxu0 0.0
    %3202 = vmatpush1.msra.mxu0 0.0
    %3203 = vmatprep.subr.mxu0 0.0
    %3204 = vmatpush1.msra.mxu0 0.0
    %3205 = vmatprep.subr.mxu0 0.0
    %3206 = vmatpush1.msra.mxu0 0.0
    %3207 = vmatprep.subr.mxu0 0.0
    %3208 = vmatpush1.msra.mxu0 0.0
    %3209 = vmatprep.subr.mxu0 0.0
    %3210 = vmatpush1.msra.mxu0 0.0
    %3211 = vmatprep.subr.mxu0 0.0
    %3212 = vmatpush1.msra.mxu0 0.0
    %3213 = vmatprep.subr.mxu0 0.0
    %3214 = vmatpush1.msra.mxu0 0.0
    %3215 = vmatprep.subr.mxu0 0.0
    %3216 = vmatpush1.msra.mxu0 0.0
    %3217 = vmatprep.subr.mxu0 0.0
    %3218 = vmatpush1.msra.mxu0 0.0
    %3219 = vmatprep.subr.mxu0 0.0
    %3220 = vmatpush1.msra.mxu0 0.0
    %3221 = vmatprep.subr.mxu0 0.0
    %3222 = vmatpush1.msra.mxu0 0.0
    %3223 = vmatprep.subr.mxu0 0.0
    %3224 = vmatpush1.msra.mxu0 0.0
    %3225 = vmatprep.subr.mxu0 0.0
    %3226 = vmatpush1.msra.mxu0 0.0
    %3227 = vmatprep.subr.mxu0 0.0
    %3228 = vmatpush1.msra.mxu0 0.0
    %3229 = vmatprep.mubr.f32.mxu0 0.0
    %3230 = vmatmul.mubr.f32.gmra.mrb[0].mxu0 %v2737
    %v3231 = vpop.f32.mrb[0].mxu0
    %v3232 = vadd.f32 0.0, %v3231
    %v3233 = vpop.f32.mrb[0].mxu0
    %v3234 = vadd.f32 0.0, %v3233
    %3235 = vdwg.mxu0
    %3236 = vmatprep.subr.mxu0 %v2718
    %3237 = vmatpush1.msra.mxu0 %v2717
    %3238 = vmatprep.subr.mxu0 %v2734
    %3239 = vmatpush1.msra.mxu0 %v2733
    %3240 = vmatprep.subr.mxu0 0.0
    %3241 = vmatpush1.msra.mxu0 0.0
    %3242 = vmatprep.subr.mxu0 0.0
    %3243 = vmatpush1.msra.mxu0 0.0
    %3244 = vmatprep.subr.mxu0 0.0
    %3245 = vmatpush1.msra.mxu0 0.0
    %3246 = vmatprep.subr.mxu0 0.0
    %3247 = vmatpush1.msra.mxu0 0.0
    %3248 = vmatprep.subr.mxu0 0.0
    %3249 = vmatpush1.msra.mxu0 0.0
    %3250 = vmatprep.subr.mxu0 0.0
    %3251 = vmatpush1.msra.mxu0 0.0
    %3252 = vmatprep.subr.mxu0 0.0
    %3253 = vmatpush1.msra.mxu0 0.0
    %3254 = vmatprep.subr.mxu0 0.0
    %3255 = vmatpush1.msra.mxu0 0.0
    %3256 = vmatprep.subr.mxu0 0.0
    %3257 = vmatpush1.msra.mxu0 0.0
    %3258 = vmatprep.subr.mxu0 0.0
    %3259 = vmatpush1.msra.mxu0 0.0
    %3260 = vmatprep.subr.mxu0 0.0
    %3261 = vmatpush1.msra.mxu0 0.0
    %3262 = vmatprep.subr.mxu0 0.0
    %3263 = vmatpush1.msra.mxu0 0.0
    %3264 = vmatprep.subr.mxu0 0.0
    %3265 = vmatpush1.msra.mxu0 0.0
    %3266 = vmatprep.subr.mxu0 0.0
    %3267 = vmatpush1.msra.mxu0 0.0
    %3268 = vmatprep.subr.mxu0 0.0
    %3269 = vmatpush1.msra.mxu0 0.0
    %3270 = vmatprep.subr.mxu0 0.0
    %3271 = vmatpush1.msra.mxu0 0.0
    %3272 = vmatprep.subr.mxu0 0.0
    %3273 = vmatpush1.msra.mxu0 0.0
    %3274 = vmatprep.subr.mxu0 0.0
    %3275 = vmatpush1.msra.mxu0 0.0
    %3276 = vmatprep.subr.mxu0 0.0
    %3277 = vmatpush1.msra.mxu0 0.0
    %3278 = vmatprep.subr.mxu0 0.0
    %3279 = vmatpush1.msra.mxu0 0.0
    %3280 = vmatprep.subr.mxu0 0.0
    %3281 = vmatpush1.msra.mxu0 0.0
    %3282 = vmatprep.subr.mxu0 0.0
    %3283 = vmatpush1.msra.mxu0 0.0
    %3284 = vmatprep.subr.mxu0 0.0
    %3285 = vmatpush1.msra.mxu0 0.0
    %3286 = vmatprep.subr.mxu0 0.0
    %3287 = vmatpush1.msra.mxu0 0.0
    %3288 = vmatprep.subr.mxu0 0.0
    %3289 = vmatpush1.msra.mxu0 0.0
    %3290 = vmatprep.subr.mxu0 0.0
    %3291 = vmatpush1.msra.mxu0 0.0
    %3292 = vmatprep.subr.mxu0 0.0
    %3293 = vmatpush1.msra.mxu0 0.0
    %3294 = vmatprep.subr.mxu0 0.0
    %3295 = vmatpush1.msra.mxu0 0.0
    %3296 = vmatprep.subr.mxu0 0.0
    %3297 = vmatpush1.msra.mxu0 0.0
    %3298 = vmatprep.subr.mxu0 0.0
    %3299 = vmatpush1.msra.mxu0 0.0
    %3300 = vmatprep.mubr.f32.mxu0 0.0
    %3301 = vmatmul.mubr.f32.gmra.mrb[0].mxu0 %v2737
    %v3302 = vpop.f32.mrb[0].mxu0
    %v3303 = vadd.f32 0.0, %v3302
    %v3304 = vpop.f32.mrb[0].mxu0
    %v3305 = vadd.f32 0.0, %v3304
    %3306 = vdwg.mxu0
    %v3323 = vcombine.low %v2806, %v2808
    %v3324 = vcombine.low %v2877, %v2879
    %v3325 = vcombine.low %v2948, %v2950
    %v3326 = vcombine.low %v3019, %v3021
    %v3328 = vunpack.c.l.s4 1966171168
    %v3329 = vunpack.c.0.s8 %v3328
    %v3330 = vlaneseq
    %v3331 = vshrl.u32 %v3330, 7
    %v3332 = vsub.s32 %v3329, %v3331
    %v3333 = vrot.slane %v3323, %v3332
    %v3335 = vunpack.c.l.s4 1966171168
    %v3336 = vunpack.c.0.s8 %v3335
    %v3337 = vlaneseq
    %v3338 = vshrl.u32 %v3337, 7
    %v3339 = vsub.s32 %v3336, %v3338
    %v3340 = vrot.slane %v3324, %v3339
    %v3342 = vunpack.c.l.s4 1966171168
    %v3343 = vunpack.c.0.s8 %v3342
    %v3344 = vlaneseq
    %v3345 = vshrl.u32 %v3344, 7
    %v3346 = vsub.s32 %v3343, %v3345
    %v3347 = vrot.slane %v3325, %v3346
    %v3349 = vunpack.c.l.s4 1966171168
    %v3350 = vunpack.c.0.s8 %v3349
    %v3351 = vlaneseq
    %v3352 = vshrl.u32 %v3351, 7
    %v3353 = vsub.s32 %v3350, %v3352
    %v3354 = vrot.slane %v3326, %v3353
    %v3355 = vcombine.low %v3333, %v3340
    %v3356 = vcombine.low %v3347, %v3354
    %v3358 = vunpack.c.l.s4 1966171168
    %v3359 = vunpack.c.0.s8 %v3358
    %v3360 = vlaneseq
    %v3361 = vshrl.u32 %v3360, 7
    %v3362 = vsub.s32 %v3359, %v3361
    %v3363 = vrot.slane %v3355, %v3362
    %v3365 = vunpack.c.l.s4 1966171168
    %v3366 = vunpack.c.0.s8 %v3365
    %v3367 = vlaneseq
    %v3368 = vshrl.u32 %v3367, 7
    %v3369 = vsub.s32 %v3366, %v3368
    %v3370 = vrot.slane %v3356, %v3369
    %v3371 = vcombine.low %v3363, %v3370
    %v3372 = vcombine.low %v3090, %v3092
    %v3373 = vcombine.low %v3161, %v3163
    %v3374 = vcombine.low %v3232, %v3234
    %v3375 = vcombine.low %v3303, %v3305
    %v3377 = vunpack.c.l.s4 1966171168
    %v3378 = vunpack.c.0.s8 %v3377
    %v3379 = vlaneseq
    %v3380 = vshrl.u32 %v3379, 7
    %v3381 = vsub.s32 %v3378, %v3380
    %v3382 = vrot.slane %v3372, %v3381
    %v3384 = vunpack.c.l.s4 1966171168
    %v3385 = vunpack.c.0.s8 %v3384
    %v3386 = vlaneseq
    %v3387 = vshrl.u32 %v3386, 7
    %v3388 = vsub.s32 %v3385, %v3387
    %v3389 = vrot.slane %v3373, %v3388
    %v3391 = vunpack.c.l.s4 1966171168
    %v3392 = vunpack.c.0.s8 %v3391
    %v3393 = vlaneseq
    %v3394 = vshrl.u32 %v3393, 7
    %v3395 = vsub.s32 %v3392, %v3394
    %v3396 = vrot.slane %v3374, %v3395
    %v3398 = vunpack.c.l.s4 1966171168
    %v3399 = vunpack.c.0.s8 %v3398
    %v3400 = vlaneseq
    %v3401 = vshrl.u32 %v3400, 7
    %v3402 = vsub.s32 %v3399, %v3401
    %v3403 = vrot.slane %v3375, %v3402
    %v3404 = vcombine.low %v3382, %v3389
    %v3405 = vcombine.low %v3396, %v3403
    %v3407 = vunpack.c.l.s4 1966171168
    %v3408 = vunpack.c.0.s8 %v3407
    %v3409 = vlaneseq
    %v3410 = vshrl.u32 %v3409, 7
    %v3411 = vsub.s32 %v3408, %v3410
    %v3412 = vrot.slane %v3404, %v3411
    %v3414 = vunpack.c.l.s4 1966171168
    %v3415 = vunpack.c.0.s8 %v3414
    %v3416 = vlaneseq
    %v3417 = vshrl.u32 %v3416, 7
    %v3418 = vsub.s32 %v3415, %v3417
    %v3419 = vrot.slane %v3405, %v3418
    %v3420 = vcombine.low %v3412, %v3419
    %v3423 = vsub.f32 0.0, %v3371
    %v3424 = vsub.f32 0.0, %v3420
    %v3425 = vmul.f32 %v3423, 1.442695
    %v3426 = vpow.pop %v3425
    %v3427 = vmul.f32 %v3424, 1.442695
    %v3428 = vpow.pop %v3427
    %v3429 = vadd.f32 %v3426, 1.0
    %v3430 = vadd.f32 %v3428, 1.0
    %v3431 = vrcp.pop %v3429
    %v3432 = vmul.f32 1.0, %v3431
    %v3433 = vrcp.pop %v3430
    %v3434 = vmul.f32 1.0, %v3433
    %v3435 = vld [vmem:[#allocation8] sm:$0xff]
    %v3436 = vld [vmem:[#allocation8 + $0x8] sm:$0xff]
    %v3437 = vld [vmem:[#allocation8 + $0x10] sm:$0xff]
    %v3438 = vld [vmem:[#allocation8 + $0x18] sm:$0xff]
    %v3439 = vld [vmem:[#allocation8 + $0x20] sm:$0xff]
    %v3440 = vld [vmem:[#allocation8 + $0x28] sm:$0xff]
    %v3441 = vld [vmem:[#allocation8 + $0x30] sm:$0xff]
    %v3442 = vld [vmem:[#allocation8 + $0x38] sm:$0xff]
    %v3443 = vld [vmem:[#allocation8 + $0x40] sm:$0xff]
    %v3444 = vld [vmem:[#allocation8 + $0x48] sm:$0xff]
    %v3445 = vld [vmem:[#allocation8 + $0x50] sm:$0xff]
    %v3446 = vld [vmem:[#allocation8 + $0x58] sm:$0xff]
    %v3447 = vld [vmem:[#allocation8 + $0x60] sm:$0xff]
    %v3448 = vld [vmem:[#allocation8 + $0x68] sm:$0xff]
    %v3449 = vld [vmem:[#allocation8 + $0x70] sm:$0xff]
    %v3450 = vld [vmem:[#allocation8 + $0x78] sm:$0xff]
    %v3451 = vld [vmem:[#allocation8 + $0x80] sm:$0xff]
    %v3452 = vld [vmem:[#allocation8 + $0x88] sm:$0xff]
    %v3453 = vld [vmem:[#allocation8 + $0x90] sm:$0xff]
    %v3454 = vld [vmem:[#allocation8 + $0x98] sm:$0xff]
    %v3455 = vld [vmem:[#allocation8 + $0xa0] sm:$0xff]
    %v3456 = vld [vmem:[#allocation8 + $0xa8] sm:$0xff]
    %v3457 = vld [vmem:[#allocation8 + $0xb0] sm:$0xff]
    %v3458 = vld [vmem:[#allocation8 + $0xb8] sm:$0xff]
    %v3459 = vld [vmem:[#allocation8 + $0xc0] sm:$0xff]
    %v3460 = vld [vmem:[#allocation8 + $0xc8] sm:$0xff]
    %v3461 = vld [vmem:[#allocation8 + $0xd0] sm:$0xff]
    %v3462 = vld [vmem:[#allocation8 + $0xd8] sm:$0xff]
    %v3463 = vld [vmem:[#allocation8 + $0xe0] sm:$0xff]
    %v3464 = vld [vmem:[#allocation8 + $0xe8] sm:$0xff]
    %v3465 = vld [vmem:[#allocation8 + $0xf0] sm:$0xff]
    %v3466 = vld [vmem:[#allocation8 + $0xf8] sm:$0xff]
    %3467 = vmatprep.subr.mxu0 %v3436
    %3468 = vmatpush1.msra.mxu0 %v3435
    %3469 = vmatprep.subr.mxu0 %v3438
    %3470 = vmatpush1.msra.mxu0 %v3437
    %3471 = vmatprep.subr.mxu0 %v3440
    %3472 = vmatpush1.msra.mxu0 %v3439
    %3473 = vmatprep.subr.mxu0 %v3442
    %3474 = vmatpush1.msra.mxu0 %v3441
    %3475 = vmatprep.subr.mxu0 %v3444
    %3476 = vmatpush1.msra.mxu0 %v3443
    %3477 = vmatprep.subr.mxu0 %v3446
    %3478 = vmatpush1.msra.mxu0 %v3445
    %3479 = vmatprep.subr.mxu0 %v3448
    %3480 = vmatpush1.msra.mxu0 %v3447
    %3481 = vmatprep.subr.mxu0 %v3450
    %3482 = vmatpush1.msra.mxu0 %v3449
    %3483 = vmatprep.subr.mxu0 %v3452
    %3484 = vmatpush1.msra.mxu0 %v3451
    %3485 = vmatprep.subr.mxu0 %v3454
    %3486 = vmatpush1.msra.mxu0 %v3453
    %3487 = vmatprep.subr.mxu0 %v3456
    %3488 = vmatpush1.msra.mxu0 %v3455
    %3489 = vmatprep.subr.mxu0 %v3458
    %3490 = vmatpush1.msra.mxu0 %v3457
    %3491 = vmatprep.subr.mxu0 %v3460
    %3492 = vmatpush1.msra.mxu0 %v3459
    %3493 = vmatprep.subr.mxu0 %v3462
    %3494 = vmatpush1.msra.mxu0 %v3461
    %3495 = vmatprep.subr.mxu0 %v3464
    %3496 = vmatpush1.msra.mxu0 %v3463
    %3497 = vmatprep.subr.mxu0 %v3466
    %3498 = vmatpush1.msra.mxu0 %v3465
    %3499 = vmatprep.subr.mxu0 0.0
    %3500 = vmatpush1.msra.mxu0 0.0
    %3501 = vmatprep.subr.mxu0 0.0
    %3502 = vmatpush1.msra.mxu0 0.0
    %3503 = vmatprep.subr.mxu0 0.0
    %3504 = vmatpush1.msra.mxu0 0.0
    %3505 = vmatprep.subr.mxu0 0.0
    %3506 = vmatpush1.msra.mxu0 0.0
    %3507 = vmatprep.subr.mxu0 0.0
    %3508 = vmatpush1.msra.mxu0 0.0
    %3509 = vmatprep.subr.mxu0 0.0
    %3510 = vmatpush1.msra.mxu0 0.0
    %3511 = vmatprep.subr.mxu0 0.0
    %3512 = vmatpush1.msra.mxu0 0.0
    %3513 = vmatprep.subr.mxu0 0.0
    %3514 = vmatpush1.msra.mxu0 0.0
    %3515 = vmatprep.subr.mxu0 0.0
    %3516 = vmatpush1.msra.mxu0 0.0
    %3517 = vmatprep.subr.mxu0 0.0
    %3518 = vmatpush1.msra.mxu0 0.0
    %3519 = vmatprep.subr.mxu0 0.0
    %3520 = vmatpush1.msra.mxu0 0.0
    %3521 = vmatprep.subr.mxu0 0.0
    %3522 = vmatpush1.msra.mxu0 0.0
    %3523 = vmatprep.subr.mxu0 0.0
    %3524 = vmatpush1.msra.mxu0 0.0
    %3525 = vmatprep.subr.mxu0 0.0
    %3526 = vmatpush1.msra.mxu0 0.0
    %3527 = vmatprep.subr.mxu0 0.0
    %3528 = vmatpush1.msra.mxu0 0.0
    %3529 = vmatprep.subr.mxu0 0.0
    %3530 = vmatpush1.msra.mxu0 0.0
    %3531 = vmatprep.mubr.f32.mxu0 0.0
    %3532 = vmatmul.mubr.f32.gmra.mrb[0].mxu0 %v2700
    %v3533 = vpop.f32.mrb[0].mxu0
    %v3534 = vadd.f32 0.0, %v3533
    %v3535 = vpop.f32.mrb[0].mxu0
    %v3536 = vadd.f32 0.0, %v3535
    %3537 = vmatprep.mubr.f32.mxu0 0.0
    %3538 = vmatmul.mubr.f32.gmra.mrb[0].mxu0 %v2702
    %v3539 = vpop.f32.mrb[0].mxu0
    %v3540 = vadd.f32 0.0, %v3539
    %v3541 = vpop.f32.mrb[0].mxu0
    %v3542 = vadd.f32 0.0, %v3541
    %3543 = vdwg.mxu0
    %v3544 = vld [vmem:[#allocation9] sm:$0xff]
    %v3545 = vld [vmem:[#allocation9 + $0x8] sm:$0xff]
    %v3546 = vld [vmem:[#allocation9 + $0x10] sm:$0xff]
    %v3547 = vld [vmem:[#allocation9 + $0x18] sm:$0xff]
    %v3548 = vld [vmem:[#allocation9 + $0x20] sm:$0xff]
    %v3549 = vld [vmem:[#allocation9 + $0x28] sm:$0xff]
    %v3550 = vld [vmem:[#allocation9 + $0x30] sm:$0xff]
    %v3551 = vld [vmem:[#allocation9 + $0x38] sm:$0xff]
    %v3552 = vld [vmem:[#allocation9 + $0x40] sm:$0xff]
    %v3553 = vld [vmem:[#allocation9 + $0x48] sm:$0xff]
    %v3554 = vld [vmem:[#allocation9 + $0x50] sm:$0xff]
    %v3555 = vld [vmem:[#allocation9 + $0x58] sm:$0xff]
    %v3556 = vld [vmem:[#allocation9 + $0x60] sm:$0xff]
    %v3557 = vld [vmem:[#allocation9 + $0x68] sm:$0xff]
    %v3558 = vld [vmem:[#allocation9 + $0x70] sm:$0xff]
    %v3559 = vld [vmem:[#allocation9 + $0x78] sm:$0xff]
    %v3560 = vld [vmem:[#allocation9 + $0x80] sm:$0xff]
    %v3561 = vld [vmem:[#allocation9 + $0x88] sm:$0xff]
    %v3562 = vld [vmem:[#allocation9 + $0x90] sm:$0xff]
    %v3563 = vld [vmem:[#allocation9 + $0x98] sm:$0xff]
    %v3564 = vld [vmem:[#allocation9 + $0xa0] sm:$0xff]
    %v3565 = vld [vmem:[#allocation9 + $0xa8] sm:$0xff]
    %v3566 = vld [vmem:[#allocation9 + $0xb0] sm:$0xff]
    %v3567 = vld [vmem:[#allocation9 + $0xb8] sm:$0xff]
    %v3568 = vld [vmem:[#allocation9 + $0xc0] sm:$0xff]
    %v3569 = vld [vmem:[#allocation9 + $0xc8] sm:$0xff]
    %v3570 = vld [vmem:[#allocation9 + $0xd0] sm:$0xff]
    %v3571 = vld [vmem:[#allocation9 + $0xd8] sm:$0xff]
    %v3572 = vld [vmem:[#allocation9 + $0xe0] sm:$0xff]
    %v3573 = vld [vmem:[#allocation9 + $0xe8] sm:$0xff]
    %v3574 = vld [vmem:[#allocation9 + $0xf0] sm:$0xff]
    %v3575 = vld [vmem:[#allocation9 + $0xf8] sm:$0xff]
    %3576 = vmatprep.subr.mxu0 %v3545
    %3577 = vmatpush1.msra.mxu0 %v3544
    %3578 = vmatprep.subr.mxu0 %v3547
    %3579 = vmatpush1.msra.mxu0 %v3546
    %3580 = vmatprep.subr.mxu0 %v3549
    %3581 = vmatpush1.msra.mxu0 %v3548
    %3582 = vmatprep.subr.mxu0 %v3551
    %3583 = vmatpush1.msra.mxu0 %v3550
    %3584 = vmatprep.subr.mxu0 %v3553
    %3585 = vmatpush1.msra.mxu0 %v3552
    %3586 = vmatprep.subr.mxu0 %v3555
    %3587 = vmatpush1.msra.mxu0 %v3554
    %3588 = vmatprep.subr.mxu0 %v3557
    %3589 = vmatpush1.msra.mxu0 %v3556
    %3590 = vmatprep.subr.mxu0 %v3559
    %3591 = vmatpush1.msra.mxu0 %v3558
    %3592 = vmatprep.subr.mxu0 %v3561
    %3593 = vmatpush1.msra.mxu0 %v3560
    %3594 = vmatprep.subr.mxu0 %v3563
    %3595 = vmatpush1.msra.mxu0 %v3562
    %3596 = vmatprep.subr.mxu0 %v3565
    %3597 = vmatpush1.msra.mxu0 %v3564
    %3598 = vmatprep.subr.mxu0 %v3567
    %3599 = vmatpush1.msra.mxu0 %v3566
    %3600 = vmatprep.subr.mxu0 %v3569
    %3601 = vmatpush1.msra.mxu0 %v3568
    %3602 = vmatprep.subr.mxu0 %v3571
    %3603 = vmatpush1.msra.mxu0 %v3570
    %3604 = vmatprep.subr.mxu0 %v3573
    %3605 = vmatpush1.msra.mxu0 %v3572
    %3606 = vmatprep.subr.mxu0 %v3575
    %3607 = vmatpush1.msra.mxu0 %v3574
    %3608 = vmatprep.subr.mxu0 0.0
    %3609 = vmatpush1.msra.mxu0 0.0
    %3610 = vmatprep.subr.mxu0 0.0
    %3611 = vmatpush1.msra.mxu0 0.0
    %3612 = vmatprep.subr.mxu0 0.0
    %3613 = vmatpush1.msra.mxu0 0.0
    %3614 = vmatprep.subr.mxu0 0.0
    %3615 = vmatpush1.msra.mxu0 0.0
    %3616 = vmatprep.subr.mxu0 0.0
    %3617 = vmatpush1.msra.mxu0 0.0
    %3618 = vmatprep.subr.mxu0 0.0
    %3619 = vmatpush1.msra.mxu0 0.0
    %3620 = vmatprep.subr.mxu0 0.0
    %3621 = vmatpush1.msra.mxu0 0.0
    %3622 = vmatprep.subr.mxu0 0.0
    %3623 = vmatpush1.msra.mxu0 0.0
    %3624 = vmatprep.subr.mxu0 0.0
    %3625 = vmatpush1.msra.mxu0 0.0
    %3626 = vmatprep.subr.mxu0 0.0
    %3627 = vmatpush1.msra.mxu0 0.0
    %3628 = vmatprep.subr.mxu0 0.0
    %3629 = vmatpush1.msra.mxu0 0.0
    %3630 = vmatprep.subr.mxu0 0.0
    %3631 = vmatpush1.msra.mxu0 0.0
    %3632 = vmatprep.subr.mxu0 0.0
    %3633 = vmatpush1.msra.mxu0 0.0
    %3634 = vmatprep.subr.mxu0 0.0
    %3635 = vmatpush1.msra.mxu0 0.0
    %3636 = vmatprep.subr.mxu0 0.0
    %3637 = vmatpush1.msra.mxu0 0.0
    %3638 = vmatprep.subr.mxu0 0.0
    %3639 = vmatpush1.msra.mxu0 0.0
    %3640 = vmatprep.mubr.f32.mxu0 0.0
    %3641 = vmatmul.mubr.f32.gmra.mrb[0].mxu0 %v3432
    %v3642 = vpop.f32.mrb[0].mxu0
    %v3643 = vadd.f32 0.0, %v3642
    %v3644 = vpop.f32.mrb[0].mxu0
    %v3645 = vadd.f32 0.0, %v3644
    %3646 = vmatprep.mubr.f32.mxu0 0.0
    %3647 = vmatmul.mubr.f32.gmra.mrb[0].mxu0 %v3434
    %v3648 = vpop.f32.mrb[0].mxu0
    %v3649 = vadd.f32 0.0, %v3648
    %v3650 = vpop.f32.mrb[0].mxu0
    %v3651 = vadd.f32 0.0, %v3650
    %3652 = vdwg.mxu0
    %v3653 = vmul.f32 %v3534, %v3643
    %v3654 = vmul.f32 %v3536, %v3645
    %v3655 = vmul.f32 %v3540, %v3649
    %v3656 = vmul.f32 %v3542, %v3651
    %3657 = vxpose.xlu0.b32.start [1/16] %v1969, 128
    %3658 = vxpose.xlu0.b32.cont [2/16] %v1970, 128
    %3659 = vxpose.xlu0.b32.cont [3/16] 0.0, 128
    %3660 = vxpose.xlu0.b32.cont [4/16] 0.0, 128
    %3661 = vxpose.xlu0.b32.cont [5/16] 0.0, 128
    %3662 = vxpose.xlu0.b32.cont [6/16] 0.0, 128
    %3663 = vxpose.xlu0.b32.cont [7/16] 0.0, 128
    %3664 = vxpose.xlu0.b32.cont [8/16] 0.0, 128
    %3665 = vxpose.xlu0.b32.cont [9/16] 0.0, 128
    %3666 = vxpose.xlu0.b32.cont [10/16] 0.0, 128
    %3667 = vxpose.xlu0.b32.cont [11/16] 0.0, 128
    %3668 = vxpose.xlu0.b32.cont [12/16] 0.0, 128
    %3669 = vxpose.xlu0.b32.cont [13/16] 0.0, 128
    %3670 = vxpose.xlu0.b32.cont [14/16] 0.0, 128
    %3671 = vxpose.xlu0.b32.cont [15/16] 0.0, 128
    %3672 = vxpose.xlu0.b32.end [16/16] 0.0, 128
    %v3673 = vpop.trf.xlu0
    %v3674 = vpop.trf.xlu0
    %v3675 = vpop.trf.xlu0
    %v3676 = vpop.trf.xlu0
    %v3677 = vpop.trf.xlu0
    %v3678 = vpop.trf.xlu0
    %v3679 = vpop.trf.xlu0
    %v3680 = vpop.trf.xlu0
    %v3681 = vpop.trf.xlu0
    %v3682 = vpop.trf.xlu0
    %v3683 = vpop.trf.xlu0
    %v3684 = vpop.trf.xlu0
    %v3685 = vpop.trf.xlu0
    %v3686 = vpop.trf.xlu0
    %v3687 = vpop.trf.xlu0
    %v3688 = vpop.trf.xlu0
    %v3690 = vsel %vm2003, %v3673, 0
    %v3693 = vsel %vm2003, %v3674, 0
    %v3696 = vsel %vm2003, %v3675, 0
    %v3699 = vsel %vm2003, %v3676, 0
    %v3702 = vsel %vm2003, %v3677, 0
    %v3705 = vsel %vm2003, %v3678, 0
    %v3708 = vsel %vm2003, %v3679, 0
    %v3711 = vsel %vm2003, %v3680, 0
    %v3714 = vsel %vm2003, %v3681, 0
    %v3717 = vsel %vm2003, %v3682, 0
    %v3720 = vsel %vm2003, %v3683, 0
    %v3723 = vsel %vm2003, %v3684, 0
    %v3726 = vsel %vm2003, %v3685, 0
    %v3729 = vsel %vm2003, %v3686, 0
    %v3732 = vsel %vm2003, %v3687, 0
    %v3735 = vsel %vm2003, %v3688, 0
    %3737 = vmatprep.subr.mxu0 %v3654
    %3738 = vmatpush1.msra.mxu0 %v3653
    %3739 = vmatprep.subr.mxu0 %v3656
    %3740 = vmatpush1.msra.mxu0 %v3655
    %3741 = vmatprep.subr.mxu0 0.0
    %3742 = vmatpush1.msra.mxu0 0.0
    %3743 = vmatprep.subr.mxu0 0.0
    %3744 = vmatpush1.msra.mxu0 0.0
    %3745 = vmatprep.subr.mxu0 0.0
    %3746 = vmatpush1.msra.mxu0 0.0
    %3747 = vmatprep.subr.mxu0 0.0
    %3748 = vmatpush1.msra.mxu0 0.0
    %3749 = vmatprep.subr.mxu0 0.0
    %3750 = vmatpush1.msra.mxu0 0.0
    %3751 = vmatprep.subr.mxu0 0.0
    %3752 = vmatpush1.msra.mxu0 0.0
    %3753 = vmatprep.subr.mxu0 0.0
    %3754 = vmatpush1.msra.mxu0 0.0
    %3755 = vmatprep.subr.mxu0 0.0
    %3756 = vmatpush1.msra.mxu0 0.0
    %3757 = vmatprep.subr.mxu0 0.0
    %3758 = vmatpush1.msra.mxu0 0.0
    %3759 = vmatprep.subr.mxu0 0.0
    %3760 = vmatpush1.msra.mxu0 0.0
    %3761 = vmatprep.subr.mxu0 0.0
    %3762 = vmatpush1.msra.mxu0 0.0
    %3763 = vmatprep.subr.mxu0 0.0
    %3764 = vmatpush1.msra.mxu0 0.0
    %3765 = vmatprep.subr.mxu0 0.0
    %3766 = vmatpush1.msra.mxu0 0.0
    %3767 = vmatprep.subr.mxu0 0.0
    %3768 = vmatpush1.msra.mxu0 0.0
    %3769 = vmatprep.subr.mxu0 0.0
    %3770 = vmatpush1.msra.mxu0 0.0
    %3771 = vmatprep.subr.mxu0 0.0
    %3772 = vmatpush1.msra.mxu0 0.0
    %3773 = vmatprep.subr.mxu0 0.0
    %3774 = vmatpush1.msra.mxu0 0.0
    %3775 = vmatprep.subr.mxu0 0.0
    %3776 = vmatpush1.msra.mxu0 0.0
    %3777 = vmatprep.subr.mxu0 0.0
    %3778 = vmatpush1.msra.mxu0 0.0
    %3779 = vmatprep.subr.mxu0 0.0
    %3780 = vmatpush1.msra.mxu0 0.0
    %3781 = vmatprep.subr.mxu0 0.0
    %3782 = vmatpush1.msra.mxu0 0.0
    %3783 = vmatprep.subr.mxu0 0.0
    %3784 = vmatpush1.msra.mxu0 0.0
    %3785 = vmatprep.subr.mxu0 0.0
    %3786 = vmatpush1.msra.mxu0 0.0
    %3787 = vmatprep.subr.mxu0 0.0
    %3788 = vmatpush1.msra.mxu0 0.0
    %3789 = vmatprep.subr.mxu0 0.0
    %3790 = vmatpush1.msra.mxu0 0.0
    %3791 = vmatprep.subr.mxu0 0.0
    %3792 = vmatpush1.msra.mxu0 0.0
    %3793 = vmatprep.subr.mxu0 0.0
    %3794 = vmatpush1.msra.mxu0 0.0
    %3795 = vmatprep.subr.mxu0 0.0
    %3796 = vmatpush1.msra.mxu0 0.0
    %3797 = vmatprep.subr.mxu0 0.0
    %3798 = vmatpush1.msra.mxu0 0.0
    %3799 = vmatprep.subr.mxu0 0.0
    %3800 = vmatpush1.msra.mxu0 0.0
    %3801 = vmatprep.mubr.f32.mxu0 0.0
    %3802 = vmatmul.mubr.f32.gmra.mrb[0].mxu0 %v3690
    %v3803 = vpop.f32.mrb[0].mxu0
    %v3804 = vadd.f32 0.0, %v3803
    %v3805 = vpop.f32.mrb[0].mxu0
    %v3806 = vadd.f32 0.0, %v3805
    %3807 = vmatprep.mubr.f32.mxu0 0.0
    %3808 = vmatmul.mubr.f32.gmra.mrb[0].mxu0 %v3693
    %v3809 = vpop.f32.mrb[0].mxu0
    %v3810 = vadd.f32 0.0, %v3809
    %v3811 = vpop.f32.mrb[0].mxu0
    %v3812 = vadd.f32 0.0, %v3811
    %3813 = vmatprep.mubr.f32.mxu0 0.0
    %3814 = vmatmul.mubr.f32.gmra.mrb[0].mxu0 %v3696
    %v3815 = vpop.f32.mrb[0].mxu0
    %v3816 = vadd.f32 0.0, %v3815
    %v3817 = vpop.f32.mrb[0].mxu0
    %v3818 = vadd.f32 0.0, %v3817
    %3819 = vmatprep.mubr.f32.mxu0 0.0
    %3820 = vmatmul.mubr.f32.gmra.mrb[0].mxu0 %v3699
    %v3821 = vpop.f32.mrb[0].mxu0
    %v3822 = vadd.f32 0.0, %v3821
    %v3823 = vpop.f32.mrb[0].mxu0
    %v3824 = vadd.f32 0.0, %v3823
    %3825 = vmatprep.mubr.f32.mxu0 0.0
    %3826 = vmatmul.mubr.f32.gmra.mrb[0].mxu0 %v3702
    %v3827 = vpop.f32.mrb[0].mxu0
    %v3828 = vadd.f32 0.0, %v3827
    %v3829 = vpop.f32.mrb[0].mxu0
    %v3830 = vadd.f32 0.0, %v3829
    %3831 = vmatprep.mubr.f32.mxu0 0.0
    %3832 = vmatmul.mubr.f32.gmra.mrb[0].mxu0 %v3705
    %v3833 = vpop.f32.mrb[0].mxu0
    %v3834 = vadd.f32 0.0, %v3833
    %v3835 = vpop.f32.mrb[0].mxu0
    %v3836 = vadd.f32 0.0, %v3835
    %3837 = vmatprep.mubr.f32.mxu0 0.0
    %3838 = vmatmul.mubr.f32.gmra.mrb[0].mxu0 %v3708
    %v3839 = vpop.f32.mrb[0].mxu0
    %v3840 = vadd.f32 0.0, %v3839
    %v3841 = vpop.f32.mrb[0].mxu0
    %v3842 = vadd.f32 0.0, %v3841
    %3843 = vmatprep.mubr.f32.mxu0 0.0
    %3844 = vmatmul.mubr.f32.gmra.mrb[0].mxu0 %v3711
    %v3845 = vpop.f32.mrb[0].mxu0
    %v3846 = vadd.f32 0.0, %v3845
    %v3847 = vpop.f32.mrb[0].mxu0
    %v3848 = vadd.f32 0.0, %v3847
    %3849 = vmatprep.mubr.f32.mxu0 0.0
    %3850 = vmatmul.mubr.f32.gmra.mrb[0].mxu0 %v3714
    %v3851 = vpop.f32.mrb[0].mxu0
    %v3852 = vadd.f32 0.0, %v3851
    %v3853 = vpop.f32.mrb[0].mxu0
    %v3854 = vadd.f32 0.0, %v3853
    %3855 = vmatprep.mubr.f32.mxu0 0.0
    %3856 = vmatmul.mubr.f32.gmra.mrb[0].mxu0 %v3717
    %v3857 = vpop.f32.mrb[0].mxu0
    %v3858 = vadd.f32 0.0, %v3857
    %v3859 = vpop.f32.mrb[0].mxu0
    %v3860 = vadd.f32 0.0, %v3859
    %3861 = vmatprep.mubr.f32.mxu0 0.0
    %3862 = vmatmul.mubr.f32.gmra.mrb[0].mxu0 %v3720
    %v3863 = vpop.f32.mrb[0].mxu0
    %v3864 = vadd.f32 0.0, %v3863
    %v3865 = vpop.f32.mrb[0].mxu0
    %v3866 = vadd.f32 0.0, %v3865
    %3867 = vmatprep.mubr.f32.mxu0 0.0
    %3868 = vmatmul.mubr.f32.gmra.mrb[0].mxu0 %v3723
    %v3869 = vpop.f32.mrb[0].mxu0
    %v3870 = vadd.f32 0.0, %v3869
    %v3871 = vpop.f32.mrb[0].mxu0
    %v3872 = vadd.f32 0.0, %v3871
    %3873 = vmatprep.mubr.f32.mxu0 0.0
    %3874 = vmatmul.mubr.f32.gmra.mrb[0].mxu0 %v3726
    %v3875 = vpop.f32.mrb[0].mxu0
    %v3876 = vadd.f32 0.0, %v3875
    %v3877 = vpop.f32.mrb[0].mxu0
    %v3878 = vadd.f32 0.0, %v3877
    %3879 = vmatprep.mubr.f32.mxu0 0.0
    %3880 = vmatmul.mubr.f32.gmra.mrb[0].mxu0 %v3729
    %v3881 = vpop.f32.mrb[0].mxu0
    %v3882 = vadd.f32 0.0, %v3881
    %v3883 = vpop.f32.mrb[0].mxu0
    %v3884 = vadd.f32 0.0, %v3883
    %3885 = vmatprep.mubr.f32.mxu0 0.0
    %3886 = vmatmul.mubr.f32.gmra.mrb[0].mxu0 %v3732
    %v3887 = vpop.f32.mrb[0].mxu0
    %v3888 = vadd.f32 0.0, %v3887
    %v3889 = vpop.f32.mrb[0].mxu0
    %v3890 = vadd.f32 0.0, %v3889
    %3891 = vmatprep.mubr.f32.mxu0 0.0
    %3892 = vmatmul.mubr.f32.gmra.mrb[0].mxu0 %v3735
    %v3893 = vpop.f32.mrb[0].mxu0
    %v3894 = vadd.f32 0.0, %v3893
    %v3895 = vpop.f32.mrb[0].mxu0
    %v3896 = vadd.f32 0.0, %v3895
    %3897 = vdwg.mxu0
    %v3898 = vmul.f32 %v621, %v3804
    %v3899 = vmul.f32 %v622, %v3806
    %v3900 = vmul.f32 %v625, %v3810
    %v3901 = vmul.f32 %v626, %v3812
    %v3902 = vmul.f32 %v629, %v3816
    %v3903 = vmul.f32 %v630, %v3818
    %v3904 = vmul.f32 %v633, %v3822
    %v3905 = vmul.f32 %v634, %v3824
    %v3906 = vmul.f32 %v637, %v3828
    %v3907 = vmul.f32 %v638, %v3830
    %v3908 = vmul.f32 %v641, %v3834
    %v3909 = vmul.f32 %v642, %v3836
    %v3910 = vmul.f32 %v645, %v3840
    %v3911 = vmul.f32 %v646, %v3842
    %v3912 = vmul.f32 %v649, %v3846
    %v3913 = vmul.f32 %v650, %v3848
    %v3914 = vmul.f32 %v653, %v3852
    %v3915 = vmul.f32 %v654, %v3854
    %v3916 = vmul.f32 %v657, %v3858
    %v3917 = vmul.f32 %v658, %v3860
    %v3918 = vmul.f32 %v661, %v3864
    %v3919 = vmul.f32 %v662, %v3866
    %v3920 = vmul.f32 %v665, %v3870
    %v3921 = vmul.f32 %v666, %v3872
    %v3922 = vmul.f32 %v669, %v3876
    %v3923 = vmul.f32 %v670, %v3878
    %v3924 = vmul.f32 %v673, %v3882
    %v3925 = vmul.f32 %v674, %v3884
    %v3926 = vmul.f32 %v677, %v3888
    %v3927 = vmul.f32 %v678, %v3890
    %v3928 = vmul.f32 %v681, %v3894
    %v3929 = vmul.f32 %v682, %v3896
    %v3930 = vmax.f32 %v3898, 0.0
    %v3931 = vmax.f32 %v3899, 0.0
    %v3932 = vmax.f32 %v3900, 0.0
    %v3933 = vmax.f32 %v3901, 0.0
    %v3934 = vmax.f32 %v3902, 0.0
    %v3935 = vmax.f32 %v3903, 0.0
    %v3936 = vmax.f32 %v3904, 0.0
    %v3937 = vmax.f32 %v3905, 0.0
    %v3938 = vmax.f32 %v3906, 0.0
    %v3939 = vmax.f32 %v3907, 0.0
    %v3940 = vmax.f32 %v3908, 0.0
    %v3941 = vmax.f32 %v3909, 0.0
    %v3942 = vmax.f32 %v3910, 0.0
    %v3943 = vmax.f32 %v3911, 0.0
    %v3944 = vmax.f32 %v3912, 0.0
    %v3945 = vmax.f32 %v3913, 0.0
    %v3946 = vmax.f32 %v3914, 0.0
    %v3947 = vmax.f32 %v3915, 0.0
    %v3948 = vmax.f32 %v3916, 0.0
    %v3949 = vmax.f32 %v3917, 0.0
    %v3950 = vmax.f32 %v3918, 0.0
    %v3951 = vmax.f32 %v3919, 0.0
    %v3952 = vmax.f32 %v3920, 0.0
    %v3953 = vmax.f32 %v3921, 0.0
    %v3954 = vmax.f32 %v3922, 0.0
    %v3955 = vmax.f32 %v3923, 0.0
    %v3956 = vmax.f32 %v3924, 0.0
    %v3957 = vmax.f32 %v3925, 0.0
    %v3958 = vmax.f32 %v3926, 0.0
    %v3959 = vmax.f32 %v3927, 0.0
    %v3960 = vmax.f32 %v3928, 0.0
    %v3961 = vmax.f32 %v3929, 0.0
    %3962 = vst [vmem:[#allocation2] sm:$0xff] %v3930
    %3963 = vst [vmem:[#allocation2 + $0x8] sm:$0xff] %v3931
    %3964 = vst [vmem:[#allocation2 + $0x20] sm:$0xff] %v3932
    %3965 = vst [vmem:[#allocation2 + $0x28] sm:$0xff] %v3933
    %3966 = vst [vmem:[#allocation2 + $0x40] sm:$0xff] %v3934
    %3967 = vst [vmem:[#allocation2 + $0x48] sm:$0xff] %v3935
    %3968 = vst [vmem:[#allocation2 + $0x60] sm:$0xff] %v3936
    %3969 = vst [vmem:[#allocation2 + $0x68] sm:$0xff] %v3937
    %3970 = vst [vmem:[#allocation2 + $0x80] sm:$0xff] %v3938
    %3971 = vst [vmem:[#allocation2 + $0x88] sm:$0xff] %v3939
    %3972 = vst [vmem:[#allocation2 + $0xa0] sm:$0xff] %v3940
    %3973 = vst [vmem:[#allocation2 + $0xa8] sm:$0xff] %v3941
    %3974 = vst [vmem:[#allocation2 + $0xc0] sm:$0xff] %v3942
    %3975 = vst [vmem:[#allocation2 + $0xc8] sm:$0xff] %v3943
    %3976 = vst [vmem:[#allocation2 + $0xe0] sm:$0xff] %v3944
    %3977 = vst [vmem:[#allocation2 + $0xe8] sm:$0xff] %v3945
    %3978 = vst [vmem:[#allocation2 + $0x100] sm:$0xff] %v3946
    %3979 = vst [vmem:[#allocation2 + $0x108] sm:$0xff] %v3947
    %3980 = vst [vmem:[#allocation2 + $0x120] sm:$0xff] %v3948
    %3981 = vst [vmem:[#allocation2 + $0x128] sm:$0xff] %v3949
    %3982 = vst [vmem:[#allocation2 + $0x140] sm:$0xff] %v3950
    %3983 = vst [vmem:[#allocation2 + $0x148] sm:$0xff] %v3951
    %3984 = vst [vmem:[#allocation2 + $0x160] sm:$0xff] %v3952
    %3985 = vst [vmem:[#allocation2 + $0x168] sm:$0xff] %v3953
    %3986 = vst [vmem:[#allocation2 + $0x180] sm:$0xff] %v3954
    %3987 = vst [vmem:[#allocation2 + $0x188] sm:$0xff] %v3955
    %3988 = vst [vmem:[#allocation2 + $0x1a0] sm:$0xff] %v3956
    %3989 = vst [vmem:[#allocation2 + $0x1a8] sm:$0xff] %v3957
    %3990 = vst [vmem:[#allocation2 + $0x1c0] sm:$0xff] %v3958
    %3991 = vst [vmem:[#allocation2 + $0x1c8] sm:$0xff] %v3959
    %3992 = vst [vmem:[#allocation2 + $0x1e0] sm:$0xff] %v3960
    %3993 = vst [vmem:[#allocation2 + $0x1e8] sm:$0xff] %v3961
    %v3994 = vadd.f32 %v623, %v624
    %3995 = vadd.xlane.f32.xlu0 %v3994
    %v3996 = vpop.xlane.xlu0 %3995
    %v3997 = vadd.f32 %v627, %v628
    %3998 = vadd.xlane.f32.xlu0 %v3997
    %v3999 = vpop.xlane.xlu0 %3998
    %v4000 = vadd.f32 %v631, %v632
    %4001 = vadd.xlane.f32.xlu0 %v4000
    %v4002 = vpop.xlane.xlu0 %4001
    %v4003 = vadd.f32 %v635, %v636
    %4004 = vadd.xlane.f32.xlu0 %v4003
    %v4005 = vpop.xlane.xlu0 %4004
    %v4006 = vadd.f32 %v639, %v640
    %4007 = vadd.xlane.f32.xlu0 %v4006
    %v4008 = vpop.xlane.xlu0 %4007
    %v4009 = vadd.f32 %v643, %v644
    %4010 = vadd.xlane.f32.xlu0 %v4009
    %v4011 = vpop.xlane.xlu0 %4010
    %v4012 = vadd.f32 %v647, %v648
    %4013 = vadd.xlane.f32.xlu0 %v4012
    %v4014 = vpop.xlane.xlu0 %4013
    %v4015 = vadd.f32 %v651, %v652
    %4016 = vadd.xlane.f32.xlu0 %v4015
    %v4017 = vpop.xlane.xlu0 %4016
    %v4018 = vadd.f32 %v655, %v656
    %4019 = vadd.xlane.f32.xlu0 %v4018
    %v4020 = vpop.xlane.xlu0 %4019
    %v4021 = vadd.f32 %v659, %v660
    %4022 = vadd.xlane.f32.xlu0 %v4021
    %v4023 = vpop.xlane.xlu0 %4022
    %v4024 = vadd.f32 %v663, %v664
    %4025 = vadd.xlane.f32.xlu0 %v4024
    %v4026 = vpop.xlane.xlu0 %4025
    %v4027 = vadd.f32 %v667, %v668
    %4028 = vadd.xlane.f32.xlu0 %v4027
    %v4029 = vpop.xlane.xlu0 %4028
    %v4030 = vadd.f32 %v671, %v672
    %4031 = vadd.xlane.f32.xlu0 %v4030
    %v4032 = vpop.xlane.xlu0 %4031
    %v4033 = vadd.f32 %v675, %v676
    %4034 = vadd.xlane.f32.xlu0 %v4033
    %v4035 = vpop.xlane.xlu0 %4034
    %v4036 = vadd.f32 %v679, %v680
    %4037 = vadd.xlane.f32.xlu0 %v4036
    %v4038 = vpop.xlane.xlu0 %4037
    %v4039 = vadd.f32 %v683, %v684
    %4040 = vadd.xlane.f32.xlu0 %v4039
    %v4041 = vpop.xlane.xlu0 %4040
    %v4042 = vadd.f32 %v623, %v627
    %v4043 = vadd.f32 %v4042, %v631
    %v4044 = vadd.f32 %v4043, %v635
    %v4045 = vadd.f32 %v4044, %v639
    %v4046 = vadd.f32 %v4045, %v643
    %v4047 = vadd.f32 %v4046, %v647
    %v4048 = vadd.f32 %v4047, %v651
    %v4049 = vadd.f32 %v4048, %v655
    %v4050 = vadd.f32 %v4049, %v659
    %v4051 = vadd.f32 %v4050, %v663
    %v4052 = vadd.f32 %v4051, %v667
    %v4053 = vadd.f32 %v4052, %v671
    %v4054 = vadd.f32 %v4053, %v675
    %v4055 = vadd.f32 %v4054, %v679
    %v4056 = vadd.f32 %v4055, %v683
    %v4057 = vrot.slane %v4056, 4
    %v4058 = vadd.f32 %v4056, %v4057
    %v4059 = vrot.slane %v4058, 2
    %v4060 = vadd.f32 %v4058, %v4059
    %v4061 = vrot.slane %v4060, 1
    %v4062 = vadd.f32 %v4060, %v4061
    %v4063 = vadd.f32 %v624, %v628
    %v4064 = vadd.f32 %v4063, %v632
    %v4065 = vadd.f32 %v4064, %v636
    %v4066 = vadd.f32 %v4065, %v640
    %v4067 = vadd.f32 %v4066, %v644
    %v4068 = vadd.f32 %v4067, %v648
    %v4069 = vadd.f32 %v4068, %v652
    %v4070 = vadd.f32 %v4069, %v656
    %v4071 = vadd.f32 %v4070, %v660
    %v4072 = vadd.f32 %v4071, %v664
    %v4073 = vadd.f32 %v4072, %v668
    %v4074 = vadd.f32 %v4073, %v672
    %v4075 = vadd.f32 %v4074, %v676
    %v4076 = vadd.f32 %v4075, %v680
    %v4077 = vadd.f32 %v4076, %v684
    %v4078 = vrot.slane %v4077, 4
    %v4079 = vadd.f32 %v4077, %v4078
    %v4080 = vrot.slane %v4079, 2
    %v4081 = vadd.f32 %v4079, %v4080
    %v4082 = vrot.slane %v4081, 1
    %v4083 = vadd.f32 %v4081, %v4082
    %v4084 = vld [vmem:[%s7] sm:$0xff]
    %v4085 = vld [vmem:[%s7 + $0x8] sm:$0xff]
    %v4086 = vld [vmem:[%s7 + $0x10] sm:$0xff]
    %v4087 = vld [vmem:[%s7 + $0x18] sm:$0xff]
    %v4088 = vld [vmem:[%s7 + $0x20] sm:$0xff]
    %v4089 = vld [vmem:[%s7 + $0x28] sm:$0xff]
    %v4090 = vld [vmem:[%s7 + $0x30] sm:$0xff]
    %v4091 = vld [vmem:[%s7 + $0x38] sm:$0xff]
    %v4092 = vld [vmem:[%s7 + $0x40] sm:$0xff]
    %v4093 = vld [vmem:[%s7 + $0x48] sm:$0xff]
    %v4094 = vld [vmem:[%s7 + $0x50] sm:$0xff]
    %v4095 = vld [vmem:[%s7 + $0x58] sm:$0xff]
    %v4096 = vld [vmem:[%s7 + $0x60] sm:$0xff]
    %v4097 = vld [vmem:[%s7 + $0x68] sm:$0xff]
    %v4098 = vld [vmem:[%s7 + $0x70] sm:$0xff]
    %v4099 = vld [vmem:[%s7 + $0x78] sm:$0xff]
    %v4100 = vld [vmem:[%s7 + $0x80] sm:$0xff]
    %v4101 = vld [vmem:[%s7 + $0x88] sm:$0xff]
    %v4102 = vld [vmem:[%s7 + $0x90] sm:$0xff]
    %v4103 = vld [vmem:[%s7 + $0x98] sm:$0xff]
    %v4104 = vld [vmem:[%s7 + $0xa0] sm:$0xff]
    %v4105 = vld [vmem:[%s7 + $0xa8] sm:$0xff]
    %v4106 = vld [vmem:[%s7 + $0xb0] sm:$0xff]
    %v4107 = vld [vmem:[%s7 + $0xb8] sm:$0xff]
    %v4108 = vld [vmem:[%s7 + $0xc0] sm:$0xff]
    %v4109 = vld [vmem:[%s7 + $0xc8] sm:$0xff]
    %v4110 = vld [vmem:[%s7 + $0xd0] sm:$0xff]
    %v4111 = vld [vmem:[%s7 + $0xd8] sm:$0xff]
    %v4112 = vld [vmem:[%s7 + $0xe0] sm:$0xff]
    %v4113 = vld [vmem:[%s7 + $0xe8] sm:$0xff]
    %v4114 = vld [vmem:[%s7 + $0xf0] sm:$0xff]
    %v4115 = vld [vmem:[%s7 + $0xf8] sm:$0xff]
    %4116 = vmatprep.subr.mxu0 0.0
    %4117 = vmatpush1.msra.mxu0 %v4084
    %4118 = vmatprep.subr.mxu0 0.0
    %4119 = vmatpush1.msra.mxu0 %v4085
    %4120 = vmatprep.subr.mxu0 0.0
    %4121 = vmatpush1.msra.mxu0 %v4086
    %4122 = vmatprep.subr.mxu0 0.0
    %4123 = vmatpush1.msra.mxu0 %v4087
    %4124 = vmatprep.subr.mxu0 0.0
    %4125 = vmatpush1.msra.mxu0 %v4088
    %4126 = vmatprep.subr.mxu0 0.0
    %4127 = vmatpush1.msra.mxu0 %v4089
    %4128 = vmatprep.subr.mxu0 0.0
    %4129 = vmatpush1.msra.mxu0 %v4090
    %4130 = vmatprep.subr.mxu0 0.0
    %4131 = vmatpush1.msra.mxu0 %v4091
    %4132 = vmatprep.subr.mxu0 0.0
    %4133 = vmatpush1.msra.mxu0 %v4092
    %4134 = vmatprep.subr.mxu0 0.0
    %4135 = vmatpush1.msra.mxu0 %v4093
    %4136 = vmatprep.subr.mxu0 0.0
    %4137 = vmatpush1.msra.mxu0 %v4094
    %4138 = vmatprep.subr.mxu0 0.0
    %4139 = vmatpush1.msra.mxu0 %v4095
    %4140 = vmatprep.subr.mxu0 0.0
    %4141 = vmatpush1.msra.mxu0 %v4096
    %4142 = vmatprep.subr.mxu0 0.0
    %4143 = vmatpush1.msra.mxu0 %v4097
    %4144 = vmatprep.subr.mxu0 0.0
    %4145 = vmatpush1.msra.mxu0 %v4098
    %4146 = vmatprep.subr.mxu0 0.0
    %4147 = vmatpush1.msra.mxu0 %v4099
    %4148 = vmatprep.subr.mxu0 0.0
    %4149 = vmatpush1.msra.mxu0 %v4100
    %4150 = vmatprep.subr.mxu0 0.0
    %4151 = vmatpush1.msra.mxu0 %v4101
    %4152 = vmatprep.subr.mxu0 0.0
    %4153 = vmatpush1.msra.mxu0 %v4102
    %4154 = vmatprep.subr.mxu0 0.0
    %4155 = vmatpush1.msra.mxu0 %v4103
    %4156 = vmatprep.subr.mxu0 0.0
    %4157 = vmatpush1.msra.mxu0 %v4104
    %4158 = vmatprep.subr.mxu0 0.0
    %4159 = vmatpush1.msra.mxu0 %v4105
    %4160 = vmatprep.subr.mxu0 0.0
    %4161 = vmatpush1.msra.mxu0 %v4106
    %4162 = vmatprep.subr.mxu0 0.0
    %4163 = vmatpush1.msra.mxu0 %v4107
    %4164 = vmatprep.subr.mxu0 0.0
    %4165 = vmatpush1.msra.mxu0 %v4108
    %4166 = vmatprep.subr.mxu0 0.0
    %4167 = vmatpush1.msra.mxu0 %v4109
    %4168 = vmatprep.subr.mxu0 0.0
    %4169 = vmatpush1.msra.mxu0 %v4110
    %4170 = vmatprep.subr.mxu0 0.0
    %4171 = vmatpush1.msra.mxu0 %v4111
    %4172 = vmatprep.subr.mxu0 0.0
    %4173 = vmatpush1.msra.mxu0 %v4112
    %4174 = vmatprep.subr.mxu0 0.0
    %4175 = vmatpush1.msra.mxu0 %v4113
    %4176 = vmatprep.subr.mxu0 0.0
    %4177 = vmatpush1.msra.mxu0 %v4114
    %4178 = vmatprep.subr.mxu0 0.0
    %4179 = vmatpush1.msra.mxu0 %v4115
    %4180 = vmatprep.mubr.f32.mxu0 %v4083
    %4181 = vmatmul.mubr.f32.gmra.mrb[0].mxu0 %v4062
    %v4182 = vpop.f32.mrb[0].mxu0
    %v4183 = vadd.f32 0.0, %v4182
    %v4184 = vpop.f32.mrb[0].mxu0
    %4185 = vdwg.mxu0
    %v4186 = vld [vmem:[#allocation3] sm:$0xff]
    %v4187 = vld [vmem:[#allocation3 + $0x8] sm:$0xff]
    %v4188 = vld [vmem:[#allocation3 + $0x10] sm:$0xff]
    %v4189 = vld [vmem:[#allocation3 + $0x18] sm:$0xff]
    %v4190 = vld [vmem:[#allocation3 + $0x20] sm:$0xff]
    %v4191 = vld [vmem:[#allocation3 + $0x28] sm:$0xff]
    %v4192 = vld [vmem:[#allocation3 + $0x30] sm:$0xff]
    %v4193 = vld [vmem:[#allocation3 + $0x38] sm:$0xff]
    %v4194 = vld [vmem:[#allocation3 + $0x40] sm:$0xff]
    %v4195 = vld [vmem:[#allocation3 + $0x48] sm:$0xff]
    %v4196 = vld [vmem:[#allocation3 + $0x50] sm:$0xff]
    %v4197 = vld [vmem:[#allocation3 + $0x58] sm:$0xff]
    %v4198 = vld [vmem:[#allocation3 + $0x60] sm:$0xff]
    %v4199 = vld [vmem:[#allocation3 + $0x68] sm:$0xff]
    %v4200 = vld [vmem:[#allocation3 + $0x70] sm:$0xff]
    %v4201 = vld [vmem:[#allocation3 + $0x78] sm:$0xff]
    %v4202 = vld [vmem:[#allocation3 + $0x80] sm:$0xff]
    %v4203 = vld [vmem:[#allocation3 + $0x88] sm:$0xff]
    %v4204 = vld [vmem:[#allocation3 + $0x90] sm:$0xff]
    %v4205 = vld [vmem:[#allocation3 + $0x98] sm:$0xff]
    %v4206 = vld [vmem:[#allocation3 + $0xa0] sm:$0xff]
    %v4207 = vld [vmem:[#allocation3 + $0xa8] sm:$0xff]
    %v4208 = vld [vmem:[#allocation3 + $0xb0] sm:$0xff]
    %v4209 = vld [vmem:[#allocation3 + $0xb8] sm:$0xff]
    %v4210 = vld [vmem:[#allocation3 + $0xc0] sm:$0xff]
    %v4211 = vld [vmem:[#allocation3 + $0xc8] sm:$0xff]
    %v4212 = vld [vmem:[#allocation3 + $0xd0] sm:$0xff]
    %v4213 = vld [vmem:[#allocation3 + $0xd8] sm:$0xff]
    %v4214 = vld [vmem:[#allocation3 + $0xe0] sm:$0xff]
    %v4215 = vld [vmem:[#allocation3 + $0xe8] sm:$0xff]
    %v4216 = vld [vmem:[#allocation3 + $0xf0] sm:$0xff]
    %v4217 = vld [vmem:[#allocation3 + $0xf8] sm:$0xff]
    %v4218 = vld [vmem:[#allocation3 + $0x100] sm:$0xff]
    %v4219 = vld [vmem:[#allocation3 + $0x108] sm:$0xff]
    %v4220 = vld [vmem:[#allocation3 + $0x110] sm:$0xff]
    %v4221 = vld [vmem:[#allocation3 + $0x118] sm:$0xff]
    %v4222 = vld [vmem:[#allocation3 + $0x120] sm:$0xff]
    %v4223 = vld [vmem:[#allocation3 + $0x128] sm:$0xff]
    %v4224 = vld [vmem:[#allocation3 + $0x130] sm:$0xff]
    %v4225 = vld [vmem:[#allocation3 + $0x138] sm:$0xff]
    %v4226 = vld [vmem:[#allocation3 + $0x140] sm:$0xff]
    %v4227 = vld [vmem:[#allocation3 + $0x148] sm:$0xff]
    %v4228 = vld [vmem:[#allocation3 + $0x150] sm:$0xff]
    %v4229 = vld [vmem:[#allocation3 + $0x158] sm:$0xff]
    %v4230 = vld [vmem:[#allocation3 + $0x160] sm:$0xff]
    %v4231 = vld [vmem:[#allocation3 + $0x168] sm:$0xff]
    %v4232 = vld [vmem:[#allocation3 + $0x170] sm:$0xff]
    %v4233 = vld [vmem:[#allocation3 + $0x178] sm:$0xff]
    %v4234 = vld [vmem:[#allocation3 + $0x180] sm:$0xff]
    %v4235 = vld [vmem:[#allocation3 + $0x188] sm:$0xff]
    %v4236 = vld [vmem:[#allocation3 + $0x190] sm:$0xff]
    %v4237 = vld [vmem:[#allocation3 + $0x198] sm:$0xff]
    %v4238 = vld [vmem:[#allocation3 + $0x1a0] sm:$0xff]
    %v4239 = vld [vmem:[#allocation3 + $0x1a8] sm:$0xff]
    %v4240 = vld [vmem:[#allocation3 + $0x1b0] sm:$0xff]
    %v4241 = vld [vmem:[#allocation3 + $0x1b8] sm:$0xff]
    %v4242 = vld [vmem:[#allocation3 + $0x1c0] sm:$0xff]
    %v4243 = vld [vmem:[#allocation3 + $0x1c8] sm:$0xff]
    %v4244 = vld [vmem:[#allocation3 + $0x1d0] sm:$0xff]
    %v4245 = vld [vmem:[#allocation3 + $0x1d8] sm:$0xff]
    %v4246 = vld [vmem:[#allocation3 + $0x1e0] sm:$0xff]
    %v4247 = vld [vmem:[#allocation3 + $0x1e8] sm:$0xff]
    %v4248 = vld [vmem:[#allocation3 + $0x1f0] sm:$0xff]
    %v4249 = vld [vmem:[#allocation3 + $0x1f8] sm:$0xff]
    %v4250 = vld [vmem:[#allocation3 + $0x200] sm:$0xff]
    %v4251 = vld [vmem:[#allocation3 + $0x208] sm:$0xff]
    %v4252 = vld [vmem:[#allocation3 + $0x210] sm:$0xff]
    %v4253 = vld [vmem:[#allocation3 + $0x218] sm:$0xff]
    %v4254 = vld [vmem:[#allocation3 + $0x220] sm:$0xff]
    %v4255 = vld [vmem:[#allocation3 + $0x228] sm:$0xff]
    %v4256 = vld [vmem:[#allocation3 + $0x230] sm:$0xff]
    %v4257 = vld [vmem:[#allocation3 + $0x238] sm:$0xff]
    %v4258 = vld [vmem:[#allocation3 + $0x240] sm:$0xff]
    %v4259 = vld [vmem:[#allocation3 + $0x248] sm:$0xff]
    %v4260 = vld [vmem:[#allocation3 + $0x250] sm:$0xff]
    %v4261 = vld [vmem:[#allocation3 + $0x258] sm:$0xff]
    %v4262 = vld [vmem:[#allocation3 + $0x260] sm:$0xff]
    %v4263 = vld [vmem:[#allocation3 + $0x268] sm:$0xff]
    %v4264 = vld [vmem:[#allocation3 + $0x270] sm:$0xff]
    %v4265 = vld [vmem:[#allocation3 + $0x278] sm:$0xff]
    %v4266 = vld [vmem:[#allocation3 + $0x280] sm:$0xff]
    %v4267 = vld [vmem:[#allocation3 + $0x288] sm:$0xff]
    %v4268 = vld [vmem:[#allocation3 + $0x290] sm:$0xff]
    %v4269 = vld [vmem:[#allocation3 + $0x298] sm:$0xff]
    %v4270 = vld [vmem:[#allocation3 + $0x2a0] sm:$0xff]
    %v4271 = vld [vmem:[#allocation3 + $0x2a8] sm:$0xff]
    %v4272 = vld [vmem:[#allocation3 + $0x2b0] sm:$0xff]
    %v4273 = vld [vmem:[#allocation3 + $0x2b8] sm:$0xff]
    %v4274 = vld [vmem:[#allocation3 + $0x2c0] sm:$0xff]
    %v4275 = vld [vmem:[#allocation3 + $0x2c8] sm:$0xff]
    %v4276 = vld [vmem:[#allocation3 + $0x2d0] sm:$0xff]
    %v4277 = vld [vmem:[#allocation3 + $0x2d8] sm:$0xff]
    %v4278 = vld [vmem:[#allocation3 + $0x2e0] sm:$0xff]
    %v4279 = vld [vmem:[#allocation3 + $0x2e8] sm:$0xff]
    %v4280 = vld [vmem:[#allocation3 + $0x2f0] sm:$0xff]
    %v4281 = vld [vmem:[#allocation3 + $0x2f8] sm:$0xff]
    %v4282 = vld [vmem:[#allocation3 + $0x300] sm:$0xff]
    %v4283 = vld [vmem:[#allocation3 + $0x308] sm:$0xff]
    %v4284 = vld [vmem:[#allocation3 + $0x310] sm:$0xff]
    %v4285 = vld [vmem:[#allocation3 + $0x318] sm:$0xff]
    %v4286 = vld [vmem:[#allocation3 + $0x320] sm:$0xff]
    %v4287 = vld [vmem:[#allocation3 + $0x328] sm:$0xff]
    %v4288 = vld [vmem:[#allocation3 + $0x330] sm:$0xff]
    %v4289 = vld [vmem:[#allocation3 + $0x338] sm:$0xff]
    %v4290 = vld [vmem:[#allocation3 + $0x340] sm:$0xff]
    %v4291 = vld [vmem:[#allocation3 + $0x348] sm:$0xff]
    %v4292 = vld [vmem:[#allocation3 + $0x350] sm:$0xff]
    %v4293 = vld [vmem:[#allocation3 + $0x358] sm:$0xff]
    %v4294 = vld [vmem:[#allocation3 + $0x360] sm:$0xff]
    %v4295 = vld [vmem:[#allocation3 + $0x368] sm:$0xff]
    %v4296 = vld [vmem:[#allocation3 + $0x370] sm:$0xff]
    %v4297 = vld [vmem:[#allocation3 + $0x378] sm:$0xff]
    %v4298 = vld [vmem:[#allocation3 + $0x380] sm:$0xff]
    %v4299 = vld [vmem:[#allocation3 + $0x388] sm:$0xff]
    %v4300 = vld [vmem:[#allocation3 + $0x390] sm:$0xff]
    %v4301 = vld [vmem:[#allocation3 + $0x398] sm:$0xff]
    %v4302 = vld [vmem:[#allocation3 + $0x3a0] sm:$0xff]
    %v4303 = vld [vmem:[#allocation3 + $0x3a8] sm:$0xff]
    %v4304 = vld [vmem:[#allocation3 + $0x3b0] sm:$0xff]
    %v4305 = vld [vmem:[#allocation3 + $0x3b8] sm:$0xff]
    %v4306 = vld [vmem:[#allocation3 + $0x3c0] sm:$0xff]
    %v4307 = vld [vmem:[#allocation3 + $0x3c8] sm:$0xff]
    %v4308 = vld [vmem:[#allocation3 + $0x3d0] sm:$0xff]
    %v4309 = vld [vmem:[#allocation3 + $0x3d8] sm:$0xff]
    %v4310 = vld [vmem:[#allocation3 + $0x3e0] sm:$0xff]
    %v4311 = vld [vmem:[#allocation3 + $0x3e8] sm:$0xff]
    %v4312 = vld [vmem:[#allocation3 + $0x3f0] sm:$0xff]
    %v4313 = vld [vmem:[#allocation3 + $0x3f8] sm:$0xff]
    %v4314 = vld [vmem:[#allocation3 + $0x400] sm:$0xff]
    %v4315 = vld [vmem:[#allocation3 + $0x408] sm:$0xff]
    %v4316 = vld [vmem:[#allocation3 + $0x410] sm:$0xff]
    %v4317 = vld [vmem:[#allocation3 + $0x418] sm:$0xff]
    %v4318 = vld [vmem:[#allocation3 + $0x420] sm:$0xff]
    %v4319 = vld [vmem:[#allocation3 + $0x428] sm:$0xff]
    %v4320 = vld [vmem:[#allocation3 + $0x430] sm:$0xff]
    %v4321 = vld [vmem:[#allocation3 + $0x438] sm:$0xff]
    %v4322 = vld [vmem:[#allocation3 + $0x440] sm:$0xff]
    %v4323 = vld [vmem:[#allocation3 + $0x448] sm:$0xff]
    %v4324 = vld [vmem:[#allocation3 + $0x450] sm:$0xff]
    %v4325 = vld [vmem:[#allocation3 + $0x458] sm:$0xff]
    %v4326 = vld [vmem:[#allocation3 + $0x460] sm:$0xff]
    %v4327 = vld [vmem:[#allocation3 + $0x468] sm:$0xff]
    %v4328 = vld [vmem:[#allocation3 + $0x470] sm:$0xff]
    %v4329 = vld [vmem:[#allocation3 + $0x478] sm:$0xff]
    %v4330 = vld [vmem:[#allocation3 + $0x480] sm:$0xff]
    %v4331 = vld [vmem:[#allocation3 + $0x488] sm:$0xff]
    %v4332 = vld [vmem:[#allocation3 + $0x490] sm:$0xff]
    %v4333 = vld [vmem:[#allocation3 + $0x498] sm:$0xff]
    %v4334 = vld [vmem:[#allocation3 + $0x4a0] sm:$0xff]
    %v4335 = vld [vmem:[#allocation3 + $0x4a8] sm:$0xff]
    %v4336 = vld [vmem:[#allocation3 + $0x4b0] sm:$0xff]
    %v4337 = vld [vmem:[#allocation3 + $0x4b8] sm:$0xff]
    %v4338 = vld [vmem:[#allocation3 + $0x4c0] sm:$0xff]
    %v4339 = vld [vmem:[#allocation3 + $0x4c8] sm:$0xff]
    %v4340 = vld [vmem:[#allocation3 + $0x4d0] sm:$0xff]
    %v4341 = vld [vmem:[#allocation3 + $0x4d8] sm:$0xff]
    %v4342 = vld [vmem:[#allocation3 + $0x4e0] sm:$0xff]
    %v4343 = vld [vmem:[#allocation3 + $0x4e8] sm:$0xff]
    %v4344 = vld [vmem:[#allocation3 + $0x4f0] sm:$0xff]
    %v4345 = vld [vmem:[#allocation3 + $0x4f8] sm:$0xff]
    %v4346 = vld [vmem:[#allocation3 + $0x500] sm:$0xff]
    %v4347 = vld [vmem:[#allocation3 + $0x508] sm:$0xff]
    %v4348 = vld [vmem:[#allocation3 + $0x510] sm:$0xff]
    %v4349 = vld [vmem:[#allocation3 + $0x518] sm:$0xff]
    %v4350 = vld [vmem:[#allocation3 + $0x520] sm:$0xff]
    %v4351 = vld [vmem:[#allocation3 + $0x528] sm:$0xff]
    %v4352 = vld [vmem:[#allocation3 + $0x530] sm:$0xff]
    %v4353 = vld [vmem:[#allocation3 + $0x538] sm:$0xff]
    %v4354 = vld [vmem:[#allocation3 + $0x540] sm:$0xff]
    %v4355 = vld [vmem:[#allocation3 + $0x548] sm:$0xff]
    %v4356 = vld [vmem:[#allocation3 + $0x550] sm:$0xff]
    %v4357 = vld [vmem:[#allocation3 + $0x558] sm:$0xff]
    %v4358 = vld [vmem:[#allocation3 + $0x560] sm:$0xff]
    %v4359 = vld [vmem:[#allocation3 + $0x568] sm:$0xff]
    %v4360 = vld [vmem:[#allocation3 + $0x570] sm:$0xff]
    %v4361 = vld [vmem:[#allocation3 + $0x578] sm:$0xff]
    %v4362 = vld [vmem:[#allocation3 + $0x580] sm:$0xff]
    %v4363 = vld [vmem:[#allocation3 + $0x588] sm:$0xff]
    %v4364 = vld [vmem:[#allocation3 + $0x590] sm:$0xff]
    %v4365 = vld [vmem:[#allocation3 + $0x598] sm:$0xff]
    %v4366 = vld [vmem:[#allocation3 + $0x5a0] sm:$0xff]
    %v4367 = vld [vmem:[#allocation3 + $0x5a8] sm:$0xff]
    %v4368 = vld [vmem:[#allocation3 + $0x5b0] sm:$0xff]
    %v4369 = vld [vmem:[#allocation3 + $0x5b8] sm:$0xff]
    %v4370 = vld [vmem:[#allocation3 + $0x5c0] sm:$0xff]
    %v4371 = vld [vmem:[#allocation3 + $0x5c8] sm:$0xff]
    %v4372 = vld [vmem:[#allocation3 + $0x5d0] sm:$0xff]
    %v4373 = vld [vmem:[#allocation3 + $0x5d8] sm:$0xff]
    %v4374 = vld [vmem:[#allocation3 + $0x5e0] sm:$0xff]
    %v4375 = vld [vmem:[#allocation3 + $0x5e8] sm:$0xff]
    %v4376 = vld [vmem:[#allocation3 + $0x5f0] sm:$0xff]
    %v4377 = vld [vmem:[#allocation3 + $0x5f8] sm:$0xff]
    %v4378 = vld [vmem:[#allocation3 + $0x600] sm:$0xff]
    %v4379 = vld [vmem:[#allocation3 + $0x608] sm:$0xff]
    %v4380 = vld [vmem:[#allocation3 + $0x610] sm:$0xff]
    %v4381 = vld [vmem:[#allocation3 + $0x618] sm:$0xff]
    %v4382 = vld [vmem:[#allocation3 + $0x620] sm:$0xff]
    %v4383 = vld [vmem:[#allocation3 + $0x628] sm:$0xff]
    %v4384 = vld [vmem:[#allocation3 + $0x630] sm:$0xff]
    %v4385 = vld [vmem:[#allocation3 + $0x638] sm:$0xff]
    %v4386 = vld [vmem:[#allocation3 + $0x640] sm:$0xff]
    %v4387 = vld [vmem:[#allocation3 + $0x648] sm:$0xff]
    %v4388 = vld [vmem:[#allocation3 + $0x650] sm:$0xff]
    %v4389 = vld [vmem:[#allocation3 + $0x658] sm:$0xff]
    %v4390 = vld [vmem:[#allocation3 + $0x660] sm:$0xff]
    %v4391 = vld [vmem:[#allocation3 + $0x668] sm:$0xff]
    %v4392 = vld [vmem:[#allocation3 + $0x670] sm:$0xff]
    %v4393 = vld [vmem:[#allocation3 + $0x678] sm:$0xff]
    %v4394 = vld [vmem:[#allocation3 + $0x680] sm:$0xff]
    %v4395 = vld [vmem:[#allocation3 + $0x688] sm:$0xff]
    %v4396 = vld [vmem:[#allocation3 + $0x690] sm:$0xff]
    %v4397 = vld [vmem:[#allocation3 + $0x698] sm:$0xff]
    %v4398 = vld [vmem:[#allocation3 + $0x6a0] sm:$0xff]
    %v4399 = vld [vmem:[#allocation3 + $0x6a8] sm:$0xff]
    %v4400 = vld [vmem:[#allocation3 + $0x6b0] sm:$0xff]
    %v4401 = vld [vmem:[#allocation3 + $0x6b8] sm:$0xff]
    %v4402 = vld [vmem:[#allocation3 + $0x6c0] sm:$0xff]
    %v4403 = vld [vmem:[#allocation3 + $0x6c8] sm:$0xff]
    %v4404 = vld [vmem:[#allocation3 + $0x6d0] sm:$0xff]
    %v4405 = vld [vmem:[#allocation3 + $0x6d8] sm:$0xff]
    %v4406 = vld [vmem:[#allocation3 + $0x6e0] sm:$0xff]
    %v4407 = vld [vmem:[#allocation3 + $0x6e8] sm:$0xff]
    %v4408 = vld [vmem:[#allocation3 + $0x6f0] sm:$0xff]
    %v4409 = vld [vmem:[#allocation3 + $0x6f8] sm:$0xff]
    %v4410 = vld [vmem:[#allocation3 + $0x700] sm:$0xff]
    %v4411 = vld [vmem:[#allocation3 + $0x708] sm:$0xff]
    %v4412 = vld [vmem:[#allocation3 + $0x710] sm:$0xff]
    %v4413 = vld [vmem:[#allocation3 + $0x718] sm:$0xff]
    %v4414 = vld [vmem:[#allocation3 + $0x720] sm:$0xff]
    %v4415 = vld [vmem:[#allocation3 + $0x728] sm:$0xff]
    %v4416 = vld [vmem:[#allocation3 + $0x730] sm:$0xff]
    %v4417 = vld [vmem:[#allocation3 + $0x738] sm:$0xff]
    %v4418 = vld [vmem:[#allocation3 + $0x740] sm:$0xff]
    %v4419 = vld [vmem:[#allocation3 + $0x748] sm:$0xff]
    %v4420 = vld [vmem:[#allocation3 + $0x750] sm:$0xff]
    %v4421 = vld [vmem:[#allocation3 + $0x758] sm:$0xff]
    %v4422 = vld [vmem:[#allocation3 + $0x760] sm:$0xff]
    %v4423 = vld [vmem:[#allocation3 + $0x768] sm:$0xff]
    %v4424 = vld [vmem:[#allocation3 + $0x770] sm:$0xff]
    %v4425 = vld [vmem:[#allocation3 + $0x778] sm:$0xff]
    %v4426 = vld [vmem:[#allocation3 + $0x780] sm:$0xff]
    %v4427 = vld [vmem:[#allocation3 + $0x788] sm:$0xff]
    %v4428 = vld [vmem:[#allocation3 + $0x790] sm:$0xff]
    %v4429 = vld [vmem:[#allocation3 + $0x798] sm:$0xff]
    %v4430 = vld [vmem:[#allocation3 + $0x7a0] sm:$0xff]
    %v4431 = vld [vmem:[#allocation3 + $0x7a8] sm:$0xff]
    %v4432 = vld [vmem:[#allocation3 + $0x7b0] sm:$0xff]
    %v4433 = vld [vmem:[#allocation3 + $0x7b8] sm:$0xff]
    %v4434 = vld [vmem:[#allocation3 + $0x7c0] sm:$0xff]
    %v4435 = vld [vmem:[#allocation3 + $0x7c8] sm:$0xff]
    %v4436 = vld [vmem:[#allocation3 + $0x7d0] sm:$0xff]
    %v4437 = vld [vmem:[#allocation3 + $0x7d8] sm:$0xff]
    %v4438 = vld [vmem:[#allocation3 + $0x7e0] sm:$0xff]
    %v4439 = vld [vmem:[#allocation3 + $0x7e8] sm:$0xff]
    %v4440 = vld [vmem:[#allocation3 + $0x7f0] sm:$0xff]
    %v4441 = vld [vmem:[#allocation3 + $0x7f8] sm:$0xff]
    %v4458 = vlaneseq
    %v4459 = vshrl.u32 %v4458, 7
    %v4460 = vsub.s32 %v1152, %v4459
    %v4461 = vrot.slane %v3996, %v4460
    %v4462 = vlaneseq
    %v4463 = vshrl.u32 %v4462, 7
    %v4464 = vsub.s32 %v1157, %v4463
    %v4465 = vrot.slane %v3999, %v4464
    %v4466 = vsel %vm1162, %v4465, %v4461
    %v4467 = vlaneseq
    %v4468 = vshrl.u32 %v4467, 7
    %v4469 = vsub.s32 %v1164, %v4468
    %v4470 = vrot.slane %v4002, %v4469
    %v4471 = vsel %vm1169, %v4470, %v4466
    %v4472 = vlaneseq
    %v4473 = vshrl.u32 %v4472, 7
    %v4474 = vsub.s32 %v1171, %v4473
    %v4475 = vrot.slane %v4005, %v4474
    %v4476 = vsel %vm1176, %v4475, %v4471
    %v4477 = vlaneseq
    %v4478 = vshrl.u32 %v4477, 7
    %v4479 = vsub.s32 %v1178, %v4478
    %v4480 = vrot.slane %v4008, %v4479
    %v4481 = vsel %vm1183, %v4480, %v4476
    %v4482 = vlaneseq
    %v4483 = vshrl.u32 %v4482, 7
    %v4484 = vsub.s32 %v1185, %v4483
    %v4485 = vrot.slane %v4011, %v4484
    %v4486 = vsel %vm1190, %v4485, %v4481
    %v4487 = vlaneseq
    %v4488 = vshrl.u32 %v4487, 7
    %v4489 = vsub.s32 %v1192, %v4488
    %v4490 = vrot.slane %v4014, %v4489
    %v4491 = vsel %vm1197, %v4490, %v4486
    %v4492 = vlaneseq
    %v4493 = vshrl.u32 %v4492, 7
    %v4494 = vsub.s32 %v1199, %v4493
    %v4495 = vrot.slane %v4017, %v4494
    %v4496 = vsel %vm1204, %v4495, %v4491
    %v4497 = vlaneseq
    %v4498 = vshrl.u32 %v4497, 7
    %v4499 = vsub.s32 %v1206, %v4498
    %v4500 = vrot.slane %v4020, %v4499
    %v4501 = vsel %vm1211, %v4500, %v4496
    %v4502 = vlaneseq
    %v4503 = vshrl.u32 %v4502, 7
    %v4504 = vsub.s32 %v1213, %v4503
    %v4505 = vrot.slane %v4023, %v4504
    %v4506 = vsel %vm1218, %v4505, %v4501
    %v4507 = vlaneseq
    %v4508 = vshrl.u32 %v4507, 7
    %v4509 = vsub.s32 %v1220, %v4508
    %v4510 = vrot.slane %v4026, %v4509
    %v4511 = vsel %vm1225, %v4510, %v4506
    %v4512 = vlaneseq
    %v4513 = vshrl.u32 %v4512, 7
    %v4514 = vsub.s32 %v1227, %v4513
    %v4515 = vrot.slane %v4029, %v4514
    %v4516 = vsel %vm1232, %v4515, %v4511
    %v4517 = vlaneseq
    %v4518 = vshrl.u32 %v4517, 7
    %v4519 = vsub.s32 %v1234, %v4518
    %v4520 = vrot.slane %v4032, %v4519
    %v4521 = vsel %vm1239, %v4520, %v4516
    %v4522 = vlaneseq
    %v4523 = vshrl.u32 %v4522, 7
    %v4524 = vsub.s32 %v1241, %v4523
    %v4525 = vrot.slane %v4035, %v4524
    %v4526 = vsel %vm1246, %v4525, %v4521
    %v4527 = vlaneseq
    %v4528 = vshrl.u32 %v4527, 7
    %v4529 = vsub.s32 %v1248, %v4528
    %v4530 = vrot.slane %v4038, %v4529
    %v4531 = vsel %vm1253, %v4530, %v4526
    %v4532 = vlaneseq
    %v4533 = vshrl.u32 %v4532, 7
    %v4534 = vsub.s32 %v1255, %v4533
    %v4535 = vrot.slane %v4041, %v4534
    %v4536 = vsel %vm1260, %v4535, %v4531
    %4538 = vmatprep.subr.mxu0 %v4187
    %4539 = vmatpush1.msra.mxu0 %v4186
    %4540 = vmatprep.subr.mxu0 %v4203
    %4541 = vmatpush1.msra.mxu0 %v4202
    %4542 = vmatprep.subr.mxu0 %v4219
    %4543 = vmatpush1.msra.mxu0 %v4218
    %4544 = vmatprep.subr.mxu0 %v4235
    %4545 = vmatpush1.msra.mxu0 %v4234
    %4546 = vmatprep.subr.mxu0 %v4251
    %4547 = vmatpush1.msra.mxu0 %v4250
    %4548 = vmatprep.subr.mxu0 %v4267
    %4549 = vmatpush1.msra.mxu0 %v4266
    %4550 = vmatprep.subr.mxu0 %v4283
    %4551 = vmatpush1.msra.mxu0 %v4282
    %4552 = vmatprep.subr.mxu0 %v4299
    %4553 = vmatpush1.msra.mxu0 %v4298
    %4554 = vmatprep.subr.mxu0 %v4315
    %4555 = vmatpush1.msra.mxu0 %v4314
    %4556 = vmatprep.subr.mxu0 %v4331
    %4557 = vmatpush1.msra.mxu0 %v4330
    %4558 = vmatprep.subr.mxu0 %v4347
    %4559 = vmatpush1.msra.mxu0 %v4346
    %4560 = vmatprep.subr.mxu0 %v4363
    %4561 = vmatpush1.msra.mxu0 %v4362
    %4562 = vmatprep.subr.mxu0 %v4379
    %4563 = vmatpush1.msra.mxu0 %v4378
    %4564 = vmatprep.subr.mxu0 %v4395
    %4565 = vmatpush1.msra.mxu0 %v4394
    %4566 = vmatprep.subr.mxu0 %v4411
    %4567 = vmatpush1.msra.mxu0 %v4410
    %4568 = vmatprep.subr.mxu0 %v4427
    %4569 = vmatpush1.msra.mxu0 %v4426
    %4570 = vmatprep.subr.mxu0 0.0
    %4571 = vmatpush1.msra.mxu0 0.0
    %4572 = vmatprep.subr.mxu0 0.0
    %4573 = vmatpush1.msra.mxu0 0.0
    %4574 = vmatprep.subr.mxu0 0.0
    %4575 = vmatpush1.msra.mxu0 0.0
    %4576 = vmatprep.subr.mxu0 0.0
    %4577 = vmatpush1.msra.mxu0 0.0
    %4578 = vmatprep.subr.mxu0 0.0
    %4579 = vmatpush1.msra.mxu0 0.0
    %4580 = vmatprep.subr.mxu0 0.0
    %4581 = vmatpush1.msra.mxu0 0.0
    %4582 = vmatprep.subr.mxu0 0.0
    %4583 = vmatpush1.msra.mxu0 0.0
    %4584 = vmatprep.subr.mxu0 0.0
    %4585 = vmatpush1.msra.mxu0 0.0
    %4586 = vmatprep.subr.mxu0 0.0
    %4587 = vmatpush1.msra.mxu0 0.0
    %4588 = vmatprep.subr.mxu0 0.0
    %4589 = vmatpush1.msra.mxu0 0.0
    %4590 = vmatprep.subr.mxu0 0.0
    %4591 = vmatpush1.msra.mxu0 0.0
    %4592 = vmatprep.subr.mxu0 0.0
    %4593 = vmatpush1.msra.mxu0 0.0
    %4594 = vmatprep.subr.mxu0 0.0
    %4595 = vmatpush1.msra.mxu0 0.0
    %4596 = vmatprep.subr.mxu0 0.0
    %4597 = vmatpush1.msra.mxu0 0.0
    %4598 = vmatprep.subr.mxu0 0.0
    %4599 = vmatpush1.msra.mxu0 0.0
    %4600 = vmatprep.subr.mxu0 0.0
    %4601 = vmatpush1.msra.mxu0 0.0
    %4602 = vmatprep.mubr.f32.mxu0 0.0
    %4603 = vmatmul.mubr.f32.gmra.mrb[0].mxu0 %v4536
    %v4604 = vpop.f32.mrb[0].mxu0
    %v4605 = vadd.f32 0.0, %v4604
    %v4606 = vpop.f32.mrb[0].mxu0
    %v4607 = vadd.f32 0.0, %v4606
    %4608 = vdwg.mxu0
    %4609 = vmatprep.subr.mxu0 %v4189
    %4610 = vmatpush1.msra.mxu0 %v4188
    %4611 = vmatprep.subr.mxu0 %v4205
    %4612 = vmatpush1.msra.mxu0 %v4204
    %4613 = vmatprep.subr.mxu0 %v4221
    %4614 = vmatpush1.msra.mxu0 %v4220
    %4615 = vmatprep.subr.mxu0 %v4237
    %4616 = vmatpush1.msra.mxu0 %v4236
    %4617 = vmatprep.subr.mxu0 %v4253
    %4618 = vmatpush1.msra.mxu0 %v4252
    %4619 = vmatprep.subr.mxu0 %v4269
    %4620 = vmatpush1.msra.mxu0 %v4268
    %4621 = vmatprep.subr.mxu0 %v4285
    %4622 = vmatpush1.msra.mxu0 %v4284
    %4623 = vmatprep.subr.mxu0 %v4301
    %4624 = vmatpush1.msra.mxu0 %v4300
    %4625 = vmatprep.subr.mxu0 %v4317
    %4626 = vmatpush1.msra.mxu0 %v4316
    %4627 = vmatprep.subr.mxu0 %v4333
    %4628 = vmatpush1.msra.mxu0 %v4332
    %4629 = vmatprep.subr.mxu0 %v4349
    %4630 = vmatpush1.msra.mxu0 %v4348
    %4631 = vmatprep.subr.mxu0 %v4365
    %4632 = vmatpush1.msra.mxu0 %v4364
    %4633 = vmatprep.subr.mxu0 %v4381
    %4634 = vmatpush1.msra.mxu0 %v4380
    %4635 = vmatprep.subr.mxu0 %v4397
    %4636 = vmatpush1.msra.mxu0 %v4396
    %4637 = vmatprep.subr.mxu0 %v4413
    %4638 = vmatpush1.msra.mxu0 %v4412
    %4639 = vmatprep.subr.mxu0 %v4429
    %4640 = vmatpush1.msra.mxu0 %v4428
    %4641 = vmatprep.subr.mxu0 0.0
    %4642 = vmatpush1.msra.mxu0 0.0
    %4643 = vmatprep.subr.mxu0 0.0
    %4644 = vmatpush1.msra.mxu0 0.0
    %4645 = vmatprep.subr.mxu0 0.0
    %4646 = vmatpush1.msra.mxu0 0.0
    %4647 = vmatprep.subr.mxu0 0.0
    %4648 = vmatpush1.msra.mxu0 0.0
    %4649 = vmatprep.subr.mxu0 0.0
    %4650 = vmatpush1.msra.mxu0 0.0
    %4651 = vmatprep.subr.mxu0 0.0
    %4652 = vmatpush1.msra.mxu0 0.0
    %4653 = vmatprep.subr.mxu0 0.0
    %4654 = vmatpush1.msra.mxu0 0.0
    %4655 = vmatprep.subr.mxu0 0.0
    %4656 = vmatpush1.msra.mxu0 0.0
    %4657 = vmatprep.subr.mxu0 0.0
    %4658 = vmatpush1.msra.mxu0 0.0
    %4659 = vmatprep.subr.mxu0 0.0
    %4660 = vmatpush1.msra.mxu0 0.0
    %4661 = vmatprep.subr.mxu0 0.0
    %4662 = vmatpush1.msra.mxu0 0.0
    %4663 = vmatprep.subr.mxu0 0.0
    %4664 = vmatpush1.msra.mxu0 0.0
    %4665 = vmatprep.subr.mxu0 0.0
    %4666 = vmatpush1.msra.mxu0 0.0
    %4667 = vmatprep.subr.mxu0 0.0
    %4668 = vmatpush1.msra.mxu0 0.0
    %4669 = vmatprep.subr.mxu0 0.0
    %4670 = vmatpush1.msra.mxu0 0.0
    %4671 = vmatprep.subr.mxu0 0.0
    %4672 = vmatpush1.msra.mxu0 0.0
    %4673 = vmatprep.mubr.f32.mxu0 0.0
    %4674 = vmatmul.mubr.f32.gmra.mrb[0].mxu0 %v4536
    %v4675 = vpop.f32.mrb[0].mxu0
    %v4676 = vadd.f32 0.0, %v4675
    %v4677 = vpop.f32.mrb[0].mxu0
    %v4678 = vadd.f32 0.0, %v4677
    %4679 = vdwg.mxu0
    %4680 = vmatprep.subr.mxu0 %v4191
    %4681 = vmatpush1.msra.mxu0 %v4190
    %4682 = vmatprep.subr.mxu0 %v4207
    %4683 = vmatpush1.msra.mxu0 %v4206
    %4684 = vmatprep.subr.mxu0 %v4223
    %4685 = vmatpush1.msra.mxu0 %v4222
    %4686 = vmatprep.subr.mxu0 %v4239
    %4687 = vmatpush1.msra.mxu0 %v4238
    %4688 = vmatprep.subr.mxu0 %v4255
    %4689 = vmatpush1.msra.mxu0 %v4254
    %4690 = vmatprep.subr.mxu0 %v4271
    %4691 = vmatpush1.msra.mxu0 %v4270
    %4692 = vmatprep.subr.mxu0 %v4287
    %4693 = vmatpush1.msra.mxu0 %v4286
    %4694 = vmatprep.subr.mxu0 %v4303
    %4695 = vmatpush1.msra.mxu0 %v4302
    %4696 = vmatprep.subr.mxu0 %v4319
    %4697 = vmatpush1.msra.mxu0 %v4318
    %4698 = vmatprep.subr.mxu0 %v4335
    %4699 = vmatpush1.msra.mxu0 %v4334
    %4700 = vmatprep.subr.mxu0 %v4351
    %4701 = vmatpush1.msra.mxu0 %v4350
    %4702 = vmatprep.subr.mxu0 %v4367
    %4703 = vmatpush1.msra.mxu0 %v4366
    %4704 = vmatprep.subr.mxu0 %v4383
    %4705 = vmatpush1.msra.mxu0 %v4382
    %4706 = vmatprep.subr.mxu0 %v4399
    %4707 = vmatpush1.msra.mxu0 %v4398
    %4708 = vmatprep.subr.mxu0 %v4415
    %4709 = vmatpush1.msra.mxu0 %v4414
    %4710 = vmatprep.subr.mxu0 %v4431
    %4711 = vmatpush1.msra.mxu0 %v4430
    %4712 = vmatprep.subr.mxu0 0.0
    %4713 = vmatpush1.msra.mxu0 0.0
    %4714 = vmatprep.subr.mxu0 0.0
    %4715 = vmatpush1.msra.mxu0 0.0
    %4716 = vmatprep.subr.mxu0 0.0
    %4717 = vmatpush1.msra.mxu0 0.0
    %4718 = vmatprep.subr.mxu0 0.0
    %4719 = vmatpush1.msra.mxu0 0.0
    %4720 = vmatprep.subr.mxu0 0.0
    %4721 = vmatpush1.msra.mxu0 0.0
    %4722 = vmatprep.subr.mxu0 0.0
    %4723 = vmatpush1.msra.mxu0 0.0
    %4724 = vmatprep.subr.mxu0 0.0
    %4725 = vmatpush1.msra.mxu0 0.0
    %4726 = vmatprep.subr.mxu0 0.0
    %4727 = vmatpush1.msra.mxu0 0.0
    %4728 = vmatprep.subr.mxu0 0.0
    %4729 = vmatpush1.msra.mxu0 0.0
    %4730 = vmatprep.subr.mxu0 0.0
    %4731 = vmatpush1.msra.mxu0 0.0
    %4732 = vmatprep.subr.mxu0 0.0
    %4733 = vmatpush1.msra.mxu0 0.0
    %4734 = vmatprep.subr.mxu0 0.0
    %4735 = vmatpush1.msra.mxu0 0.0
    %4736 = vmatprep.subr.mxu0 0.0
    %4737 = vmatpush1.msra.mxu0 0.0
    %4738 = vmatprep.subr.mxu0 0.0
    %4739 = vmatpush1.msra.mxu0 0.0
    %4740 = vmatprep.subr.mxu0 0.0
    %4741 = vmatpush1.msra.mxu0 0.0
    %4742 = vmatprep.subr.mxu0 0.0
    %4743 = vmatpush1.msra.mxu0 0.0
    %4744 = vmatprep.mubr.f32.mxu0 0.0
    %4745 = vmatmul.mubr.f32.gmra.mrb[0].mxu0 %v4536
    %v4746 = vpop.f32.mrb[0].mxu0
    %v4747 = vadd.f32 0.0, %v4746
    %v4748 = vpop.f32.mrb[0].mxu0
    %v4749 = vadd.f32 0.0, %v4748
    %4750 = vdwg.mxu0
    %4751 = vmatprep.subr.mxu0 %v4193
    %4752 = vmatpush1.msra.mxu0 %v4192
    %4753 = vmatprep.subr.mxu0 %v4209
    %4754 = vmatpush1.msra.mxu0 %v4208
    %4755 = vmatprep.subr.mxu0 %v4225
    %4756 = vmatpush1.msra.mxu0 %v4224
    %4757 = vmatprep.subr.mxu0 %v4241
    %4758 = vmatpush1.msra.mxu0 %v4240
    %4759 = vmatprep.subr.mxu0 %v4257
    %4760 = vmatpush1.msra.mxu0 %v4256
    %4761 = vmatprep.subr.mxu0 %v4273
    %4762 = vmatpush1.msra.mxu0 %v4272
    %4763 = vmatprep.subr.mxu0 %v4289
    %4764 = vmatpush1.msra.mxu0 %v4288
    %4765 = vmatprep.subr.mxu0 %v4305
    %4766 = vmatpush1.msra.mxu0 %v4304
    %4767 = vmatprep.subr.mxu0 %v4321
    %4768 = vmatpush1.msra.mxu0 %v4320
    %4769 = vmatprep.subr.mxu0 %v4337
    %4770 = vmatpush1.msra.mxu0 %v4336
    %4771 = vmatprep.subr.mxu0 %v4353
    %4772 = vmatpush1.msra.mxu0 %v4352
    %4773 = vmatprep.subr.mxu0 %v4369
    %4774 = vmatpush1.msra.mxu0 %v4368
    %4775 = vmatprep.subr.mxu0 %v4385
    %4776 = vmatpush1.msra.mxu0 %v4384
    %4777 = vmatprep.subr.mxu0 %v4401
    %4778 = vmatpush1.msra.mxu0 %v4400
    %4779 = vmatprep.subr.mxu0 %v4417
    %4780 = vmatpush1.msra.mxu0 %v4416
    %4781 = vmatprep.subr.mxu0 %v4433
    %4782 = vmatpush1.msra.mxu0 %v4432
    %4783 = vmatprep.subr.mxu0 0.0
    %4784 = vmatpush1.msra.mxu0 0.0
    %4785 = vmatprep.subr.mxu0 0.0
    %4786 = vmatpush1.msra.mxu0 0.0
    %4787 = vmatprep.subr.mxu0 0.0
    %4788 = vmatpush1.msra.mxu0 0.0
    %4789 = vmatprep.subr.mxu0 0.0
    %4790 = vmatpush1.msra.mxu0 0.0
    %4791 = vmatprep.subr.mxu0 0.0
    %4792 = vmatpush1.msra.mxu0 0.0
    %4793 = vmatprep.subr.mxu0 0.0
    %4794 = vmatpush1.msra.mxu0 0.0
    %4795 = vmatprep.subr.mxu0 0.0
    %4796 = vmatpush1.msra.mxu0 0.0
    %4797 = vmatprep.subr.mxu0 0.0
    %4798 = vmatpush1.msra.mxu0 0.0
    %4799 = vmatprep.subr.mxu0 0.0
    %4800 = vmatpush1.msra.mxu0 0.0
    %4801 = vmatprep.subr.mxu0 0.0
    %4802 = vmatpush1.msra.mxu0 0.0
    %4803 = vmatprep.subr.mxu0 0.0
    %4804 = vmatpush1.msra.mxu0 0.0
    %4805 = vmatprep.subr.mxu0 0.0
    %4806 = vmatpush1.msra.mxu0 0.0
    %4807 = vmatprep.subr.mxu0 0.0
    %4808 = vmatpush1.msra.mxu0 0.0
    %4809 = vmatprep.subr.mxu0 0.0
    %4810 = vmatpush1.msra.mxu0 0.0
    %4811 = vmatprep.subr.mxu0 0.0
    %4812 = vmatpush1.msra.mxu0 0.0
    %4813 = vmatprep.subr.mxu0 0.0
    %4814 = vmatpush1.msra.mxu0 0.0
    %4815 = vmatprep.mubr.f32.mxu0 0.0
    %4816 = vmatmul.mubr.f32.gmra.mrb[0].mxu0 %v4536
    %v4817 = vpop.f32.mrb[0].mxu0
    %v4818 = vadd.f32 0.0, %v4817
    %v4819 = vpop.f32.mrb[0].mxu0
    %v4820 = vadd.f32 0.0, %v4819
    %4821 = vdwg.mxu0
    %4822 = vmatprep.subr.mxu0 %v4195
    %4823 = vmatpush1.msra.mxu0 %v4194
    %4824 = vmatprep.subr.mxu0 %v4211
    %4825 = vmatpush1.msra.mxu0 %v4210
    %4826 = vmatprep.subr.mxu0 %v4227
    %4827 = vmatpush1.msra.mxu0 %v4226
    %4828 = vmatprep.subr.mxu0 %v4243
    %4829 = vmatpush1.msra.mxu0 %v4242
    %4830 = vmatprep.subr.mxu0 %v4259
    %4831 = vmatpush1.msra.mxu0 %v4258
    %4832 = vmatprep.subr.mxu0 %v4275
    %4833 = vmatpush1.msra.mxu0 %v4274
    %4834 = vmatprep.subr.mxu0 %v4291
    %4835 = vmatpush1.msra.mxu0 %v4290
    %4836 = vmatprep.subr.mxu0 %v4307
    %4837 = vmatpush1.msra.mxu0 %v4306
    %4838 = vmatprep.subr.mxu0 %v4323
    %4839 = vmatpush1.msra.mxu0 %v4322
    %4840 = vmatprep.subr.mxu0 %v4339
    %4841 = vmatpush1.msra.mxu0 %v4338
    %4842 = vmatprep.subr.mxu0 %v4355
    %4843 = vmatpush1.msra.mxu0 %v4354
    %4844 = vmatprep.subr.mxu0 %v4371
    %4845 = vmatpush1.msra.mxu0 %v4370
    %4846 = vmatprep.subr.mxu0 %v4387
    %4847 = vmatpush1.msra.mxu0 %v4386
    %4848 = vmatprep.subr.mxu0 %v4403
    %4849 = vmatpush1.msra.mxu0 %v4402
    %4850 = vmatprep.subr.mxu0 %v4419
    %4851 = vmatpush1.msra.mxu0 %v4418
    %4852 = vmatprep.subr.mxu0 %v4435
    %4853 = vmatpush1.msra.mxu0 %v4434
    %4854 = vmatprep.subr.mxu0 0.0
    %4855 = vmatpush1.msra.mxu0 0.0
    %4856 = vmatprep.subr.mxu0 0.0
    %4857 = vmatpush1.msra.mxu0 0.0
    %4858 = vmatprep.subr.mxu0 0.0
    %4859 = vmatpush1.msra.mxu0 0.0
    %4860 = vmatprep.subr.mxu0 0.0
    %4861 = vmatpush1.msra.mxu0 0.0
    %4862 = vmatprep.subr.mxu0 0.0
    %4863 = vmatpush1.msra.mxu0 0.0
    %4864 = vmatprep.subr.mxu0 0.0
    %4865 = vmatpush1.msra.mxu0 0.0
    %4866 = vmatprep.subr.mxu0 0.0
    %4867 = vmatpush1.msra.mxu0 0.0
    %4868 = vmatprep.subr.mxu0 0.0
    %4869 = vmatpush1.msra.mxu0 0.0
    %4870 = vmatprep.subr.mxu0 0.0
    %4871 = vmatpush1.msra.mxu0 0.0
    %4872 = vmatprep.subr.mxu0 0.0
    %4873 = vmatpush1.msra.mxu0 0.0
    %4874 = vmatprep.subr.mxu0 0.0
    %4875 = vmatpush1.msra.mxu0 0.0
    %4876 = vmatprep.subr.mxu0 0.0
    %4877 = vmatpush1.msra.mxu0 0.0
    %4878 = vmatprep.subr.mxu0 0.0
    %4879 = vmatpush1.msra.mxu0 0.0
    %4880 = vmatprep.subr.mxu0 0.0
    %4881 = vmatpush1.msra.mxu0 0.0
    %4882 = vmatprep.subr.mxu0 0.0
    %4883 = vmatpush1.msra.mxu0 0.0
    %4884 = vmatprep.subr.mxu0 0.0
    %4885 = vmatpush1.msra.mxu0 0.0
    %4886 = vmatprep.mubr.f32.mxu0 0.0
    %4887 = vmatmul.mubr.f32.gmra.mrb[0].mxu0 %v4536
    %v4888 = vpop.f32.mrb[0].mxu0
    %v4889 = vadd.f32 0.0, %v4888
    %v4890 = vpop.f32.mrb[0].mxu0
    %v4891 = vadd.f32 0.0, %v4890
    %4892 = vdwg.mxu0
    %4893 = vmatprep.subr.mxu0 %v4197
    %4894 = vmatpush1.msra.mxu0 %v4196
    %4895 = vmatprep.subr.mxu0 %v4213
    %4896 = vmatpush1.msra.mxu0 %v4212
    %4897 = vmatprep.subr.mxu0 %v4229
    %4898 = vmatpush1.msra.mxu0 %v4228
    %4899 = vmatprep.subr.mxu0 %v4245
    %4900 = vmatpush1.msra.mxu0 %v4244
    %4901 = vmatprep.subr.mxu0 %v4261
    %4902 = vmatpush1.msra.mxu0 %v4260
    %4903 = vmatprep.subr.mxu0 %v4277
    %4904 = vmatpush1.msra.mxu0 %v4276
    %4905 = vmatprep.subr.mxu0 %v4293
    %4906 = vmatpush1.msra.mxu0 %v4292
    %4907 = vmatprep.subr.mxu0 %v4309
    %4908 = vmatpush1.msra.mxu0 %v4308
    %4909 = vmatprep.subr.mxu0 %v4325
    %4910 = vmatpush1.msra.mxu0 %v4324
    %4911 = vmatprep.subr.mxu0 %v4341
    %4912 = vmatpush1.msra.mxu0 %v4340
    %4913 = vmatprep.subr.mxu0 %v4357
    %4914 = vmatpush1.msra.mxu0 %v4356
    %4915 = vmatprep.subr.mxu0 %v4373
    %4916 = vmatpush1.msra.mxu0 %v4372
    %4917 = vmatprep.subr.mxu0 %v4389
    %4918 = vmatpush1.msra.mxu0 %v4388
    %4919 = vmatprep.subr.mxu0 %v4405
    %4920 = vmatpush1.msra.mxu0 %v4404
    %4921 = vmatprep.subr.mxu0 %v4421
    %4922 = vmatpush1.msra.mxu0 %v4420
    %4923 = vmatprep.subr.mxu0 %v4437
    %4924 = vmatpush1.msra.mxu0 %v4436
    %4925 = vmatprep.subr.mxu0 0.0
    %4926 = vmatpush1.msra.mxu0 0.0
    %4927 = vmatprep.subr.mxu0 0.0
    %4928 = vmatpush1.msra.mxu0 0.0
    %4929 = vmatprep.subr.mxu0 0.0
    %4930 = vmatpush1.msra.mxu0 0.0
    %4931 = vmatprep.subr.mxu0 0.0
    %4932 = vmatpush1.msra.mxu0 0.0
    %4933 = vmatprep.subr.mxu0 0.0
    %4934 = vmatpush1.msra.mxu0 0.0
    %4935 = vmatprep.subr.mxu0 0.0
    %4936 = vmatpush1.msra.mxu0 0.0
    %4937 = vmatprep.subr.mxu0 0.0
    %4938 = vmatpush1.msra.mxu0 0.0
    %4939 = vmatprep.subr.mxu0 0.0
    %4940 = vmatpush1.msra.mxu0 0.0
    %4941 = vmatprep.subr.mxu0 0.0
    %4942 = vmatpush1.msra.mxu0 0.0
    %4943 = vmatprep.subr.mxu0 0.0
    %4944 = vmatpush1.msra.mxu0 0.0
    %4945 = vmatprep.subr.mxu0 0.0
    %4946 = vmatpush1.msra.mxu0 0.0
    %4947 = vmatprep.subr.mxu0 0.0
    %4948 = vmatpush1.msra.mxu0 0.0
    %4949 = vmatprep.subr.mxu0 0.0
    %4950 = vmatpush1.msra.mxu0 0.0
    %4951 = vmatprep.subr.mxu0 0.0
    %4952 = vmatpush1.msra.mxu0 0.0
    %4953 = vmatprep.subr.mxu0 0.0
    %4954 = vmatpush1.msra.mxu0 0.0
    %4955 = vmatprep.subr.mxu0 0.0
    %4956 = vmatpush1.msra.mxu0 0.0
    %4957 = vmatprep.mubr.f32.mxu0 0.0
    %4958 = vmatmul.mubr.f32.gmra.mrb[0].mxu0 %v4536
    %v4959 = vpop.f32.mrb[0].mxu0
    %v4960 = vadd.f32 0.0, %v4959
    %v4961 = vpop.f32.mrb[0].mxu0
    %v4962 = vadd.f32 0.0, %v4961
    %4963 = vdwg.mxu0
    %4964 = vmatprep.subr.mxu0 %v4199
    %4965 = vmatpush1.msra.mxu0 %v4198
    %4966 = vmatprep.subr.mxu0 %v4215
    %4967 = vmatpush1.msra.mxu0 %v4214
    %4968 = vmatprep.subr.mxu0 %v4231
    %4969 = vmatpush1.msra.mxu0 %v4230
    %4970 = vmatprep.subr.mxu0 %v4247
    %4971 = vmatpush1.msra.mxu0 %v4246
    %4972 = vmatprep.subr.mxu0 %v4263
    %4973 = vmatpush1.msra.mxu0 %v4262
    %4974 = vmatprep.subr.mxu0 %v4279
    %4975 = vmatpush1.msra.mxu0 %v4278
    %4976 = vmatprep.subr.mxu0 %v4295
    %4977 = vmatpush1.msra.mxu0 %v4294
    %4978 = vmatprep.subr.mxu0 %v4311
    %4979 = vmatpush1.msra.mxu0 %v4310
    %4980 = vmatprep.subr.mxu0 %v4327
    %4981 = vmatpush1.msra.mxu0 %v4326
    %4982 = vmatprep.subr.mxu0 %v4343
    %4983 = vmatpush1.msra.mxu0 %v4342
    %4984 = vmatprep.subr.mxu0 %v4359
    %4985 = vmatpush1.msra.mxu0 %v4358
    %4986 = vmatprep.subr.mxu0 %v4375
    %4987 = vmatpush1.msra.mxu0 %v4374
    %4988 = vmatprep.subr.mxu0 %v4391
    %4989 = vmatpush1.msra.mxu0 %v4390
    %4990 = vmatprep.subr.mxu0 %v4407
    %4991 = vmatpush1.msra.mxu0 %v4406
    %4992 = vmatprep.subr.mxu0 %v4423
    %4993 = vmatpush1.msra.mxu0 %v4422
    %4994 = vmatprep.subr.mxu0 %v4439
    %4995 = vmatpush1.msra.mxu0 %v4438
    %4996 = vmatprep.subr.mxu0 0.0
    %4997 = vmatpush1.msra.mxu0 0.0
    %4998 = vmatprep.subr.mxu0 0.0
    %4999 = vmatpush1.msra.mxu0 0.0
    %5000 = vmatprep.subr.mxu0 0.0
    %5001 = vmatpush1.msra.mxu0 0.0
    %5002 = vmatprep.subr.mxu0 0.0
    %5003 = vmatpush1.msra.mxu0 0.0
    %5004 = vmatprep.subr.mxu0 0.0
    %5005 = vmatpush1.msra.mxu0 0.0
    %5006 = vmatprep.subr.mxu0 0.0
    %5007 = vmatpush1.msra.mxu0 0.0
    %5008 = vmatprep.subr.mxu0 0.0
    %5009 = vmatpush1.msra.mxu0 0.0
    %5010 = vmatprep.subr.mxu0 0.0
    %5011 = vmatpush1.msra.mxu0 0.0
    %5012 = vmatprep.subr.mxu0 0.0
    %5013 = vmatpush1.msra.mxu0 0.0
    %5014 = vmatprep.subr.mxu0 0.0
    %5015 = vmatpush1.msra.mxu0 0.0
    %5016 = vmatprep.subr.mxu0 0.0
    %5017 = vmatpush1.msra.mxu0 0.0
    %5018 = vmatprep.subr.mxu0 0.0
    %5019 = vmatpush1.msra.mxu0 0.0
    %5020 = vmatprep.subr.mxu0 0.0
    %5021 = vmatpush1.msra.mxu0 0.0
    %5022 = vmatprep.subr.mxu0 0.0
    %5023 = vmatpush1.msra.mxu0 0.0
    %5024 = vmatprep.subr.mxu0 0.0
    %5025 = vmatpush1.msra.mxu0 0.0
    %5026 = vmatprep.subr.mxu0 0.0
    %5027 = vmatpush1.msra.mxu0 0.0
    %5028 = vmatprep.mubr.f32.mxu0 0.0
    %5029 = vmatmul.mubr.f32.gmra.mrb[0].mxu0 %v4536
    %v5030 = vpop.f32.mrb[0].mxu0
    %v5031 = vadd.f32 0.0, %v5030
    %v5032 = vpop.f32.mrb[0].mxu0
    %v5033 = vadd.f32 0.0, %v5032
    %5034 = vdwg.mxu0
    %5035 = vmatprep.subr.mxu0 %v4201
    %5036 = vmatpush1.msra.mxu0 %v4200
    %5037 = vmatprep.subr.mxu0 %v4217
    %5038 = vmatpush1.msra.mxu0 %v4216
    %5039 = vmatprep.subr.mxu0 %v4233
    %5040 = vmatpush1.msra.mxu0 %v4232
    %5041 = vmatprep.subr.mxu0 %v4249
    %5042 = vmatpush1.msra.mxu0 %v4248
    %5043 = vmatprep.subr.mxu0 %v4265
    %5044 = vmatpush1.msra.mxu0 %v4264
    %5045 = vmatprep.subr.mxu0 %v4281
    %5046 = vmatpush1.msra.mxu0 %v4280
    %5047 = vmatprep.subr.mxu0 %v4297
    %5048 = vmatpush1.msra.mxu0 %v4296
    %5049 = vmatprep.subr.mxu0 %v4313
    %5050 = vmatpush1.msra.mxu0 %v4312
    %5051 = vmatprep.subr.mxu0 %v4329
    %5052 = vmatpush1.msra.mxu0 %v4328
    %5053 = vmatprep.subr.mxu0 %v4345
    %5054 = vmatpush1.msra.mxu0 %v4344
    %5055 = vmatprep.subr.mxu0 %v4361
    %5056 = vmatpush1.msra.mxu0 %v4360
    %5057 = vmatprep.subr.mxu0 %v4377
    %5058 = vmatpush1.msra.mxu0 %v4376
    %5059 = vmatprep.subr.mxu0 %v4393
    %5060 = vmatpush1.msra.mxu0 %v4392
    %5061 = vmatprep.subr.mxu0 %v4409
    %5062 = vmatpush1.msra.mxu0 %v4408
    %5063 = vmatprep.subr.mxu0 %v4425
    %5064 = vmatpush1.msra.mxu0 %v4424
    %5065 = vmatprep.subr.mxu0 %v4441
    %5066 = vmatpush1.msra.mxu0 %v4440
    %5067 = vmatprep.subr.mxu0 0.0
    %5068 = vmatpush1.msra.mxu0 0.0
    %5069 = vmatprep.subr.mxu0 0.0
    %5070 = vmatpush1.msra.mxu0 0.0
    %5071 = vmatprep.subr.mxu0 0.0
    %5072 = vmatpush1.msra.mxu0 0.0
    %5073 = vmatprep.subr.mxu0 0.0
    %5074 = vmatpush1.msra.mxu0 0.0
    %5075 = vmatprep.subr.mxu0 0.0
    %5076 = vmatpush1.msra.mxu0 0.0
    %5077 = vmatprep.subr.mxu0 0.0
    %5078 = vmatpush1.msra.mxu0 0.0
    %5079 = vmatprep.subr.mxu0 0.0
    %5080 = vmatpush1.msra.mxu0 0.0
    %5081 = vmatprep.subr.mxu0 0.0
    %5082 = vmatpush1.msra.mxu0 0.0
    %5083 = vmatprep.subr.mxu0 0.0
    %5084 = vmatpush1.msra.mxu0 0.0
    %5085 = vmatprep.subr.mxu0 0.0
    %5086 = vmatpush1.msra.mxu0 0.0
    %5087 = vmatprep.subr.mxu0 0.0
    %5088 = vmatpush1.msra.mxu0 0.0
    %5089 = vmatprep.subr.mxu0 0.0
    %5090 = vmatpush1.msra.mxu0 0.0
    %5091 = vmatprep.subr.mxu0 0.0
    %5092 = vmatpush1.msra.mxu0 0.0
    %5093 = vmatprep.subr.mxu0 0.0
    %5094 = vmatpush1.msra.mxu0 0.0
    %5095 = vmatprep.subr.mxu0 0.0
    %5096 = vmatpush1.msra.mxu0 0.0
    %5097 = vmatprep.subr.mxu0 0.0
    %5098 = vmatpush1.msra.mxu0 0.0
    %5099 = vmatprep.mubr.f32.mxu0 0.0
    %5100 = vmatmul.mubr.f32.gmra.mrb[0].mxu0 %v4536
    %v5101 = vpop.f32.mrb[0].mxu0
    %v5102 = vadd.f32 0.0, %v5101
    %v5103 = vpop.f32.mrb[0].mxu0
    %v5104 = vadd.f32 0.0, %v5103
    %5105 = vdwg.mxu0
    %v5122 = vcombine.low %v4605, %v4607
    %v5123 = vcombine.low %v4676, %v4678
    %v5124 = vcombine.low %v4747, %v4749
    %v5125 = vcombine.low %v4818, %v4820
    %v5127 = vunpack.c.l.s4 1966171168
    %v5128 = vunpack.c.0.s8 %v5127
    %v5129 = vlaneseq
    %v5130 = vshrl.u32 %v5129, 7
    %v5131 = vsub.s32 %v5128, %v5130
    %v5132 = vrot.slane %v5122, %v5131
    %v5134 = vunpack.c.l.s4 1966171168
    %v5135 = vunpack.c.0.s8 %v5134
    %v5136 = vlaneseq
    %v5137 = vshrl.u32 %v5136, 7
    %v5138 = vsub.s32 %v5135, %v5137
    %v5139 = vrot.slane %v5123, %v5138
    %v5141 = vunpack.c.l.s4 1966171168
    %v5142 = vunpack.c.0.s8 %v5141
    %v5143 = vlaneseq
    %v5144 = vshrl.u32 %v5143, 7
    %v5145 = vsub.s32 %v5142, %v5144
    %v5146 = vrot.slane %v5124, %v5145
    %v5148 = vunpack.c.l.s4 1966171168
    %v5149 = vunpack.c.0.s8 %v5148
    %v5150 = vlaneseq
    %v5151 = vshrl.u32 %v5150, 7
    %v5152 = vsub.s32 %v5149, %v5151
    %v5153 = vrot.slane %v5125, %v5152
    %v5154 = vcombine.low %v5132, %v5139
    %v5155 = vcombine.low %v5146, %v5153
    %v5157 = vunpack.c.l.s4 1966171168
    %v5158 = vunpack.c.0.s8 %v5157
    %v5159 = vlaneseq
    %v5160 = vshrl.u32 %v5159, 7
    %v5161 = vsub.s32 %v5158, %v5160
    %v5162 = vrot.slane %v5154, %v5161
    %v5164 = vunpack.c.l.s4 1966171168
    %v5165 = vunpack.c.0.s8 %v5164
    %v5166 = vlaneseq
    %v5167 = vshrl.u32 %v5166, 7
    %v5168 = vsub.s32 %v5165, %v5167
    %v5169 = vrot.slane %v5155, %v5168
    %v5170 = vcombine.low %v5162, %v5169
    %v5171 = vcombine.low %v4889, %v4891
    %v5172 = vcombine.low %v4960, %v4962
    %v5173 = vcombine.low %v5031, %v5033
    %v5174 = vcombine.low %v5102, %v5104
    %v5176 = vunpack.c.l.s4 1966171168
    %v5177 = vunpack.c.0.s8 %v5176
    %v5178 = vlaneseq
    %v5179 = vshrl.u32 %v5178, 7
    %v5180 = vsub.s32 %v5177, %v5179
    %v5181 = vrot.slane %v5171, %v5180
    %v5183 = vunpack.c.l.s4 1966171168
    %v5184 = vunpack.c.0.s8 %v5183
    %v5185 = vlaneseq
    %v5186 = vshrl.u32 %v5185, 7
    %v5187 = vsub.s32 %v5184, %v5186
    %v5188 = vrot.slane %v5172, %v5187
    %v5190 = vunpack.c.l.s4 1966171168
    %v5191 = vunpack.c.0.s8 %v5190
    %v5192 = vlaneseq
    %v5193 = vshrl.u32 %v5192, 7
    %v5194 = vsub.s32 %v5191, %v5193
    %v5195 = vrot.slane %v5173, %v5194
    %v5197 = vunpack.c.l.s4 1966171168
    %v5198 = vunpack.c.0.s8 %v5197
    %v5199 = vlaneseq
    %v5200 = vshrl.u32 %v5199, 7
    %v5201 = vsub.s32 %v5198, %v5200
    %v5202 = vrot.slane %v5174, %v5201
    %v5203 = vcombine.low %v5181, %v5188
    %v5204 = vcombine.low %v5195, %v5202
    %v5206 = vunpack.c.l.s4 1966171168
    %v5207 = vunpack.c.0.s8 %v5206
    %v5208 = vlaneseq
    %v5209 = vshrl.u32 %v5208, 7
    %v5210 = vsub.s32 %v5207, %v5209
    %v5211 = vrot.slane %v5203, %v5210
    %v5213 = vunpack.c.l.s4 1966171168
    %v5214 = vunpack.c.0.s8 %v5213
    %v5215 = vlaneseq
    %v5216 = vshrl.u32 %v5215, 7
    %v5217 = vsub.s32 %v5214, %v5216
    %v5218 = vrot.slane %v5204, %v5217
    %v5219 = vcombine.low %v5211, %v5218
    %v5222 = vsub.f32 0.0, %v5170
    %v5223 = vsub.f32 0.0, %v5219
    %v5224 = vmul.f32 %v5222, 1.442695
    %v5225 = vpow.pop %v5224
    %v5226 = vmul.f32 %v5223, 1.442695
    %v5227 = vpow.pop %v5226
    %v5228 = vadd.f32 %v5225, 1.0
    %v5229 = vadd.f32 %v5227, 1.0
    %v5230 = vrcp.pop %v5228
    %v5231 = vmul.f32 1.0, %v5230
    %v5232 = vrcp.pop %v5229
    %v5233 = vmul.f32 1.0, %v5232
    %v5234 = vmul.f32 %v5231, %v1962
    %v5235 = vmul.f32 %v5233, %v1967
    %v5236 = vld [vmem:[%s5] sm:$0xff]
    %v5237 = vld [vmem:[%s5 + $0x8] sm:$0xff]
    %v5238 = vld [vmem:[%s5 + $0x10] sm:$0xff]
    %v5239 = vld [vmem:[%s5 + $0x18] sm:$0xff]
    %v5240 = vld [vmem:[%s5 + $0x20] sm:$0xff]
    %v5241 = vld [vmem:[%s5 + $0x28] sm:$0xff]
    %v5242 = vld [vmem:[%s5 + $0x30] sm:$0xff]
    %v5243 = vld [vmem:[%s5 + $0x38] sm:$0xff]
    %v5244 = vld [vmem:[%s5 + $0x40] sm:$0xff]
    %v5245 = vld [vmem:[%s5 + $0x48] sm:$0xff]
    %v5246 = vld [vmem:[%s5 + $0x50] sm:$0xff]
    %v5247 = vld [vmem:[%s5 + $0x58] sm:$0xff]
    %v5248 = vld [vmem:[%s5 + $0x60] sm:$0xff]
    %v5249 = vld [vmem:[%s5 + $0x68] sm:$0xff]
    %v5250 = vld [vmem:[%s5 + $0x70] sm:$0xff]
    %v5251 = vld [vmem:[%s5 + $0x78] sm:$0xff]
    %v5252 = vld [vmem:[%s5 + $0x80] sm:$0xff]
    %v5253 = vld [vmem:[%s5 + $0x88] sm:$0xff]
    %v5254 = vld [vmem:[%s5 + $0x90] sm:$0xff]
    %v5255 = vld [vmem:[%s5 + $0x98] sm:$0xff]
    %v5256 = vld [vmem:[%s5 + $0xa0] sm:$0xff]
    %v5257 = vld [vmem:[%s5 + $0xa8] sm:$0xff]
    %v5258 = vld [vmem:[%s5 + $0xb0] sm:$0xff]
    %v5259 = vld [vmem:[%s5 + $0xb8] sm:$0xff]
    %v5260 = vld [vmem:[%s5 + $0xc0] sm:$0xff]
    %v5261 = vld [vmem:[%s5 + $0xc8] sm:$0xff]
    %v5262 = vld [vmem:[%s5 + $0xd0] sm:$0xff]
    %v5263 = vld [vmem:[%s5 + $0xd8] sm:$0xff]
    %v5264 = vld [vmem:[%s5 + $0xe0] sm:$0xff]
    %v5265 = vld [vmem:[%s5 + $0xe8] sm:$0xff]
    %v5266 = vld [vmem:[%s5 + $0xf0] sm:$0xff]
    %v5267 = vld [vmem:[%s5 + $0xf8] sm:$0xff]
    %v5269 = vsel %vm2003, %v4183, 0
    %5271 = vmatprep.subr.mxu0 %v5237
    %5272 = vmatpush1.msra.mxu0 %v5236
    %5273 = vmatprep.subr.mxu0 %v5253
    %5274 = vmatpush1.msra.mxu0 %v5252
    %5275 = vmatprep.subr.mxu0 0.0
    %5276 = vmatpush1.msra.mxu0 0.0
    %5277 = vmatprep.subr.mxu0 0.0
    %5278 = vmatpush1.msra.mxu0 0.0
    %5279 = vmatprep.subr.mxu0 0.0
    %5280 = vmatpush1.msra.mxu0 0.0
    %5281 = vmatprep.subr.mxu0 0.0
    %5282 = vmatpush1.msra.mxu0 0.0
    %5283 = vmatprep.subr.mxu0 0.0
    %5284 = vmatpush1.msra.mxu0 0.0
    %5285 = vmatprep.subr.mxu0 0.0
    %5286 = vmatpush1.msra.mxu0 0.0
    %5287 = vmatprep.subr.mxu0 0.0
    %5288 = vmatpush1.msra.mxu0 0.0
    %5289 = vmatprep.subr.mxu0 0.0
    %5290 = vmatpush1.msra.mxu0 0.0
    %5291 = vmatprep.subr.mxu0 0.0
    %5292 = vmatpush1.msra.mxu0 0.0
    %5293 = vmatprep.subr.mxu0 0.0
    %5294 = vmatpush1.msra.mxu0 0.0
    %5295 = vmatprep.subr.mxu0 0.0
    %5296 = vmatpush1.msra.mxu0 0.0
    %5297 = vmatprep.subr.mxu0 0.0
    %5298 = vmatpush1.msra.mxu0 0.0
    %5299 = vmatprep.subr.mxu0 0.0
    %5300 = vmatpush1.msra.mxu0 0.0
    %5301 = vmatprep.subr.mxu0 0.0
    %5302 = vmatpush1.msra.mxu0 0.0
    %5303 = vmatprep.subr.mxu0 0.0
    %5304 = vmatpush1.msra.mxu0 0.0
    %5305 = vmatprep.subr.mxu0 0.0
    %5306 = vmatpush1.msra.mxu0 0.0
    %5307 = vmatprep.subr.mxu0 0.0
    %5308 = vmatpush1.msra.mxu0 0.0
    %5309 = vmatprep.subr.mxu0 0.0
    %5310 = vmatpush1.msra.mxu0 0.0
    %5311 = vmatprep.subr.mxu0 0.0
    %5312 = vmatpush1.msra.mxu0 0.0
    %5313 = vmatprep.subr.mxu0 0.0
    %5314 = vmatpush1.msra.mxu0 0.0
    %5315 = vmatprep.subr.mxu0 0.0
    %5316 = vmatpush1.msra.mxu0 0.0
    %5317 = vmatprep.subr.mxu0 0.0
    %5318 = vmatpush1.msra.mxu0 0.0
    %5319 = vmatprep.subr.mxu0 0.0
    %5320 = vmatpush1.msra.mxu0 0.0
    %5321 = vmatprep.subr.mxu0 0.0
    %5322 = vmatpush1.msra.mxu0 0.0
    %5323 = vmatprep.subr.mxu0 0.0
    %5324 = vmatpush1.msra.mxu0 0.0
    %5325 = vmatprep.subr.mxu0 0.0
    %5326 = vmatpush1.msra.mxu0 0.0
    %5327 = vmatprep.subr.mxu0 0.0
    %5328 = vmatpush1.msra.mxu0 0.0
    %5329 = vmatprep.subr.mxu0 0.0
    %5330 = vmatpush1.msra.mxu0 0.0
    %5331 = vmatprep.subr.mxu0 0.0
    %5332 = vmatpush1.msra.mxu0 0.0
    %5333 = vmatprep.subr.mxu0 0.0
    %5334 = vmatpush1.msra.mxu0 0.0
    %5335 = vmatprep.mubr.f32.mxu0 0.0
    %5336 = vmatmul.mubr.f32.gmra.mrb[0].mxu0 %v5269
    %v5337 = vpop.f32.mrb[0].mxu0
    %v5338 = vadd.f32 0.0, %v5337
    %v5339 = vpop.f32.mrb[0].mxu0
    %v5340 = vadd.f32 0.0, %v5339
    %5341 = vdwg.mxu0
    %5342 = vmatprep.subr.mxu0 %v5239
    %5343 = vmatpush1.msra.mxu0 %v5238
    %5344 = vmatprep.subr.mxu0 %v5255
    %5345 = vmatpush1.msra.mxu0 %v5254
    %5346 = vmatprep.subr.mxu0 0.0
    %5347 = vmatpush1.msra.mxu0 0.0
    %5348 = vmatprep.subr.mxu0 0.0
    %5349 = vmatpush1.msra.mxu0 0.0
    %5350 = vmatprep.subr.mxu0 0.0
    %5351 = vmatpush1.msra.mxu0 0.0
    %5352 = vmatprep.subr.mxu0 0.0
    %5353 = vmatpush1.msra.mxu0 0.0
    %5354 = vmatprep.subr.mxu0 0.0
    %5355 = vmatpush1.msra.mxu0 0.0
    %5356 = vmatprep.subr.mxu0 0.0
    %5357 = vmatpush1.msra.mxu0 0.0
    %5358 = vmatprep.subr.mxu0 0.0
    %5359 = vmatpush1.msra.mxu0 0.0
    %5360 = vmatprep.subr.mxu0 0.0
    %5361 = vmatpush1.msra.mxu0 0.0
    %5362 = vmatprep.subr.mxu0 0.0
    %5363 = vmatpush1.msra.mxu0 0.0
    %5364 = vmatprep.subr.mxu0 0.0
    %5365 = vmatpush1.msra.mxu0 0.0
    %5366 = vmatprep.subr.mxu0 0.0
    %5367 = vmatpush1.msra.mxu0 0.0
    %5368 = vmatprep.subr.mxu0 0.0
    %5369 = vmatpush1.msra.mxu0 0.0
    %5370 = vmatprep.subr.mxu0 0.0
    %5371 = vmatpush1.msra.mxu0 0.0
    %5372 = vmatprep.subr.mxu0 0.0
    %5373 = vmatpush1.msra.mxu0 0.0
    %5374 = vmatprep.subr.mxu0 0.0
    %5375 = vmatpush1.msra.mxu0 0.0
    %5376 = vmatprep.subr.mxu0 0.0
    %5377 = vmatpush1.msra.mxu0 0.0
    %5378 = vmatprep.subr.mxu0 0.0
    %5379 = vmatpush1.msra.mxu0 0.0
    %5380 = vmatprep.subr.mxu0 0.0
    %5381 = vmatpush1.msra.mxu0 0.0
    %5382 = vmatprep.subr.mxu0 0.0
    %5383 = vmatpush1.msra.mxu0 0.0
    %5384 = vmatprep.subr.mxu0 0.0
    %5385 = vmatpush1.msra.mxu0 0.0
    %5386 = vmatprep.subr.mxu0 0.0
    %5387 = vmatpush1.msra.mxu0 0.0
    %5388 = vmatprep.subr.mxu0 0.0
    %5389 = vmatpush1.msra.mxu0 0.0
    %5390 = vmatprep.subr.mxu0 0.0
    %5391 = vmatpush1.msra.mxu0 0.0
    %5392 = vmatprep.subr.mxu0 0.0
    %5393 = vmatpush1.msra.mxu0 0.0
    %5394 = vmatprep.subr.mxu0 0.0
    %5395 = vmatpush1.msra.mxu0 0.0
    %5396 = vmatprep.subr.mxu0 0.0
    %5397 = vmatpush1.msra.mxu0 0.0
    %5398 = vmatprep.subr.mxu0 0.0
    %5399 = vmatpush1.msra.mxu0 0.0
    %5400 = vmatprep.subr.mxu0 0.0
    %5401 = vmatpush1.msra.mxu0 0.0
    %5402 = vmatprep.subr.mxu0 0.0
    %5403 = vmatpush1.msra.mxu0 0.0
    %5404 = vmatprep.subr.mxu0 0.0
    %5405 = vmatpush1.msra.mxu0 0.0
    %5406 = vmatprep.mubr.f32.mxu0 0.0
    %5407 = vmatmul.mubr.f32.gmra.mrb[0].mxu0 %v5269
    %v5408 = vpop.f32.mrb[0].mxu0
    %v5409 = vadd.f32 0.0, %v5408
    %v5410 = vpop.f32.mrb[0].mxu0
    %v5411 = vadd.f32 0.0, %v5410
    %5412 = vdwg.mxu0
    %5413 = vmatprep.subr.mxu0 %v5241
    %5414 = vmatpush1.msra.mxu0 %v5240
    %5415 = vmatprep.subr.mxu0 %v5257
    %5416 = vmatpush1.msra.mxu0 %v5256
    %5417 = vmatprep.subr.mxu0 0.0
    %5418 = vmatpush1.msra.mxu0 0.0
    %5419 = vmatprep.subr.mxu0 0.0
    %5420 = vmatpush1.msra.mxu0 0.0
    %5421 = vmatprep.subr.mxu0 0.0
    %5422 = vmatpush1.msra.mxu0 0.0
    %5423 = vmatprep.subr.mxu0 0.0
    %5424 = vmatpush1.msra.mxu0 0.0
    %5425 = vmatprep.subr.mxu0 0.0
    %5426 = vmatpush1.msra.mxu0 0.0
    %5427 = vmatprep.subr.mxu0 0.0
    %5428 = vmatpush1.msra.mxu0 0.0
    %5429 = vmatprep.subr.mxu0 0.0
    %5430 = vmatpush1.msra.mxu0 0.0
    %5431 = vmatprep.subr.mxu0 0.0
    %5432 = vmatpush1.msra.mxu0 0.0
    %5433 = vmatprep.subr.mxu0 0.0
    %5434 = vmatpush1.msra.mxu0 0.0
    %5435 = vmatprep.subr.mxu0 0.0
    %5436 = vmatpush1.msra.mxu0 0.0
    %5437 = vmatprep.subr.mxu0 0.0
    %5438 = vmatpush1.msra.mxu0 0.0
    %5439 = vmatprep.subr.mxu0 0.0
    %5440 = vmatpush1.msra.mxu0 0.0
    %5441 = vmatprep.subr.mxu0 0.0
    %5442 = vmatpush1.msra.mxu0 0.0
    %5443 = vmatprep.subr.mxu0 0.0
    %5444 = vmatpush1.msra.mxu0 0.0
    %5445 = vmatprep.subr.mxu0 0.0
    %5446 = vmatpush1.msra.mxu0 0.0
    %5447 = vmatprep.subr.mxu0 0.0
    %5448 = vmatpush1.msra.mxu0 0.0
    %5449 = vmatprep.subr.mxu0 0.0
    %5450 = vmatpush1.msra.mxu0 0.0
    %5451 = vmatprep.subr.mxu0 0.0
    %5452 = vmatpush1.msra.mxu0 0.0
    %5453 = vmatprep.subr.mxu0 0.0
    %5454 = vmatpush1.msra.mxu0 0.0
    %5455 = vmatprep.subr.mxu0 0.0
    %5456 = vmatpush1.msra.mxu0 0.0
    %5457 = vmatprep.subr.mxu0 0.0
    %5458 = vmatpush1.msra.mxu0 0.0
    %5459 = vmatprep.subr.mxu0 0.0
    %5460 = vmatpush1.msra.mxu0 0.0
    %5461 = vmatprep.subr.mxu0 0.0
    %5462 = vmatpush1.msra.mxu0 0.0
    %5463 = vmatprep.subr.mxu0 0.0
    %5464 = vmatpush1.msra.mxu0 0.0
    %5465 = vmatprep.subr.mxu0 0.0
    %5466 = vmatpush1.msra.mxu0 0.0
    %5467 = vmatprep.subr.mxu0 0.0
    %5468 = vmatpush1.msra.mxu0 0.0
    %5469 = vmatprep.subr.mxu0 0.0
    %5470 = vmatpush1.msra.mxu0 0.0
    %5471 = vmatprep.subr.mxu0 0.0
    %5472 = vmatpush1.msra.mxu0 0.0
    %5473 = vmatprep.subr.mxu0 0.0
    %5474 = vmatpush1.msra.mxu0 0.0
    %5475 = vmatprep.subr.mxu0 0.0
    %5476 = vmatpush1.msra.mxu0 0.0
    %5477 = vmatprep.mubr.f32.mxu0 0.0
    %5478 = vmatmul.mubr.f32.gmra.mrb[0].mxu0 %v5269
    %v5479 = vpop.f32.mrb[0].mxu0
    %v5480 = vadd.f32 0.0, %v5479
    %v5481 = vpop.f32.mrb[0].mxu0
    %v5482 = vadd.f32 0.0, %v5481
    %5483 = vdwg.mxu0
    %5484 = vmatprep.subr.mxu0 %v5243
    %5485 = vmatpush1.msra.mxu0 %v5242
    %5486 = vmatprep.subr.mxu0 %v5259
    %5487 = vmatpush1.msra.mxu0 %v5258
    %5488 = vmatprep.subr.mxu0 0.0
    %5489 = vmatpush1.msra.mxu0 0.0
    %5490 = vmatprep.subr.mxu0 0.0
    %5491 = vmatpush1.msra.mxu0 0.0
    %5492 = vmatprep.subr.mxu0 0.0
    %5493 = vmatpush1.msra.mxu0 0.0
    %5494 = vmatprep.subr.mxu0 0.0
    %5495 = vmatpush1.msra.mxu0 0.0
    %5496 = vmatprep.subr.mxu0 0.0
    %5497 = vmatpush1.msra.mxu0 0.0
    %5498 = vmatprep.subr.mxu0 0.0
    %5499 = vmatpush1.msra.mxu0 0.0
    %5500 = vmatprep.subr.mxu0 0.0
    %5501 = vmatpush1.msra.mxu0 0.0
    %5502 = vmatprep.subr.mxu0 0.0
    %5503 = vmatpush1.msra.mxu0 0.0
    %5504 = vmatprep.subr.mxu0 0.0
    %5505 = vmatpush1.msra.mxu0 0.0
    %5506 = vmatprep.subr.mxu0 0.0
    %5507 = vmatpush1.msra.mxu0 0.0
    %5508 = vmatprep.subr.mxu0 0.0
    %5509 = vmatpush1.msra.mxu0 0.0
    %5510 = vmatprep.subr.mxu0 0.0
    %5511 = vmatpush1.msra.mxu0 0.0
    %5512 = vmatprep.subr.mxu0 0.0
    %5513 = vmatpush1.msra.mxu0 0.0
    %5514 = vmatprep.subr.mxu0 0.0
    %5515 = vmatpush1.msra.mxu0 0.0
    %5516 = vmatprep.subr.mxu0 0.0
    %5517 = vmatpush1.msra.mxu0 0.0
    %5518 = vmatprep.subr.mxu0 0.0
    %5519 = vmatpush1.msra.mxu0 0.0
    %5520 = vmatprep.subr.mxu0 0.0
    %5521 = vmatpush1.msra.mxu0 0.0
    %5522 = vmatprep.subr.mxu0 0.0
    %5523 = vmatpush1.msra.mxu0 0.0
    %5524 = vmatprep.subr.mxu0 0.0
    %5525 = vmatpush1.msra.mxu0 0.0
    %5526 = vmatprep.subr.mxu0 0.0
    %5527 = vmatpush1.msra.mxu0 0.0
    %5528 = vmatprep.subr.mxu0 0.0
    %5529 = vmatpush1.msra.mxu0 0.0
    %5530 = vmatprep.subr.mxu0 0.0
    %5531 = vmatpush1.msra.mxu0 0.0
    %5532 = vmatprep.subr.mxu0 0.0
    %5533 = vmatpush1.msra.mxu0 0.0
    %5534 = vmatprep.subr.mxu0 0.0
    %5535 = vmatpush1.msra.mxu0 0.0
    %5536 = vmatprep.subr.mxu0 0.0
    %5537 = vmatpush1.msra.mxu0 0.0
    %5538 = vmatprep.subr.mxu0 0.0
    %5539 = vmatpush1.msra.mxu0 0.0
    %5540 = vmatprep.subr.mxu0 0.0
    %5541 = vmatpush1.msra.mxu0 0.0
    %5542 = vmatprep.subr.mxu0 0.0
    %5543 = vmatpush1.msra.mxu0 0.0
    %5544 = vmatprep.subr.mxu0 0.0
    %5545 = vmatpush1.msra.mxu0 0.0
    %5546 = vmatprep.subr.mxu0 0.0
    %5547 = vmatpush1.msra.mxu0 0.0
    %5548 = vmatprep.mubr.f32.mxu0 0.0
    %5549 = vmatmul.mubr.f32.gmra.mrb[0].mxu0 %v5269
    %v5550 = vpop.f32.mrb[0].mxu0
    %v5551 = vadd.f32 0.0, %v5550
    %v5552 = vpop.f32.mrb[0].mxu0
    %v5553 = vadd.f32 0.0, %v5552
    %5554 = vdwg.mxu0
    %5555 = vmatprep.subr.mxu0 %v5245
    %5556 = vmatpush1.msra.mxu0 %v5244
    %5557 = vmatprep.subr.mxu0 %v5261
    %5558 = vmatpush1.msra.mxu0 %v5260
    %5559 = vmatprep.subr.mxu0 0.0
    %5560 = vmatpush1.msra.mxu0 0.0
    %5561 = vmatprep.subr.mxu0 0.0
    %5562 = vmatpush1.msra.mxu0 0.0
    %5563 = vmatprep.subr.mxu0 0.0
    %5564 = vmatpush1.msra.mxu0 0.0
    %5565 = vmatprep.subr.mxu0 0.0
    %5566 = vmatpush1.msra.mxu0 0.0
    %5567 = vmatprep.subr.mxu0 0.0
    %5568 = vmatpush1.msra.mxu0 0.0
    %5569 = vmatprep.subr.mxu0 0.0
    %5570 = vmatpush1.msra.mxu0 0.0
    %5571 = vmatprep.subr.mxu0 0.0
    %5572 = vmatpush1.msra.mxu0 0.0
    %5573 = vmatprep.subr.mxu0 0.0
    %5574 = vmatpush1.msra.mxu0 0.0
    %5575 = vmatprep.subr.mxu0 0.0
    %5576 = vmatpush1.msra.mxu0 0.0
    %5577 = vmatprep.subr.mxu0 0.0
    %5578 = vmatpush1.msra.mxu0 0.0
    %5579 = vmatprep.subr.mxu0 0.0
    %5580 = vmatpush1.msra.mxu0 0.0
    %5581 = vmatprep.subr.mxu0 0.0
    %5582 = vmatpush1.msra.mxu0 0.0
    %5583 = vmatprep.subr.mxu0 0.0
    %5584 = vmatpush1.msra.mxu0 0.0
    %5585 = vmatprep.subr.mxu0 0.0
    %5586 = vmatpush1.msra.mxu0 0.0
    %5587 = vmatprep.subr.mxu0 0.0
    %5588 = vmatpush1.msra.mxu0 0.0
    %5589 = vmatprep.subr.mxu0 0.0
    %5590 = vmatpush1.msra.mxu0 0.0
    %5591 = vmatprep.subr.mxu0 0.0
    %5592 = vmatpush1.msra.mxu0 0.0
    %5593 = vmatprep.subr.mxu0 0.0
    %5594 = vmatpush1.msra.mxu0 0.0
    %5595 = vmatprep.subr.mxu0 0.0
    %5596 = vmatpush1.msra.mxu0 0.0
    %5597 = vmatprep.subr.mxu0 0.0
    %5598 = vmatpush1.msra.mxu0 0.0
    %5599 = vmatprep.subr.mxu0 0.0
    %5600 = vmatpush1.msra.mxu0 0.0
    %5601 = vmatprep.subr.mxu0 0.0
    %5602 = vmatpush1.msra.mxu0 0.0
    %5603 = vmatprep.subr.mxu0 0.0
    %5604 = vmatpush1.msra.mxu0 0.0
    %5605 = vmatprep.subr.mxu0 0.0
    %5606 = vmatpush1.msra.mxu0 0.0
    %5607 = vmatprep.subr.mxu0 0.0
    %5608 = vmatpush1.msra.mxu0 0.0
    %5609 = vmatprep.subr.mxu0 0.0
    %5610 = vmatpush1.msra.mxu0 0.0
    %5611 = vmatprep.subr.mxu0 0.0
    %5612 = vmatpush1.msra.mxu0 0.0
    %5613 = vmatprep.subr.mxu0 0.0
    %5614 = vmatpush1.msra.mxu0 0.0
    %5615 = vmatprep.subr.mxu0 0.0
    %5616 = vmatpush1.msra.mxu0 0.0
    %5617 = vmatprep.subr.mxu0 0.0
    %5618 = vmatpush1.msra.mxu0 0.0
    %5619 = vmatprep.mubr.f32.mxu0 0.0
    %5620 = vmatmul.mubr.f32.gmra.mrb[0].mxu0 %v5269
    %v5621 = vpop.f32.mrb[0].mxu0
    %v5622 = vadd.f32 0.0, %v5621
    %v5623 = vpop.f32.mrb[0].mxu0
    %v5624 = vadd.f32 0.0, %v5623
    %5625 = vdwg.mxu0
    %5626 = vmatprep.subr.mxu0 %v5247
    %5627 = vmatpush1.msra.mxu0 %v5246
    %5628 = vmatprep.subr.mxu0 %v5263
    %5629 = vmatpush1.msra.mxu0 %v5262
    %5630 = vmatprep.subr.mxu0 0.0
    %5631 = vmatpush1.msra.mxu0 0.0
    %5632 = vmatprep.subr.mxu0 0.0
    %5633 = vmatpush1.msra.mxu0 0.0
    %5634 = vmatprep.subr.mxu0 0.0
    %5635 = vmatpush1.msra.mxu0 0.0
    %5636 = vmatprep.subr.mxu0 0.0
    %5637 = vmatpush1.msra.mxu0 0.0
    %5638 = vmatprep.subr.mxu0 0.0
    %5639 = vmatpush1.msra.mxu0 0.0
    %5640 = vmatprep.subr.mxu0 0.0
    %5641 = vmatpush1.msra.mxu0 0.0
    %5642 = vmatprep.subr.mxu0 0.0
    %5643 = vmatpush1.msra.mxu0 0.0
    %5644 = vmatprep.subr.mxu0 0.0
    %5645 = vmatpush1.msra.mxu0 0.0
    %5646 = vmatprep.subr.mxu0 0.0
    %5647 = vmatpush1.msra.mxu0 0.0
    %5648 = vmatprep.subr.mxu0 0.0
    %5649 = vmatpush1.msra.mxu0 0.0
    %5650 = vmatprep.subr.mxu0 0.0
    %5651 = vmatpush1.msra.mxu0 0.0
    %5652 = vmatprep.subr.mxu0 0.0
    %5653 = vmatpush1.msra.mxu0 0.0
    %5654 = vmatprep.subr.mxu0 0.0
    %5655 = vmatpush1.msra.mxu0 0.0
    %5656 = vmatprep.subr.mxu0 0.0
    %5657 = vmatpush1.msra.mxu0 0.0
    %5658 = vmatprep.subr.mxu0 0.0
    %5659 = vmatpush1.msra.mxu0 0.0
    %5660 = vmatprep.subr.mxu0 0.0
    %5661 = vmatpush1.msra.mxu0 0.0
    %5662 = vmatprep.subr.mxu0 0.0
    %5663 = vmatpush1.msra.mxu0 0.0
    %5664 = vmatprep.subr.mxu0 0.0
    %5665 = vmatpush1.msra.mxu0 0.0
    %5666 = vmatprep.subr.mxu0 0.0
    %5667 = vmatpush1.msra.mxu0 0.0
    %5668 = vmatprep.subr.mxu0 0.0
    %5669 = vmatpush1.msra.mxu0 0.0
    %5670 = vmatprep.subr.mxu0 0.0
    %5671 = vmatpush1.msra.mxu0 0.0
    %5672 = vmatprep.subr.mxu0 0.0
    %5673 = vmatpush1.msra.mxu0 0.0
    %5674 = vmatprep.subr.mxu0 0.0
    %5675 = vmatpush1.msra.mxu0 0.0
    %5676 = vmatprep.subr.mxu0 0.0
    %5677 = vmatpush1.msra.mxu0 0.0
    %5678 = vmatprep.subr.mxu0 0.0
    %5679 = vmatpush1.msra.mxu0 0.0
    %5680 = vmatprep.subr.mxu0 0.0
    %5681 = vmatpush1.msra.mxu0 0.0
    %5682 = vmatprep.subr.mxu0 0.0
    %5683 = vmatpush1.msra.mxu0 0.0
    %5684 = vmatprep.subr.mxu0 0.0
    %5685 = vmatpush1.msra.mxu0 0.0
    %5686 = vmatprep.subr.mxu0 0.0
    %5687 = vmatpush1.msra.mxu0 0.0
    %5688 = vmatprep.subr.mxu0 0.0
    %5689 = vmatpush1.msra.mxu0 0.0
    %5690 = vmatprep.mubr.f32.mxu0 0.0
    %5691 = vmatmul.mubr.f32.gmra.mrb[0].mxu0 %v5269
    %v5692 = vpop.f32.mrb[0].mxu0
    %v5693 = vadd.f32 0.0, %v5692
    %v5694 = vpop.f32.mrb[0].mxu0
    %v5695 = vadd.f32 0.0, %v5694
    %5696 = vdwg.mxu0
    %5697 = vmatprep.subr.mxu0 %v5249
    %5698 = vmatpush1.msra.mxu0 %v5248
    %5699 = vmatprep.subr.mxu0 %v5265
    %5700 = vmatpush1.msra.mxu0 %v5264
    %5701 = vmatprep.subr.mxu0 0.0
    %5702 = vmatpush1.msra.mxu0 0.0
    %5703 = vmatprep.subr.mxu0 0.0
    %5704 = vmatpush1.msra.mxu0 0.0
    %5705 = vmatprep.subr.mxu0 0.0
    %5706 = vmatpush1.msra.mxu0 0.0
    %5707 = vmatprep.subr.mxu0 0.0
    %5708 = vmatpush1.msra.mxu0 0.0
    %5709 = vmatprep.subr.mxu0 0.0
    %5710 = vmatpush1.msra.mxu0 0.0
    %5711 = vmatprep.subr.mxu0 0.0
    %5712 = vmatpush1.msra.mxu0 0.0
    %5713 = vmatprep.subr.mxu0 0.0
    %5714 = vmatpush1.msra.mxu0 0.0
    %5715 = vmatprep.subr.mxu0 0.0
    %5716 = vmatpush1.msra.mxu0 0.0
    %5717 = vmatprep.subr.mxu0 0.0
    %5718 = vmatpush1.msra.mxu0 0.0
    %5719 = vmatprep.subr.mxu0 0.0
    %5720 = vmatpush1.msra.mxu0 0.0
    %5721 = vmatprep.subr.mxu0 0.0
    %5722 = vmatpush1.msra.mxu0 0.0
    %5723 = vmatprep.subr.mxu0 0.0
    %5724 = vmatpush1.msra.mxu0 0.0
    %5725 = vmatprep.subr.mxu0 0.0
    %5726 = vmatpush1.msra.mxu0 0.0
    %5727 = vmatprep.subr.mxu0 0.0
    %5728 = vmatpush1.msra.mxu0 0.0
    %5729 = vmatprep.subr.mxu0 0.0
    %5730 = vmatpush1.msra.mxu0 0.0
    %5731 = vmatprep.subr.mxu0 0.0
    %5732 = vmatpush1.msra.mxu0 0.0
    %5733 = vmatprep.subr.mxu0 0.0
    %5734 = vmatpush1.msra.mxu0 0.0
    %5735 = vmatprep.subr.mxu0 0.0
    %5736 = vmatpush1.msra.mxu0 0.0
    %5737 = vmatprep.subr.mxu0 0.0
    %5738 = vmatpush1.msra.mxu0 0.0
    %5739 = vmatprep.subr.mxu0 0.0
    %5740 = vmatpush1.msra.mxu0 0.0
    %5741 = vmatprep.subr.mxu0 0.0
    %5742 = vmatpush1.msra.mxu0 0.0
    %5743 = vmatprep.subr.mxu0 0.0
    %5744 = vmatpush1.msra.mxu0 0.0
    %5745 = vmatprep.subr.mxu0 0.0
    %5746 = vmatpush1.msra.mxu0 0.0
    %5747 = vmatprep.subr.mxu0 0.0
    %5748 = vmatpush1.msra.mxu0 0.0
    %5749 = vmatprep.subr.mxu0 0.0
    %5750 = vmatpush1.msra.mxu0 0.0
    %5751 = vmatprep.subr.mxu0 0.0
    %5752 = vmatpush1.msra.mxu0 0.0
    %5753 = vmatprep.subr.mxu0 0.0
    %5754 = vmatpush1.msra.mxu0 0.0
    %5755 = vmatprep.subr.mxu0 0.0
    %5756 = vmatpush1.msra.mxu0 0.0
    %5757 = vmatprep.subr.mxu0 0.0
    %5758 = vmatpush1.msra.mxu0 0.0
    %5759 = vmatprep.subr.mxu0 0.0
    %5760 = vmatpush1.msra.mxu0 0.0
    %5761 = vmatprep.mubr.f32.mxu0 0.0
    %5762 = vmatmul.mubr.f32.gmra.mrb[0].mxu0 %v5269
    %v5763 = vpop.f32.mrb[0].mxu0
    %v5764 = vadd.f32 0.0, %v5763
    %v5765 = vpop.f32.mrb[0].mxu0
    %v5766 = vadd.f32 0.0, %v5765
    %5767 = vdwg.mxu0
    %5768 = vmatprep.subr.mxu0 %v5251
    %5769 = vmatpush1.msra.mxu0 %v5250
    %5770 = vmatprep.subr.mxu0 %v5267
    %5771 = vmatpush1.msra.mxu0 %v5266
    %5772 = vmatprep.subr.mxu0 0.0
    %5773 = vmatpush1.msra.mxu0 0.0
    %5774 = vmatprep.subr.mxu0 0.0
    %5775 = vmatpush1.msra.mxu0 0.0
    %5776 = vmatprep.subr.mxu0 0.0
    %5777 = vmatpush1.msra.mxu0 0.0
    %5778 = vmatprep.subr.mxu0 0.0
    %5779 = vmatpush1.msra.mxu0 0.0
    %5780 = vmatprep.subr.mxu0 0.0
    %5781 = vmatpush1.msra.mxu0 0.0
    %5782 = vmatprep.subr.mxu0 0.0
    %5783 = vmatpush1.msra.mxu0 0.0
    %5784 = vmatprep.subr.mxu0 0.0
    %5785 = vmatpush1.msra.mxu0 0.0
    %5786 = vmatprep.subr.mxu0 0.0
    %5787 = vmatpush1.msra.mxu0 0.0
    %5788 = vmatprep.subr.mxu0 0.0
    %5789 = vmatpush1.msra.mxu0 0.0
    %5790 = vmatprep.subr.mxu0 0.0
    %5791 = vmatpush1.msra.mxu0 0.0
    %5792 = vmatprep.subr.mxu0 0.0
    %5793 = vmatpush1.msra.mxu0 0.0
    %5794 = vmatprep.subr.mxu0 0.0
    %5795 = vmatpush1.msra.mxu0 0.0
    %5796 = vmatprep.subr.mxu0 0.0
    %5797 = vmatpush1.msra.mxu0 0.0
    %5798 = vmatprep.subr.mxu0 0.0
    %5799 = vmatpush1.msra.mxu0 0.0
    %5800 = vmatprep.subr.mxu0 0.0
    %5801 = vmatpush1.msra.mxu0 0.0
    %5802 = vmatprep.subr.mxu0 0.0
    %5803 = vmatpush1.msra.mxu0 0.0
    %5804 = vmatprep.subr.mxu0 0.0
    %5805 = vmatpush1.msra.mxu0 0.0
    %5806 = vmatprep.subr.mxu0 0.0
    %5807 = vmatpush1.msra.mxu0 0.0
    %5808 = vmatprep.subr.mxu0 0.0
    %5809 = vmatpush1.msra.mxu0 0.0
    %5810 = vmatprep.subr.mxu0 0.0
    %5811 = vmatpush1.msra.mxu0 0.0
    %5812 = vmatprep.subr.mxu0 0.0
    %5813 = vmatpush1.msra.mxu0 0.0
    %5814 = vmatprep.subr.mxu0 0.0
    %5815 = vmatpush1.msra.mxu0 0.0
    %5816 = vmatprep.subr.mxu0 0.0
    %5817 = vmatpush1.msra.mxu0 0.0
    %5818 = vmatprep.subr.mxu0 0.0
    %5819 = vmatpush1.msra.mxu0 0.0
    %5820 = vmatprep.subr.mxu0 0.0
    %5821 = vmatpush1.msra.mxu0 0.0
    %5822 = vmatprep.subr.mxu0 0.0
    %5823 = vmatpush1.msra.mxu0 0.0
    %5824 = vmatprep.subr.mxu0 0.0
    %5825 = vmatpush1.msra.mxu0 0.0
    %5826 = vmatprep.subr.mxu0 0.0
    %5827 = vmatpush1.msra.mxu0 0.0
    %5828 = vmatprep.subr.mxu0 0.0
    %5829 = vmatpush1.msra.mxu0 0.0
    %5830 = vmatprep.subr.mxu0 0.0
    %5831 = vmatpush1.msra.mxu0 0.0
    %5832 = vmatprep.mubr.f32.mxu0 0.0
    %5833 = vmatmul.mubr.f32.gmra.mrb[0].mxu0 %v5269
    %v5834 = vpop.f32.mrb[0].mxu0
    %v5835 = vadd.f32 0.0, %v5834
    %v5836 = vpop.f32.mrb[0].mxu0
    %v5837 = vadd.f32 0.0, %v5836
    %5838 = vdwg.mxu0
    %v5855 = vcombine.low %v5338, %v5340
    %v5856 = vcombine.low %v5409, %v5411
    %v5857 = vcombine.low %v5480, %v5482
    %v5858 = vcombine.low %v5551, %v5553
    %v5860 = vunpack.c.l.s4 1966171168
    %v5861 = vunpack.c.0.s8 %v5860
    %v5862 = vlaneseq
    %v5863 = vshrl.u32 %v5862, 7
    %v5864 = vsub.s32 %v5861, %v5863
    %v5865 = vrot.slane %v5855, %v5864
    %v5867 = vunpack.c.l.s4 1966171168
    %v5868 = vunpack.c.0.s8 %v5867
    %v5869 = vlaneseq
    %v5870 = vshrl.u32 %v5869, 7
    %v5871 = vsub.s32 %v5868, %v5870
    %v5872 = vrot.slane %v5856, %v5871
    %v5874 = vunpack.c.l.s4 1966171168
    %v5875 = vunpack.c.0.s8 %v5874
    %v5876 = vlaneseq
    %v5877 = vshrl.u32 %v5876, 7
    %v5878 = vsub.s32 %v5875, %v5877
    %v5879 = vrot.slane %v5857, %v5878
    %v5881 = vunpack.c.l.s4 1966171168
    %v5882 = vunpack.c.0.s8 %v5881
    %v5883 = vlaneseq
    %v5884 = vshrl.u32 %v5883, 7
    %v5885 = vsub.s32 %v5882, %v5884
    %v5886 = vrot.slane %v5858, %v5885
    %v5887 = vcombine.low %v5865, %v5872
    %v5888 = vcombine.low %v5879, %v5886
    %v5890 = vunpack.c.l.s4 1966171168
    %v5891 = vunpack.c.0.s8 %v5890
    %v5892 = vlaneseq
    %v5893 = vshrl.u32 %v5892, 7
    %v5894 = vsub.s32 %v5891, %v5893
    %v5895 = vrot.slane %v5887, %v5894
    %v5897 = vunpack.c.l.s4 1966171168
    %v5898 = vunpack.c.0.s8 %v5897
    %v5899 = vlaneseq
    %v5900 = vshrl.u32 %v5899, 7
    %v5901 = vsub.s32 %v5898, %v5900
    %v5902 = vrot.slane %v5888, %v5901
    %v5903 = vcombine.low %v5895, %v5902
    %v5904 = vcombine.low %v5622, %v5624
    %v5905 = vcombine.low %v5693, %v5695
    %v5906 = vcombine.low %v5764, %v5766
    %v5907 = vcombine.low %v5835, %v5837
    %v5909 = vunpack.c.l.s4 1966171168
    %v5910 = vunpack.c.0.s8 %v5909
    %v5911 = vlaneseq
    %v5912 = vshrl.u32 %v5911, 7
    %v5913 = vsub.s32 %v5910, %v5912
    %v5914 = vrot.slane %v5904, %v5913
    %v5916 = vunpack.c.l.s4 1966171168
    %v5917 = vunpack.c.0.s8 %v5916
    %v5918 = vlaneseq
    %v5919 = vshrl.u32 %v5918, 7
    %v5920 = vsub.s32 %v5917, %v5919
    %v5921 = vrot.slane %v5905, %v5920
    %v5923 = vunpack.c.l.s4 1966171168
    %v5924 = vunpack.c.0.s8 %v5923
    %v5925 = vlaneseq
    %v5926 = vshrl.u32 %v5925, 7
    %v5927 = vsub.s32 %v5924, %v5926
    %v5928 = vrot.slane %v5906, %v5927
    %v5930 = vunpack.c.l.s4 1966171168
    %v5931 = vunpack.c.0.s8 %v5930
    %v5932 = vlaneseq
    %v5933 = vshrl.u32 %v5932, 7
    %v5934 = vsub.s32 %v5931, %v5933
    %v5935 = vrot.slane %v5907, %v5934
    %v5936 = vcombine.low %v5914, %v5921
    %v5937 = vcombine.low %v5928, %v5935
    %v5939 = vunpack.c.l.s4 1966171168
    %v5940 = vunpack.c.0.s8 %v5939
    %v5941 = vlaneseq
    %v5942 = vshrl.u32 %v5941, 7
    %v5943 = vsub.s32 %v5940, %v5942
    %v5944 = vrot.slane %v5936, %v5943
    %v5946 = vunpack.c.l.s4 1966171168
    %v5947 = vunpack.c.0.s8 %v5946
    %v5948 = vlaneseq
    %v5949 = vshrl.u32 %v5948, 7
    %v5950 = vsub.s32 %v5947, %v5949
    %v5951 = vrot.slane %v5937, %v5950
    %v5952 = vcombine.low %v5944, %v5951
    %v5955 = vsub.f32 0.0, %v5903
    %v5956 = vsub.f32 0.0, %v5952
    %v5957 = vmul.f32 %v5955, 1.442695
    %v5958 = vpow.pop %v5957
    %v5959 = vmul.f32 %v5956, 1.442695
    %v5960 = vpow.pop %v5959
    %v5961 = vadd.f32 %v5958, 1.0
    %v5962 = vadd.f32 %v5960, 1.0
    %v5963 = vrcp.pop %v5961
    %v5964 = vmul.f32 1.0, %v5963
    %v5965 = vrcp.pop %v5962
    %v5966 = vmul.f32 1.0, %v5965
    %v5967 = vld [vmem:[#allocation6] sm:$0xff]
    %v5968 = vld [vmem:[#allocation6 + $0x8] sm:$0xff]
    %v5969 = vld [vmem:[#allocation6 + $0x10] sm:$0xff]
    %v5970 = vld [vmem:[#allocation6 + $0x18] sm:$0xff]
    %v5971 = vld [vmem:[#allocation6 + $0x20] sm:$0xff]
    %v5972 = vld [vmem:[#allocation6 + $0x28] sm:$0xff]
    %v5973 = vld [vmem:[#allocation6 + $0x30] sm:$0xff]
    %v5974 = vld [vmem:[#allocation6 + $0x38] sm:$0xff]
    %v5975 = vld [vmem:[#allocation6 + $0x40] sm:$0xff]
    %v5976 = vld [vmem:[#allocation6 + $0x48] sm:$0xff]
    %v5977 = vld [vmem:[#allocation6 + $0x50] sm:$0xff]
    %v5978 = vld [vmem:[#allocation6 + $0x58] sm:$0xff]
    %v5979 = vld [vmem:[#allocation6 + $0x60] sm:$0xff]
    %v5980 = vld [vmem:[#allocation6 + $0x68] sm:$0xff]
    %v5981 = vld [vmem:[#allocation6 + $0x70] sm:$0xff]
    %v5982 = vld [vmem:[#allocation6 + $0x78] sm:$0xff]
    %v5983 = vld [vmem:[#allocation6 + $0x80] sm:$0xff]
    %v5984 = vld [vmem:[#allocation6 + $0x88] sm:$0xff]
    %v5985 = vld [vmem:[#allocation6 + $0x90] sm:$0xff]
    %v5986 = vld [vmem:[#allocation6 + $0x98] sm:$0xff]
    %v5987 = vld [vmem:[#allocation6 + $0xa0] sm:$0xff]
    %v5988 = vld [vmem:[#allocation6 + $0xa8] sm:$0xff]
    %v5989 = vld [vmem:[#allocation6 + $0xb0] sm:$0xff]
    %v5990 = vld [vmem:[#allocation6 + $0xb8] sm:$0xff]
    %v5991 = vld [vmem:[#allocation6 + $0xc0] sm:$0xff]
    %v5992 = vld [vmem:[#allocation6 + $0xc8] sm:$0xff]
    %v5993 = vld [vmem:[#allocation6 + $0xd0] sm:$0xff]
    %v5994 = vld [vmem:[#allocation6 + $0xd8] sm:$0xff]
    %v5995 = vld [vmem:[#allocation6 + $0xe0] sm:$0xff]
    %v5996 = vld [vmem:[#allocation6 + $0xe8] sm:$0xff]
    %v5997 = vld [vmem:[#allocation6 + $0xf0] sm:$0xff]
    %v5998 = vld [vmem:[#allocation6 + $0xf8] sm:$0xff]
    %5999 = vrot.lane.b32.xlu0 %v4183, 112
    %v6000 = vpop.permute.xlu0 %5999
    %v6001 = vsel %vm2003, %v6000, 0
    %6003 = vmatprep.subr.mxu0 %v5968
    %6004 = vmatpush1.msra.mxu0 %v5967
    %6005 = vmatprep.subr.mxu0 %v5984
    %6006 = vmatpush1.msra.mxu0 %v5983
    %6007 = vmatprep.subr.mxu0 0.0
    %6008 = vmatpush1.msra.mxu0 0.0
    %6009 = vmatprep.subr.mxu0 0.0
    %6010 = vmatpush1.msra.mxu0 0.0
    %6011 = vmatprep.subr.mxu0 0.0
    %6012 = vmatpush1.msra.mxu0 0.0
    %6013 = vmatprep.subr.mxu0 0.0
    %6014 = vmatpush1.msra.mxu0 0.0
    %6015 = vmatprep.subr.mxu0 0.0
    %6016 = vmatpush1.msra.mxu0 0.0
    %6017 = vmatprep.subr.mxu0 0.0
    %6018 = vmatpush1.msra.mxu0 0.0
    %6019 = vmatprep.subr.mxu0 0.0
    %6020 = vmatpush1.msra.mxu0 0.0
    %6021 = vmatprep.subr.mxu0 0.0
    %6022 = vmatpush1.msra.mxu0 0.0
    %6023 = vmatprep.subr.mxu0 0.0
    %6024 = vmatpush1.msra.mxu0 0.0
    %6025 = vmatprep.subr.mxu0 0.0
    %6026 = vmatpush1.msra.mxu0 0.0
    %6027 = vmatprep.subr.mxu0 0.0
    %6028 = vmatpush1.msra.mxu0 0.0
    %6029 = vmatprep.subr.mxu0 0.0
    %6030 = vmatpush1.msra.mxu0 0.0
    %6031 = vmatprep.subr.mxu0 0.0
    %6032 = vmatpush1.msra.mxu0 0.0
    %6033 = vmatprep.subr.mxu0 0.0
    %6034 = vmatpush1.msra.mxu0 0.0
    %6035 = vmatprep.subr.mxu0 0.0
    %6036 = vmatpush1.msra.mxu0 0.0
    %6037 = vmatprep.subr.mxu0 0.0
    %6038 = vmatpush1.msra.mxu0 0.0
    %6039 = vmatprep.subr.mxu0 0.0
    %6040 = vmatpush1.msra.mxu0 0.0
    %6041 = vmatprep.subr.mxu0 0.0
    %6042 = vmatpush1.msra.mxu0 0.0
    %6043 = vmatprep.subr.mxu0 0.0
    %6044 = vmatpush1.msra.mxu0 0.0
    %6045 = vmatprep.subr.mxu0 0.0
    %6046 = vmatpush1.msra.mxu0 0.0
    %6047 = vmatprep.subr.mxu0 0.0
    %6048 = vmatpush1.msra.mxu0 0.0
    %6049 = vmatprep.subr.mxu0 0.0
    %6050 = vmatpush1.msra.mxu0 0.0
    %6051 = vmatprep.subr.mxu0 0.0
    %6052 = vmatpush1.msra.mxu0 0.0
    %6053 = vmatprep.subr.mxu0 0.0
    %6054 = vmatpush1.msra.mxu0 0.0
    %6055 = vmatprep.subr.mxu0 0.0
    %6056 = vmatpush1.msra.mxu0 0.0
    %6057 = vmatprep.subr.mxu0 0.0
    %6058 = vmatpush1.msra.mxu0 0.0
    %6059 = vmatprep.subr.mxu0 0.0
    %6060 = vmatpush1.msra.mxu0 0.0
    %6061 = vmatprep.subr.mxu0 0.0
    %6062 = vmatpush1.msra.mxu0 0.0
    %6063 = vmatprep.subr.mxu0 0.0
    %6064 = vmatpush1.msra.mxu0 0.0
    %6065 = vmatprep.subr.mxu0 0.0
    %6066 = vmatpush1.msra.mxu0 0.0
    %6067 = vmatprep.mubr.f32.mxu0 0.0
    %6068 = vmatmul.mubr.f32.gmra.mrb[0].mxu0 %v6001
    %v6069 = vpop.f32.mrb[0].mxu0
    %v6070 = vadd.f32 0.0, %v6069
    %v6071 = vpop.f32.mrb[0].mxu0
    %v6072 = vadd.f32 0.0, %v6071
    %6073 = vdwg.mxu0
    %6074 = vmatprep.subr.mxu0 %v5970
    %6075 = vmatpush1.msra.mxu0 %v5969
    %6076 = vmatprep.subr.mxu0 %v5986
    %6077 = vmatpush1.msra.mxu0 %v5985
    %6078 = vmatprep.subr.mxu0 0.0
    %6079 = vmatpush1.msra.mxu0 0.0
    %6080 = vmatprep.subr.mxu0 0.0
    %6081 = vmatpush1.msra.mxu0 0.0
    %6082 = vmatprep.subr.mxu0 0.0
    %6083 = vmatpush1.msra.mxu0 0.0
    %6084 = vmatprep.subr.mxu0 0.0
    %6085 = vmatpush1.msra.mxu0 0.0
    %6086 = vmatprep.subr.mxu0 0.0
    %6087 = vmatpush1.msra.mxu0 0.0
    %6088 = vmatprep.subr.mxu0 0.0
    %6089 = vmatpush1.msra.mxu0 0.0
    %6090 = vmatprep.subr.mxu0 0.0
    %6091 = vmatpush1.msra.mxu0 0.0
    %6092 = vmatprep.subr.mxu0 0.0
    %6093 = vmatpush1.msra.mxu0 0.0
    %6094 = vmatprep.subr.mxu0 0.0
    %6095 = vmatpush1.msra.mxu0 0.0
    %6096 = vmatprep.subr.mxu0 0.0
    %6097 = vmatpush1.msra.mxu0 0.0
    %6098 = vmatprep.subr.mxu0 0.0
    %6099 = vmatpush1.msra.mxu0 0.0
    %6100 = vmatprep.subr.mxu0 0.0
    %6101 = vmatpush1.msra.mxu0 0.0
    %6102 = vmatprep.subr.mxu0 0.0
    %6103 = vmatpush1.msra.mxu0 0.0
    %6104 = vmatprep.subr.mxu0 0.0
    %6105 = vmatpush1.msra.mxu0 0.0
    %6106 = vmatprep.subr.mxu0 0.0
    %6107 = vmatpush1.msra.mxu0 0.0
    %6108 = vmatprep.subr.mxu0 0.0
    %6109 = vmatpush1.msra.mxu0 0.0
    %6110 = vmatprep.subr.mxu0 0.0
    %6111 = vmatpush1.msra.mxu0 0.0
    %6112 = vmatprep.subr.mxu0 0.0
    %6113 = vmatpush1.msra.mxu0 0.0
    %6114 = vmatprep.subr.mxu0 0.0
    %6115 = vmatpush1.msra.mxu0 0.0
    %6116 = vmatprep.subr.mxu0 0.0
    %6117 = vmatpush1.msra.mxu0 0.0
    %6118 = vmatprep.subr.mxu0 0.0
    %6119 = vmatpush1.msra.mxu0 0.0
    %6120 = vmatprep.subr.mxu0 0.0
    %6121 = vmatpush1.msra.mxu0 0.0
    %6122 = vmatprep.subr.mxu0 0.0
    %6123 = vmatpush1.msra.mxu0 0.0
    %6124 = vmatprep.subr.mxu0 0.0
    %6125 = vmatpush1.msra.mxu0 0.0
    %6126 = vmatprep.subr.mxu0 0.0
    %6127 = vmatpush1.msra.mxu0 0.0
    %6128 = vmatprep.subr.mxu0 0.0
    %6129 = vmatpush1.msra.mxu0 0.0
    %6130 = vmatprep.subr.mxu0 0.0
    %6131 = vmatpush1.msra.mxu0 0.0
    %6132 = vmatprep.subr.mxu0 0.0
    %6133 = vmatpush1.msra.mxu0 0.0
    %6134 = vmatprep.subr.mxu0 0.0
    %6135 = vmatpush1.msra.mxu0 0.0
    %6136 = vmatprep.subr.mxu0 0.0
    %6137 = vmatpush1.msra.mxu0 0.0
    %6138 = vmatprep.mubr.f32.mxu0 0.0
    %6139 = vmatmul.mubr.f32.gmra.mrb[0].mxu0 %v6001
    %v6140 = vpop.f32.mrb[0].mxu0
    %v6141 = vadd.f32 0.0, %v6140
    %v6142 = vpop.f32.mrb[0].mxu0
    %v6143 = vadd.f32 0.0, %v6142
    %6144 = vdwg.mxu0
    %6145 = vmatprep.subr.mxu0 %v5972
    %6146 = vmatpush1.msra.mxu0 %v5971
    %6147 = vmatprep.subr.mxu0 %v5988
    %6148 = vmatpush1.msra.mxu0 %v5987
    %6149 = vmatprep.subr.mxu0 0.0
    %6150 = vmatpush1.msra.mxu0 0.0
    %6151 = vmatprep.subr.mxu0 0.0
    %6152 = vmatpush1.msra.mxu0 0.0
    %6153 = vmatprep.subr.mxu0 0.0
    %6154 = vmatpush1.msra.mxu0 0.0
    %6155 = vmatprep.subr.mxu0 0.0
    %6156 = vmatpush1.msra.mxu0 0.0
    %6157 = vmatprep.subr.mxu0 0.0
    %6158 = vmatpush1.msra.mxu0 0.0
    %6159 = vmatprep.subr.mxu0 0.0
    %6160 = vmatpush1.msra.mxu0 0.0
    %6161 = vmatprep.subr.mxu0 0.0
    %6162 = vmatpush1.msra.mxu0 0.0
    %6163 = vmatprep.subr.mxu0 0.0
    %6164 = vmatpush1.msra.mxu0 0.0
    %6165 = vmatprep.subr.mxu0 0.0
    %6166 = vmatpush1.msra.mxu0 0.0
    %6167 = vmatprep.subr.mxu0 0.0
    %6168 = vmatpush1.msra.mxu0 0.0
    %6169 = vmatprep.subr.mxu0 0.0
    %6170 = vmatpush1.msra.mxu0 0.0
    %6171 = vmatprep.subr.mxu0 0.0
    %6172 = vmatpush1.msra.mxu0 0.0
    %6173 = vmatprep.subr.mxu0 0.0
    %6174 = vmatpush1.msra.mxu0 0.0
    %6175 = vmatprep.subr.mxu0 0.0
    %6176 = vmatpush1.msra.mxu0 0.0
    %6177 = vmatprep.subr.mxu0 0.0
    %6178 = vmatpush1.msra.mxu0 0.0
    %6179 = vmatprep.subr.mxu0 0.0
    %6180 = vmatpush1.msra.mxu0 0.0
    %6181 = vmatprep.subr.mxu0 0.0
    %6182 = vmatpush1.msra.mxu0 0.0
    %6183 = vmatprep.subr.mxu0 0.0
    %6184 = vmatpush1.msra.mxu0 0.0
    %6185 = vmatprep.subr.mxu0 0.0
    %6186 = vmatpush1.msra.mxu0 0.0
    %6187 = vmatprep.subr.mxu0 0.0
    %6188 = vmatpush1.msra.mxu0 0.0
    %6189 = vmatprep.subr.mxu0 0.0
    %6190 = vmatpush1.msra.mxu0 0.0
    %6191 = vmatprep.subr.mxu0 0.0
    %6192 = vmatpush1.msra.mxu0 0.0
    %6193 = vmatprep.subr.mxu0 0.0
    %6194 = vmatpush1.msra.mxu0 0.0
    %6195 = vmatprep.subr.mxu0 0.0
    %6196 = vmatpush1.msra.mxu0 0.0
    %6197 = vmatprep.subr.mxu0 0.0
    %6198 = vmatpush1.msra.mxu0 0.0
    %6199 = vmatprep.subr.mxu0 0.0
    %6200 = vmatpush1.msra.mxu0 0.0
    %6201 = vmatprep.subr.mxu0 0.0
    %6202 = vmatpush1.msra.mxu0 0.0
    %6203 = vmatprep.subr.mxu0 0.0
    %6204 = vmatpush1.msra.mxu0 0.0
    %6205 = vmatprep.subr.mxu0 0.0
    %6206 = vmatpush1.msra.mxu0 0.0
    %6207 = vmatprep.subr.mxu0 0.0
    %6208 = vmatpush1.msra.mxu0 0.0
    %6209 = vmatprep.mubr.f32.mxu0 0.0
    %6210 = vmatmul.mubr.f32.gmra.mrb[0].mxu0 %v6001
    %v6211 = vpop.f32.mrb[0].mxu0
    %v6212 = vadd.f32 0.0, %v6211
    %v6213 = vpop.f32.mrb[0].mxu0
    %v6214 = vadd.f32 0.0, %v6213
    %6215 = vdwg.mxu0
    %6216 = vmatprep.subr.mxu0 %v5974
    %6217 = vmatpush1.msra.mxu0 %v5973
    %6218 = vmatprep.subr.mxu0 %v5990
    %6219 = vmatpush1.msra.mxu0 %v5989
    %6220 = vmatprep.subr.mxu0 0.0
    %6221 = vmatpush1.msra.mxu0 0.0
    %6222 = vmatprep.subr.mxu0 0.0
    %6223 = vmatpush1.msra.mxu0 0.0
    %6224 = vmatprep.subr.mxu0 0.0
    %6225 = vmatpush1.msra.mxu0 0.0
    %6226 = vmatprep.subr.mxu0 0.0
    %6227 = vmatpush1.msra.mxu0 0.0
    %6228 = vmatprep.subr.mxu0 0.0
    %6229 = vmatpush1.msra.mxu0 0.0
    %6230 = vmatprep.subr.mxu0 0.0
    %6231 = vmatpush1.msra.mxu0 0.0
    %6232 = vmatprep.subr.mxu0 0.0
    %6233 = vmatpush1.msra.mxu0 0.0
    %6234 = vmatprep.subr.mxu0 0.0
    %6235 = vmatpush1.msra.mxu0 0.0
    %6236 = vmatprep.subr.mxu0 0.0
    %6237 = vmatpush1.msra.mxu0 0.0
    %6238 = vmatprep.subr.mxu0 0.0
    %6239 = vmatpush1.msra.mxu0 0.0
    %6240 = vmatprep.subr.mxu0 0.0
    %6241 = vmatpush1.msra.mxu0 0.0
    %6242 = vmatprep.subr.mxu0 0.0
    %6243 = vmatpush1.msra.mxu0 0.0
    %6244 = vmatprep.subr.mxu0 0.0
    %6245 = vmatpush1.msra.mxu0 0.0
    %6246 = vmatprep.subr.mxu0 0.0
    %6247 = vmatpush1.msra.mxu0 0.0
    %6248 = vmatprep.subr.mxu0 0.0
    %6249 = vmatpush1.msra.mxu0 0.0
    %6250 = vmatprep.subr.mxu0 0.0
    %6251 = vmatpush1.msra.mxu0 0.0
    %6252 = vmatprep.subr.mxu0 0.0
    %6253 = vmatpush1.msra.mxu0 0.0
    %6254 = vmatprep.subr.mxu0 0.0
    %6255 = vmatpush1.msra.mxu0 0.0
    %6256 = vmatprep.subr.mxu0 0.0
    %6257 = vmatpush1.msra.mxu0 0.0
    %6258 = vmatprep.subr.mxu0 0.0
    %6259 = vmatpush1.msra.mxu0 0.0
    %6260 = vmatprep.subr.mxu0 0.0
    %6261 = vmatpush1.msra.mxu0 0.0
    %6262 = vmatprep.subr.mxu0 0.0
    %6263 = vmatpush1.msra.mxu0 0.0
    %6264 = vmatprep.subr.mxu0 0.0
    %6265 = vmatpush1.msra.mxu0 0.0
    %6266 = vmatprep.subr.mxu0 0.0
    %6267 = vmatpush1.msra.mxu0 0.0
    %6268 = vmatprep.subr.mxu0 0.0
    %6269 = vmatpush1.msra.mxu0 0.0
    %6270 = vmatprep.subr.mxu0 0.0
    %6271 = vmatpush1.msra.mxu0 0.0
    %6272 = vmatprep.subr.mxu0 0.0
    %6273 = vmatpush1.msra.mxu0 0.0
    %6274 = vmatprep.subr.mxu0 0.0
    %6275 = vmatpush1.msra.mxu0 0.0
    %6276 = vmatprep.subr.mxu0 0.0
    %6277 = vmatpush1.msra.mxu0 0.0
    %6278 = vmatprep.subr.mxu0 0.0
    %6279 = vmatpush1.msra.mxu0 0.0
    %6280 = vmatprep.mubr.f32.mxu0 0.0
    %6281 = vmatmul.mubr.f32.gmra.mrb[0].mxu0 %v6001
    %v6282 = vpop.f32.mrb[0].mxu0
    %v6283 = vadd.f32 0.0, %v6282
    %v6284 = vpop.f32.mrb[0].mxu0
    %v6285 = vadd.f32 0.0, %v6284
    %6286 = vdwg.mxu0
    %6287 = vmatprep.subr.mxu0 %v5976
    %6288 = vmatpush1.msra.mxu0 %v5975
    %6289 = vmatprep.subr.mxu0 %v5992
    %6290 = vmatpush1.msra.mxu0 %v5991
    %6291 = vmatprep.subr.mxu0 0.0
    %6292 = vmatpush1.msra.mxu0 0.0
    %6293 = vmatprep.subr.mxu0 0.0
    %6294 = vmatpush1.msra.mxu0 0.0
    %6295 = vmatprep.subr.mxu0 0.0
    %6296 = vmatpush1.msra.mxu0 0.0
    %6297 = vmatprep.subr.mxu0 0.0
    %6298 = vmatpush1.msra.mxu0 0.0
    %6299 = vmatprep.subr.mxu0 0.0
    %6300 = vmatpush1.msra.mxu0 0.0
    %6301 = vmatprep.subr.mxu0 0.0
    %6302 = vmatpush1.msra.mxu0 0.0
    %6303 = vmatprep.subr.mxu0 0.0
    %6304 = vmatpush1.msra.mxu0 0.0
    %6305 = vmatprep.subr.mxu0 0.0
    %6306 = vmatpush1.msra.mxu0 0.0
    %6307 = vmatprep.subr.mxu0 0.0
    %6308 = vmatpush1.msra.mxu0 0.0
    %6309 = vmatprep.subr.mxu0 0.0
    %6310 = vmatpush1.msra.mxu0 0.0
    %6311 = vmatprep.subr.mxu0 0.0
    %6312 = vmatpush1.msra.mxu0 0.0
    %6313 = vmatprep.subr.mxu0 0.0
    %6314 = vmatpush1.msra.mxu0 0.0
    %6315 = vmatprep.subr.mxu0 0.0
    %6316 = vmatpush1.msra.mxu0 0.0
    %6317 = vmatprep.subr.mxu0 0.0
    %6318 = vmatpush1.msra.mxu0 0.0
    %6319 = vmatprep.subr.mxu0 0.0
    %6320 = vmatpush1.msra.mxu0 0.0
    %6321 = vmatprep.subr.mxu0 0.0
    %6322 = vmatpush1.msra.mxu0 0.0
    %6323 = vmatprep.subr.mxu0 0.0
    %6324 = vmatpush1.msra.mxu0 0.0
    %6325 = vmatprep.subr.mxu0 0.0
    %6326 = vmatpush1.msra.mxu0 0.0
    %6327 = vmatprep.subr.mxu0 0.0
    %6328 = vmatpush1.msra.mxu0 0.0
    %6329 = vmatprep.subr.mxu0 0.0
    %6330 = vmatpush1.msra.mxu0 0.0
    %6331 = vmatprep.subr.mxu0 0.0
    %6332 = vmatpush1.msra.mxu0 0.0
    %6333 = vmatprep.subr.mxu0 0.0
    %6334 = vmatpush1.msra.mxu0 0.0
    %6335 = vmatprep.subr.mxu0 0.0
    %6336 = vmatpush1.msra.mxu0 0.0
    %6337 = vmatprep.subr.mxu0 0.0
    %6338 = vmatpush1.msra.mxu0 0.0
    %6339 = vmatprep.subr.mxu0 0.0
    %6340 = vmatpush1.msra.mxu0 0.0
    %6341 = vmatprep.subr.mxu0 0.0
    %6342 = vmatpush1.msra.mxu0 0.0
    %6343 = vmatprep.subr.mxu0 0.0
    %6344 = vmatpush1.msra.mxu0 0.0
    %6345 = vmatprep.subr.mxu0 0.0
    %6346 = vmatpush1.msra.mxu0 0.0
    %6347 = vmatprep.subr.mxu0 0.0
    %6348 = vmatpush1.msra.mxu0 0.0
    %6349 = vmatprep.subr.mxu0 0.0
    %6350 = vmatpush1.msra.mxu0 0.0
    %6351 = vmatprep.mubr.f32.mxu0 0.0
    %6352 = vmatmul.mubr.f32.gmra.mrb[0].mxu0 %v6001
    %v6353 = vpop.f32.mrb[0].mxu0
    %v6354 = vadd.f32 0.0, %v6353
    %v6355 = vpop.f32.mrb[0].mxu0
    %v6356 = vadd.f32 0.0, %v6355
    %6357 = vdwg.mxu0
    %6358 = vmatprep.subr.mxu0 %v5978
    %6359 = vmatpush1.msra.mxu0 %v5977
    %6360 = vmatprep.subr.mxu0 %v5994
    %6361 = vmatpush1.msra.mxu0 %v5993
    %6362 = vmatprep.subr.mxu0 0.0
    %6363 = vmatpush1.msra.mxu0 0.0
    %6364 = vmatprep.subr.mxu0 0.0
    %6365 = vmatpush1.msra.mxu0 0.0
    %6366 = vmatprep.subr.mxu0 0.0
    %6367 = vmatpush1.msra.mxu0 0.0
    %6368 = vmatprep.subr.mxu0 0.0
    %6369 = vmatpush1.msra.mxu0 0.0
    %6370 = vmatprep.subr.mxu0 0.0
    %6371 = vmatpush1.msra.mxu0 0.0
    %6372 = vmatprep.subr.mxu0 0.0
    %6373 = vmatpush1.msra.mxu0 0.0
    %6374 = vmatprep.subr.mxu0 0.0
    %6375 = vmatpush1.msra.mxu0 0.0
    %6376 = vmatprep.subr.mxu0 0.0
    %6377 = vmatpush1.msra.mxu0 0.0
    %6378 = vmatprep.subr.mxu0 0.0
    %6379 = vmatpush1.msra.mxu0 0.0
    %6380 = vmatprep.subr.mxu0 0.0
    %6381 = vmatpush1.msra.mxu0 0.0
    %6382 = vmatprep.subr.mxu0 0.0
    %6383 = vmatpush1.msra.mxu0 0.0
    %6384 = vmatprep.subr.mxu0 0.0
    %6385 = vmatpush1.msra.mxu0 0.0
    %6386 = vmatprep.subr.mxu0 0.0
    %6387 = vmatpush1.msra.mxu0 0.0
    %6388 = vmatprep.subr.mxu0 0.0
    %6389 = vmatpush1.msra.mxu0 0.0
    %6390 = vmatprep.subr.mxu0 0.0
    %6391 = vmatpush1.msra.mxu0 0.0
    %6392 = vmatprep.subr.mxu0 0.0
    %6393 = vmatpush1.msra.mxu0 0.0
    %6394 = vmatprep.subr.mxu0 0.0
    %6395 = vmatpush1.msra.mxu0 0.0
    %6396 = vmatprep.subr.mxu0 0.0
    %6397 = vmatpush1.msra.mxu0 0.0
    %6398 = vmatprep.subr.mxu0 0.0
    %6399 = vmatpush1.msra.mxu0 0.0
    %6400 = vmatprep.subr.mxu0 0.0
    %6401 = vmatpush1.msra.mxu0 0.0
    %6402 = vmatprep.subr.mxu0 0.0
    %6403 = vmatpush1.msra.mxu0 0.0
    %6404 = vmatprep.subr.mxu0 0.0
    %6405 = vmatpush1.msra.mxu0 0.0
    %6406 = vmatprep.subr.mxu0 0.0
    %6407 = vmatpush1.msra.mxu0 0.0
    %6408 = vmatprep.subr.mxu0 0.0
    %6409 = vmatpush1.msra.mxu0 0.0
    %6410 = vmatprep.subr.mxu0 0.0
    %6411 = vmatpush1.msra.mxu0 0.0
    %6412 = vmatprep.subr.mxu0 0.0
    %6413 = vmatpush1.msra.mxu0 0.0
    %6414 = vmatprep.subr.mxu0 0.0
    %6415 = vmatpush1.msra.mxu0 0.0
    %6416 = vmatprep.subr.mxu0 0.0
    %6417 = vmatpush1.msra.mxu0 0.0
    %6418 = vmatprep.subr.mxu0 0.0
    %6419 = vmatpush1.msra.mxu0 0.0
    %6420 = vmatprep.subr.mxu0 0.0
    %6421 = vmatpush1.msra.mxu0 0.0
    %6422 = vmatprep.mubr.f32.mxu0 0.0
    %6423 = vmatmul.mubr.f32.gmra.mrb[0].mxu0 %v6001
    %v6424 = vpop.f32.mrb[0].mxu0
    %v6425 = vadd.f32 0.0, %v6424
    %v6426 = vpop.f32.mrb[0].mxu0
    %v6427 = vadd.f32 0.0, %v6426
    %6428 = vdwg.mxu0
    %6429 = vmatprep.subr.mxu0 %v5980
    %6430 = vmatpush1.msra.mxu0 %v5979
    %6431 = vmatprep.subr.mxu0 %v5996
    %6432 = vmatpush1.msra.mxu0 %v5995
    %6433 = vmatprep.subr.mxu0 0.0
    %6434 = vmatpush1.msra.mxu0 0.0
    %6435 = vmatprep.subr.mxu0 0.0
    %6436 = vmatpush1.msra.mxu0 0.0
    %6437 = vmatprep.subr.mxu0 0.0
    %6438 = vmatpush1.msra.mxu0 0.0
    %6439 = vmatprep.subr.mxu0 0.0
    %6440 = vmatpush1.msra.mxu0 0.0
    %6441 = vmatprep.subr.mxu0 0.0
    %6442 = vmatpush1.msra.mxu0 0.0
    %6443 = vmatprep.subr.mxu0 0.0
    %6444 = vmatpush1.msra.mxu0 0.0
    %6445 = vmatprep.subr.mxu0 0.0
    %6446 = vmatpush1.msra.mxu0 0.0
    %6447 = vmatprep.subr.mxu0 0.0
    %6448 = vmatpush1.msra.mxu0 0.0
    %6449 = vmatprep.subr.mxu0 0.0
    %6450 = vmatpush1.msra.mxu0 0.0
    %6451 = vmatprep.subr.mxu0 0.0
    %6452 = vmatpush1.msra.mxu0 0.0
    %6453 = vmatprep.subr.mxu0 0.0
    %6454 = vmatpush1.msra.mxu0 0.0
    %6455 = vmatprep.subr.mxu0 0.0
    %6456 = vmatpush1.msra.mxu0 0.0
    %6457 = vmatprep.subr.mxu0 0.0
    %6458 = vmatpush1.msra.mxu0 0.0
    %6459 = vmatprep.subr.mxu0 0.0
    %6460 = vmatpush1.msra.mxu0 0.0
    %6461 = vmatprep.subr.mxu0 0.0
    %6462 = vmatpush1.msra.mxu0 0.0
    %6463 = vmatprep.subr.mxu0 0.0
    %6464 = vmatpush1.msra.mxu0 0.0
    %6465 = vmatprep.subr.mxu0 0.0
    %6466 = vmatpush1.msra.mxu0 0.0
    %6467 = vmatprep.subr.mxu0 0.0
    %6468 = vmatpush1.msra.mxu0 0.0
    %6469 = vmatprep.subr.mxu0 0.0
    %6470 = vmatpush1.msra.mxu0 0.0
    %6471 = vmatprep.subr.mxu0 0.0
    %6472 = vmatpush1.msra.mxu0 0.0
    %6473 = vmatprep.subr.mxu0 0.0
    %6474 = vmatpush1.msra.mxu0 0.0
    %6475 = vmatprep.subr.mxu0 0.0
    %6476 = vmatpush1.msra.mxu0 0.0
    %6477 = vmatprep.subr.mxu0 0.0
    %6478 = vmatpush1.msra.mxu0 0.0
    %6479 = vmatprep.subr.mxu0 0.0
    %6480 = vmatpush1.msra.mxu0 0.0
    %6481 = vmatprep.subr.mxu0 0.0
    %6482 = vmatpush1.msra.mxu0 0.0
    %6483 = vmatprep.subr.mxu0 0.0
    %6484 = vmatpush1.msra.mxu0 0.0
    %6485 = vmatprep.subr.mxu0 0.0
    %6486 = vmatpush1.msra.mxu0 0.0
    %6487 = vmatprep.subr.mxu0 0.0
    %6488 = vmatpush1.msra.mxu0 0.0
    %6489 = vmatprep.subr.mxu0 0.0
    %6490 = vmatpush1.msra.mxu0 0.0
    %6491 = vmatprep.subr.mxu0 0.0
    %6492 = vmatpush1.msra.mxu0 0.0
    %6493 = vmatprep.mubr.f32.mxu0 0.0
    %6494 = vmatmul.mubr.f32.gmra.mrb[0].mxu0 %v6001
    %v6495 = vpop.f32.mrb[0].mxu0
    %v6496 = vadd.f32 0.0, %v6495
    %v6497 = vpop.f32.mrb[0].mxu0
    %v6498 = vadd.f32 0.0, %v6497
    %6499 = vdwg.mxu0
    %6500 = vmatprep.subr.mxu0 %v5982
    %6501 = vmatpush1.msra.mxu0 %v5981
    %6502 = vmatprep.subr.mxu0 %v5998
    %6503 = vmatpush1.msra.mxu0 %v5997
    %6504 = vmatprep.subr.mxu0 0.0
    %6505 = vmatpush1.msra.mxu0 0.0
    %6506 = vmatprep.subr.mxu0 0.0
    %6507 = vmatpush1.msra.mxu0 0.0
    %6508 = vmatprep.subr.mxu0 0.0
    %6509 = vmatpush1.msra.mxu0 0.0
    %6510 = vmatprep.subr.mxu0 0.0
    %6511 = vmatpush1.msra.mxu0 0.0
    %6512 = vmatprep.subr.mxu0 0.0
    %6513 = vmatpush1.msra.mxu0 0.0
    %6514 = vmatprep.subr.mxu0 0.0
    %6515 = vmatpush1.msra.mxu0 0.0
    %6516 = vmatprep.subr.mxu0 0.0
    %6517 = vmatpush1.msra.mxu0 0.0
    %6518 = vmatprep.subr.mxu0 0.0
    %6519 = vmatpush1.msra.mxu0 0.0
    %6520 = vmatprep.subr.mxu0 0.0
    %6521 = vmatpush1.msra.mxu0 0.0
    %6522 = vmatprep.subr.mxu0 0.0
    %6523 = vmatpush1.msra.mxu0 0.0
    %6524 = vmatprep.subr.mxu0 0.0
    %6525 = vmatpush1.msra.mxu0 0.0
    %6526 = vmatprep.subr.mxu0 0.0
    %6527 = vmatpush1.msra.mxu0 0.0
    %6528 = vmatprep.subr.mxu0 0.0
    %6529 = vmatpush1.msra.mxu0 0.0
    %6530 = vmatprep.subr.mxu0 0.0
    %6531 = vmatpush1.msra.mxu0 0.0
    %6532 = vmatprep.subr.mxu0 0.0
    %6533 = vmatpush1.msra.mxu0 0.0
    %6534 = vmatprep.subr.mxu0 0.0
    %6535 = vmatpush1.msra.mxu0 0.0
    %6536 = vmatprep.subr.mxu0 0.0
    %6537 = vmatpush1.msra.mxu0 0.0
    %6538 = vmatprep.subr.mxu0 0.0
    %6539 = vmatpush1.msra.mxu0 0.0
    %6540 = vmatprep.subr.mxu0 0.0
    %6541 = vmatpush1.msra.mxu0 0.0
    %6542 = vmatprep.subr.mxu0 0.0
    %6543 = vmatpush1.msra.mxu0 0.0
    %6544 = vmatprep.subr.mxu0 0.0
    %6545 = vmatpush1.msra.mxu0 0.0
    %6546 = vmatprep.subr.mxu0 0.0
    %6547 = vmatpush1.msra.mxu0 0.0
    %6548 = vmatprep.subr.mxu0 0.0
    %6549 = vmatpush1.msra.mxu0 0.0
    %6550 = vmatprep.subr.mxu0 0.0
    %6551 = vmatpush1.msra.mxu0 0.0
    %6552 = vmatprep.subr.mxu0 0.0
    %6553 = vmatpush1.msra.mxu0 0.0
    %6554 = vmatprep.subr.mxu0 0.0
    %6555 = vmatpush1.msra.mxu0 0.0
    %6556 = vmatprep.subr.mxu0 0.0
    %6557 = vmatpush1.msra.mxu0 0.0
    %6558 = vmatprep.subr.mxu0 0.0
    %6559 = vmatpush1.msra.mxu0 0.0
    %6560 = vmatprep.subr.mxu0 0.0
    %6561 = vmatpush1.msra.mxu0 0.0
    %6562 = vmatprep.subr.mxu0 0.0
    %6563 = vmatpush1.msra.mxu0 0.0
    %6564 = vmatprep.mubr.f32.mxu0 0.0
    %6565 = vmatmul.mubr.f32.gmra.mrb[0].mxu0 %v6001
    %v6566 = vpop.f32.mrb[0].mxu0
    %v6567 = vadd.f32 0.0, %v6566
    %v6568 = vpop.f32.mrb[0].mxu0
    %v6569 = vadd.f32 0.0, %v6568
    %6570 = vdwg.mxu0
    %v6587 = vcombine.low %v6070, %v6072
    %v6588 = vcombine.low %v6141, %v6143
    %v6589 = vcombine.low %v6212, %v6214
    %v6590 = vcombine.low %v6283, %v6285
    %v6592 = vunpack.c.l.s4 1966171168
    %v6593 = vunpack.c.0.s8 %v6592
    %v6594 = vlaneseq
    %v6595 = vshrl.u32 %v6594, 7
    %v6596 = vsub.s32 %v6593, %v6595
    %v6597 = vrot.slane %v6587, %v6596
    %v6599 = vunpack.c.l.s4 1966171168
    %v6600 = vunpack.c.0.s8 %v6599
    %v6601 = vlaneseq
    %v6602 = vshrl.u32 %v6601, 7
    %v6603 = vsub.s32 %v6600, %v6602
    %v6604 = vrot.slane %v6588, %v6603
    %v6606 = vunpack.c.l.s4 1966171168
    %v6607 = vunpack.c.0.s8 %v6606
    %v6608 = vlaneseq
    %v6609 = vshrl.u32 %v6608, 7
    %v6610 = vsub.s32 %v6607, %v6609
    %v6611 = vrot.slane %v6589, %v6610
    %v6613 = vunpack.c.l.s4 1966171168
    %v6614 = vunpack.c.0.s8 %v6613
    %v6615 = vlaneseq
    %v6616 = vshrl.u32 %v6615, 7
    %v6617 = vsub.s32 %v6614, %v6616
    %v6618 = vrot.slane %v6590, %v6617
    %v6619 = vcombine.low %v6597, %v6604
    %v6620 = vcombine.low %v6611, %v6618
    %v6622 = vunpack.c.l.s4 1966171168
    %v6623 = vunpack.c.0.s8 %v6622
    %v6624 = vlaneseq
    %v6625 = vshrl.u32 %v6624, 7
    %v6626 = vsub.s32 %v6623, %v6625
    %v6627 = vrot.slane %v6619, %v6626
    %v6629 = vunpack.c.l.s4 1966171168
    %v6630 = vunpack.c.0.s8 %v6629
    %v6631 = vlaneseq
    %v6632 = vshrl.u32 %v6631, 7
    %v6633 = vsub.s32 %v6630, %v6632
    %v6634 = vrot.slane %v6620, %v6633
    %v6635 = vcombine.low %v6627, %v6634
    %v6636 = vcombine.low %v6354, %v6356
    %v6637 = vcombine.low %v6425, %v6427
    %v6638 = vcombine.low %v6496, %v6498
    %v6639 = vcombine.low %v6567, %v6569
    %v6641 = vunpack.c.l.s4 1966171168
    %v6642 = vunpack.c.0.s8 %v6641
    %v6643 = vlaneseq
    %v6644 = vshrl.u32 %v6643, 7
    %v6645 = vsub.s32 %v6642, %v6644
    %v6646 = vrot.slane %v6636, %v6645
    %v6648 = vunpack.c.l.s4 1966171168
    %v6649 = vunpack.c.0.s8 %v6648
    %v6650 = vlaneseq
    %v6651 = vshrl.u32 %v6650, 7
    %v6652 = vsub.s32 %v6649, %v6651
    %v6653 = vrot.slane %v6637, %v6652
    %v6655 = vunpack.c.l.s4 1966171168
    %v6656 = vunpack.c.0.s8 %v6655
    %v6657 = vlaneseq
    %v6658 = vshrl.u32 %v6657, 7
    %v6659 = vsub.s32 %v6656, %v6658
    %v6660 = vrot.slane %v6638, %v6659
    %v6662 = vunpack.c.l.s4 1966171168
    %v6663 = vunpack.c.0.s8 %v6662
    %v6664 = vlaneseq
    %v6665 = vshrl.u32 %v6664, 7
    %v6666 = vsub.s32 %v6663, %v6665
    %v6667 = vrot.slane %v6639, %v6666
    %v6668 = vcombine.low %v6646, %v6653
    %v6669 = vcombine.low %v6660, %v6667
    %v6671 = vunpack.c.l.s4 1966171168
    %v6672 = vunpack.c.0.s8 %v6671
    %v6673 = vlaneseq
    %v6674 = vshrl.u32 %v6673, 7
    %v6675 = vsub.s32 %v6672, %v6674
    %v6676 = vrot.slane %v6668, %v6675
    %v6678 = vunpack.c.l.s4 1966171168
    %v6679 = vunpack.c.0.s8 %v6678
    %v6680 = vlaneseq
    %v6681 = vshrl.u32 %v6680, 7
    %v6682 = vsub.s32 %v6679, %v6681
    %v6683 = vrot.slane %v6669, %v6682
    %v6684 = vcombine.low %v6676, %v6683
    %v6687 = vsub.f32 0.0, %v6635
    %v6688 = vsub.f32 0.0, %v6684
    %v6689 = vmul.f32 %v6687, 1.442695
    %v6690 = vpow.pop %v6689
    %v6691 = vmul.f32 %v6688, 1.442695
    %v6692 = vpow.pop %v6691
    %v6693 = vadd.f32 %v6690, 1.0
    %v6694 = vadd.f32 %v6692, 1.0
    %v6695 = vrcp.pop %v6693
    %v6696 = vmul.f32 1.0, %v6695
    %v6697 = vrcp.pop %v6694
    %v6698 = vmul.f32 1.0, %v6697
    %v6699 = vld [vmem:[#allocation8] sm:$0xff]
    %v6700 = vld [vmem:[#allocation8 + $0x8] sm:$0xff]
    %v6701 = vld [vmem:[#allocation8 + $0x10] sm:$0xff]
    %v6702 = vld [vmem:[#allocation8 + $0x18] sm:$0xff]
    %v6703 = vld [vmem:[#allocation8 + $0x20] sm:$0xff]
    %v6704 = vld [vmem:[#allocation8 + $0x28] sm:$0xff]
    %v6705 = vld [vmem:[#allocation8 + $0x30] sm:$0xff]
    %v6706 = vld [vmem:[#allocation8 + $0x38] sm:$0xff]
    %v6707 = vld [vmem:[#allocation8 + $0x40] sm:$0xff]
    %v6708 = vld [vmem:[#allocation8 + $0x48] sm:$0xff]
    %v6709 = vld [vmem:[#allocation8 + $0x50] sm:$0xff]
    %v6710 = vld [vmem:[#allocation8 + $0x58] sm:$0xff]
    %v6711 = vld [vmem:[#allocation8 + $0x60] sm:$0xff]
    %v6712 = vld [vmem:[#allocation8 + $0x68] sm:$0xff]
    %v6713 = vld [vmem:[#allocation8 + $0x70] sm:$0xff]
    %v6714 = vld [vmem:[#allocation8 + $0x78] sm:$0xff]
    %v6715 = vld [vmem:[#allocation8 + $0x80] sm:$0xff]
    %v6716 = vld [vmem:[#allocation8 + $0x88] sm:$0xff]
    %v6717 = vld [vmem:[#allocation8 + $0x90] sm:$0xff]
    %v6718 = vld [vmem:[#allocation8 + $0x98] sm:$0xff]
    %v6719 = vld [vmem:[#allocation8 + $0xa0] sm:$0xff]
    %v6720 = vld [vmem:[#allocation8 + $0xa8] sm:$0xff]
    %v6721 = vld [vmem:[#allocation8 + $0xb0] sm:$0xff]
    %v6722 = vld [vmem:[#allocation8 + $0xb8] sm:$0xff]
    %v6723 = vld [vmem:[#allocation8 + $0xc0] sm:$0xff]
    %v6724 = vld [vmem:[#allocation8 + $0xc8] sm:$0xff]
    %v6725 = vld [vmem:[#allocation8 + $0xd0] sm:$0xff]
    %v6726 = vld [vmem:[#allocation8 + $0xd8] sm:$0xff]
    %v6727 = vld [vmem:[#allocation8 + $0xe0] sm:$0xff]
    %v6728 = vld [vmem:[#allocation8 + $0xe8] sm:$0xff]
    %v6729 = vld [vmem:[#allocation8 + $0xf0] sm:$0xff]
    %v6730 = vld [vmem:[#allocation8 + $0xf8] sm:$0xff]
    %6731 = vmatprep.subr.mxu0 %v6700
    %6732 = vmatpush1.msra.mxu0 %v6699
    %6733 = vmatprep.subr.mxu0 %v6702
    %6734 = vmatpush1.msra.mxu0 %v6701
    %6735 = vmatprep.subr.mxu0 %v6704
    %6736 = vmatpush1.msra.mxu0 %v6703
    %6737 = vmatprep.subr.mxu0 %v6706
    %6738 = vmatpush1.msra.mxu0 %v6705
    %6739 = vmatprep.subr.mxu0 %v6708
    %6740 = vmatpush1.msra.mxu0 %v6707
    %6741 = vmatprep.subr.mxu0 %v6710
    %6742 = vmatpush1.msra.mxu0 %v6709
    %6743 = vmatprep.subr.mxu0 %v6712
    %6744 = vmatpush1.msra.mxu0 %v6711
    %6745 = vmatprep.subr.mxu0 %v6714
    %6746 = vmatpush1.msra.mxu0 %v6713
    %6747 = vmatprep.subr.mxu0 %v6716
    %6748 = vmatpush1.msra.mxu0 %v6715
    %6749 = vmatprep.subr.mxu0 %v6718
    %6750 = vmatpush1.msra.mxu0 %v6717
    %6751 = vmatprep.subr.mxu0 %v6720
    %6752 = vmatpush1.msra.mxu0 %v6719
    %6753 = vmatprep.subr.mxu0 %v6722
    %6754 = vmatpush1.msra.mxu0 %v6721
    %6755 = vmatprep.subr.mxu0 %v6724
    %6756 = vmatpush1.msra.mxu0 %v6723
    %6757 = vmatprep.subr.mxu0 %v6726
    %6758 = vmatpush1.msra.mxu0 %v6725
    %6759 = vmatprep.subr.mxu0 %v6728
    %6760 = vmatpush1.msra.mxu0 %v6727
    %6761 = vmatprep.subr.mxu0 %v6730
    %6762 = vmatpush1.msra.mxu0 %v6729
    %6763 = vmatprep.subr.mxu0 0.0
    %6764 = vmatpush1.msra.mxu0 0.0
    %6765 = vmatprep.subr.mxu0 0.0
    %6766 = vmatpush1.msra.mxu0 0.0
    %6767 = vmatprep.subr.mxu0 0.0
    %6768 = vmatpush1.msra.mxu0 0.0
    %6769 = vmatprep.subr.mxu0 0.0
    %6770 = vmatpush1.msra.mxu0 0.0
    %6771 = vmatprep.subr.mxu0 0.0
    %6772 = vmatpush1.msra.mxu0 0.0
    %6773 = vmatprep.subr.mxu0 0.0
    %6774 = vmatpush1.msra.mxu0 0.0
    %6775 = vmatprep.subr.mxu0 0.0
    %6776 = vmatpush1.msra.mxu0 0.0
    %6777 = vmatprep.subr.mxu0 0.0
    %6778 = vmatpush1.msra.mxu0 0.0
    %6779 = vmatprep.subr.mxu0 0.0
    %6780 = vmatpush1.msra.mxu0 0.0
    %6781 = vmatprep.subr.mxu0 0.0
    %6782 = vmatpush1.msra.mxu0 0.0
    %6783 = vmatprep.subr.mxu0 0.0
    %6784 = vmatpush1.msra.mxu0 0.0
    %6785 = vmatprep.subr.mxu0 0.0
    %6786 = vmatpush1.msra.mxu0 0.0
    %6787 = vmatprep.subr.mxu0 0.0
    %6788 = vmatpush1.msra.mxu0 0.0
    %6789 = vmatprep.subr.mxu0 0.0
    %6790 = vmatpush1.msra.mxu0 0.0
    %6791 = vmatprep.subr.mxu0 0.0
    %6792 = vmatpush1.msra.mxu0 0.0
    %6793 = vmatprep.subr.mxu0 0.0
    %6794 = vmatpush1.msra.mxu0 0.0
    %6795 = vmatprep.mubr.f32.mxu0 0.0
    %6796 = vmatmul.mubr.f32.gmra.mrb[0].mxu0 %v5964
    %v6797 = vpop.f32.mrb[0].mxu0
    %v6798 = vadd.f32 0.0, %v6797
    %v6799 = vpop.f32.mrb[0].mxu0
    %v6800 = vadd.f32 0.0, %v6799
    %6801 = vmatprep.mubr.f32.mxu0 0.0
    %6802 = vmatmul.mubr.f32.gmra.mrb[0].mxu0 %v5966
    %v6803 = vpop.f32.mrb[0].mxu0
    %v6804 = vadd.f32 0.0, %v6803
    %v6805 = vpop.f32.mrb[0].mxu0
    %v6806 = vadd.f32 0.0, %v6805
    %6807 = vdwg.mxu0
    %v6808 = vld [vmem:[#allocation9] sm:$0xff]
    %v6809 = vld [vmem:[#allocation9 + $0x8] sm:$0xff]
    %v6810 = vld [vmem:[#allocation9 + $0x10] sm:$0xff]
    %v6811 = vld [vmem:[#allocation9 + $0x18] sm:$0xff]
    %v6812 = vld [vmem:[#allocation9 + $0x20] sm:$0xff]
    %v6813 = vld [vmem:[#allocation9 + $0x28] sm:$0xff]
    %v6814 = vld [vmem:[#allocation9 + $0x30] sm:$0xff]
    %v6815 = vld [vmem:[#allocation9 + $0x38] sm:$0xff]
    %v6816 = vld [vmem:[#allocation9 + $0x40] sm:$0xff]
    %v6817 = vld [vmem:[#allocation9 + $0x48] sm:$0xff]
    %v6818 = vld [vmem:[#allocation9 + $0x50] sm:$0xff]
    %v6819 = vld [vmem:[#allocation9 + $0x58] sm:$0xff]
    %v6820 = vld [vmem:[#allocation9 + $0x60] sm:$0xff]
    %v6821 = vld [vmem:[#allocation9 + $0x68] sm:$0xff]
    %v6822 = vld [vmem:[#allocation9 + $0x70] sm:$0xff]
    %v6823 = vld [vmem:[#allocation9 + $0x78] sm:$0xff]
    %v6824 = vld [vmem:[#allocation9 + $0x80] sm:$0xff]
    %v6825 = vld [vmem:[#allocation9 + $0x88] sm:$0xff]
    %v6826 = vld [vmem:[#allocation9 + $0x90] sm:$0xff]
    %v6827 = vld [vmem:[#allocation9 + $0x98] sm:$0xff]
    %v6828 = vld [vmem:[#allocation9 + $0xa0] sm:$0xff]
    %v6829 = vld [vmem:[#allocation9 + $0xa8] sm:$0xff]
    %v6830 = vld [vmem:[#allocation9 + $0xb0] sm:$0xff]
    %v6831 = vld [vmem:[#allocation9 + $0xb8] sm:$0xff]
    %v6832 = vld [vmem:[#allocation9 + $0xc0] sm:$0xff]
    %v6833 = vld [vmem:[#allocation9 + $0xc8] sm:$0xff]
    %v6834 = vld [vmem:[#allocation9 + $0xd0] sm:$0xff]
    %v6835 = vld [vmem:[#allocation9 + $0xd8] sm:$0xff]
    %v6836 = vld [vmem:[#allocation9 + $0xe0] sm:$0xff]
    %v6837 = vld [vmem:[#allocation9 + $0xe8] sm:$0xff]
    %v6838 = vld [vmem:[#allocation9 + $0xf0] sm:$0xff]
    %v6839 = vld [vmem:[#allocation9 + $0xf8] sm:$0xff]
    %6840 = vmatprep.subr.mxu0 %v6809
    %6841 = vmatpush1.msra.mxu0 %v6808
    %6842 = vmatprep.subr.mxu0 %v6811
    %6843 = vmatpush1.msra.mxu0 %v6810
    %6844 = vmatprep.subr.mxu0 %v6813
    %6845 = vmatpush1.msra.mxu0 %v6812
    %6846 = vmatprep.subr.mxu0 %v6815
    %6847 = vmatpush1.msra.mxu0 %v6814
    %6848 = vmatprep.subr.mxu0 %v6817
    %6849 = vmatpush1.msra.mxu0 %v6816
    %6850 = vmatprep.subr.mxu0 %v6819
    %6851 = vmatpush1.msra.mxu0 %v6818
    %6852 = vmatprep.subr.mxu0 %v6821
    %6853 = vmatpush1.msra.mxu0 %v6820
    %6854 = vmatprep.subr.mxu0 %v6823
    %6855 = vmatpush1.msra.mxu0 %v6822
    %6856 = vmatprep.subr.mxu0 %v6825
    %6857 = vmatpush1.msra.mxu0 %v6824
    %6858 = vmatprep.subr.mxu0 %v6827
    %6859 = vmatpush1.msra.mxu0 %v6826
    %6860 = vmatprep.subr.mxu0 %v6829
    %6861 = vmatpush1.msra.mxu0 %v6828
    %6862 = vmatprep.subr.mxu0 %v6831
    %6863 = vmatpush1.msra.mxu0 %v6830
    %6864 = vmatprep.subr.mxu0 %v6833
    %6865 = vmatpush1.msra.mxu0 %v6832
    %6866 = vmatprep.subr.mxu0 %v6835
    %6867 = vmatpush1.msra.mxu0 %v6834
    %6868 = vmatprep.subr.mxu0 %v6837
    %6869 = vmatpush1.msra.mxu0 %v6836
    %6870 = vmatprep.subr.mxu0 %v6839
    %6871 = vmatpush1.msra.mxu0 %v6838
    %6872 = vmatprep.subr.mxu0 0.0
    %6873 = vmatpush1.msra.mxu0 0.0
    %6874 = vmatprep.subr.mxu0 0.0
    %6875 = vmatpush1.msra.mxu0 0.0
    %6876 = vmatprep.subr.mxu0 0.0
    %6877 = vmatpush1.msra.mxu0 0.0
    %6878 = vmatprep.subr.mxu0 0.0
    %6879 = vmatpush1.msra.mxu0 0.0
    %6880 = vmatprep.subr.mxu0 0.0
    %6881 = vmatpush1.msra.mxu0 0.0
    %6882 = vmatprep.subr.mxu0 0.0
    %6883 = vmatpush1.msra.mxu0 0.0
    %6884 = vmatprep.subr.mxu0 0.0
    %6885 = vmatpush1.msra.mxu0 0.0
    %6886 = vmatprep.subr.mxu0 0.0
    %6887 = vmatpush1.msra.mxu0 0.0
    %6888 = vmatprep.subr.mxu0 0.0
    %6889 = vmatpush1.msra.mxu0 0.0
    %6890 = vmatprep.subr.mxu0 0.0
    %6891 = vmatpush1.msra.mxu0 0.0
    %6892 = vmatprep.subr.mxu0 0.0
    %6893 = vmatpush1.msra.mxu0 0.0
    %6894 = vmatprep.subr.mxu0 0.0
    %6895 = vmatpush1.msra.mxu0 0.0
    %6896 = vmatprep.subr.mxu0 0.0
    %6897 = vmatpush1.msra.mxu0 0.0
    %6898 = vmatprep.subr.mxu0 0.0
    %6899 = vmatpush1.msra.mxu0 0.0
    %6900 = vmatprep.subr.mxu0 0.0
    %6901 = vmatpush1.msra.mxu0 0.0
    %6902 = vmatprep.subr.mxu0 0.0
    %6903 = vmatpush1.msra.mxu0 0.0
    %6904 = vmatprep.mubr.f32.mxu0 0.0
    %6905 = vmatmul.mubr.f32.gmra.mrb[0].mxu0 %v6696
    %v6906 = vpop.f32.mrb[0].mxu0
    %v6907 = vadd.f32 0.0, %v6906
    %v6908 = vpop.f32.mrb[0].mxu0
    %v6909 = vadd.f32 0.0, %v6908
    %6910 = vmatprep.mubr.f32.mxu0 0.0
    %6911 = vmatmul.mubr.f32.gmra.mrb[0].mxu0 %v6698
    %v6912 = vpop.f32.mrb[0].mxu0
    %v6913 = vadd.f32 0.0, %v6912
    %v6914 = vpop.f32.mrb[0].mxu0
    %v6915 = vadd.f32 0.0, %v6914
    %6916 = vdwg.mxu0
    %v6917 = vmul.f32 %v6798, %v6907
    %v6918 = vmul.f32 %v6800, %v6909
    %v6919 = vmul.f32 %v6804, %v6913
    %v6920 = vmul.f32 %v6806, %v6915
    %6921 = vxpose.xlu0.b32.start [1/16] %v5234, 128
    %6922 = vxpose.xlu0.b32.cont [2/16] %v5235, 128
    %6923 = vxpose.xlu0.b32.cont [3/16] 0.0, 128
    %6924 = vxpose.xlu0.b32.cont [4/16] 0.0, 128
    %6925 = vxpose.xlu0.b32.cont [5/16] 0.0, 128
    %6926 = vxpose.xlu0.b32.cont [6/16] 0.0, 128
    %6927 = vxpose.xlu0.b32.cont [7/16] 0.0, 128
    %6928 = vxpose.xlu0.b32.cont [8/16] 0.0, 128
    %6929 = vxpose.xlu0.b32.cont [9/16] 0.0, 128
    %6930 = vxpose.xlu0.b32.cont [10/16] 0.0, 128
    %6931 = vxpose.xlu0.b32.cont [11/16] 0.0, 128
    %6932 = vxpose.xlu0.b32.cont [12/16] 0.0, 128
    %6933 = vxpose.xlu0.b32.cont [13/16] 0.0, 128
    %6934 = vxpose.xlu0.b32.cont [14/16] 0.0, 128
    %6935 = vxpose.xlu0.b32.cont [15/16] 0.0, 128
    %6936 = vxpose.xlu0.b32.end [16/16] 0.0, 128
    %v6937 = vpop.trf.xlu0
    %v6938 = vpop.trf.xlu0
    %v6939 = vpop.trf.xlu0
    %v6940 = vpop.trf.xlu0
    %v6941 = vpop.trf.xlu0
    %v6942 = vpop.trf.xlu0
    %v6943 = vpop.trf.xlu0
    %v6944 = vpop.trf.xlu0
    %v6945 = vpop.trf.xlu0
    %v6946 = vpop.trf.xlu0
    %v6947 = vpop.trf.xlu0
    %v6948 = vpop.trf.xlu0
    %v6949 = vpop.trf.xlu0
    %v6950 = vpop.trf.xlu0
    %v6951 = vpop.trf.xlu0
    %v6952 = vpop.trf.xlu0
    %v6954 = vsel %vm2003, %v6937, 0
    %v6957 = vsel %vm2003, %v6938, 0
    %v6960 = vsel %vm2003, %v6939, 0
    %v6963 = vsel %vm2003, %v6940, 0
    %v6966 = vsel %vm2003, %v6941, 0
    %v6969 = vsel %vm2003, %v6942, 0
    %v6972 = vsel %vm2003, %v6943, 0
    %v6975 = vsel %vm2003, %v6944, 0
    %v6978 = vsel %vm2003, %v6945, 0
    %v6981 = vsel %vm2003, %v6946, 0
    %v6984 = vsel %vm2003, %v6947, 0
    %v6987 = vsel %vm2003, %v6948, 0
    %v6990 = vsel %vm2003, %v6949, 0
    %v6993 = vsel %vm2003, %v6950, 0
    %v6996 = vsel %vm2003, %v6951, 0
    %v6999 = vsel %vm2003, %v6952, 0
    %7001 = vmatprep.subr.mxu0 %v6918
    %7002 = vmatpush1.msra.mxu0 %v6917
    %7003 = vmatprep.subr.mxu0 %v6920
    %7004 = vmatpush1.msra.mxu0 %v6919
    %7005 = vmatprep.subr.mxu0 0.0
    %7006 = vmatpush1.msra.mxu0 0.0
    %7007 = vmatprep.subr.mxu0 0.0
    %7008 = vmatpush1.msra.mxu0 0.0
    %7009 = vmatprep.subr.mxu0 0.0
    %7010 = vmatpush1.msra.mxu0 0.0
    %7011 = vmatprep.subr.mxu0 0.0
    %7012 = vmatpush1.msra.mxu0 0.0
    %7013 = vmatprep.subr.mxu0 0.0
    %7014 = vmatpush1.msra.mxu0 0.0
    %7015 = vmatprep.subr.mxu0 0.0
    %7016 = vmatpush1.msra.mxu0 0.0
    %7017 = vmatprep.subr.mxu0 0.0
    %7018 = vmatpush1.msra.mxu0 0.0
    %7019 = vmatprep.subr.mxu0 0.0
    %7020 = vmatpush1.msra.mxu0 0.0
    %7021 = vmatprep.subr.mxu0 0.0
    %7022 = vmatpush1.msra.mxu0 0.0
    %7023 = vmatprep.subr.mxu0 0.0
    %7024 = vmatpush1.msra.mxu0 0.0
    %7025 = vmatprep.subr.mxu0 0.0
    %7026 = vmatpush1.msra.mxu0 0.0
    %7027 = vmatprep.subr.mxu0 0.0
    %7028 = vmatpush1.msra.mxu0 0.0
    %7029 = vmatprep.subr.mxu0 0.0
    %7030 = vmatpush1.msra.mxu0 0.0
    %7031 = vmatprep.subr.mxu0 0.0
    %7032 = vmatpush1.msra.mxu0 0.0
    %7033 = vmatprep.subr.mxu0 0.0
    %7034 = vmatpush1.msra.mxu0 0.0
    %7035 = vmatprep.subr.mxu0 0.0
    %7036 = vmatpush1.msra.mxu0 0.0
    %7037 = vmatprep.subr.mxu0 0.0
    %7038 = vmatpush1.msra.mxu0 0.0
    %7039 = vmatprep.subr.mxu0 0.0
    %7040 = vmatpush1.msra.mxu0 0.0
    %7041 = vmatprep.subr.mxu0 0.0
    %7042 = vmatpush1.msra.mxu0 0.0
    %7043 = vmatprep.subr.mxu0 0.0
    %7044 = vmatpush1.msra.mxu0 0.0
    %7045 = vmatprep.subr.mxu0 0.0
    %7046 = vmatpush1.msra.mxu0 0.0
    %7047 = vmatprep.subr.mxu0 0.0
    %7048 = vmatpush1.msra.mxu0 0.0
    %7049 = vmatprep.subr.mxu0 0.0
    %7050 = vmatpush1.msra.mxu0 0.0
    %7051 = vmatprep.subr.mxu0 0.0
    %7052 = vmatpush1.msra.mxu0 0.0
    %7053 = vmatprep.subr.mxu0 0.0
    %7054 = vmatpush1.msra.mxu0 0.0
    %7055 = vmatprep.subr.mxu0 0.0
    %7056 = vmatpush1.msra.mxu0 0.0
    %7057 = vmatprep.subr.mxu0 0.0
    %7058 = vmatpush1.msra.mxu0 0.0
    %7059 = vmatprep.subr.mxu0 0.0
    %7060 = vmatpush1.msra.mxu0 0.0
    %7061 = vmatprep.subr.mxu0 0.0
    %7062 = vmatpush1.msra.mxu0 0.0
    %7063 = vmatprep.subr.mxu0 0.0
    %7064 = vmatpush1.msra.mxu0 0.0
    %7065 = vmatprep.mubr.f32.mxu0 0.0
    %7066 = vmatmul.mubr.f32.gmra.mrb[0].mxu0 %v6954
    %v7067 = vpop.f32.mrb[0].mxu0
    %v7068 = vadd.f32 0.0, %v7067
    %v7069 = vpop.f32.mrb[0].mxu0
    %v7070 = vadd.f32 0.0, %v7069
    %7071 = vmatprep.mubr.f32.mxu0 0.0
    %7072 = vmatmul.mubr.f32.gmra.mrb[0].mxu0 %v6957
    %v7073 = vpop.f32.mrb[0].mxu0
    %v7074 = vadd.f32 0.0, %v7073
    %v7075 = vpop.f32.mrb[0].mxu0
    %v7076 = vadd.f32 0.0, %v7075
    %7077 = vmatprep.mubr.f32.mxu0 0.0
    %7078 = vmatmul.mubr.f32.gmra.mrb[0].mxu0 %v6960
    %v7079 = vpop.f32.mrb[0].mxu0
    %v7080 = vadd.f32 0.0, %v7079
    %v7081 = vpop.f32.mrb[0].mxu0
    %v7082 = vadd.f32 0.0, %v7081
    %7083 = vmatprep.mubr.f32.mxu0 0.0
    %7084 = vmatmul.mubr.f32.gmra.mrb[0].mxu0 %v6963
    %v7085 = vpop.f32.mrb[0].mxu0
    %v7086 = vadd.f32 0.0, %v7085
    %v7087 = vpop.f32.mrb[0].mxu0
    %v7088 = vadd.f32 0.0, %v7087
    %7089 = vmatprep.mubr.f32.mxu0 0.0
    %7090 = vmatmul.mubr.f32.gmra.mrb[0].mxu0 %v6966
    %v7091 = vpop.f32.mrb[0].mxu0
    %v7092 = vadd.f32 0.0, %v7091
    %v7093 = vpop.f32.mrb[0].mxu0
    %v7094 = vadd.f32 0.0, %v7093
    %7095 = vmatprep.mubr.f32.mxu0 0.0
    %7096 = vmatmul.mubr.f32.gmra.mrb[0].mxu0 %v6969
    %v7097 = vpop.f32.mrb[0].mxu0
    %v7098 = vadd.f32 0.0, %v7097
    %v7099 = vpop.f32.mrb[0].mxu0
    %v7100 = vadd.f32 0.0, %v7099
    %7101 = vmatprep.mubr.f32.mxu0 0.0
    %7102 = vmatmul.mubr.f32.gmra.mrb[0].mxu0 %v6972
    %v7103 = vpop.f32.mrb[0].mxu0
    %v7104 = vadd.f32 0.0, %v7103
    %v7105 = vpop.f32.mrb[0].mxu0
    %v7106 = vadd.f32 0.0, %v7105
    %7107 = vmatprep.mubr.f32.mxu0 0.0
    %7108 = vmatmul.mubr.f32.gmra.mrb[0].mxu0 %v6975
    %v7109 = vpop.f32.mrb[0].mxu0
    %v7110 = vadd.f32 0.0, %v7109
    %v7111 = vpop.f32.mrb[0].mxu0
    %v7112 = vadd.f32 0.0, %v7111
    %7113 = vmatprep.mubr.f32.mxu0 0.0
    %7114 = vmatmul.mubr.f32.gmra.mrb[0].mxu0 %v6978
    %v7115 = vpop.f32.mrb[0].mxu0
    %v7116 = vadd.f32 0.0, %v7115
    %v7117 = vpop.f32.mrb[0].mxu0
    %v7118 = vadd.f32 0.0, %v7117
    %7119 = vmatprep.mubr.f32.mxu0 0.0
    %7120 = vmatmul.mubr.f32.gmra.mrb[0].mxu0 %v6981
    %v7121 = vpop.f32.mrb[0].mxu0
    %v7122 = vadd.f32 0.0, %v7121
    %v7123 = vpop.f32.mrb[0].mxu0
    %v7124 = vadd.f32 0.0, %v7123
    %7125 = vmatprep.mubr.f32.mxu0 0.0
    %7126 = vmatmul.mubr.f32.gmra.mrb[0].mxu0 %v6984
    %v7127 = vpop.f32.mrb[0].mxu0
    %v7128 = vadd.f32 0.0, %v7127
    %v7129 = vpop.f32.mrb[0].mxu0
    %v7130 = vadd.f32 0.0, %v7129
    %7131 = vmatprep.mubr.f32.mxu0 0.0
    %7132 = vmatmul.mubr.f32.gmra.mrb[0].mxu0 %v6987
    %v7133 = vpop.f32.mrb[0].mxu0
    %v7134 = vadd.f32 0.0, %v7133
    %v7135 = vpop.f32.mrb[0].mxu0
    %v7136 = vadd.f32 0.0, %v7135
    %7137 = vmatprep.mubr.f32.mxu0 0.0
    %7138 = vmatmul.mubr.f32.gmra.mrb[0].mxu0 %v6990
    %v7139 = vpop.f32.mrb[0].mxu0
    %v7140 = vadd.f32 0.0, %v7139
    %v7141 = vpop.f32.mrb[0].mxu0
    %v7142 = vadd.f32 0.0, %v7141
    %7143 = vmatprep.mubr.f32.mxu0 0.0
    %7144 = vmatmul.mubr.f32.gmra.mrb[0].mxu0 %v6993
    %v7145 = vpop.f32.mrb[0].mxu0
    %v7146 = vadd.f32 0.0, %v7145
    %v7147 = vpop.f32.mrb[0].mxu0
    %v7148 = vadd.f32 0.0, %v7147
    %7149 = vmatprep.mubr.f32.mxu0 0.0
    %7150 = vmatmul.mubr.f32.gmra.mrb[0].mxu0 %v6996
    %v7151 = vpop.f32.mrb[0].mxu0
    %v7152 = vadd.f32 0.0, %v7151
    %v7153 = vpop.f32.mrb[0].mxu0
    %v7154 = vadd.f32 0.0, %v7153
    %7155 = vmatprep.mubr.f32.mxu0 0.0
    %7156 = vmatmul.mubr.f32.gmra.mrb[0].mxu0 %v6999
    %v7157 = vpop.f32.mrb[0].mxu0
    %v7158 = vadd.f32 0.0, %v7157
    %v7159 = vpop.f32.mrb[0].mxu0
    %v7160 = vadd.f32 0.0, %v7159
    %7161 = vdwg.mxu0
    %v7162 = vmul.f32 %v623, %v7068
    %v7163 = vmul.f32 %v624, %v7070
    %v7164 = vmul.f32 %v627, %v7074
    %v7165 = vmul.f32 %v628, %v7076
    %v7166 = vmul.f32 %v631, %v7080
    %v7167 = vmul.f32 %v632, %v7082
    %v7168 = vmul.f32 %v635, %v7086
    %v7169 = vmul.f32 %v636, %v7088
    %v7170 = vmul.f32 %v639, %v7092
    %v7171 = vmul.f32 %v640, %v7094
    %v7172 = vmul.f32 %v643, %v7098
    %v7173 = vmul.f32 %v644, %v7100
    %v7174 = vmul.f32 %v647, %v7104
    %v7175 = vmul.f32 %v648, %v7106
    %v7176 = vmul.f32 %v651, %v7110
    %v7177 = vmul.f32 %v652, %v7112
    %v7178 = vmul.f32 %v655, %v7116
    %v7179 = vmul.f32 %v656, %v7118
    %v7180 = vmul.f32 %v659, %v7122
    %v7181 = vmul.f32 %v660, %v7124
    %v7182 = vmul.f32 %v663, %v7128
    %v7183 = vmul.f32 %v664, %v7130
    %v7184 = vmul.f32 %v667, %v7134
    %v7185 = vmul.f32 %v668, %v7136
    %v7186 = vmul.f32 %v671, %v7140
    %v7187 = vmul.f32 %v672, %v7142
    %v7188 = vmul.f32 %v675, %v7146
    %v7189 = vmul.f32 %v676, %v7148
    %v7190 = vmul.f32 %v679, %v7152
    %v7191 = vmul.f32 %v680, %v7154
    %v7192 = vmul.f32 %v683, %v7158
    %v7193 = vmul.f32 %v684, %v7160
    %v7194 = vmax.f32 %v7162, 0.0
    %v7195 = vmax.f32 %v7163, 0.0
    %v7196 = vmax.f32 %v7164, 0.0
    %v7197 = vmax.f32 %v7165, 0.0
    %v7198 = vmax.f32 %v7166, 0.0
    %v7199 = vmax.f32 %v7167, 0.0
    %v7200 = vmax.f32 %v7168, 0.0
    %v7201 = vmax.f32 %v7169, 0.0
    %v7202 = vmax.f32 %v7170, 0.0
    %v7203 = vmax.f32 %v7171, 0.0
    %v7204 = vmax.f32 %v7172, 0.0
    %v7205 = vmax.f32 %v7173, 0.0
    %v7206 = vmax.f32 %v7174, 0.0
    %v7207 = vmax.f32 %v7175, 0.0
    %v7208 = vmax.f32 %v7176, 0.0
    %v7209 = vmax.f32 %v7177, 0.0
    %v7210 = vmax.f32 %v7178, 0.0
    %v7211 = vmax.f32 %v7179, 0.0
    %v7212 = vmax.f32 %v7180, 0.0
    %v7213 = vmax.f32 %v7181, 0.0
    %v7214 = vmax.f32 %v7182, 0.0
    %v7215 = vmax.f32 %v7183, 0.0
    %v7216 = vmax.f32 %v7184, 0.0
    %v7217 = vmax.f32 %v7185, 0.0
    %v7218 = vmax.f32 %v7186, 0.0
    %v7219 = vmax.f32 %v7187, 0.0
    %v7220 = vmax.f32 %v7188, 0.0
    %v7221 = vmax.f32 %v7189, 0.0
    %v7222 = vmax.f32 %v7190, 0.0
    %v7223 = vmax.f32 %v7191, 0.0
    %v7224 = vmax.f32 %v7192, 0.0
    %v7225 = vmax.f32 %v7193, 0.0
    %7226 = vst [vmem:[#allocation2 + $0x10] sm:$0xff] %v7194
    %7227 = vst [vmem:[#allocation2 + $0x18] sm:$0xff] %v7195
    %7228 = vst [vmem:[#allocation2 + $0x30] sm:$0xff] %v7196
    %7229 = vst [vmem:[#allocation2 + $0x38] sm:$0xff] %v7197
    %7230 = vst [vmem:[#allocation2 + $0x50] sm:$0xff] %v7198
    %7231 = vst [vmem:[#allocation2 + $0x58] sm:$0xff] %v7199
    %7232 = vst [vmem:[#allocation2 + $0x70] sm:$0xff] %v7200
    %7233 = vst [vmem:[#allocation2 + $0x78] sm:$0xff] %v7201
    %7234 = vst [vmem:[#allocation2 + $0x90] sm:$0xff] %v7202
    %7235 = vst [vmem:[#allocation2 + $0x98] sm:$0xff] %v7203
    %7236 = vst [vmem:[#allocation2 + $0xb0] sm:$0xff] %v7204
    %7237 = vst [vmem:[#allocation2 + $0xb8] sm:$0xff] %v7205
    %7238 = vst [vmem:[#allocation2 + $0xd0] sm:$0xff] %v7206
    %7239 = vst [vmem:[#allocation2 + $0xd8] sm:$0xff] %v7207
    %7240 = vst [vmem:[#allocation2 + $0xf0] sm:$0xff] %v7208
    %7241 = vst [vmem:[#allocation2 + $0xf8] sm:$0xff] %v7209
    %7242 = vst [vmem:[#allocation2 + $0x110] sm:$0xff] %v7210
    %7243 = vst [vmem:[#allocation2 + $0x118] sm:$0xff] %v7211
    %7244 = vst [vmem:[#allocation2 + $0x130] sm:$0xff] %v7212
    %7245 = vst [vmem:[#allocation2 + $0x138] sm:$0xff] %v7213
    %7246 = vst [vmem:[#allocation2 + $0x150] sm:$0xff] %v7214
    %7247 = vst [vmem:[#allocation2 + $0x158] sm:$0xff] %v7215
    %7248 = vst [vmem:[#allocation2 + $0x170] sm:$0xff] %v7216
    %7249 = vst [vmem:[#allocation2 + $0x178] sm:$0xff] %v7217
    %7250 = vst [vmem:[#allocation2 + $0x190] sm:$0xff] %v7218
    %7251 = vst [vmem:[#allocation2 + $0x198] sm:$0xff] %v7219
    %7252 = vst [vmem:[#allocation2 + $0x1b0] sm:$0xff] %v7220
    %7253 = vst [vmem:[#allocation2 + $0x1b8] sm:$0xff] %v7221
    %7254 = vst [vmem:[#allocation2 + $0x1d0] sm:$0xff] %v7222
    %7255 = vst [vmem:[#allocation2 + $0x1d8] sm:$0xff] %v7223
    %7256 = vst [vmem:[#allocation2 + $0x1f0] sm:$0xff] %v7224
    %7257 = vst [vmem:[#allocation2 + $0x1f8] sm:$0xff] %v7225
    %v7258 = vld [vmem:[#allocation2] sm:$0xff]
    %v7259 = vld [vmem:[#allocation2 + $0x8] sm:$0xff]
    %v7260 = vld [vmem:[#allocation2 + $0x10] sm:$0xff]
    %v7261 = vld [vmem:[#allocation2 + $0x18] sm:$0xff]
    %v7262 = vld [vmem:[#allocation2 + $0x20] sm:$0xff]
    %v7263 = vld [vmem:[#allocation2 + $0x28] sm:$0xff]
    %v7264 = vld [vmem:[#allocation2 + $0x30] sm:$0xff]
    %v7265 = vld [vmem:[#allocation2 + $0x38] sm:$0xff]
    %v7266 = vld [vmem:[#allocation2 + $0x40] sm:$0xff]
    %v7267 = vld [vmem:[#allocation2 + $0x48] sm:$0xff]
    %v7268 = vld [vmem:[#allocation2 + $0x50] sm:$0xff]
    %v7269 = vld [vmem:[#allocation2 + $0x58] sm:$0xff]
    %v7270 = vld [vmem:[#allocation2 + $0x60] sm:$0xff]
    %v7271 = vld [vmem:[#allocation2 + $0x68] sm:$0xff]
    %v7272 = vld [vmem:[#allocation2 + $0x70] sm:$0xff]
    %v7273 = vld [vmem:[#allocation2 + $0x78] sm:$0xff]
    %v7274 = vld [vmem:[#allocation2 + $0x80] sm:$0xff]
    %v7275 = vld [vmem:[#allocation2 + $0x88] sm:$0xff]
    %v7276 = vld [vmem:[#allocation2 + $0x90] sm:$0xff]
    %v7277 = vld [vmem:[#allocation2 + $0x98] sm:$0xff]
    %v7278 = vld [vmem:[#allocation2 + $0xa0] sm:$0xff]
    %v7279 = vld [vmem:[#allocation2 + $0xa8] sm:$0xff]
    %v7280 = vld [vmem:[#allocation2 + $0xb0] sm:$0xff]
    %v7281 = vld [vmem:[#allocation2 + $0xb8] sm:$0xff]
    %v7282 = vld [vmem:[#allocation2 + $0xc0] sm:$0xff]
    %v7283 = vld [vmem:[#allocation2 + $0xc8] sm:$0xff]
    %v7284 = vld [vmem:[#allocation2 + $0xd0] sm:$0xff]
    %v7285 = vld [vmem:[#allocation2 + $0xd8] sm:$0xff]
    %v7286 = vld [vmem:[#allocation2 + $0xe0] sm:$0xff]
    %v7287 = vld [vmem:[#allocation2 + $0xe8] sm:$0xff]
    %v7288 = vld [vmem:[#allocation2 + $0xf0] sm:$0xff]
    %v7289 = vld [vmem:[#allocation2 + $0xf8] sm:$0xff]
    %v7290 = vld [vmem:[#allocation2 + $0x100] sm:$0xff]
    %v7291 = vld [vmem:[#allocation2 + $0x108] sm:$0xff]
    %v7292 = vld [vmem:[#allocation2 + $0x110] sm:$0xff]
    %v7293 = vld [vmem:[#allocation2 + $0x118] sm:$0xff]
    %v7294 = vld [vmem:[#allocation2 + $0x120] sm:$0xff]
    %v7295 = vld [vmem:[#allocation2 + $0x128] sm:$0xff]
    %v7296 = vld [vmem:[#allocation2 + $0x130] sm:$0xff]
    %v7297 = vld [vmem:[#allocation2 + $0x138] sm:$0xff]
    %v7298 = vld [vmem:[#allocation2 + $0x140] sm:$0xff]
    %v7299 = vld [vmem:[#allocation2 + $0x148] sm:$0xff]
    %v7300 = vld [vmem:[#allocation2 + $0x150] sm:$0xff]
    %v7301 = vld [vmem:[#allocation2 + $0x158] sm:$0xff]
    %v7302 = vld [vmem:[#allocation2 + $0x160] sm:$0xff]
    %v7303 = vld [vmem:[#allocation2 + $0x168] sm:$0xff]
    %v7304 = vld [vmem:[#allocation2 + $0x170] sm:$0xff]
    %v7305 = vld [vmem:[#allocation2 + $0x178] sm:$0xff]
    %v7306 = vld [vmem:[#allocation2 + $0x180] sm:$0xff]
    %v7307 = vld [vmem:[#allocation2 + $0x188] sm:$0xff]
    %v7308 = vld [vmem:[#allocation2 + $0x190] sm:$0xff]
    %v7309 = vld [vmem:[#allocation2 + $0x198] sm:$0xff]
    %v7310 = vld [vmem:[#allocation2 + $0x1a0] sm:$0xff]
    %v7311 = vld [vmem:[#allocation2 + $0x1a8] sm:$0xff]
    %v7312 = vld [vmem:[#allocation2 + $0x1b0] sm:$0xff]
    %v7313 = vld [vmem:[#allocation2 + $0x1b8] sm:$0xff]
    %v7314 = vld [vmem:[#allocation2 + $0x1c0] sm:$0xff]
    %v7315 = vld [vmem:[#allocation2 + $0x1c8] sm:$0xff]
    %v7316 = vld [vmem:[#allocation2 + $0x1d0] sm:$0xff]
    %v7317 = vld [vmem:[#allocation2 + $0x1d8] sm:$0xff]
    %v7318 = vld [vmem:[#allocation2 + $0x1e0] sm:$0xff]
    %v7319 = vld [vmem:[#allocation2 + $0x1e8] sm:$0xff]
    %v7320 = vld [vmem:[#allocation2 + $0x1f0] sm:$0xff]
    %v7321 = vld [vmem:[#allocation2 + $0x1f8] sm:$0xff]
    %v7322 = vld [vmem:[%s10] sm:$0xff]
    %v7323 = vld [vmem:[%s10 + $0x8] sm:$0xff]
    %v7324 = vld [vmem:[%s11] sm:$0xff]
    %v7325 = vld [vmem:[%s11 + $0x8] sm:$0xff]
    %7326 = vmatprep.subr.mxu0 %v7259
    %7327 = vmatpush1.msra.mxu0 %v7258
    %7328 = vmatprep.subr.mxu0 %v7263
    %7329 = vmatpush1.msra.mxu0 %v7262
    %7330 = vmatprep.subr.mxu0 %v7267
    %7331 = vmatpush1.msra.mxu0 %v7266
    %7332 = vmatprep.subr.mxu0 %v7271
    %7333 = vmatpush1.msra.mxu0 %v7270
    %7334 = vmatprep.subr.mxu0 %v7275
    %7335 = vmatpush1.msra.mxu0 %v7274
    %7336 = vmatprep.subr.mxu0 %v7279
    %7337 = vmatpush1.msra.mxu0 %v7278
    %7338 = vmatprep.subr.mxu0 %v7283
    %7339 = vmatpush1.msra.mxu0 %v7282
    %7340 = vmatprep.subr.mxu0 %v7287
    %7341 = vmatpush1.msra.mxu0 %v7286
    %7342 = vmatprep.subr.mxu0 %v7291
    %7343 = vmatpush1.msra.mxu0 %v7290
    %7344 = vmatprep.subr.mxu0 %v7295
    %7345 = vmatpush1.msra.mxu0 %v7294
    %7346 = vmatprep.subr.mxu0 %v7299
    %7347 = vmatpush1.msra.mxu0 %v7298
    %7348 = vmatprep.subr.mxu0 %v7303
    %7349 = vmatpush1.msra.mxu0 %v7302
    %7350 = vmatprep.subr.mxu0 %v7307
    %7351 = vmatpush1.msra.mxu0 %v7306
    %7352 = vmatprep.subr.mxu0 %v7311
    %7353 = vmatpush1.msra.mxu0 %v7310
    %7354 = vmatprep.subr.mxu0 %v7315
    %7355 = vmatpush1.msra.mxu0 %v7314
    %7356 = vmatprep.subr.mxu0 %v7319
    %7357 = vmatpush1.msra.mxu0 %v7318
    %7358 = vmatprep.subr.mxu0 0.0
    %7359 = vmatpush1.msra.mxu0 0.0
    %7360 = vmatprep.subr.mxu0 0.0
    %7361 = vmatpush1.msra.mxu0 0.0
    %7362 = vmatprep.subr.mxu0 0.0
    %7363 = vmatpush1.msra.mxu0 0.0
    %7364 = vmatprep.subr.mxu0 0.0
    %7365 = vmatpush1.msra.mxu0 0.0
    %7366 = vmatprep.subr.mxu0 0.0
    %7367 = vmatpush1.msra.mxu0 0.0
    %7368 = vmatprep.subr.mxu0 0.0
    %7369 = vmatpush1.msra.mxu0 0.0
    %7370 = vmatprep.subr.mxu0 0.0
    %7371 = vmatpush1.msra.mxu0 0.0
    %7372 = vmatprep.subr.mxu0 0.0
    %7373 = vmatpush1.msra.mxu0 0.0
    %7374 = vmatprep.subr.mxu0 0.0
    %7375 = vmatpush1.msra.mxu0 0.0
    %7376 = vmatprep.subr.mxu0 0.0
    %7377 = vmatpush1.msra.mxu0 0.0
    %7378 = vmatprep.subr.mxu0 0.0
    %7379 = vmatpush1.msra.mxu0 0.0
    %7380 = vmatprep.subr.mxu0 0.0
    %7381 = vmatpush1.msra.mxu0 0.0
    %7382 = vmatprep.subr.mxu0 0.0
    %7383 = vmatpush1.msra.mxu0 0.0
    %7384 = vmatprep.subr.mxu0 0.0
    %7385 = vmatpush1.msra.mxu0 0.0
    %7386 = vmatprep.subr.mxu0 0.0
    %7387 = vmatpush1.msra.mxu0 0.0
    %7388 = vmatprep.subr.mxu0 0.0
    %7389 = vmatpush1.msra.mxu0 0.0
    %7390 = vmatprep.mubr.f32.mxu0 0.0
    %7391 = vmatmul.mubr.f32.gmra.mrb[0].mxu0 %v7324
    %v7392 = vpop.f32.mrb[0].mxu0
    %v7393 = vadd.f32 0.0, %v7392
    %v7394 = vpop.f32.mrb[0].mxu0
    %v7395 = vadd.f32 0.0, %v7394
    %7396 = vmatprep.mubr.f32.mxu0 0.0
    %7397 = vmatmul.mubr.f32.gmra.mrb[0].mxu0 %v7325
    %v7398 = vpop.f32.mrb[0].mxu0
    %v7399 = vadd.f32 0.0, %v7398
    %v7400 = vpop.f32.mrb[0].mxu0
    %v7401 = vadd.f32 0.0, %v7400
    %7402 = vdwg.mxu0
    %7403 = vmatprep.subr.mxu0 %v7261
    %7404 = vmatpush1.msra.mxu0 %v7260
    %7405 = vmatprep.subr.mxu0 %v7265
    %7406 = vmatpush1.msra.mxu0 %v7264
    %7407 = vmatprep.subr.mxu0 %v7269
    %7408 = vmatpush1.msra.mxu0 %v7268
    %7409 = vmatprep.subr.mxu0 %v7273
    %7410 = vmatpush1.msra.mxu0 %v7272
    %7411 = vmatprep.subr.mxu0 %v7277
    %7412 = vmatpush1.msra.mxu0 %v7276
    %7413 = vmatprep.subr.mxu0 %v7281
    %7414 = vmatpush1.msra.mxu0 %v7280
    %7415 = vmatprep.subr.mxu0 %v7285
    %7416 = vmatpush1.msra.mxu0 %v7284
    %7417 = vmatprep.subr.mxu0 %v7289
    %7418 = vmatpush1.msra.mxu0 %v7288
    %7419 = vmatprep.subr.mxu0 %v7293
    %7420 = vmatpush1.msra.mxu0 %v7292
    %7421 = vmatprep.subr.mxu0 %v7297
    %7422 = vmatpush1.msra.mxu0 %v7296
    %7423 = vmatprep.subr.mxu0 %v7301
    %7424 = vmatpush1.msra.mxu0 %v7300
    %7425 = vmatprep.subr.mxu0 %v7305
    %7426 = vmatpush1.msra.mxu0 %v7304
    %7427 = vmatprep.subr.mxu0 %v7309
    %7428 = vmatpush1.msra.mxu0 %v7308
    %7429 = vmatprep.subr.mxu0 %v7313
    %7430 = vmatpush1.msra.mxu0 %v7312
    %7431 = vmatprep.subr.mxu0 %v7317
    %7432 = vmatpush1.msra.mxu0 %v7316
    %7433 = vmatprep.subr.mxu0 %v7321
    %7434 = vmatpush1.msra.mxu0 %v7320
    %7435 = vmatprep.subr.mxu0 0.0
    %7436 = vmatpush1.msra.mxu0 0.0
    %7437 = vmatprep.subr.mxu0 0.0
    %7438 = vmatpush1.msra.mxu0 0.0
    %7439 = vmatprep.subr.mxu0 0.0
    %7440 = vmatpush1.msra.mxu0 0.0
    %7441 = vmatprep.subr.mxu0 0.0
    %7442 = vmatpush1.msra.mxu0 0.0
    %7443 = vmatprep.subr.mxu0 0.0
    %7444 = vmatpush1.msra.mxu0 0.0
    %7445 = vmatprep.subr.mxu0 0.0
    %7446 = vmatpush1.msra.mxu0 0.0
    %7447 = vmatprep.subr.mxu0 0.0
    %7448 = vmatpush1.msra.mxu0 0.0
    %7449 = vmatprep.subr.mxu0 0.0
    %7450 = vmatpush1.msra.mxu0 0.0
    %7451 = vmatprep.subr.mxu0 0.0
    %7452 = vmatpush1.msra.mxu0 0.0
    %7453 = vmatprep.subr.mxu0 0.0
    %7454 = vmatpush1.msra.mxu0 0.0
    %7455 = vmatprep.subr.mxu0 0.0
    %7456 = vmatpush1.msra.mxu0 0.0
    %7457 = vmatprep.subr.mxu0 0.0
    %7458 = vmatpush1.msra.mxu0 0.0
    %7459 = vmatprep.subr.mxu0 0.0
    %7460 = vmatpush1.msra.mxu0 0.0
    %7461 = vmatprep.subr.mxu0 0.0
    %7462 = vmatpush1.msra.mxu0 0.0
    %7463 = vmatprep.subr.mxu0 0.0
    %7464 = vmatpush1.msra.mxu0 0.0
    %7465 = vmatprep.subr.mxu0 0.0
    %7466 = vmatpush1.msra.mxu0 0.0
    %7467 = vmatprep.mubr.f32.mxu0 0.0
    %7468 = vmatmul.mubr.f32.gmra.mrb[0].mxu0 %v7324
    %v7469 = vpop.f32.mrb[0].mxu0
    %v7470 = vadd.f32 0.0, %v7469
    %v7471 = vpop.f32.mrb[0].mxu0
    %v7472 = vadd.f32 0.0, %v7471
    %7473 = vmatprep.mubr.f32.mxu0 0.0
    %7474 = vmatmul.mubr.f32.gmra.mrb[0].mxu0 %v7325
    %v7475 = vpop.f32.mrb[0].mxu0
    %v7476 = vadd.f32 0.0, %v7475
    %v7477 = vpop.f32.mrb[0].mxu0
    %v7478 = vadd.f32 0.0, %v7477
    %7479 = vdwg.mxu0
    %7480 = vmatprep.subr.mxu0 %v622
    %7481 = vmatpush1.msra.mxu0 %v621
    %7482 = vmatprep.subr.mxu0 %v626
    %7483 = vmatpush1.msra.mxu0 %v625
    %7484 = vmatprep.subr.mxu0 %v630
    %7485 = vmatpush1.msra.mxu0 %v629
    %7486 = vmatprep.subr.mxu0 %v634
    %7487 = vmatpush1.msra.mxu0 %v633
    %7488 = vmatprep.subr.mxu0 %v638
    %7489 = vmatpush1.msra.mxu0 %v637
    %7490 = vmatprep.subr.mxu0 %v642
    %7491 = vmatpush1.msra.mxu0 %v641
    %7492 = vmatprep.subr.mxu0 %v646
    %7493 = vmatpush1.msra.mxu0 %v645
    %7494 = vmatprep.subr.mxu0 %v650
    %7495 = vmatpush1.msra.mxu0 %v649
    %7496 = vmatprep.subr.mxu0 %v654
    %7497 = vmatpush1.msra.mxu0 %v653
    %7498 = vmatprep.subr.mxu0 %v658
    %7499 = vmatpush1.msra.mxu0 %v657
    %7500 = vmatprep.subr.mxu0 %v662
    %7501 = vmatpush1.msra.mxu0 %v661
    %7502 = vmatprep.subr.mxu0 %v666
    %7503 = vmatpush1.msra.mxu0 %v665
    %7504 = vmatprep.subr.mxu0 %v670
    %7505 = vmatpush1.msra.mxu0 %v669
    %7506 = vmatprep.subr.mxu0 %v674
    %7507 = vmatpush1.msra.mxu0 %v673
    %7508 = vmatprep.subr.mxu0 %v678
    %7509 = vmatpush1.msra.mxu0 %v677
    %7510 = vmatprep.subr.mxu0 %v682
    %7511 = vmatpush1.msra.mxu0 %v681
    %7512 = vmatprep.subr.mxu0 0.0
    %7513 = vmatpush1.msra.mxu0 0.0
    %7514 = vmatprep.subr.mxu0 0.0
    %7515 = vmatpush1.msra.mxu0 0.0
    %7516 = vmatprep.subr.mxu0 0.0
    %7517 = vmatpush1.msra.mxu0 0.0
    %7518 = vmatprep.subr.mxu0 0.0
    %7519 = vmatpush1.msra.mxu0 0.0
    %7520 = vmatprep.subr.mxu0 0.0
    %7521 = vmatpush1.msra.mxu0 0.0
    %7522 = vmatprep.subr.mxu0 0.0
    %7523 = vmatpush1.msra.mxu0 0.0
    %7524 = vmatprep.subr.mxu0 0.0
    %7525 = vmatpush1.msra.mxu0 0.0
    %7526 = vmatprep.subr.mxu0 0.0
    %7527 = vmatpush1.msra.mxu0 0.0
    %7528 = vmatprep.subr.mxu0 0.0
    %7529 = vmatpush1.msra.mxu0 0.0
    %7530 = vmatprep.subr.mxu0 0.0
    %7531 = vmatpush1.msra.mxu0 0.0
    %7532 = vmatprep.subr.mxu0 0.0
    %7533 = vmatpush1.msra.mxu0 0.0
    %7534 = vmatprep.subr.mxu0 0.0
    %7535 = vmatpush1.msra.mxu0 0.0
    %7536 = vmatprep.subr.mxu0 0.0
    %7537 = vmatpush1.msra.mxu0 0.0
    %7538 = vmatprep.subr.mxu0 0.0
    %7539 = vmatpush1.msra.mxu0 0.0
    %7540 = vmatprep.subr.mxu0 0.0
    %7541 = vmatpush1.msra.mxu0 0.0
    %7542 = vmatprep.subr.mxu0 0.0
    %7543 = vmatpush1.msra.mxu0 0.0
    %7544 = vmatprep.mubr.f32.mxu0 0.0
    %7545 = vmatmul.mubr.f32.gmra.mrb[0].mxu0 %v7322
    %v7546 = vpop.f32.mrb[0].mxu0
    %v7547 = vadd.f32 %v7393, %v7546
    %v7548 = vpop.f32.mrb[0].mxu0
    %v7549 = vadd.f32 %v7395, %v7548
    %7550 = vmatprep.mubr.f32.mxu0 0.0
    %7551 = vmatmul.mubr.f32.gmra.mrb[0].mxu0 %v7323
    %v7552 = vpop.f32.mrb[0].mxu0
    %v7553 = vadd.f32 %v7399, %v7552
    %v7554 = vpop.f32.mrb[0].mxu0
    %v7555 = vadd.f32 %v7401, %v7554
    %7556 = vdwg.mxu0
    %7557 = vmatprep.subr.mxu0 %v624
    %7558 = vmatpush1.msra.mxu0 %v623
    %7559 = vmatprep.subr.mxu0 %v628
    %7560 = vmatpush1.msra.mxu0 %v627
    %7561 = vmatprep.subr.mxu0 %v632
    %7562 = vmatpush1.msra.mxu0 %v631
    %7563 = vmatprep.subr.mxu0 %v636
    %7564 = vmatpush1.msra.mxu0 %v635
    %7565 = vmatprep.subr.mxu0 %v640
    %7566 = vmatpush1.msra.mxu0 %v639
    %7567 = vmatprep.subr.mxu0 %v644
    %7568 = vmatpush1.msra.mxu0 %v643
    %7569 = vmatprep.subr.mxu0 %v648
    %7570 = vmatpush1.msra.mxu0 %v647
    %7571 = vmatprep.subr.mxu0 %v652
    %7572 = vmatpush1.msra.mxu0 %v651
    %7573 = vmatprep.subr.mxu0 %v656
    %7574 = vmatpush1.msra.mxu0 %v655
    %7575 = vmatprep.subr.mxu0 %v660
    %7576 = vmatpush1.msra.mxu0 %v659
    %7577 = vmatprep.subr.mxu0 %v664
    %7578 = vmatpush1.msra.mxu0 %v663
    %7579 = vmatprep.subr.mxu0 %v668
    %7580 = vmatpush1.msra.mxu0 %v667
    %7581 = vmatprep.subr.mxu0 %v672
    %7582 = vmatpush1.msra.mxu0 %v671
    %7583 = vmatprep.subr.mxu0 %v676
    %7584 = vmatpush1.msra.mxu0 %v675
    %7585 = vmatprep.subr.mxu0 %v680
    %7586 = vmatpush1.msra.mxu0 %v679
    %7587 = vmatprep.subr.mxu0 %v684
    %7588 = vmatpush1.msra.mxu0 %v683
    %7589 = vmatprep.subr.mxu0 0.0
    %7590 = vmatpush1.msra.mxu0 0.0
    %7591 = vmatprep.subr.mxu0 0.0
    %7592 = vmatpush1.msra.mxu0 0.0
    %7593 = vmatprep.subr.mxu0 0.0
    %7594 = vmatpush1.msra.mxu0 0.0
    %7595 = vmatprep.subr.mxu0 0.0
    %7596 = vmatpush1.msra.mxu0 0.0
    %7597 = vmatprep.subr.mxu0 0.0
    %7598 = vmatpush1.msra.mxu0 0.0
    %7599 = vmatprep.subr.mxu0 0.0
    %7600 = vmatpush1.msra.mxu0 0.0
    %7601 = vmatprep.subr.mxu0 0.0
    %7602 = vmatpush1.msra.mxu0 0.0
    %7603 = vmatprep.subr.mxu0 0.0
    %7604 = vmatpush1.msra.mxu0 0.0
    %7605 = vmatprep.subr.mxu0 0.0
    %7606 = vmatpush1.msra.mxu0 0.0
    %7607 = vmatprep.subr.mxu0 0.0
    %7608 = vmatpush1.msra.mxu0 0.0
    %7609 = vmatprep.subr.mxu0 0.0
    %7610 = vmatpush1.msra.mxu0 0.0
    %7611 = vmatprep.subr.mxu0 0.0
    %7612 = vmatpush1.msra.mxu0 0.0
    %7613 = vmatprep.subr.mxu0 0.0
    %7614 = vmatpush1.msra.mxu0 0.0
    %7615 = vmatprep.subr.mxu0 0.0
    %7616 = vmatpush1.msra.mxu0 0.0
    %7617 = vmatprep.subr.mxu0 0.0
    %7618 = vmatpush1.msra.mxu0 0.0
    %7619 = vmatprep.subr.mxu0 0.0
    %7620 = vmatpush1.msra.mxu0 0.0
    %7621 = vmatprep.mubr.f32.mxu0 0.0
    %7622 = vmatmul.mubr.f32.gmra.mrb[0].mxu0 %v7322
    %v7623 = vpop.f32.mrb[0].mxu0
    %v7624 = vadd.f32 %v7470, %v7623
    %v7625 = vpop.f32.mrb[0].mxu0
    %v7626 = vadd.f32 %v7472, %v7625
    %7627 = vmatprep.mubr.f32.mxu0 0.0
    %7628 = vmatmul.mubr.f32.gmra.mrb[0].mxu0 %v7323
    %v7629 = vpop.f32.mrb[0].mxu0
    %v7630 = vadd.f32 %v7476, %v7629
    %v7631 = vpop.f32.mrb[0].mxu0
    %v7632 = vadd.f32 %v7478, %v7631
    %7633 = vdwg.mxu0
    %v7634 = vld [vmem:[%s12] sm:$0xff]
    %v7635 = vld [vmem:[%s12 + $0x8] sm:$0xff]
    %7637 = vset.pattern.permute.xlu0 0
    %7638 = vperm.xlu0 %7637, %v7634
    %v7639 = vpop.permute.xlu0 %7638
    %7642 = vset.pattern.permute.xlu0 0
    %7643 = vperm.xlu0 %7642, %v7635
    %v7644 = vpop.permute.xlu0 %7643
    %v7646 = vadd.f32 %v7547, %v7639
    %v7647 = vadd.f32 %v7549, %v7639
    %v7648 = vadd.f32 %v7624, %v7639
    %v7649 = vadd.f32 %v7626, %v7639
    %v7650 = vadd.f32 %v7553, %v7644
    %v7651 = vadd.f32 %v7555, %v7644
    %v7652 = vadd.f32 %v7630, %v7644
    %v7653 = vadd.f32 %v7632, %v7644
    %v7654 = vmax.f32 %v7646, 0.0
    %v7655 = vmax.f32 %v7647, 0.0
    %v7656 = vmax.f32 %v7648, 0.0
    %v7657 = vmax.f32 %v7649, 0.0
    %v7658 = vmax.f32 %v7650, 0.0
    %v7659 = vmax.f32 %v7651, 0.0
    %v7660 = vmax.f32 %v7652, 0.0
    %v7661 = vmax.f32 %v7653, 0.0
    %v7662 = vld [vmem:[%s13] sm:$0xff]
    %v7663 = vld [vmem:[%s14] sm:$0xff]
    %7665 = vset.pattern.permute.xlu0 0
    %7666 = vperm.xlu0 %7665, %v7663
    %v7667 = vpop.permute.xlu0 %7666
    %v7670 = vsel %vm2003, %v7662, 0
    %7672 = vmatprep.subr.mxu0 %v7655
    %7673 = vmatpush1.msra.mxu0 %v7654
    %7674 = vmatprep.subr.mxu0 %v7659
    %7675 = vmatpush1.msra.mxu0 %v7658
    %7676 = vmatprep.subr.mxu0 0.0
    %7677 = vmatpush1.msra.mxu0 0.0
    %7678 = vmatprep.subr.mxu0 0.0
    %7679 = vmatpush1.msra.mxu0 0.0
    %7680 = vmatprep.subr.mxu0 0.0
    %7681 = vmatpush1.msra.mxu0 0.0
    %7682 = vmatprep.subr.mxu0 0.0
    %7683 = vmatpush1.msra.mxu0 0.0
    %7684 = vmatprep.subr.mxu0 0.0
    %7685 = vmatpush1.msra.mxu0 0.0
    %7686 = vmatprep.subr.mxu0 0.0
    %7687 = vmatpush1.msra.mxu0 0.0
    %7688 = vmatprep.subr.mxu0 0.0
    %7689 = vmatpush1.msra.mxu0 0.0
    %7690 = vmatprep.subr.mxu0 0.0
    %7691 = vmatpush1.msra.mxu0 0.0
    %7692 = vmatprep.subr.mxu0 0.0
    %7693 = vmatpush1.msra.mxu0 0.0
    %7694 = vmatprep.subr.mxu0 0.0
    %7695 = vmatpush1.msra.mxu0 0.0
    %7696 = vmatprep.subr.mxu0 0.0
    %7697 = vmatpush1.msra.mxu0 0.0
    %7698 = vmatprep.subr.mxu0 0.0
    %7699 = vmatpush1.msra.mxu0 0.0
    %7700 = vmatprep.subr.mxu0 0.0
    %7701 = vmatpush1.msra.mxu0 0.0
    %7702 = vmatprep.subr.mxu0 0.0
    %7703 = vmatpush1.msra.mxu0 0.0
    %7704 = vmatprep.subr.mxu0 0.0
    %7705 = vmatpush1.msra.mxu0 0.0
    %7706 = vmatprep.subr.mxu0 0.0
    %7707 = vmatpush1.msra.mxu0 0.0
    %7708 = vmatprep.subr.mxu0 0.0
    %7709 = vmatpush1.msra.mxu0 0.0
    %7710 = vmatprep.subr.mxu0 0.0
    %7711 = vmatpush1.msra.mxu0 0.0
    %7712 = vmatprep.subr.mxu0 0.0
    %7713 = vmatpush1.msra.mxu0 0.0
    %7714 = vmatprep.subr.mxu0 0.0
    %7715 = vmatpush1.msra.mxu0 0.0
    %7716 = vmatprep.subr.mxu0 0.0
    %7717 = vmatpush1.msra.mxu0 0.0
    %7718 = vmatprep.subr.mxu0 0.0
    %7719 = vmatpush1.msra.mxu0 0.0
    %7720 = vmatprep.subr.mxu0 0.0
    %7721 = vmatpush1.msra.mxu0 0.0
    %7722 = vmatprep.subr.mxu0 0.0
    %7723 = vmatpush1.msra.mxu0 0.0
    %7724 = vmatprep.subr.mxu0 0.0
    %7725 = vmatpush1.msra.mxu0 0.0
    %7726 = vmatprep.subr.mxu0 0.0
    %7727 = vmatpush1.msra.mxu0 0.0
    %7728 = vmatprep.subr.mxu0 0.0
    %7729 = vmatpush1.msra.mxu0 0.0
    %7730 = vmatprep.subr.mxu0 0.0
    %7731 = vmatpush1.msra.mxu0 0.0
    %7732 = vmatprep.subr.mxu0 0.0
    %7733 = vmatpush1.msra.mxu0 0.0
    %7734 = vmatprep.subr.mxu0 0.0
    %7735 = vmatpush1.msra.mxu0 0.0
    %7736 = vmatprep.mubr.f32.mxu0 0.0
    %7737 = vmatmul.mubr.f32.gmra.mrb[0].mxu0 %v7670
    %v7738 = vpop.f32.mrb[0].mxu0
    %v7739 = vadd.f32 %v7667, %v7738
    %v7740 = vpop.f32.mrb[0].mxu0
    %v7741 = vadd.f32 %v7667, %v7740
    %7742 = vdwg.mxu0
    %7743 = vmatprep.subr.mxu0 %v7657
    %7744 = vmatpush1.msra.mxu0 %v7656
    %7745 = vmatprep.subr.mxu0 %v7661
    %7746 = vmatpush1.msra.mxu0 %v7660
    %7747 = vmatprep.subr.mxu0 0.0
    %7748 = vmatpush1.msra.mxu0 0.0
    %7749 = vmatprep.subr.mxu0 0.0
    %7750 = vmatpush1.msra.mxu0 0.0
    %7751 = vmatprep.subr.mxu0 0.0
    %7752 = vmatpush1.msra.mxu0 0.0
    %7753 = vmatprep.subr.mxu0 0.0
    %7754 = vmatpush1.msra.mxu0 0.0
    %7755 = vmatprep.subr.mxu0 0.0
    %7756 = vmatpush1.msra.mxu0 0.0
    %7757 = vmatprep.subr.mxu0 0.0
    %7758 = vmatpush1.msra.mxu0 0.0
    %7759 = vmatprep.subr.mxu0 0.0
    %7760 = vmatpush1.msra.mxu0 0.0
    %7761 = vmatprep.subr.mxu0 0.0
    %7762 = vmatpush1.msra.mxu0 0.0
    %7763 = vmatprep.subr.mxu0 0.0
    %7764 = vmatpush1.msra.mxu0 0.0
    %7765 = vmatprep.subr.mxu0 0.0
    %7766 = vmatpush1.msra.mxu0 0.0
    %7767 = vmatprep.subr.mxu0 0.0
    %7768 = vmatpush1.msra.mxu0 0.0
    %7769 = vmatprep.subr.mxu0 0.0
    %7770 = vmatpush1.msra.mxu0 0.0
    %7771 = vmatprep.subr.mxu0 0.0
    %7772 = vmatpush1.msra.mxu0 0.0
    %7773 = vmatprep.subr.mxu0 0.0
    %7774 = vmatpush1.msra.mxu0 0.0
    %7775 = vmatprep.subr.mxu0 0.0
    %7776 = vmatpush1.msra.mxu0 0.0
    %7777 = vmatprep.subr.mxu0 0.0
    %7778 = vmatpush1.msra.mxu0 0.0
    %7779 = vmatprep.subr.mxu0 0.0
    %7780 = vmatpush1.msra.mxu0 0.0
    %7781 = vmatprep.subr.mxu0 0.0
    %7782 = vmatpush1.msra.mxu0 0.0
    %7783 = vmatprep.subr.mxu0 0.0
    %7784 = vmatpush1.msra.mxu0 0.0
    %7785 = vmatprep.subr.mxu0 0.0
    %7786 = vmatpush1.msra.mxu0 0.0
    %7787 = vmatprep.subr.mxu0 0.0
    %7788 = vmatpush1.msra.mxu0 0.0
    %7789 = vmatprep.subr.mxu0 0.0
    %7790 = vmatpush1.msra.mxu0 0.0
    %7791 = vmatprep.subr.mxu0 0.0
    %7792 = vmatpush1.msra.mxu0 0.0
    %7793 = vmatprep.subr.mxu0 0.0
    %7794 = vmatpush1.msra.mxu0 0.0
    %7795 = vmatprep.subr.mxu0 0.0
    %7796 = vmatpush1.msra.mxu0 0.0
    %7797 = vmatprep.subr.mxu0 0.0
    %7798 = vmatpush1.msra.mxu0 0.0
    %7799 = vmatprep.subr.mxu0 0.0
    %7800 = vmatpush1.msra.mxu0 0.0
    %7801 = vmatprep.subr.mxu0 0.0
    %7802 = vmatpush1.msra.mxu0 0.0
    %7803 = vmatprep.subr.mxu0 0.0
    %7804 = vmatpush1.msra.mxu0 0.0
    %7805 = vmatprep.subr.mxu0 0.0
    %7806 = vmatpush1.msra.mxu0 0.0
    %7807 = vmatprep.mubr.f32.mxu0 0.0
    %7808 = vmatmul.mubr.f32.gmra.mrb[0].mxu0 %v7670
    %v7809 = vpop.f32.mrb[0].mxu0
    %v7810 = vadd.f32 %v7667, %v7809
    %v7811 = vpop.f32.mrb[0].mxu0
    %v7812 = vadd.f32 %v7667, %v7811
    %7813 = vdwg.mxu0
    %7814 = vst [vmem:[#allocation11] sm:$0xff] %v7739
    %7815 = vst [vmem:[#allocation11 + $0x8] sm:$0xff] %v7741
    %7816 = vst [vmem:[#allocation11 + $0x10] sm:$0xff] %v7810
    %7817 = vst [vmem:[#allocation11 + $0x18] sm:$0xff] %v7812
    // Predicated region
    $region78: #{tpu_custom_call.1} parent=1 // pred_check
      _
    $region79: #{tpu_custom_call.1} parent=1 // pred_check_branch
      %7819 = sbr.rel (0) target = $region81
    $region80: #{tpu_custom_call.1} parent=1 // pred_region
      %s7821 = ssub.s32 512, 512
      %7822 = vsyncadd [#allocation5], %s7821
      %s7824 = sshll.u32 [#allocation11], 4
      %s7825 = int_to_ptr.vmem [resolvable:$true] %s7824
      %7827 = dma.vmem_to_hbm [thread:$0]  %s7825, 512, %s15, [#allocation5]
    $region81: #{tpu_custom_call.1} parent=1 // pred_fallthru
      _
    // Predicated region
    $region82: #{tpu_custom_call.1} parent=1 // pred_check
      _
    $region83: #{tpu_custom_call.1} parent=1 // pred_check_branch
      %7829 = sbr.rel (0) target = $region85
    $region84: #{tpu_custom_call.1} parent=1 // pred_region
      %7830 = dma.done [#allocation5], 512
    $region85: #{tpu_custom_call.1} parent=1 // pred_fallthru
      _
    %7831 = vsyncpa [#allocation4], 1
    %7832 = vsyncpa [#allocation7], 1
    %7833 = vsyncpa [#allocation10], 1
    %7834 = vsyncpa [#allocation5], 1

</llo_original>
